<compile_context>
chip_gen: v5e
topology: v5e:2x2
jax: 0.10.0
libtpu: 0.0.40
codegen_flags: <defaults>
</compile_context>

<pallas_src>
import numpy as np
import jax
import jax.numpy as jnp
from jax import lax
from jax.experimental import pallas as pl
from jax.experimental.pallas import tpu as pltpu


# ----------------------------------------------------------------------------
# TPU generation detection (v7x has 2 TensorCores per chip; v5e/v6e have 1)
# ----------------------------------------------------------------------------
def _is_v7x():
    try:
        kind = jax.devices()[0].device_kind.lower().replace(" ", "")
        return ("v7" in kind) or ("tpu7" in kind)
    except Exception:
        return False


_V7X = _is_v7x()


# ----------------------------------------------------------------------------
# Kernel 1: fused conv3x3(pad=1) + ReLU + maxpool2x2, lane-dense output
# ----------------------------------------------------------------------------
def conv_relu_pool_kernel(patch_ref, w_ref, bias_ref, out_ref):
    # patch_ref: (TG, 64)   4 pooled pixels x their 4x4 padded-input window
    # w_ref    : (64, 512)  block-diag conv weights; 4 pool positions on the
    #                       lane axis as 4 groups of 128
    # bias_ref : (1, 128)   conv bias tiled over the 4 pixels in a group
    # out_ref  : (TG, 128)  relu(maxpool(conv)) for 4 pixels x 32 ch (NHWC)
    y = jnp.dot(patch_ref[...], w_ref[...],
                preferred_element_type=jnp.float32)
    # max over the 4 pool positions (static 128-lane slices -> free selects)
    m = jnp.maximum(jnp.maximum(y[:, 0:128], y[:, 128:256]),
                    jnp.maximum(y[:, 256:384], y[:, 384:512]))
    # relu(max_pos(conv) + b) == max_pos(relu(conv + b))   (monotone)
    out_ref[...] = jnp.maximum(m + bias_ref[...], 0.0)


def _pick_conv_tile(n_rows, min_steps):
    # 144 rows == one sample, so 144 always divides n_rows (= B * 144).
    for tg in (4608, 2304, 1152, 576, 288, 144):
        if n_rows % tg == 0 and n_rows // tg >= min_steps:
            return tg
    return 144


def conv_relu_pool(patches64, w_all, bias128):
    n_rows = patches64.shape[0]          # B * 144
    assert n_rows % 144 == 0
    # Single-TC (v5e/v6e): 1 big grid step is fine; v7x: keep >=2 for megacore.
    tg = _pick_conv_tile(n_rows, min_steps=2 if _V7X else 1)
    assert n_rows % tg == 0
    return pl.pallas_call(
        conv_relu_pool_kernel,
        out_shape=jax.ShapeDtypeStruct((n_rows, 128), jnp.float32),
        grid_spec=pltpu.PrefetchScalarGridSpec(
            num_scalar_prefetch=0,
            grid=(n_rows // tg,),
            in_specs=[
                pl.BlockSpec((tg, 64), lambda i: (i, 0)),
                pl.BlockSpec((64, 512), lambda i: (0, 0)),
                pl.BlockSpec((1, 128), lambda i: (0, 0)),
            ],
            out_specs=pl.BlockSpec((tg, 128), lambda i: (i, 0)),
        ),
        compiler_params=pltpu.CompilerParams(
            dimension_semantics=("parallel",)),
    )(patches64, w_all, bias128)


# ----------------------------------------------------------------------------
# Kernel 2: fused fc1 + ReLU + fc2-partial
#   grid = (nh "parallel", K/tk "arbitrary").
#   nh = 2 on v7x (one 128-wide hidden slice per TensorCore), nh = 1 otherwise.
#   w1 is streamed in bf16; accumulation stays f32 in VMEM scratch.
# ----------------------------------------------------------------------------
def mlp_kernel(x_ref, w1_ref, b1_ref, w2_ref, o_ref, acc_ref):
    k = pl.program_id(1)

    @pl.when(k == 0)
    def _():
        acc_ref[...] = jnp.zeros_like(acc_ref)

    acc_ref[...] += jnp.dot(x_ref[...].astype(jnp.bfloat16), w1_ref[...],
                            preferred_element_type=jnp.float32)

    @pl.when(k == pl.num_programs(1) - 1)
    def _():
        h = jnp.maximum(acc_ref[...] + b1_ref[...], 0.0)        # (B, HB)
        part = jnp.dot(h, w2_ref[...],
                       preferred_element_type=jnp.float32)      # (B, O)
        o_ref[...] = part.reshape(o_ref.shape)


def _pick_k_tile(K):
    for tk in (9216, 6144, 4608, 3072, 2304, 1536, 1152, 768, 512, 384, 256, 128):
        if K % tk == 0:
            return tk
    return K


def mlp(flat, w1, b1, w2):
    # flat: (B, K) f32 in NHWC flatten order; w1: (K, H) bf16; b1: (1, H) f32;
    # w2: (H, O) f32
    B, K = flat.shape
    H = w1.shape[1]
    O = w2.shape[1]
    # Hidden split only pays on v7x's two TensorCores; collapse otherwise.
    nh = 2 if (_V7X and H % 256 == 0) else 1
    assert H % nh == 0
    HB = H // nh
    assert HB % 128 == 0
    tk = _pick_k_tile(K)
    assert K % tk == 0
    return pl.pallas_call(
        mlp_kernel,
        out_shape=jax.ShapeDtypeStruct((nh, B, O), jnp.float32),
        grid_spec=pltpu.PrefetchScalarGridSpec(
            num_scalar_prefetch=0,
            grid=(nh, K // tk),
            in_specs=[
                pl.BlockSpec((B, tk), lambda j, k: (0, k)),
                pl.BlockSpec((tk, HB), lambda j, k: (k, j)),
                pl.BlockSpec((1, HB), lambda j, k: (0, j)),
                pl.BlockSpec((HB, O), lambda j, k: (j, 0)),
            ],
            out_specs=pl.BlockSpec((1, B, O), lambda j, k: (j, 0, 0)),
            scratch_shapes=[pltpu.VMEM((B, HB), jnp.float32)],
        ),
        compiler_params=pltpu.CompilerParams(
            dimension_semantics=("parallel", "arbitrary"),
            vmem_limit_bytes=32 * 1024 * 1024),
    )(flat, w1, b1, w2)


# ----------------------------------------------------------------------------
# One-time weight preparation (OUTSIDE the jitted forward)
# ----------------------------------------------------------------------------
def prepare_params(params):
    conv_w = np.asarray(params["conv_w"], np.float32)   # (32, 1, 3, 3)
    conv_b = np.asarray(params["conv_b"], np.float32)   # (32,)
    fc1_w = np.asarray(params["fc1_w"], np.float32)     # (256, 18432)
    fc1_b = np.asarray(params["fc1_b"], np.float32)     # (256,)
    fc2_w = np.asarray(params["fc2_w"], np.float32)     # (4, 256)
    fc2_b = np.asarray(params["fc2_b"], np.float32)     # (4,)

    # Expanded conv weight per pool position p=2a+b acting on a 4x4 window.
    wexp = np.zeros((4, 16, 32), np.float32)
    for a in range(2):
        for b in range(2):
            p = 2 * a + b
            for dy in range(3):
                for dx in range(3):
                    wexp[p, 4 * (a + dy) + (b + dx), :] = conv_w[:, 0, dy, dx]

    # Block-diagonal over the 4 pooled pixels of a 64-wide patch group; the
    # 4 pool positions are concatenated on the lane axis (512 = 4 x 128).
    w_all = np.zeros((64, 512), np.float32)
    for g in range(4):
        for p in range(4):
            w_all[16 * g:16 * (g + 1),
                  128 * p + 32 * g:128 * p + 32 * (g + 1)] = wexp[p]
    bias128 = np.tile(conv_b, 4).reshape(1, 128)

    # fc1 weight: (256, 18432) with NCHW-flat columns (c*576 + hw)
    #   -> (18432, 256) with rows in the conv kernel's NHWC order (hw*32 + c),
    # then cast ONCE to bf16 (streamed weight; accumulation stays f32).
    w1 = fc1_w.reshape(256, 32, 24 * 24).transpose(2, 1, 0).reshape(24 * 24 * 32, 256)

    return dict(
        w_conv=jnp.asarray(w_all),
        b_conv=jnp.asarray(bias128),
        w1=jnp.asarray(np.ascontiguousarray(w1), dtype=jnp.bfloat16),  # (18432, 256) bf16
        b1=jnp.asarray(fc1_b.reshape(1, 256)),
        w2=jnp.asarray(np.ascontiguousarray(fc2_w.T)),                 # (256, 4) f32
        b2=jnp.asarray(fc2_b),
    )


# ----------------------------------------------------------------------------
# Forward pass (glue: pad, im2col patch grouping, free reshapes)
# ----------------------------------------------------------------------------
def facial_expression_cnn_forward(x, prepped):
    # x: (B, 1, 48, 48) float32, NCHW (PyTorch convention)
    B = x.shape[0]
    xpad = jnp.pad(x[:, 0, :, :], ((0, 0), (1, 1), (1, 1)))       # (B, 50, 50)

    # im2col at pooled-output granularity: each pooled pixel's 4x4 window;
    # 4 consecutive pooled pixels are packed per 64-wide row.
    # TODO(synk): move this im2col inside the conv kernel for large batches.
    cols = []
    for r in range(4):
        for s in range(4):
            cols.append(xpad[:, r::2, s::2][:, :24, :24])
    patches64 = jnp.stack(cols, axis=-1).reshape(B * 144, 64)

    pooled = conv_relu_pool(patches64, prepped["w_conv"], prepped["b_conv"])
    # (B*144, 128) -> (B, 18432): contiguous, free reshape (NHWC flatten order)
    flat = pooled.reshape(B, 24 * 24 * 32)

    partial = mlp(flat, prepped["w1"], prepped["b1"], prepped["w2"])  # (nh, B, 4)
    return partial.sum(axis=0) + prepped["b2"]                        # (B, 4)


# ----------------------------------------------------------------------------
# Pure-JAX f32 reference (correctness check only, original PyTorch layout)
# ----------------------------------------------------------------------------
def reference_forward(x, params):
    conv = lax.conv_general_dilated(
        x, params["conv_w"], window_strides=(1, 1), padding="SAME",
        dimension_numbers=("NCHW", "OIHW", "NCHW"),
        precision=lax.Precision.HIGHEST)
    conv = conv + params["conv_b"][None, :, None, None]
    r = jnp.maximum(conv, 0.0)                                    # (B,32,48,48)
    pooled = r.reshape(r.shape[0], 32, 24, 2, 24, 2).max(axis=(3, 5))
    flat = pooled.reshape(r.shape[0], 32 * 24 * 24)
    h = jnp.maximum(
        jnp.dot(flat, params["fc1_w"].T, precision=lax.Precision.HIGHEST)
        + params["fc1_b"], 0.0)
    return (jnp.dot(h, params["fc2_w"].T, precision=lax.Precision.HIGHEST)
            + params["fc2_b"])


if __name__ == "__main__":
    key = jax.random.PRNGKey(0)
    ks = jax.random.split(key, 7)
    B = 2
    fc_in = 32 * 24 * 24  # 18432, as computed by the dummy pass in __init__

    x = jax.random.normal(ks[0], (B, 1, 48, 48), dtype=jnp.float32)
    params = dict(
        conv_w=jax.random.normal(ks[1], (32, 1, 3, 3), jnp.float32) * 0.1,
        conv_b=jax.random.normal(ks[2], (32,), jnp.float32) * 0.1,
        fc1_w=jax.random.normal(ks[3], (256, fc_in), jnp.float32) * 0.02,
        fc1_b=jax.random.normal(ks[4], (256,), jnp.float32) * 0.02,
        fc2_w=jax.random.normal(ks[5], (4, 256), jnp.float32) * 0.05,
        fc2_b=jax.random.normal(ks[6], (4,), jnp.float32) * 0.05,
    )

    prepped = prepare_params(params)            # one-time weight prep, not jitted
    fwd = jax.jit(facial_expression_cnn_forward)

    out = jax.block_until_ready(fwd(x, prepped))
    assert out.shape == (B, 4), out.shape

    ref = jax.block_until_ready(reference_forward(x, params))
    # bf16-streamed fc1 weight + DEFAULT MXU precision => ~1e-2 level agreement
    # with the pure-f32 reference; tolerance relaxed accordingly.
    assert jnp.allclose(out, ref, rtol=3e-2, atol=3e-2), (out, ref)

    print("KERNEL_OK")
</pallas_src>

<mosaic_0001>
module attributes {stable_mosaic.version = 11 : i64} {
  func.func @conv_relu_pool_kernel(%arg0: i32, %arg1: memref<288x64xf32, #tpu.memory_space<vmem>>, %arg2: memref<64x512xf32, #tpu.memory_space<vmem>>, %arg3: memref<1x128xf32, #tpu.memory_space<vmem>>, %arg4: memref<288x128xf32, #tpu.memory_space<vmem>>) attributes {dimension_semantics = [#tpu.dimension_semantics<parallel>], iteration_bounds = array<i64: 1>, scalar_prefetch = 0 : i64, scratch_operands = 0 : i64, tpu.core_type = #tpu.core_type<tc>, window_params = [{transform_indices = @transform_0, window_bounds = array<i64: 288, 64>}, {pipeline_mode = #tpu.pipeline_mode<synchronous>, transform_indices = @transform_1, window_bounds = array<i64: 64, 512>}, {pipeline_mode = #tpu.pipeline_mode<synchronous>, transform_indices = @transform_2, window_bounds = array<i64: 1, 128>}, {transform_indices = @transform_3, window_bounds = array<i64: 288, 128>}]} {
    %c0 = arith.constant 0 : index
    %c0_0 = arith.constant 0 : index
    %0 = vector.load %arg1[%c0, %c0_0] : memref<288x64xf32, #tpu.memory_space<vmem>>, vector<288x64xf32>
    %c0_1 = arith.constant 0 : index
    %c0_2 = arith.constant 0 : index
    %1 = vector.load %arg2[%c0_1, %c0_2] : memref<64x512xf32, #tpu.memory_space<vmem>>, vector<64x512xf32>
    %cst = arith.constant dense<0.000000e+00> : vector<288x512xf32>
    %2 = tpu.matmul %0, %1, %cst {dimension_numbers = #tpu.dot_dimension_numbers<[1], [0], [0], [1], [0, 0, 1, 1], [], []>} : vector<288x64xf32>, vector<64x512xf32>, vector<288x512xf32> -> vector<288x512xf32>
    %3 = vector.extract_strided_slice %2 {offsets = [0, 0], sizes = [288, 128], strides = [1, 1]} : vector<288x512xf32> to vector<288x128xf32>
    %4 = vector.extract_strided_slice %2 {offsets = [0, 128], sizes = [288, 128], strides = [1, 1]} : vector<288x512xf32> to vector<288x128xf32>
    %5 = arith.maximumf %3, %4 : vector<288x128xf32>
    %6 = vector.extract_strided_slice %2 {offsets = [0, 256], sizes = [288, 128], strides = [1, 1]} : vector<288x512xf32> to vector<288x128xf32>
    %7 = vector.extract_strided_slice %2 {offsets = [0, 384], sizes = [288, 128], strides = [1, 1]} : vector<288x512xf32> to vector<288x128xf32>
    %8 = arith.maximumf %6, %7 : vector<288x128xf32>
    %9 = arith.maximumf %5, %8 : vector<288x128xf32>
    %c0_3 = arith.constant 0 : index
    %c0_4 = arith.constant 0 : index
    %10 = vector.load %arg3[%c0_3, %c0_4] : memref<1x128xf32, #tpu.memory_space<vmem>>, vector<1x128xf32>
    %11 = vector.broadcast %10 : vector<1x128xf32> to vector<288x128xf32>
    %12 = arith.addf %9, %11 : vector<288x128xf32>
    %cst_5 = arith.constant 0.000000e+00 : f32
    %13 = vector.broadcast %cst_5 : f32 to vector<288x128xf32>
    %14 = arith.maximumf %12, %13 : vector<288x128xf32>
    %c0_6 = arith.constant 0 : index
    %c0_7 = arith.constant 0 : index
    %15 = vector.load %arg4[%c0_6, %c0_7] : memref<288x128xf32, #tpu.memory_space<vmem>>, vector<288x128xf32>
    tpu.vector_store %arg4[%c0_6, %c0_7], %14 {strides = array<i32>} : memref<288x128xf32, #tpu.memory_space<vmem>>, vector<288x128xf32>,
    return
  }
  func.func @transform_0(%arg0: i32) -> (i32, i32) {
    %c0_i32 = arith.constant 0 : i32
    %c0_i32_0 = arith.constant 0 : i32
    return %arg0, %c0_i32 : i32, i32
  }
  func.func @transform_1(%arg0: i32) -> (i32, i32) {
    %c0_i32 = arith.constant 0 : i32
    %c0_i32_0 = arith.constant 0 : i32
    %c0_i32_1 = arith.constant 0 : i32
    return %c0_i32, %c0_i32_0 : i32, i32
  }
  func.func @transform_2(%arg0: i32) -> (i32, i32) {
    %c0_i32 = arith.constant 0 : i32
    %c0_i32_0 = arith.constant 0 : i32
    %c0_i32_1 = arith.constant 0 : i32
    return %c0_i32, %c0_i32_0 : i32, i32
  }
  func.func @transform_3(%arg0: i32) -> (i32, i32) {
    %c0_i32 = arith.constant 0 : i32
    %c0_i32_0 = arith.constant 0 : i32
    return %arg0, %c0_i32 : i32, i32
  }
}

module attributes {stable_mosaic.version = 11 : i64} {
  func.func @mlp_kernel(%arg0: i32, %arg1: i32, %arg2: memref<2x9216xf32, #tpu.memory_space<vmem>>, %arg3: memref<9216x256xbf16, #tpu.memory_space<vmem>>, %arg4: memref<1x256xf32, #tpu.memory_space<vmem>>, %arg5: memref<256x4xf32, #tpu.memory_space<vmem>>, %arg6: memref<1x2x4xf32, #tpu.memory_space<vmem>>, %arg7: memref<2x256xf32, #tpu.memory_space<vmem>>) attributes {dimension_semantics = [#tpu.dimension_semantics<parallel>, #tpu.dimension_semantics<arbitrary>], iteration_bounds = array<i64: 1, 2>, scalar_prefetch = 0 : i64, scratch_operands = 1 : i64, tpu.core_type = #tpu.core_type<tc>, window_params = [{transform_indices = @transform_0, window_bounds = array<i64: 2, 9216>}, {transform_indices = @transform_1, window_bounds = array<i64: 9216, 256>}, {transform_indices = @transform_2, window_bounds = array<i64: 1, 256>}, {transform_indices = @transform_3, window_bounds = array<i64: 256, 4>}, {transform_indices = @transform_4, window_bounds = array<i64: 1, 2, 4>}]} {
    %c0_i32 = arith.constant 0 : i32
    %0 = arith.cmpi eq, %arg1, %c0_i32 : i32
    %1 = arith.extui %0 : i1 to i32
    %c0_i32_0 = arith.constant 0 : i32
    %2 = arith.cmpi ne, %1, %c0_i32_0 : i32
    scf.if %2 {
      %cst_9 = arith.constant 0.000000e+00 : f32
      %13 = vector.broadcast %cst_9 : f32 to vector<2x256xf32>
      %c0_10 = arith.constant 0 : index
      %c0_11 = arith.constant 0 : index
      %14 = vector.load %arg7[%c0_10, %c0_11] : memref<2x256xf32, #tpu.memory_space<vmem>>, vector<2x256xf32>
      tpu.vector_store %arg7[%c0_10, %c0_11], %13 {strides = array<i32>} : memref<2x256xf32, #tpu.memory_space<vmem>>, vector<2x256xf32>,
    } else {
    }
    %c0 = arith.constant 0 : index
    %c0_1 = arith.constant 0 : index
    %3 = vector.load %arg7[%c0, %c0_1] : memref<2x256xf32, #tpu.memory_space<vmem>>, vector<2x256xf32>
    %c0_2 = arith.constant 0 : index
    %c0_3 = arith.constant 0 : index
    %4 = vector.load %arg2[%c0_2, %c0_3] : memref<2x9216xf32, #tpu.memory_space<vmem>>, vector<2x9216xf32>
    %5 = arith.truncf %4 : vector<2x9216xf32> to vector<2x9216xbf16>
    %c0_4 = arith.constant 0 : index
    %c0_5 = arith.constant 0 : index
    %6 = vector.load %arg3[%c0_4, %c0_5] : memref<9216x256xbf16, #tpu.memory_space<vmem>>, vector<9216x256xbf16>
    %cst = arith.constant dense<0.000000e+00> : vector<2x256xf32>
    %7 = tpu.matmul %5, %6, %cst {dimension_numbers = #tpu.dot_dimension_numbers<[1], [0], [0], [1], [0, 0, 1, 1], [], []>} : vector<2x9216xbf16>, vector<9216x256xbf16>, vector<2x256xf32> -> vector<2x256xf32>
    %8 = arith.addf %3, %7 : vector<2x256xf32>
    %c0_6 = arith.constant 0 : index
    %c0_7 = arith.constant 0 : index
    %9 = vector.load %arg7[%c0_6, %c0_7] : memref<2x256xf32, #tpu.memory_space<vmem>>, vector<2x256xf32>
    tpu.vector_store %arg7[%c0_6, %c0_7], %8 {strides = array<i32>} : memref<2x256xf32, #tpu.memory_space<vmem>>, vector<2x256xf32>,
    %c1_i32 = arith.constant 1 : i32
    %10 = arith.cmpi eq, %arg1, %c1_i32 : i32
    %11 = arith.extui %10 : i1 to i32
    %c0_i32_8 = arith.constant 0 : i32
    %12 = arith.cmpi ne, %11, %c0_i32_8 : i32
    scf.if %12 {
      %c0_9 = arith.constant 0 : index
      %c0_10 = arith.constant 0 : index
      %13 = vector.load %arg7[%c0_9, %c0_10] : memref<2x256xf32, #tpu.memory_space<vmem>>, vector<2x256xf32>
      %c0_11 = arith.constant 0 : index
      %c0_12 = arith.constant 0 : index
      %14 = vector.load %arg4[%c0_11, %c0_12] : memref<1x256xf32, #tpu.memory_space<vmem>>, vector<1x256xf32>
      %15 = vector.broadcast %14 : vector<1x256xf32> to vector<2x256xf32>
      %16 = arith.addf %13, %15 : vector<2x256xf32>
      %cst_13 = arith.constant 0.000000e+00 : f32
      %17 = vector.broadcast %cst_13 : f32 to vector<2x256xf32>
      %18 = arith.maximumf %16, %17 : vector<2x256xf32>
      %c0_14 = arith.constant 0 : index
      %c0_15 = arith.constant 0 : index
      %19 = vector.load %arg5[%c0_14, %c0_15] : memref<256x4xf32, #tpu.memory_space<vmem>>, vector<256x4xf32>
      %cst_16 = arith.constant dense<0.000000e+00> : vector<2x4xf32>
      %20 = tpu.matmul %18, %19, %cst_16 {dimension_numbers = #tpu.dot_dimension_numbers<[1], [0], [0], [1], [0, 0, 1, 1], [], []>} : vector<2x256xf32>, vector<256x4xf32>, vector<2x4xf32> -> vector<2x4xf32>
      %21 = vector.shape_cast %20 : vector<2x4xf32> to vector<1x2x4xf32>
      %c0_17 = arith.constant 0 : index
      %c0_18 = arith.constant 0 : index
      %c0_19 = arith.constant 0 : index
      %22 = vector.load %arg6[%c0_17, %c0_18, %c0_19] : memref<1x2x4xf32, #tpu.memory_space<vmem>>, vector<1x2x4xf32>
      tpu.vector_store %arg6[%c0_17, %c0_18, %c0_19], %21 {strides = array<i32>} : memref<1x2x4xf32, #tpu.memory_space<vmem>>, vector<1x2x4xf32>,
    } else {
    }
    return
  }
  func.func @transform_0(%arg0: i32, %arg1: i32) -> (i32, i32) {
    %c0_i32 = arith.constant 0 : i32
    %c0_i32_0 = arith.constant 0 : i32
    return %c0_i32, %arg1 : i32, i32
  }
  func.func @transform_1(%arg0: i32, %arg1: i32) -> (i32, i32) {
    %c0_i32 = arith.constant 0 : i32
    return %arg1, %arg0 : i32, i32
  }
  func.func @transform_2(%arg0: i32, %arg1: i32) -> (i32, i32) {
    %c0_i32 = arith.constant 0 : i32
    %c0_i32_0 = arith.constant 0 : i32
    return %c0_i32, %arg0 : i32, i32
  }
  func.func @transform_3(%arg0: i32, %arg1: i32) -> (i32, i32) {
    %c0_i32 = arith.constant 0 : i32
    %c0_i32_0 = arith.constant 0 : i32
    return %arg0, %c0_i32 : i32, i32
  }
  func.func @transform_4(%arg0: i32, %arg1: i32) -> (i32, i32, i32) {
    %c0_i32 = arith.constant 0 : i32
    %c0_i32_0 = arith.constant 0 : i32
    %c0_i32_1 = arith.constant 0 : i32
    return %arg0, %c0_i32, %c0_i32_0 : i32, i32, i32
  }
}

</mosaic_0001>

<llo_original>
// kernel: facial_expression_cnn_forward.2
$region0: #{facial_expression_cnn_forward.2}
  #allocation0 [shape = 'u32[]', space=smem, size = 0x4, offset = 0x4, fixed_abs, tag = 'smem constant byte address 0x4 - core index']
  #allocation1 [shape = 'u32[72,128]{1,0:T(1,128)}', space=vmem, size = 0x9000, scoped, tag = 'internal scratch']
  %s0 = inlined_call_operand.vmem [shape: f32[288,64], index: 0, kind: input, shape index: {}]
  %s1 = inlined_call_operand.hbm [shape: f32[64,512], index: 1, kind: input, shape index: {}]
  %s2 = inlined_call_operand.hbm [shape: f32[1,128], index: 2, kind: input, shape index: {}]
  %s3 = inlined_call_operand.vmem [shape: f32[288,128], index: 3, kind: output, shape index: {}]
  %s4 = sld [smem:[#allocation0]]
  $region30: #{facial_expression_cnn_forward.2} parent=0
    _
  %s6 = ssub.s32 1, %s4
  %s7 = scalar_select 0, %s6, %s4
  $region1: #{facial_expression_cnn_forward.2} parent=0
    #allocation2 [shape = 'u8[131072]{0}', space=vmem, size = 0x20000, scoped, tag = 'input window, operand 1, single buffered']
    #allocation3 [shape = 's32[1]{0}', space=sflag, size = 0x4, scoped, tag = 'scoped memory for facial_expression_cnn_forward.2']
    #allocation4 [shape = 'u8[512]{0}', space=vmem, size = 0x400, scoped, tag = 'input window, operand 2, single buffered']
    #allocation5 [shape = 's32[1]{0}', space=sflag, size = 0x4, scoped, tag = 'scoped memory for facial_expression_cnn_forward.2']
    %8 = vsyncpa [#allocation3], 0
    %9 = vsyncpa [#allocation5], 0
    // Predicated region
    $region2: #{facial_expression_cnn_forward.2} parent=1 // pred_check
      _
    $region3: #{facial_expression_cnn_forward.2} parent=1 // pred_check_branch
      %11 = sbr.rel (0) target = $region5
    $region4: #{facial_expression_cnn_forward.2} parent=1 // pred_region
      _
    $region5: #{facial_expression_cnn_forward.2} parent=1 // pred_fallthru
      _
    // Predicated region
    $region6: #{facial_expression_cnn_forward.2} parent=1 // pred_check
      _
    $region7: #{facial_expression_cnn_forward.2} parent=1 // pred_check_branch
      %13 = sbr.rel (0) target = $region9
    $region8: #{facial_expression_cnn_forward.2} parent=1 // pred_region
      %15 = vsyncadd [#allocation3], 0
      %s16 = sshll.u32 %s1, 4
      %s17 = int_to_ptr.hbm [resolvable:$true] %s16
      %s18 = sshll.u32 [#allocation2], 4
      %s19 = int_to_ptr.vmem [resolvable:$true] %s18
      %24 = dma.hbm_to_vmem [thread:$0]  %s17, 4096, %s19, [#allocation3], 512, 512, 32
    $region9: #{facial_expression_cnn_forward.2} parent=1 // pred_fallthru
      _
    // Predicated region
    $region10: #{facial_expression_cnn_forward.2} parent=1 // pred_check
      _
    $region11: #{facial_expression_cnn_forward.2} parent=1 // pred_check_branch
      %26 = sbr.rel (0) target = $region13
    $region12: #{facial_expression_cnn_forward.2} parent=1 // pred_region
      %28 = vsyncadd [#allocation5], 0
      %s30 = sshll.u32 %s2, 4
      %s31 = int_to_ptr.hbm [resolvable:$true] %s30
      %s32 = sshll.u32 [#allocation4], 4
      %s33 = int_to_ptr.vmem [resolvable:$true] %s32
      %35 = dma.hbm_to_vmem [thread:$0]  %s31, 16, %s33, [#allocation5]
    $region13: #{facial_expression_cnn_forward.2} parent=1 // pred_fallthru
      _
    // Predicated region
    $region14: #{facial_expression_cnn_forward.2} parent=1 // pred_check
      _
    $region15: #{facial_expression_cnn_forward.2} parent=1 // pred_check_branch
      %37 = sbr.rel (0) target = $region17
    $region16: #{facial_expression_cnn_forward.2} parent=1 // pred_region
      %39 = dma.done [#allocation3], 4096
    $region17: #{facial_expression_cnn_forward.2} parent=1 // pred_fallthru
      _
    // Predicated region
    $region18: #{facial_expression_cnn_forward.2} parent=1 // pred_check
      _
    $region19: #{facial_expression_cnn_forward.2} parent=1 // pred_check_branch
      %41 = sbr.rel (0) target = $region21
    $region20: #{facial_expression_cnn_forward.2} parent=1 // pred_region
      %43 = dma.done [#allocation5], 16
    $region21: #{facial_expression_cnn_forward.2} parent=1 // pred_fallthru
      _
    %v44 = vld [vmem:[%s0] sm:$0xff]
    %v45 = vld [vmem:[%s0 + $0x8] sm:$0xff]
    %v46 = vld [vmem:[%s0 + $0x10] sm:$0xff]
    %v47 = vld [vmem:[%s0 + $0x18] sm:$0xff]
    %v48 = vld [vmem:[%s0 + $0x20] sm:$0xff]
    %v49 = vld [vmem:[%s0 + $0x28] sm:$0xff]
    %v50 = vld [vmem:[%s0 + $0x30] sm:$0xff]
    %v51 = vld [vmem:[%s0 + $0x38] sm:$0xff]
    %v52 = vld [vmem:[%s0 + $0x40] sm:$0xff]
    %v53 = vld [vmem:[%s0 + $0x48] sm:$0xff]
    %v54 = vld [vmem:[%s0 + $0x50] sm:$0xff]
    %v55 = vld [vmem:[%s0 + $0x58] sm:$0xff]
    %v56 = vld [vmem:[%s0 + $0x60] sm:$0xff]
    %v57 = vld [vmem:[%s0 + $0x68] sm:$0xff]
    %v58 = vld [vmem:[%s0 + $0x70] sm:$0xff]
    %v59 = vld [vmem:[%s0 + $0x78] sm:$0xff]
    %v60 = vld [vmem:[%s0 + $0x80] sm:$0xff]
    %v61 = vld [vmem:[%s0 + $0x88] sm:$0xff]
    %v62 = vld [vmem:[%s0 + $0x90] sm:$0xff]
    %v63 = vld [vmem:[%s0 + $0x98] sm:$0xff]
    %v64 = vld [vmem:[%s0 + $0xa0] sm:$0xff]
    %v65 = vld [vmem:[%s0 + $0xa8] sm:$0xff]
    %v66 = vld [vmem:[%s0 + $0xb0] sm:$0xff]
    %v67 = vld [vmem:[%s0 + $0xb8] sm:$0xff]
    %v68 = vld [vmem:[%s0 + $0xc0] sm:$0xff]
    %v69 = vld [vmem:[%s0 + $0xc8] sm:$0xff]
    %v70 = vld [vmem:[%s0 + $0xd0] sm:$0xff]
    %v71 = vld [vmem:[%s0 + $0xd8] sm:$0xff]
    %v72 = vld [vmem:[%s0 + $0xe0] sm:$0xff]
    %v73 = vld [vmem:[%s0 + $0xe8] sm:$0xff]
    %v74 = vld [vmem:[%s0 + $0xf0] sm:$0xff]
    %v75 = vld [vmem:[%s0 + $0xf8] sm:$0xff]
    %v76 = vld [vmem:[%s0 + $0x100] sm:$0xff]
    %v77 = vld [vmem:[%s0 + $0x108] sm:$0xff]
    %v78 = vld [vmem:[%s0 + $0x110] sm:$0xff]
    %v79 = vld [vmem:[%s0 + $0x118] sm:$0xff]
    %v80 = vld [vmem:[#allocation2] sm:$0xff]
    %v81 = vld [vmem:[#allocation2 + $0x8] sm:$0xff]
    %v82 = vld [vmem:[#allocation2 + $0x10] sm:$0xff]
    %v83 = vld [vmem:[#allocation2 + $0x18] sm:$0xff]
    %v84 = vld [vmem:[#allocation2 + $0x20] sm:$0xff]
    %v85 = vld [vmem:[#allocation2 + $0x28] sm:$0xff]
    %v86 = vld [vmem:[#allocation2 + $0x30] sm:$0xff]
    %v87 = vld [vmem:[#allocation2 + $0x38] sm:$0xff]
    %v88 = vld [vmem:[#allocation2 + $0x40] sm:$0xff]
    %v89 = vld [vmem:[#allocation2 + $0x48] sm:$0xff]
    %v90 = vld [vmem:[#allocation2 + $0x50] sm:$0xff]
    %v91 = vld [vmem:[#allocation2 + $0x58] sm:$0xff]
    %v92 = vld [vmem:[#allocation2 + $0x60] sm:$0xff]
    %v93 = vld [vmem:[#allocation2 + $0x68] sm:$0xff]
    %v94 = vld [vmem:[#allocation2 + $0x70] sm:$0xff]
    %v95 = vld [vmem:[#allocation2 + $0x78] sm:$0xff]
    %v96 = vld [vmem:[#allocation2 + $0x80] sm:$0xff]
    %v97 = vld [vmem:[#allocation2 + $0x88] sm:$0xff]
    %v98 = vld [vmem:[#allocation2 + $0x90] sm:$0xff]
    %v99 = vld [vmem:[#allocation2 + $0x98] sm:$0xff]
    %v100 = vld [vmem:[#allocation2 + $0xa0] sm:$0xff]
    %v101 = vld [vmem:[#allocation2 + $0xa8] sm:$0xff]
    %v102 = vld [vmem:[#allocation2 + $0xb0] sm:$0xff]
    %v103 = vld [vmem:[#allocation2 + $0xb8] sm:$0xff]
    %v104 = vld [vmem:[#allocation2 + $0xc0] sm:$0xff]
    %v105 = vld [vmem:[#allocation2 + $0xc8] sm:$0xff]
    %v106 = vld [vmem:[#allocation2 + $0xd0] sm:$0xff]
    %v107 = vld [vmem:[#allocation2 + $0xd8] sm:$0xff]
    %v108 = vld [vmem:[#allocation2 + $0xe0] sm:$0xff]
    %v109 = vld [vmem:[#allocation2 + $0xe8] sm:$0xff]
    %v110 = vld [vmem:[#allocation2 + $0xf0] sm:$0xff]
    %v111 = vld [vmem:[#allocation2 + $0xf8] sm:$0xff]
    %vm112 = vcmask 523264
    %v114 = vsel %vm112, %v44, 0
    %v117 = vsel %vm112, %v45, 0
    %v120 = vsel %vm112, %v46, 0
    %v123 = vsel %vm112, %v47, 0
    %v126 = vsel %vm112, %v48, 0
    %v129 = vsel %vm112, %v49, 0
    %v132 = vsel %vm112, %v50, 0
    %v135 = vsel %vm112, %v51, 0
    %v138 = vsel %vm112, %v52, 0
    %v141 = vsel %vm112, %v53, 0
    %v144 = vsel %vm112, %v54, 0
    %v147 = vsel %vm112, %v55, 0
    %v150 = vsel %vm112, %v56, 0
    %v153 = vsel %vm112, %v57, 0
    %v156 = vsel %vm112, %v58, 0
    %v159 = vsel %vm112, %v59, 0
    %v162 = vsel %vm112, %v60, 0
    %v165 = vsel %vm112, %v61, 0
    %v168 = vsel %vm112, %v62, 0
    %v171 = vsel %vm112, %v63, 0
    %v174 = vsel %vm112, %v64, 0
    %v177 = vsel %vm112, %v65, 0
    %v180 = vsel %vm112, %v66, 0
    %v183 = vsel %vm112, %v67, 0
    %v186 = vsel %vm112, %v68, 0
    %v189 = vsel %vm112, %v69, 0
    %v192 = vsel %vm112, %v70, 0
    %v195 = vsel %vm112, %v71, 0
    %v198 = vsel %vm112, %v72, 0
    %v201 = vsel %vm112, %v73, 0
    %v204 = vsel %vm112, %v74, 0
    %v207 = vsel %vm112, %v75, 0
    %v210 = vsel %vm112, %v76, 0
    %v213 = vsel %vm112, %v77, 0
    %v216 = vsel %vm112, %v78, 0
    %v219 = vsel %vm112, %v79, 0
    %221 = vmatpush.msra.mxu0 0.0
    %222 = vmatpush.msra.mxu0 0.0
    %223 = vmatpush.msra.mxu0 0.0
    %224 = vmatpush.msra.mxu0 0.0
    %225 = vmatpush.msra.mxu0 0.0
    %226 = vmatpush.msra.mxu0 0.0
    %227 = vmatpush.msra.mxu0 0.0
    %228 = vmatpush.msra.mxu0 0.0
    %229 = vmatpush.msra.mxu0 %v108
    %230 = vmatpush.msra.mxu0 %v104
    %231 = vmatpush.msra.mxu0 %v100
    %232 = vmatpush.msra.mxu0 %v96
    %233 = vmatpush.msra.mxu0 %v92
    %234 = vmatpush.msra.mxu0 %v88
    %235 = vmatpush.msra.mxu0 %v84
    %236 = vmatpush.msra.mxu0 %v80
    %237 = vmatmul.f32.gmra.mxu0 %v114
    %v238 = vpop.f32.mrf.mxu0
    %v239 = vadd.f32 0.0, %v238
    %240 = vmatmul.f32.gmra.mxu0 %v117
    %v241 = vpop.f32.mrf.mxu0
    %v242 = vadd.f32 0.0, %v241
    %243 = vmatmul.f32.gmra.mxu0 %v120
    %v244 = vpop.f32.mrf.mxu0
    %v245 = vadd.f32 0.0, %v244
    %246 = vmatmul.f32.gmra.mxu0 %v123
    %v247 = vpop.f32.mrf.mxu0
    %v248 = vadd.f32 0.0, %v247
    %249 = vmatmul.f32.gmra.mxu0 %v126
    %v250 = vpop.f32.mrf.mxu0
    %v251 = vadd.f32 0.0, %v250
    %252 = vmatmul.f32.gmra.mxu0 %v129
    %v253 = vpop.f32.mrf.mxu0
    %v254 = vadd.f32 0.0, %v253
    %255 = vmatmul.f32.gmra.mxu0 %v132
    %v256 = vpop.f32.mrf.mxu0
    %v257 = vadd.f32 0.0, %v256
    %258 = vmatmul.f32.gmra.mxu0 %v135
    %v259 = vpop.f32.mrf.mxu0
    %v260 = vadd.f32 0.0, %v259
    %261 = vmatmul.f32.gmra.mxu0 %v138
    %v262 = vpop.f32.mrf.mxu0
    %v263 = vadd.f32 0.0, %v262
    %264 = vmatmul.f32.gmra.mxu0 %v141
    %v265 = vpop.f32.mrf.mxu0
    %v266 = vadd.f32 0.0, %v265
    %267 = vmatmul.f32.gmra.mxu0 %v144
    %v268 = vpop.f32.mrf.mxu0
    %v269 = vadd.f32 0.0, %v268
    %270 = vmatmul.f32.gmra.mxu0 %v147
    %v271 = vpop.f32.mrf.mxu0
    %v272 = vadd.f32 0.0, %v271
    %273 = vmatmul.f32.gmra.mxu0 %v150
    %v274 = vpop.f32.mrf.mxu0
    %v275 = vadd.f32 0.0, %v274
    %276 = vmatmul.f32.gmra.mxu0 %v153
    %v277 = vpop.f32.mrf.mxu0
    %v278 = vadd.f32 0.0, %v277
    %279 = vmatmul.f32.gmra.mxu0 %v156
    %v280 = vpop.f32.mrf.mxu0
    %v281 = vadd.f32 0.0, %v280
    %282 = vmatmul.f32.gmra.mxu0 %v159
    %v283 = vpop.f32.mrf.mxu0
    %v284 = vadd.f32 0.0, %v283
    %285 = vmatmul.f32.gmra.mxu0 %v162
    %v286 = vpop.f32.mrf.mxu0
    %v287 = vadd.f32 0.0, %v286
    %288 = vmatmul.f32.gmra.mxu0 %v165
    %v289 = vpop.f32.mrf.mxu0
    %v290 = vadd.f32 0.0, %v289
    %291 = vmatmul.f32.gmra.mxu0 %v168
    %v292 = vpop.f32.mrf.mxu0
    %v293 = vadd.f32 0.0, %v292
    %294 = vmatmul.f32.gmra.mxu0 %v171
    %v295 = vpop.f32.mrf.mxu0
    %v296 = vadd.f32 0.0, %v295
    %297 = vmatmul.f32.gmra.mxu0 %v174
    %v298 = vpop.f32.mrf.mxu0
    %v299 = vadd.f32 0.0, %v298
    %300 = vmatmul.f32.gmra.mxu0 %v177
    %v301 = vpop.f32.mrf.mxu0
    %v302 = vadd.f32 0.0, %v301
    %303 = vmatmul.f32.gmra.mxu0 %v180
    %v304 = vpop.f32.mrf.mxu0
    %v305 = vadd.f32 0.0, %v304
    %306 = vmatmul.f32.gmra.mxu0 %v183
    %v307 = vpop.f32.mrf.mxu0
    %v308 = vadd.f32 0.0, %v307
    %309 = vmatmul.f32.gmra.mxu0 %v186
    %v310 = vpop.f32.mrf.mxu0
    %v311 = vadd.f32 0.0, %v310
    %312 = vmatmul.f32.gmra.mxu0 %v189
    %v313 = vpop.f32.mrf.mxu0
    %v314 = vadd.f32 0.0, %v313
    %315 = vmatmul.f32.gmra.mxu0 %v192
    %v316 = vpop.f32.mrf.mxu0
    %v317 = vadd.f32 0.0, %v316
    %318 = vmatmul.f32.gmra.mxu0 %v195
    %v319 = vpop.f32.mrf.mxu0
    %v320 = vadd.f32 0.0, %v319
    %321 = vmatmul.f32.gmra.mxu0 %v198
    %v322 = vpop.f32.mrf.mxu0
    %v323 = vadd.f32 0.0, %v322
    %324 = vmatmul.f32.gmra.mxu0 %v201
    %v325 = vpop.f32.mrf.mxu0
    %v326 = vadd.f32 0.0, %v325
    %327 = vmatmul.f32.gmra.mxu0 %v204
    %v328 = vpop.f32.mrf.mxu0
    %v329 = vadd.f32 0.0, %v328
    %330 = vmatmul.f32.gmra.mxu0 %v207
    %v331 = vpop.f32.mrf.mxu0
    %v332 = vadd.f32 0.0, %v331
    %333 = vmatmul.f32.gmra.mxu0 %v210
    %v334 = vpop.f32.mrf.mxu0
    %v335 = vadd.f32 0.0, %v334
    %336 = vmatmul.f32.gmra.mxu0 %v213
    %v337 = vpop.f32.mrf.mxu0
    %v338 = vadd.f32 0.0, %v337
    %339 = vmatmul.f32.gmra.mxu0 %v216
    %v340 = vpop.f32.mrf.mxu0
    %v341 = vadd.f32 0.0, %v340
    %342 = vmatmul.f32.gmra.mxu0 %v219
    %v343 = vpop.f32.mrf.mxu0
    %v344 = vadd.f32 0.0, %v343
    %345 = vdwg.mxu0
    %346 = vmatpush.msra.mxu0 0.0
    %347 = vmatpush.msra.mxu0 0.0
    %348 = vmatpush.msra.mxu0 0.0
    %349 = vmatpush.msra.mxu0 0.0
    %350 = vmatpush.msra.mxu0 0.0
    %351 = vmatpush.msra.mxu0 0.0
    %352 = vmatpush.msra.mxu0 0.0
    %353 = vmatpush.msra.mxu0 0.0
    %354 = vmatpush.msra.mxu0 %v109
    %355 = vmatpush.msra.mxu0 %v105
    %356 = vmatpush.msra.mxu0 %v101
    %357 = vmatpush.msra.mxu0 %v97
    %358 = vmatpush.msra.mxu0 %v93
    %359 = vmatpush.msra.mxu0 %v89
    %360 = vmatpush.msra.mxu0 %v85
    %361 = vmatpush.msra.mxu0 %v81
    %362 = vmatmul.f32.gmra.mxu0 %v114
    %v363 = vpop.f32.mrf.mxu0
    %v364 = vadd.f32 0.0, %v363
    %365 = vmatmul.f32.gmra.mxu0 %v117
    %v366 = vpop.f32.mrf.mxu0
    %v367 = vadd.f32 0.0, %v366
    %368 = vmatmul.f32.gmra.mxu0 %v120
    %v369 = vpop.f32.mrf.mxu0
    %v370 = vadd.f32 0.0, %v369
    %371 = vmatmul.f32.gmra.mxu0 %v123
    %v372 = vpop.f32.mrf.mxu0
    %v373 = vadd.f32 0.0, %v372
    %374 = vmatmul.f32.gmra.mxu0 %v126
    %v375 = vpop.f32.mrf.mxu0
    %v376 = vadd.f32 0.0, %v375
    %377 = vmatmul.f32.gmra.mxu0 %v129
    %v378 = vpop.f32.mrf.mxu0
    %v379 = vadd.f32 0.0, %v378
    %380 = vmatmul.f32.gmra.mxu0 %v132
    %v381 = vpop.f32.mrf.mxu0
    %v382 = vadd.f32 0.0, %v381
    %383 = vmatmul.f32.gmra.mxu0 %v135
    %v384 = vpop.f32.mrf.mxu0
    %v385 = vadd.f32 0.0, %v384
    %386 = vmatmul.f32.gmra.mxu0 %v138
    %v387 = vpop.f32.mrf.mxu0
    %v388 = vadd.f32 0.0, %v387
    %389 = vmatmul.f32.gmra.mxu0 %v141
    %v390 = vpop.f32.mrf.mxu0
    %v391 = vadd.f32 0.0, %v390
    %392 = vmatmul.f32.gmra.mxu0 %v144
    %v393 = vpop.f32.mrf.mxu0
    %v394 = vadd.f32 0.0, %v393
    %395 = vmatmul.f32.gmra.mxu0 %v147
    %v396 = vpop.f32.mrf.mxu0
    %v397 = vadd.f32 0.0, %v396
    %398 = vmatmul.f32.gmra.mxu0 %v150
    %v399 = vpop.f32.mrf.mxu0
    %v400 = vadd.f32 0.0, %v399
    %401 = vmatmul.f32.gmra.mxu0 %v153
    %v402 = vpop.f32.mrf.mxu0
    %v403 = vadd.f32 0.0, %v402
    %404 = vmatmul.f32.gmra.mxu0 %v156
    %v405 = vpop.f32.mrf.mxu0
    %v406 = vadd.f32 0.0, %v405
    %407 = vmatmul.f32.gmra.mxu0 %v159
    %v408 = vpop.f32.mrf.mxu0
    %v409 = vadd.f32 0.0, %v408
    %410 = vmatmul.f32.gmra.mxu0 %v162
    %v411 = vpop.f32.mrf.mxu0
    %v412 = vadd.f32 0.0, %v411
    %413 = vmatmul.f32.gmra.mxu0 %v165
    %v414 = vpop.f32.mrf.mxu0
    %v415 = vadd.f32 0.0, %v414
    %416 = vmatmul.f32.gmra.mxu0 %v168
    %v417 = vpop.f32.mrf.mxu0
    %v418 = vadd.f32 0.0, %v417
    %419 = vmatmul.f32.gmra.mxu0 %v171
    %v420 = vpop.f32.mrf.mxu0
    %v421 = vadd.f32 0.0, %v420
    %422 = vmatmul.f32.gmra.mxu0 %v174
    %v423 = vpop.f32.mrf.mxu0
    %v424 = vadd.f32 0.0, %v423
    %425 = vmatmul.f32.gmra.mxu0 %v177
    %v426 = vpop.f32.mrf.mxu0
    %v427 = vadd.f32 0.0, %v426
    %428 = vmatmul.f32.gmra.mxu0 %v180
    %v429 = vpop.f32.mrf.mxu0
    %v430 = vadd.f32 0.0, %v429
    %431 = vmatmul.f32.gmra.mxu0 %v183
    %v432 = vpop.f32.mrf.mxu0
    %v433 = vadd.f32 0.0, %v432
    %434 = vmatmul.f32.gmra.mxu0 %v186
    %v435 = vpop.f32.mrf.mxu0
    %v436 = vadd.f32 0.0, %v435
    %437 = vmatmul.f32.gmra.mxu0 %v189
    %v438 = vpop.f32.mrf.mxu0
    %v439 = vadd.f32 0.0, %v438
    %440 = vmatmul.f32.gmra.mxu0 %v192
    %v441 = vpop.f32.mrf.mxu0
    %v442 = vadd.f32 0.0, %v441
    %443 = vmatmul.f32.gmra.mxu0 %v195
    %v444 = vpop.f32.mrf.mxu0
    %v445 = vadd.f32 0.0, %v444
    %446 = vmatmul.f32.gmra.mxu0 %v198
    %v447 = vpop.f32.mrf.mxu0
    %v448 = vadd.f32 0.0, %v447
    %449 = vmatmul.f32.gmra.mxu0 %v201
    %v450 = vpop.f32.mrf.mxu0
    %v451 = vadd.f32 0.0, %v450
    %452 = vmatmul.f32.gmra.mxu0 %v204
    %v453 = vpop.f32.mrf.mxu0
    %v454 = vadd.f32 0.0, %v453
    %455 = vmatmul.f32.gmra.mxu0 %v207
    %v456 = vpop.f32.mrf.mxu0
    %v457 = vadd.f32 0.0, %v456
    %458 = vmatmul.f32.gmra.mxu0 %v210
    %v459 = vpop.f32.mrf.mxu0
    %v460 = vadd.f32 0.0, %v459
    %461 = vmatmul.f32.gmra.mxu0 %v213
    %v462 = vpop.f32.mrf.mxu0
    %v463 = vadd.f32 0.0, %v462
    %464 = vmatmul.f32.gmra.mxu0 %v216
    %v465 = vpop.f32.mrf.mxu0
    %v466 = vadd.f32 0.0, %v465
    %467 = vmatmul.f32.gmra.mxu0 %v219
    %v468 = vpop.f32.mrf.mxu0
    %v469 = vadd.f32 0.0, %v468
    %470 = vdwg.mxu0
    %471 = vmatpush.msra.mxu0 0.0
    %472 = vmatpush.msra.mxu0 0.0
    %473 = vmatpush.msra.mxu0 0.0
    %474 = vmatpush.msra.mxu0 0.0
    %475 = vmatpush.msra.mxu0 0.0
    %476 = vmatpush.msra.mxu0 0.0
    %477 = vmatpush.msra.mxu0 0.0
    %478 = vmatpush.msra.mxu0 0.0
    %479 = vmatpush.msra.mxu0 %v110
    %480 = vmatpush.msra.mxu0 %v106
    %481 = vmatpush.msra.mxu0 %v102
    %482 = vmatpush.msra.mxu0 %v98
    %483 = vmatpush.msra.mxu0 %v94
    %484 = vmatpush.msra.mxu0 %v90
    %485 = vmatpush.msra.mxu0 %v86
    %486 = vmatpush.msra.mxu0 %v82
    %487 = vmatmul.f32.gmra.mxu0 %v114
    %v488 = vpop.f32.mrf.mxu0
    %v489 = vadd.f32 0.0, %v488
    %490 = vmatmul.f32.gmra.mxu0 %v117
    %v491 = vpop.f32.mrf.mxu0
    %v492 = vadd.f32 0.0, %v491
    %493 = vmatmul.f32.gmra.mxu0 %v120
    %v494 = vpop.f32.mrf.mxu0
    %v495 = vadd.f32 0.0, %v494
    %496 = vmatmul.f32.gmra.mxu0 %v123
    %v497 = vpop.f32.mrf.mxu0
    %v498 = vadd.f32 0.0, %v497
    %499 = vmatmul.f32.gmra.mxu0 %v126
    %v500 = vpop.f32.mrf.mxu0
    %v501 = vadd.f32 0.0, %v500
    %502 = vmatmul.f32.gmra.mxu0 %v129
    %v503 = vpop.f32.mrf.mxu0
    %v504 = vadd.f32 0.0, %v503
    %505 = vmatmul.f32.gmra.mxu0 %v132
    %v506 = vpop.f32.mrf.mxu0
    %v507 = vadd.f32 0.0, %v506
    %508 = vmatmul.f32.gmra.mxu0 %v135
    %v509 = vpop.f32.mrf.mxu0
    %v510 = vadd.f32 0.0, %v509
    %511 = vmatmul.f32.gmra.mxu0 %v138
    %v512 = vpop.f32.mrf.mxu0
    %v513 = vadd.f32 0.0, %v512
    %514 = vmatmul.f32.gmra.mxu0 %v141
    %v515 = vpop.f32.mrf.mxu0
    %v516 = vadd.f32 0.0, %v515
    %517 = vmatmul.f32.gmra.mxu0 %v144
    %v518 = vpop.f32.mrf.mxu0
    %v519 = vadd.f32 0.0, %v518
    %520 = vmatmul.f32.gmra.mxu0 %v147
    %v521 = vpop.f32.mrf.mxu0
    %v522 = vadd.f32 0.0, %v521
    %523 = vmatmul.f32.gmra.mxu0 %v150
    %v524 = vpop.f32.mrf.mxu0
    %v525 = vadd.f32 0.0, %v524
    %526 = vmatmul.f32.gmra.mxu0 %v153
    %v527 = vpop.f32.mrf.mxu0
    %v528 = vadd.f32 0.0, %v527
    %529 = vmatmul.f32.gmra.mxu0 %v156
    %v530 = vpop.f32.mrf.mxu0
    %v531 = vadd.f32 0.0, %v530
    %532 = vmatmul.f32.gmra.mxu0 %v159
    %v533 = vpop.f32.mrf.mxu0
    %v534 = vadd.f32 0.0, %v533
    %535 = vmatmul.f32.gmra.mxu0 %v162
    %v536 = vpop.f32.mrf.mxu0
    %v537 = vadd.f32 0.0, %v536
    %538 = vmatmul.f32.gmra.mxu0 %v165
    %v539 = vpop.f32.mrf.mxu0
    %v540 = vadd.f32 0.0, %v539
    %541 = vmatmul.f32.gmra.mxu0 %v168
    %v542 = vpop.f32.mrf.mxu0
    %v543 = vadd.f32 0.0, %v542
    %544 = vmatmul.f32.gmra.mxu0 %v171
    %v545 = vpop.f32.mrf.mxu0
    %v546 = vadd.f32 0.0, %v545
    %547 = vmatmul.f32.gmra.mxu0 %v174
    %v548 = vpop.f32.mrf.mxu0
    %v549 = vadd.f32 0.0, %v548
    %550 = vmatmul.f32.gmra.mxu0 %v177
    %v551 = vpop.f32.mrf.mxu0
    %v552 = vadd.f32 0.0, %v551
    %553 = vmatmul.f32.gmra.mxu0 %v180
    %v554 = vpop.f32.mrf.mxu0
    %v555 = vadd.f32 0.0, %v554
    %556 = vmatmul.f32.gmra.mxu0 %v183
    %v557 = vpop.f32.mrf.mxu0
    %v558 = vadd.f32 0.0, %v557
    %559 = vmatmul.f32.gmra.mxu0 %v186
    %v560 = vpop.f32.mrf.mxu0
    %v561 = vadd.f32 0.0, %v560
    %562 = vmatmul.f32.gmra.mxu0 %v189
    %v563 = vpop.f32.mrf.mxu0
    %v564 = vadd.f32 0.0, %v563
    %565 = vmatmul.f32.gmra.mxu0 %v192
    %v566 = vpop.f32.mrf.mxu0
    %v567 = vadd.f32 0.0, %v566
    %568 = vmatmul.f32.gmra.mxu0 %v195
    %v569 = vpop.f32.mrf.mxu0
    %v570 = vadd.f32 0.0, %v569
    %571 = vmatmul.f32.gmra.mxu0 %v198
    %v572 = vpop.f32.mrf.mxu0
    %v573 = vadd.f32 0.0, %v572
    %574 = vmatmul.f32.gmra.mxu0 %v201
    %v575 = vpop.f32.mrf.mxu0
    %v576 = vadd.f32 0.0, %v575
    %577 = vmatmul.f32.gmra.mxu0 %v204
    %v578 = vpop.f32.mrf.mxu0
    %v579 = vadd.f32 0.0, %v578
    %580 = vmatmul.f32.gmra.mxu0 %v207
    %v581 = vpop.f32.mrf.mxu0
    %v582 = vadd.f32 0.0, %v581
    %583 = vmatmul.f32.gmra.mxu0 %v210
    %v584 = vpop.f32.mrf.mxu0
    %v585 = vadd.f32 0.0, %v584
    %586 = vmatmul.f32.gmra.mxu0 %v213
    %v587 = vpop.f32.mrf.mxu0
    %v588 = vadd.f32 0.0, %v587
    %589 = vmatmul.f32.gmra.mxu0 %v216
    %v590 = vpop.f32.mrf.mxu0
    %v591 = vadd.f32 0.0, %v590
    %592 = vmatmul.f32.gmra.mxu0 %v219
    %v593 = vpop.f32.mrf.mxu0
    %v594 = vadd.f32 0.0, %v593
    %595 = vdwg.mxu0
    %596 = vmatpush.msra.mxu0 0.0
    %597 = vmatpush.msra.mxu0 0.0
    %598 = vmatpush.msra.mxu0 0.0
    %599 = vmatpush.msra.mxu0 0.0
    %600 = vmatpush.msra.mxu0 0.0
    %601 = vmatpush.msra.mxu0 0.0
    %602 = vmatpush.msra.mxu0 0.0
    %603 = vmatpush.msra.mxu0 0.0
    %604 = vmatpush.msra.mxu0 %v111
    %605 = vmatpush.msra.mxu0 %v107
    %606 = vmatpush.msra.mxu0 %v103
    %607 = vmatpush.msra.mxu0 %v99
    %608 = vmatpush.msra.mxu0 %v95
    %609 = vmatpush.msra.mxu0 %v91
    %610 = vmatpush.msra.mxu0 %v87
    %611 = vmatpush.msra.mxu0 %v83
    %612 = vmatmul.f32.gmra.mxu0 %v114
    %v613 = vpop.f32.mrf.mxu0
    %v614 = vadd.f32 0.0, %v613
    %615 = vmatmul.f32.gmra.mxu0 %v117
    %v616 = vpop.f32.mrf.mxu0
    %v617 = vadd.f32 0.0, %v616
    %618 = vmatmul.f32.gmra.mxu0 %v120
    %v619 = vpop.f32.mrf.mxu0
    %v620 = vadd.f32 0.0, %v619
    %621 = vmatmul.f32.gmra.mxu0 %v123
    %v622 = vpop.f32.mrf.mxu0
    %v623 = vadd.f32 0.0, %v622
    %624 = vmatmul.f32.gmra.mxu0 %v126
    %v625 = vpop.f32.mrf.mxu0
    %v626 = vadd.f32 0.0, %v625
    %627 = vmatmul.f32.gmra.mxu0 %v129
    %v628 = vpop.f32.mrf.mxu0
    %v629 = vadd.f32 0.0, %v628
    %630 = vmatmul.f32.gmra.mxu0 %v132
    %v631 = vpop.f32.mrf.mxu0
    %v632 = vadd.f32 0.0, %v631
    %633 = vmatmul.f32.gmra.mxu0 %v135
    %v634 = vpop.f32.mrf.mxu0
    %v635 = vadd.f32 0.0, %v634
    %636 = vmatmul.f32.gmra.mxu0 %v138
    %v637 = vpop.f32.mrf.mxu0
    %v638 = vadd.f32 0.0, %v637
    %639 = vmatmul.f32.gmra.mxu0 %v141
    %v640 = vpop.f32.mrf.mxu0
    %v641 = vadd.f32 0.0, %v640
    %642 = vmatmul.f32.gmra.mxu0 %v144
    %v643 = vpop.f32.mrf.mxu0
    %v644 = vadd.f32 0.0, %v643
    %645 = vmatmul.f32.gmra.mxu0 %v147
    %v646 = vpop.f32.mrf.mxu0
    %v647 = vadd.f32 0.0, %v646
    %648 = vmatmul.f32.gmra.mxu0 %v150
    %v649 = vpop.f32.mrf.mxu0
    %v650 = vadd.f32 0.0, %v649
    %651 = vmatmul.f32.gmra.mxu0 %v153
    %v652 = vpop.f32.mrf.mxu0
    %v653 = vadd.f32 0.0, %v652
    %654 = vmatmul.f32.gmra.mxu0 %v156
    %v655 = vpop.f32.mrf.mxu0
    %v656 = vadd.f32 0.0, %v655
    %657 = vmatmul.f32.gmra.mxu0 %v159
    %v658 = vpop.f32.mrf.mxu0
    %v659 = vadd.f32 0.0, %v658
    %660 = vmatmul.f32.gmra.mxu0 %v162
    %v661 = vpop.f32.mrf.mxu0
    %v662 = vadd.f32 0.0, %v661
    %663 = vmatmul.f32.gmra.mxu0 %v165
    %v664 = vpop.f32.mrf.mxu0
    %v665 = vadd.f32 0.0, %v664
    %666 = vmatmul.f32.gmra.mxu0 %v168
    %v667 = vpop.f32.mrf.mxu0
    %v668 = vadd.f32 0.0, %v667
    %669 = vmatmul.f32.gmra.mxu0 %v171
    %v670 = vpop.f32.mrf.mxu0
    %v671 = vadd.f32 0.0, %v670
    %672 = vmatmul.f32.gmra.mxu0 %v174
    %v673 = vpop.f32.mrf.mxu0
    %v674 = vadd.f32 0.0, %v673
    %675 = vmatmul.f32.gmra.mxu0 %v177
    %v676 = vpop.f32.mrf.mxu0
    %v677 = vadd.f32 0.0, %v676
    %678 = vmatmul.f32.gmra.mxu0 %v180
    %v679 = vpop.f32.mrf.mxu0
    %v680 = vadd.f32 0.0, %v679
    %681 = vmatmul.f32.gmra.mxu0 %v183
    %v682 = vpop.f32.mrf.mxu0
    %v683 = vadd.f32 0.0, %v682
    %684 = vmatmul.f32.gmra.mxu0 %v186
    %v685 = vpop.f32.mrf.mxu0
    %v686 = vadd.f32 0.0, %v685
    %687 = vmatmul.f32.gmra.mxu0 %v189
    %v688 = vpop.f32.mrf.mxu0
    %v689 = vadd.f32 0.0, %v688
    %690 = vmatmul.f32.gmra.mxu0 %v192
    %v691 = vpop.f32.mrf.mxu0
    %v692 = vadd.f32 0.0, %v691
    %693 = vmatmul.f32.gmra.mxu0 %v195
    %v694 = vpop.f32.mrf.mxu0
    %v695 = vadd.f32 0.0, %v694
    %696 = vmatmul.f32.gmra.mxu0 %v198
    %v697 = vpop.f32.mrf.mxu0
    %v698 = vadd.f32 0.0, %v697
    %699 = vmatmul.f32.gmra.mxu0 %v201
    %v700 = vpop.f32.mrf.mxu0
    %v701 = vadd.f32 0.0, %v700
    %702 = vmatmul.f32.gmra.mxu0 %v204
    %v703 = vpop.f32.mrf.mxu0
    %v704 = vadd.f32 0.0, %v703
    %705 = vmatmul.f32.gmra.mxu0 %v207
    %v706 = vpop.f32.mrf.mxu0
    %v707 = vadd.f32 0.0, %v706
    %708 = vmatmul.f32.gmra.mxu0 %v210
    %v709 = vpop.f32.mrf.mxu0
    %v710 = vadd.f32 0.0, %v709
    %711 = vmatmul.f32.gmra.mxu0 %v213
    %v712 = vpop.f32.mrf.mxu0
    %v713 = vadd.f32 0.0, %v712
    %714 = vmatmul.f32.gmra.mxu0 %v216
    %v715 = vpop.f32.mrf.mxu0
    %v716 = vadd.f32 0.0, %v715
    %717 = vmatmul.f32.gmra.mxu0 %v219
    %v718 = vpop.f32.mrf.mxu0
    %v719 = vadd.f32 0.0, %v718
    %720 = vdwg.mxu0
    %v721 = vmax.f32 %v239, %v364
    %v722 = vmax.f32 %v242, %v367
    %v723 = vmax.f32 %v245, %v370
    %v724 = vmax.f32 %v248, %v373
    %v725 = vmax.f32 %v251, %v376
    %v726 = vmax.f32 %v254, %v379
    %v727 = vmax.f32 %v257, %v382
    %v728 = vmax.f32 %v260, %v385
    %v729 = vmax.f32 %v263, %v388
    %v730 = vmax.f32 %v266, %v391
    %v731 = vmax.f32 %v269, %v394
    %v732 = vmax.f32 %v272, %v397
    %v733 = vmax.f32 %v275, %v400
    %v734 = vmax.f32 %v278, %v403
    %v735 = vmax.f32 %v281, %v406
    %v736 = vmax.f32 %v284, %v409
    %v737 = vmax.f32 %v287, %v412
    %v738 = vmax.f32 %v290, %v415
    %v739 = vmax.f32 %v293, %v418
    %v740 = vmax.f32 %v296, %v421
    %v741 = vmax.f32 %v299, %v424
    %v742 = vmax.f32 %v302, %v427
    %v743 = vmax.f32 %v305, %v430
    %v744 = vmax.f32 %v308, %v433
    %v745 = vmax.f32 %v311, %v436
    %v746 = vmax.f32 %v314, %v439
    %v747 = vmax.f32 %v317, %v442
    %v748 = vmax.f32 %v320, %v445
    %v749 = vmax.f32 %v323, %v448
    %v750 = vmax.f32 %v326, %v451
    %v751 = vmax.f32 %v329, %v454
    %v752 = vmax.f32 %v332, %v457
    %v753 = vmax.f32 %v335, %v460
    %v754 = vmax.f32 %v338, %v463
    %v755 = vmax.f32 %v341, %v466
    %v756 = vmax.f32 %v344, %v469
    %v757 = vmax.f32 %v489, %v614
    %v758 = vmax.f32 %v492, %v617
    %v759 = vmax.f32 %v495, %v620
    %v760 = vmax.f32 %v498, %v623
    %v761 = vmax.f32 %v501, %v626
    %v762 = vmax.f32 %v504, %v629
    %v763 = vmax.f32 %v507, %v632
    %v764 = vmax.f32 %v510, %v635
    %v765 = vmax.f32 %v513, %v638
    %v766 = vmax.f32 %v516, %v641
    %v767 = vmax.f32 %v519, %v644
    %v768 = vmax.f32 %v522, %v647
    %v769 = vmax.f32 %v525, %v650
    %v770 = vmax.f32 %v528, %v653
    %v771 = vmax.f32 %v531, %v656
    %v772 = vmax.f32 %v534, %v659
    %v773 = vmax.f32 %v537, %v662
    %v774 = vmax.f32 %v540, %v665
    %v775 = vmax.f32 %v543, %v668
    %v776 = vmax.f32 %v546, %v671
    %v777 = vmax.f32 %v549, %v674
    %v778 = vmax.f32 %v552, %v677
    %v779 = vmax.f32 %v555, %v680
    %v780 = vmax.f32 %v558, %v683
    %v781 = vmax.f32 %v561, %v686
    %v782 = vmax.f32 %v564, %v689
    %v783 = vmax.f32 %v567, %v692
    %v784 = vmax.f32 %v570, %v695
    %v785 = vmax.f32 %v573, %v698
    %v786 = vmax.f32 %v576, %v701
    %v787 = vmax.f32 %v579, %v704
    %v788 = vmax.f32 %v582, %v707
    %v789 = vmax.f32 %v585, %v710
    %v790 = vmax.f32 %v588, %v713
    %v791 = vmax.f32 %v591, %v716
    %v792 = vmax.f32 %v594, %v719
    %v793 = vmax.f32 %v721, %v757
    %v794 = vmax.f32 %v722, %v758
    %v795 = vmax.f32 %v723, %v759
    %v796 = vmax.f32 %v724, %v760
    %v797 = vmax.f32 %v725, %v761
    %v798 = vmax.f32 %v726, %v762
    %v799 = vmax.f32 %v727, %v763
    %v800 = vmax.f32 %v728, %v764
    %v801 = vmax.f32 %v729, %v765
    %v802 = vmax.f32 %v730, %v766
    %v803 = vmax.f32 %v731, %v767
    %v804 = vmax.f32 %v732, %v768
    %v805 = vmax.f32 %v733, %v769
    %v806 = vmax.f32 %v734, %v770
    %v807 = vmax.f32 %v735, %v771
    %v808 = vmax.f32 %v736, %v772
    %v809 = vmax.f32 %v737, %v773
    %v810 = vmax.f32 %v738, %v774
    %v811 = vmax.f32 %v739, %v775
    %v812 = vmax.f32 %v740, %v776
    %v813 = vmax.f32 %v741, %v777
    %v814 = vmax.f32 %v742, %v778
    %v815 = vmax.f32 %v743, %v779
    %v816 = vmax.f32 %v744, %v780
    %v817 = vmax.f32 %v745, %v781
    %v818 = vmax.f32 %v746, %v782
    %v819 = vmax.f32 %v747, %v783
    %v820 = vmax.f32 %v748, %v784
    %v821 = vmax.f32 %v749, %v785
    %v822 = vmax.f32 %v750, %v786
    %v823 = vmax.f32 %v751, %v787
    %v824 = vmax.f32 %v752, %v788
    %v825 = vmax.f32 %v753, %v789
    %v826 = vmax.f32 %v754, %v790
    %v827 = vmax.f32 %v755, %v791
    %v828 = vmax.f32 %v756, %v792
    %v829 = vld [vmem:[#allocation4] sm:$0x1]
    %v831 = vperm.slane %v829, 0
    %v833 = vadd.f32 %v793, %v831
    %v834 = vadd.f32 %v794, %v831
    %v835 = vadd.f32 %v795, %v831
    %v836 = vadd.f32 %v796, %v831
    %v837 = vadd.f32 %v797, %v831
    %v838 = vadd.f32 %v798, %v831
    %v839 = vadd.f32 %v799, %v831
    %v840 = vadd.f32 %v800, %v831
    %v841 = vadd.f32 %v801, %v831
    %v842 = vadd.f32 %v802, %v831
    %v843 = vadd.f32 %v803, %v831
    %v844 = vadd.f32 %v804, %v831
    %v845 = vadd.f32 %v805, %v831
    %v846 = vadd.f32 %v806, %v831
    %v847 = vadd.f32 %v807, %v831
    %v848 = vadd.f32 %v808, %v831
    %v849 = vadd.f32 %v809, %v831
    %v850 = vadd.f32 %v810, %v831
    %v851 = vadd.f32 %v811, %v831
    %v852 = vadd.f32 %v812, %v831
    %v853 = vadd.f32 %v813, %v831
    %v854 = vadd.f32 %v814, %v831
    %v855 = vadd.f32 %v815, %v831
    %v856 = vadd.f32 %v816, %v831
    %v857 = vadd.f32 %v817, %v831
    %v858 = vadd.f32 %v818, %v831
    %v859 = vadd.f32 %v819, %v831
    %v860 = vadd.f32 %v820, %v831
    %v861 = vadd.f32 %v821, %v831
    %v862 = vadd.f32 %v822, %v831
    %v863 = vadd.f32 %v823, %v831
    %v864 = vadd.f32 %v824, %v831
    %v865 = vadd.f32 %v825, %v831
    %v866 = vadd.f32 %v826, %v831
    %v867 = vadd.f32 %v827, %v831
    %v868 = vadd.f32 %v828, %v831
    %v869 = vmax.f32 %v833, 0.0
    %v870 = vmax.f32 %v834, 0.0
    %v871 = vmax.f32 %v835, 0.0
    %v872 = vmax.f32 %v836, 0.0
    %v873 = vmax.f32 %v837, 0.0
    %v874 = vmax.f32 %v838, 0.0
    %v875 = vmax.f32 %v839, 0.0
    %v876 = vmax.f32 %v840, 0.0
    %v877 = vmax.f32 %v841, 0.0
    %v878 = vmax.f32 %v842, 0.0
    %v879 = vmax.f32 %v843, 0.0
    %v880 = vmax.f32 %v844, 0.0
    %v881 = vmax.f32 %v845, 0.0
    %v882 = vmax.f32 %v846, 0.0
    %v883 = vmax.f32 %v847, 0.0
    %v884 = vmax.f32 %v848, 0.0
    %v885 = vmax.f32 %v849, 0.0
    %v886 = vmax.f32 %v850, 0.0
    %v887 = vmax.f32 %v851, 0.0
    %v888 = vmax.f32 %v852, 0.0
    %v889 = vmax.f32 %v853, 0.0
    %v890 = vmax.f32 %v854, 0.0
    %v891 = vmax.f32 %v855, 0.0
    %v892 = vmax.f32 %v856, 0.0
    %v893 = vmax.f32 %v857, 0.0
    %v894 = vmax.f32 %v858, 0.0
    %v895 = vmax.f32 %v859, 0.0
    %v896 = vmax.f32 %v860, 0.0
    %v897 = vmax.f32 %v861, 0.0
    %v898 = vmax.f32 %v862, 0.0
    %v899 = vmax.f32 %v863, 0.0
    %v900 = vmax.f32 %v864, 0.0
    %v901 = vmax.f32 %v865, 0.0
    %v902 = vmax.f32 %v866, 0.0
    %v903 = vmax.f32 %v867, 0.0
    %v904 = vmax.f32 %v868, 0.0
    %905 = vst [vmem:[%s3] sm:$0xff] %v869
    %906 = vst [vmem:[%s3 + $0x8] sm:$0xff] %v870
    %907 = vst [vmem:[%s3 + $0x10] sm:$0xff] %v871
    %908 = vst [vmem:[%s3 + $0x18] sm:$0xff] %v872
    %909 = vst [vmem:[%s3 + $0x20] sm:$0xff] %v873
    %910 = vst [vmem:[%s3 + $0x28] sm:$0xff] %v874
    %911 = vst [vmem:[%s3 + $0x30] sm:$0xff] %v875
    %912 = vst [vmem:[%s3 + $0x38] sm:$0xff] %v876
    %913 = vst [vmem:[%s3 + $0x40] sm:$0xff] %v877
    %914 = vst [vmem:[%s3 + $0x48] sm:$0xff] %v878
    %915 = vst [vmem:[%s3 + $0x50] sm:$0xff] %v879
    %916 = vst [vmem:[%s3 + $0x58] sm:$0xff] %v880
    %917 = vst [vmem:[%s3 + $0x60] sm:$0xff] %v881
    %918 = vst [vmem:[%s3 + $0x68] sm:$0xff] %v882
    %919 = vst [vmem:[%s3 + $0x70] sm:$0xff] %v883
    %920 = vst [vmem:[%s3 + $0x78] sm:$0xff] %v884
    %921 = vst [vmem:[%s3 + $0x80] sm:$0xff] %v885
    %922 = vst [vmem:[%s3 + $0x88] sm:$0xff] %v886
    %923 = vst [vmem:[%s3 + $0x90] sm:$0xff] %v887
    %924 = vst [vmem:[%s3 + $0x98] sm:$0xff] %v888
    %925 = vst [vmem:[%s3 + $0xa0] sm:$0xff] %v889
    %926 = vst [vmem:[%s3 + $0xa8] sm:$0xff] %v890
    %927 = vst [vmem:[%s3 + $0xb0] sm:$0xff] %v891
    %928 = vst [vmem:[%s3 + $0xb8] sm:$0xff] %v892
    %929 = vst [vmem:[%s3 + $0xc0] sm:$0xff] %v893
    %930 = vst [vmem:[%s3 + $0xc8] sm:$0xff] %v894
    %931 = vst [vmem:[%s3 + $0xd0] sm:$0xff] %v895
    %932 = vst [vmem:[%s3 + $0xd8] sm:$0xff] %v896
    %933 = vst [vmem:[%s3 + $0xe0] sm:$0xff] %v897
    %934 = vst [vmem:[%s3 + $0xe8] sm:$0xff] %v898
    %935 = vst [vmem:[%s3 + $0xf0] sm:$0xff] %v899
    %936 = vst [vmem:[%s3 + $0xf8] sm:$0xff] %v900
    %937 = vst [vmem:[%s3 + $0x100] sm:$0xff] %v901
    %938 = vst [vmem:[%s3 + $0x108] sm:$0xff] %v902
    %939 = vst [vmem:[%s3 + $0x110] sm:$0xff] %v903
    %940 = vst [vmem:[%s3 + $0x118] sm:$0xff] %v904
    // Predicated region
    $region22: #{facial_expression_cnn_forward.2} parent=1 // pred_check
      _
    $region23: #{facial_expression_cnn_forward.2} parent=1 // pred_check_branch
      %942 = sbr.rel (0) target = $region25
    $region24: #{facial_expression_cnn_forward.2} parent=1 // pred_region
      _
    $region25: #{facial_expression_cnn_forward.2} parent=1 // pred_fallthru
      _
    // Predicated region
    $region26: #{facial_expression_cnn_forward.2} parent=1 // pred_check
      _
    $region27: #{facial_expression_cnn_forward.2} parent=1 // pred_check_branch
      %944 = sbr.rel (0) target = $region29
    $region28: #{facial_expression_cnn_forward.2} parent=1 // pred_region
      _
    $region29: #{facial_expression_cnn_forward.2} parent=1 // pred_fallthru
      _
    %945 = vsyncpa [#allocation3], 1
    %946 = vsyncpa [#allocation5], 1

// kernel: facial_expression_cnn_forward.3
$region0: #{facial_expression_cnn_forward.3}
  #allocation0 [shape = 'u32[]', space=smem, size = 0x4, offset = 0x4, fixed_abs, tag = 'smem constant byte address 0x4 - core index']
  #allocation1 [shape = 'u32[72,128]{1,0:T(1,128)}', space=vmem, size = 0x9000, scoped, tag = 'internal scratch']
  #allocation2 [shape = 'f32[2,256]{1,0:T(2,128)}', space=vmem, size = 0x800, scoped, tag = 'scratch operand']
  %s0 = inlined_call_operand.vmem [shape: f32[2,18432], index: 0, kind: input, shape index: {}]
  %s1 = inlined_call_operand.hbm [shape: bf16[18432,256], index: 1, kind: input, shape index: {}]
  %s2 = inlined_call_operand.hbm [shape: f32[1,256], index: 2, kind: input, shape index: {}]
  %s3 = inlined_call_operand.vmem [shape: f32[256,4], index: 3, kind: input, shape index: {}]
  %s4 = inlined_call_operand.vmem [shape: f32[1,2,4], index: 4, kind: output, shape index: {}]
  %s5 = sld [smem:[#allocation0]]
  $region65: #{facial_expression_cnn_forward.3} parent=0
    _
  %s7 = ssub.s32 1, %s5
  %s8 = scalar_select 0, %s7, %s5
  $region1: #{facial_expression_cnn_forward.3} parent=0
    #allocation3 [shape = 'u8[9437184]{0}', space=vmem, size = 0x900000, scoped, tag = 'input window, operand 1']
    #allocation4 [shape = 's32[2]{0}', space=sflag, size = 0x8, scoped, tag = 'scoped memory for facial_expression_cnn_forward.3']
    #allocation5 [shape = 'u8[1024]{0}', space=vmem, size = 0x400, scoped, tag = 'input window, operand 2, single buffered']
    #allocation6 [shape = 's32[1]{0}', space=sflag, size = 0x4, scoped, tag = 'scoped memory for facial_expression_cnn_forward.3']
    %9 = vsyncpa [#allocation4], 0
    %s10 = scalar_lea.sflag [#allocation4], 1
    %11 = vsyncpa %s10, 0
    %12 = vsyncpa [#allocation6], 0
    loop: start=0, step=1, limit=4
    $region2: #{facial_expression_cnn_forward.3} parent=1 // loop_pre_header
      _
    $region3: #{facial_expression_cnn_forward.3} parent=1 // loop_header
      %s14 = sphi 0, %s18
      %p15 = scmp.ge.s32.totalorder %s14, 4
      %s21 = sphi 0, %s33
      %s22 = sphi 0, %s29
      %s23 = sphi 0, %s21
      %s24 = sphi 0, %s22
      %s25 = sphi 0, %s23
      %s26 = sphi 0, %s24
      %s36 = sphi 0, %s38
      %s39 = sphi 0, %s36
      %s40 = sphi 0, %s39
      %s56 = sphi 0, %s40
      %s64 = sphi 0, %s66
      %s67 = sphi 0, %s64
      %s68 = sphi 0, %s67
      %s84 = sphi 0, %s68
      %s90 = sphi 0, %s92
      %s93 = sphi 0, %s90
      %s94 = sphi 0, %s93
      %s110 = sphi 0, %s94
      %s116 = sphi 0, %s118
      %s119 = sphi 0, %s116
      %s120 = sphi 0, %s119
      %s136 = sphi 0, %s120
      %s142 = sphi 0, %s144
      %s145 = sphi 0, %s142
      %s146 = sphi 0, %s145
      %s162 = sphi 0, %s146
    $region4: #{facial_expression_cnn_forward.3} parent=1 // loop_header_branch
      %17 = sbr.rel (%p15) target = $region8
    $region5: #{facial_expression_cnn_forward.3} parent=1 // loop_body
      %s19 = ssub.s32 %s14, 1
      %s20 = ssub.s32 %s14, 2
      %s27 = sadd.s32 1, %s22
      %p28 = scmp.ge.s32.totalorder %s27, 2
      %s29 = scalar_select %p28, 0, %s27
      %s30 = sadd.s32 1, %s21
      %s31 = scalar_select %p28, %s30, %s21
      %p32 = scmp.ge.s32.totalorder %s31, 1
      %s33 = scalar_select %p32, 0, %s31
      %s34 = ssub.s32 %s22, %s29
      %p35 = scmp.eq.s32.totalorder %s34, 0
      %s37 = sadd.s32 %s36, 1
      %s38 = scalar_select %p35, %s36, %s37
      %p41 = pneg %p35
      %p42 = scmp.eq.s32.totalorder %s14, 1
      %p43 = por %p41, %p42
      %p44 = scmp.ne.s32.totalorder %s36, %s39
      %p45 = scmp.eq.s32.totalorder %s14, 0
      %p46 = por %p44, %p45
      %p47 = scmp.ne.s32.totalorder %s36, %s39
      %p48 = scmp.eq.s32.totalorder %s19, 1
      %p49 = por %p47, %p48
      %p50 = scmp.ne.s32.totalorder %s39, %s40
      %p51 = scmp.eq.s32.totalorder %s19, 0
      %p52 = por %p50, %p51
      %p53 = scmp.ne.s32.totalorder %s39, %s40
      %p54 = scmp.eq.s32.totalorder %s20, 1
      %p55 = por %p53, %p54
      %p57 = scmp.ne.s32.totalorder %s40, %s56
      %p58 = scmp.eq.s32.totalorder %s20, 0
      %p59 = por %p57, %p58
      %s60 = ssub.s32 %s22, %s29
      %s61 = ssub.s32 %s21, %s33
      %s62 = sor.u32 %s60, %s61
      %p63 = scmp.eq.s32.totalorder %s62, 0
      %s65 = sadd.s32 %s64, 1
      %s66 = scalar_select %p63, %s64, %s65
      %p69 = pneg %p63
      %p70 = scmp.eq.s32.totalorder %s14, 1
      %p71 = por %p69, %p70
      %p72 = scmp.ne.s32.totalorder %s64, %s67
      %p73 = scmp.eq.s32.totalorder %s14, 0
      %p74 = por %p72, %p73
      %p75 = scmp.ne.s32.totalorder %s64, %s67
      %p76 = scmp.eq.s32.totalorder %s19, 1
      %p77 = por %p75, %p76
      %p78 = scmp.ne.s32.totalorder %s67, %s68
      %p79 = scmp.eq.s32.totalorder %s19, 0
      %p80 = por %p78, %p79
      %p81 = scmp.ne.s32.totalorder %s67, %s68
      %p82 = scmp.eq.s32.totalorder %s20, 1
      %p83 = por %p81, %p82
      %p85 = scmp.ne.s32.totalorder %s68, %s84
      %p86 = scmp.eq.s32.totalorder %s20, 0
      %p87 = por %p85, %p86
      %s88 = ssub.s32 %s21, %s33
      %p89 = scmp.eq.s32.totalorder %s88, 0
      %s91 = sadd.s32 %s90, 1
      %s92 = scalar_select %p89, %s90, %s91
      %p95 = pneg %p89
      %p96 = scmp.eq.s32.totalorder %s14, 1
      %p97 = por %p95, %p96
      %p98 = scmp.ne.s32.totalorder %s90, %s93
      %p99 = scmp.eq.s32.totalorder %s14, 0
      %p100 = por %p98, %p99
      %p101 = scmp.ne.s32.totalorder %s90, %s93
      %p102 = scmp.eq.s32.totalorder %s19, 1
      %p103 = por %p101, %p102
      %p104 = scmp.ne.s32.totalorder %s93, %s94
      %p105 = scmp.eq.s32.totalorder %s19, 0
      %p106 = por %p104, %p105
      %p107 = scmp.ne.s32.totalorder %s93, %s94
      %p108 = scmp.eq.s32.totalorder %s20, 1
      %p109 = por %p107, %p108
      %p111 = scmp.ne.s32.totalorder %s94, %s110
      %p112 = scmp.eq.s32.totalorder %s20, 0
      %p113 = por %p111, %p112
      %s114 = ssub.s32 %s21, %s33
      %p115 = scmp.eq.s32.totalorder %s114, 0
      %s117 = sadd.s32 %s116, 1
      %s118 = scalar_select %p115, %s116, %s117
      %p121 = pneg %p115
      %p122 = scmp.eq.s32.totalorder %s14, 1
      %p123 = por %p121, %p122
      %p124 = scmp.ne.s32.totalorder %s116, %s119
      %p125 = scmp.eq.s32.totalorder %s14, 0
      %p126 = por %p124, %p125
      %p127 = scmp.ne.s32.totalorder %s116, %s119
      %p128 = scmp.eq.s32.totalorder %s19, 1
      %p129 = por %p127, %p128
      %p130 = scmp.ne.s32.totalorder %s119, %s120
      %p131 = scmp.eq.s32.totalorder %s19, 0
      %p132 = por %p130, %p131
      %p133 = scmp.ne.s32.totalorder %s119, %s120
      %p134 = scmp.eq.s32.totalorder %s20, 1
      %p135 = por %p133, %p134
      %p137 = scmp.ne.s32.totalorder %s120, %s136
      %p138 = scmp.eq.s32.totalorder %s20, 0
      %p139 = por %p137, %p138
      %s140 = ssub.s32 %s21, %s33
      %p141 = scmp.eq.s32.totalorder %s140, 0
      %s143 = sadd.s32 %s142, 1
      %s144 = scalar_select %p141, %s142, %s143
      %p147 = pneg %p141
      %p148 = scmp.eq.s32.totalorder %s14, 1
      %p149 = por %p147, %p148
      %p150 = scmp.ne.s32.totalorder %s142, %s145
      %p151 = scmp.eq.s32.totalorder %s14, 0
      %p152 = por %p150, %p151
      %p153 = scmp.ne.s32.totalorder %s142, %s145
      %p154 = scmp.eq.s32.totalorder %s19, 1
      %p155 = por %p153, %p154
      %p156 = scmp.ne.s32.totalorder %s145, %s146
      %p157 = scmp.eq.s32.totalorder %s19, 0
      %p158 = por %p156, %p157
      %p159 = scmp.ne.s32.totalorder %s145, %s146
      %p160 = scmp.eq.s32.totalorder %s20, 1
      %p161 = por %p159, %p160
      %p163 = scmp.ne.s32.totalorder %s146, %s162
      %p164 = scmp.eq.s32.totalorder %s20, 0
      %p165 = por %p163, %p164
      %p166 = scmp.le.s32.totalorder 1, %s14
      %p167 = scmp.lt.s32.totalorder %s14, 3
      %p168 = pnand %p166, %p167
      %p169 = pneg %p168
      // Predicated region
      $region9: #{facial_expression_cnn_forward.3} parent=5 // pred_check
        _
      $region10: #{facial_expression_cnn_forward.3} parent=5 // pred_check_branch
        %171 = sbr.rel (%p168) target = $region12
      $region11: #{facial_expression_cnn_forward.3} parent=5 // pred_region
        %s172 = ssub.s32 %s14, 1
        // Predicated region
        $region13: #{facial_expression_cnn_forward.3} parent=11 // pred_check
          %p173 = pneg %p106
        $region14: #{facial_expression_cnn_forward.3} parent=11 // pred_check_branch
          %175 = sbr.rel (%p173) target = $region16
        $region15: #{facial_expression_cnn_forward.3} parent=11 // pred_region
          %s176 = smul.u32 2, %s23
          %178 = vsyncadd [#allocation6], 0
          %s179 = scalar_lea.hbm %s2, %s176
          %s181 = sshll.u32 %s179, 4
          %s182 = int_to_ptr.hbm [resolvable:$true] %s181
          %s183 = sshll.u32 [#allocation5], 4
          %s184 = int_to_ptr.vmem [resolvable:$true] %s183
          %186 = dma.hbm_to_vmem [thread:$0]  %s182, 32, %s184, [#allocation6]
        $region16: #{facial_expression_cnn_forward.3} parent=11 // pred_fallthru
          _
        // Predicated region
        $region17: #{facial_expression_cnn_forward.3} parent=11 // pred_check
          %p187 = pneg %p132
        $region18: #{facial_expression_cnn_forward.3} parent=11 // pred_check_branch
          %189 = sbr.rel (%p187) target = $region20
        $region19: #{facial_expression_cnn_forward.3} parent=11 // pred_region
          %s190 = smul.u32 32, %s23
          %p191 = scmp.lt.s32.totalorder %s190, 31
          %s192 = scalar_select %p191, %s190, 31
          %s193 = smul.addr %s192, 8
          %s194 = scalar_lea.vmem %s3, %s193
          %s195 = smul.u32 32, %s23
        $region20: #{facial_expression_cnn_forward.3} parent=11 // pred_fallthru
          _
      $region12: #{facial_expression_cnn_forward.3} parent=5 // pred_fallthru
        _
      %p196 = scmp.lt.s32.totalorder %s14, 2
      // Predicated region
      $region21: #{facial_expression_cnn_forward.3} parent=5 // pred_check
        %p197 = pneg %p196
      $region22: #{facial_expression_cnn_forward.3} parent=5 // pred_check_branch
        %199 = sbr.rel (%p197) target = $region24
      $region23: #{facial_expression_cnn_forward.3} parent=5 // pred_region
        // Predicated region
        $region25: #{facial_expression_cnn_forward.3} parent=23 // pred_check
          %p200 = pneg %p46
        $region26: #{facial_expression_cnn_forward.3} parent=23 // pred_check_branch
          %202 = sbr.rel (%p200) target = $region28
        $region27: #{facial_expression_cnn_forward.3} parent=23 // pred_region
          %s203 = smul.u32 72, %s22
          %p204 = scmp.lt.s32.totalorder %s203, 143
          %s205 = scalar_select %p204, %s203, 143
          %s206 = smul.addr %s205, 2
          %s207 = scalar_lea.vmem %s0, %s206
          %s208 = smul.u32 72, %s22
        $region28: #{facial_expression_cnn_forward.3} parent=23 // pred_fallthru
          _
        // Predicated region
        $region29: #{facial_expression_cnn_forward.3} parent=23 // pred_check
          %p209 = pneg %p74
        $region30: #{facial_expression_cnn_forward.3} parent=23 // pred_check_branch
          %211 = sbr.rel (%p209) target = $region32
        $region31: #{facial_expression_cnn_forward.3} parent=23 // pred_region
          %s212 = sand.u32 %s64, 1
          %s213 = scalar_lea.sflag [#allocation4], %s212
          %s214 = sand.u32 %s64, 1
          %s215 = smul.addr %s214, 9216
          %s216 = scalar_lea.vmem [#allocation3], %s215
          %s217 = smul.u32 1152, %s22
          %s218 = smul.u32 2, %s21
          %220 = vsyncadd %s213, 0
          %s221 = smul.addr %s217, 2
          %s222 = sadd.s32 %s218, %s221
          %s223 = smul.addr %s222, 4
          %s224 = scalar_lea.hbm %s1, %s223
          %s225 = sshll.u32 %s224, 4
          %s226 = int_to_ptr.hbm [resolvable:$true] %s225
          %s227 = sshll.u32 %s216, 4
          %s228 = int_to_ptr.vmem [resolvable:$true] %s227
          %233 = dma.hbm_to_vmem [thread:$0]  %s226, 147456, %s228, %s213, 128, 128, 8
        $region32: #{facial_expression_cnn_forward.3} parent=23 // pred_fallthru
          _
      $region24: #{facial_expression_cnn_forward.3} parent=5 // pred_fallthru
        _
      %p234 = scmp.le.s32.totalorder 1, %s14
      %p235 = scmp.lt.s32.totalorder %s14, 3
      %p236 = pnand %p234, %p235
      %p237 = pneg %p236
      // Predicated region
      $region33: #{facial_expression_cnn_forward.3} parent=5 // pred_check
        _
      $region34: #{facial_expression_cnn_forward.3} parent=5 // pred_check_branch
        %239 = sbr.rel (%p236) target = $region36
      $region35: #{facial_expression_cnn_forward.3} parent=5 // pred_region
        %s240 = ssub.s32 %s14, 1
        %s241 = sand.u32 %s67, 1
        %s242 = scalar_lea.sflag [#allocation4], %s241
        %s243 = sand.u32 %s67, 1
        %s244 = smul.addr %s243, 9216
        %s245 = scalar_lea.vmem [#allocation3], %s244
        // Predicated region
        $region37: #{facial_expression_cnn_forward.3} parent=35 // pred_check
          %p246 = pneg %p80
        $region38: #{facial_expression_cnn_forward.3} parent=35 // pred_check_branch
          %248 = sbr.rel (%p246) target = $region40
        $region39: #{facial_expression_cnn_forward.3} parent=35 // pred_region
          %250 = dma.done %s242, 147456
        $region40: #{facial_expression_cnn_forward.3} parent=35 // pred_fallthru
          _
        // Predicated region
        $region41: #{facial_expression_cnn_forward.3} parent=35 // pred_check
          %p251 = pneg %p106
        $region42: #{facial_expression_cnn_forward.3} parent=35 // pred_check_branch
          %253 = sbr.rel (%p251) target = $region44
        $region43: #{facial_expression_cnn_forward.3} parent=35 // pred_region
          %255 = dma.done [#allocation6], 32
        $region44: #{facial_expression_cnn_forward.3} parent=35 // pred_fallthru
          _
        %s256 = smul.u32 72, %s24
        %p257 = scmp.lt.s32.totalorder %s256, 143
        %s258 = scalar_select %p257, %s256, 143
        %s259 = smul.addr %s258, 2
        %s260 = scalar_lea.vmem %s0, %s259
        %p261 = pneg %p52
        %p262 = pneg %p49
        %s263 = sand.u32 %s67, 1
        %s264 = scalar_lea.sflag [#allocation4], %s263
        %s265 = sand.u32 %s67, 1
        %s266 = smul.addr %s265, 9216
        %s267 = scalar_lea.vmem [#allocation3], %s266
        %p268 = pneg %p80
        %p269 = pneg %p77
        %p270 = pneg %p106
        %p271 = pneg %p103
        %s272 = smul.u32 32, %s23
        %p273 = scmp.lt.s32.totalorder %s272, 31
        %s274 = scalar_select %p273, %s272, 31
        %s275 = smul.addr %s274, 8
        %s276 = scalar_lea.vmem %s3, %s275
        %p277 = pneg %p132
        %p278 = pneg %p129
        %p279 = pneg %p158
        %p280 = pneg %p155
        %p281 = scmp.lt.s32.totalorder %s23, 0
        %s282 = scalar_select %p281, %s23, 0
        %s283 = smul.addr %s282, 2
        %s284 = scalar_lea.vmem %s4, %s283
        %s285 = smul.u32 72, %s24
        %p286 = scmp.lt.s32.totalorder %s285, 143
        %s287 = scalar_select %p286, %s285, 143
        %s288 = smul.addr %s287, 2
        %s289 = scalar_lea.vmem %s0, %s288
        %s290 = smul.u32 72, %s24
        %s291 = smul.u32 1152, %s24
        %s292 = smul.u32 2, %s23
        %s293 = smul.u32 2, %s23
        %s294 = smul.u32 32, %s23
        %p295 = scmp.lt.s32.totalorder %s294, 31
        %s296 = scalar_select %p295, %s294, 31
        %s297 = smul.addr %s296, 8
        %s298 = scalar_lea.vmem %s3, %s297
        %s299 = smul.u32 32, %s23
        %p300 = scmp.lt.s32.totalorder %s23, 0
        %s301 = scalar_select %p300, %s23, 0
        %s302 = smul.addr %s301, 2
        %s303 = scalar_lea.vmem %s4, %s302
        %p304 = scmp.eq.s32.totalorder %s24, 0
        // Predicated region
        $region45: #{facial_expression_cnn_forward.3} parent=35 // pred_check
          %p305 = pneg %p304
        $region46: #{facial_expression_cnn_forward.3} parent=35 // pred_check_branch
          %307 = sbr.rel (%p305) target = $region48
        $region47: #{facial_expression_cnn_forward.3} parent=35 // pred_region
          %308 = vst [vmem:[#allocation2] sm:$0xf] 0.0
        $region48: #{facial_expression_cnn_forward.3} parent=35 // pred_fallthru
          _
        %v309 = vld [vmem:[#allocation2] sm:$0xf]
        %v310 = vld [vmem:[%s289] sm:$0xff]
        %v311 = vld [vmem:[%s289 + $0x8] sm:$0xff]
        %v312 = vld [vmem:[%s289 + $0x10] sm:$0xff]
        %v313 = vld [vmem:[%s289 + $0x18] sm:$0xff]
        %v314 = vld [vmem:[%s289 + $0x20] sm:$0xff]
        %v315 = vld [vmem:[%s289 + $0x28] sm:$0xff]
        %v316 = vld [vmem:[%s289 + $0x30] sm:$0xff]
        %v317 = vld [vmem:[%s289 + $0x38] sm:$0xff]
        %v318 = vld [vmem:[%s289 + $0x40] sm:$0xff]
        %v319 = vld [vmem:[%s289 + $0x48] sm:$0xff]
        %v320 = vld [vmem:[%s289 + $0x50] sm:$0xff]
        %v321 = vld [vmem:[%s289 + $0x58] sm:$0xff]
        %v322 = vld [vmem:[%s289 + $0x60] sm:$0xff]
        %v323 = vld [vmem:[%s289 + $0x68] sm:$0xff]
        %v324 = vld [vmem:[%s289 + $0x70] sm:$0xff]
        %v325 = vld [vmem:[%s289 + $0x78] sm:$0xff]
        %v326 = vld [vmem:[%s289 + $0x80] sm:$0xff]
        %v327 = vld [vmem:[%s289 + $0x88] sm:$0xff]
        %346 = vst [vmem:[#allocation1] ss:$4 sm:$0xff] %v310
        %s347 = scalar_lea.vmem [#allocation1], 32
        %348 = vst [vmem:[%s347] ss:$4 sm:$0xff] %v311
        %v349 = vld.sshfl [vmem:[#allocation1] sm:$0xff pattern:$0x73625140]
        %v350 = vld.sshfl [vmem:[#allocation1 + $0x8] sm:$0xff pattern:$0x73625140]
        %v351 = vld.sshfl [vmem:[#allocation1 + $0x10] sm:$0xff pattern:$0x73625140]
        %v352 = vld.sshfl [vmem:[#allocation1 + $0x18] sm:$0xff pattern:$0x73625140]
        %v353 = vld.sshfl [vmem:[#allocation1 + $0x20] sm:$0xff pattern:$0x73625140]
        %v354 = vld.sshfl [vmem:[#allocation1 + $0x28] sm:$0xff pattern:$0x73625140]
        %v355 = vld.sshfl [vmem:[#allocation1 + $0x30] sm:$0xff pattern:$0x73625140]
        %v356 = vld.sshfl [vmem:[#allocation1 + $0x38] sm:$0xff pattern:$0x73625140]
        %357 = vst [vmem:[#allocation1] ss:$4 sm:$0xff] %v312
        %358 = vst [vmem:[%s347] ss:$4 sm:$0xff] %v313
        %v359 = vld.sshfl [vmem:[#allocation1] sm:$0xff pattern:$0x73625140]
        %v360 = vld.sshfl [vmem:[#allocation1 + $0x8] sm:$0xff pattern:$0x73625140]
        %v361 = vld.sshfl [vmem:[#allocation1 + $0x10] sm:$0xff pattern:$0x73625140]
        %v362 = vld.sshfl [vmem:[#allocation1 + $0x18] sm:$0xff pattern:$0x73625140]
        %v363 = vld.sshfl [vmem:[#allocation1 + $0x20] sm:$0xff pattern:$0x73625140]
        %v364 = vld.sshfl [vmem:[#allocation1 + $0x28] sm:$0xff pattern:$0x73625140]
        %v365 = vld.sshfl [vmem:[#allocation1 + $0x30] sm:$0xff pattern:$0x73625140]
        %v366 = vld.sshfl [vmem:[#allocation1 + $0x38] sm:$0xff pattern:$0x73625140]
        %367 = vst [vmem:[#allocation1] ss:$4 sm:$0xff] %v314
        %368 = vst [vmem:[%s347] ss:$4 sm:$0xff] %v315
        %v369 = vld.sshfl [vmem:[#allocation1] sm:$0xff pattern:$0x73625140]
        %v370 = vld.sshfl [vmem:[#allocation1 + $0x8] sm:$0xff pattern:$0x73625140]
        %v371 = vld.sshfl [vmem:[#allocation1 + $0x10] sm:$0xff pattern:$0x73625140]
        %v372 = vld.sshfl [vmem:[#allocation1 + $0x18] sm:$0xff pattern:$0x73625140]
        %v373 = vld.sshfl [vmem:[#allocation1 + $0x20] sm:$0xff pattern:$0x73625140]
        %v374 = vld.sshfl [vmem:[#allocation1 + $0x28] sm:$0xff pattern:$0x73625140]
        %v375 = vld.sshfl [vmem:[#allocation1 + $0x30] sm:$0xff pattern:$0x73625140]
        %v376 = vld.sshfl [vmem:[#allocation1 + $0x38] sm:$0xff pattern:$0x73625140]
        %377 = vst [vmem:[#allocation1] ss:$4 sm:$0xff] %v316
        %378 = vst [vmem:[%s347] ss:$4 sm:$0xff] %v317
        %v379 = vld.sshfl [vmem:[#allocation1] sm:$0xff pattern:$0x73625140]
        %v380 = vld.sshfl [vmem:[#allocation1 + $0x8] sm:$0xff pattern:$0x73625140]
        %v381 = vld.sshfl [vmem:[#allocation1 + $0x10] sm:$0xff pattern:$0x73625140]
        %v382 = vld.sshfl [vmem:[#allocation1 + $0x18] sm:$0xff pattern:$0x73625140]
        %v383 = vld.sshfl [vmem:[#allocation1 + $0x20] sm:$0xff pattern:$0x73625140]
        %v384 = vld.sshfl [vmem:[#allocation1 + $0x28] sm:$0xff pattern:$0x73625140]
        %v385 = vld.sshfl [vmem:[#allocation1 + $0x30] sm:$0xff pattern:$0x73625140]
        %v386 = vld.sshfl [vmem:[#allocation1 + $0x38] sm:$0xff pattern:$0x73625140]
        %387 = vst [vmem:[#allocation1] ss:$4 sm:$0xff] %v318
        %388 = vst [vmem:[%s347] ss:$4 sm:$0xff] %v319
        %v389 = vld.sshfl [vmem:[#allocation1] sm:$0xff pattern:$0x73625140]
        %v390 = vld.sshfl [vmem:[#allocation1 + $0x8] sm:$0xff pattern:$0x73625140]
        %v391 = vld.sshfl [vmem:[#allocation1 + $0x10] sm:$0xff pattern:$0x73625140]
        %v392 = vld.sshfl [vmem:[#allocation1 + $0x18] sm:$0xff pattern:$0x73625140]
        %v393 = vld.sshfl [vmem:[#allocation1 + $0x20] sm:$0xff pattern:$0x73625140]
        %v394 = vld.sshfl [vmem:[#allocation1 + $0x28] sm:$0xff pattern:$0x73625140]
        %v395 = vld.sshfl [vmem:[#allocation1 + $0x30] sm:$0xff pattern:$0x73625140]
        %v396 = vld.sshfl [vmem:[#allocation1 + $0x38] sm:$0xff pattern:$0x73625140]
        %397 = vst [vmem:[#allocation1] ss:$4 sm:$0xff] %v320
        %398 = vst [vmem:[%s347] ss:$4 sm:$0xff] %v321
        %v399 = vld.sshfl [vmem:[#allocation1] sm:$0xff pattern:$0x73625140]
        %v400 = vld.sshfl [vmem:[#allocation1 + $0x8] sm:$0xff pattern:$0x73625140]
        %v401 = vld.sshfl [vmem:[#allocation1 + $0x10] sm:$0xff pattern:$0x73625140]
        %v402 = vld.sshfl [vmem:[#allocation1 + $0x18] sm:$0xff pattern:$0x73625140]
        %v403 = vld.sshfl [vmem:[#allocation1 + $0x20] sm:$0xff pattern:$0x73625140]
        %v404 = vld.sshfl [vmem:[#allocation1 + $0x28] sm:$0xff pattern:$0x73625140]
        %v405 = vld.sshfl [vmem:[#allocation1 + $0x30] sm:$0xff pattern:$0x73625140]
        %v406 = vld.sshfl [vmem:[#allocation1 + $0x38] sm:$0xff pattern:$0x73625140]
        %407 = vst [vmem:[#allocation1] ss:$4 sm:$0xff] %v322
        %408 = vst [vmem:[%s347] ss:$4 sm:$0xff] %v323
        %v409 = vld.sshfl [vmem:[#allocation1] sm:$0xff pattern:$0x73625140]
        %v410 = vld.sshfl [vmem:[#allocation1 + $0x8] sm:$0xff pattern:$0x73625140]
        %v411 = vld.sshfl [vmem:[#allocation1 + $0x10] sm:$0xff pattern:$0x73625140]
        %v412 = vld.sshfl [vmem:[#allocation1 + $0x18] sm:$0xff pattern:$0x73625140]
        %v413 = vld.sshfl [vmem:[#allocation1 + $0x20] sm:$0xff pattern:$0x73625140]
        %v414 = vld.sshfl [vmem:[#allocation1 + $0x28] sm:$0xff pattern:$0x73625140]
        %v415 = vld.sshfl [vmem:[#allocation1 + $0x30] sm:$0xff pattern:$0x73625140]
        %v416 = vld.sshfl [vmem:[#allocation1 + $0x38] sm:$0xff pattern:$0x73625140]
        %417 = vst [vmem:[#allocation1] ss:$4 sm:$0xff] %v324
        %418 = vst [vmem:[%s347] ss:$4 sm:$0xff] %v325
        %v419 = vld.sshfl [vmem:[#allocation1] sm:$0xff pattern:$0x73625140]
        %v420 = vld.sshfl [vmem:[#allocation1 + $0x8] sm:$0xff pattern:$0x73625140]
        %v421 = vld.sshfl [vmem:[#allocation1 + $0x10] sm:$0xff pattern:$0x73625140]
        %v422 = vld.sshfl [vmem:[#allocation1 + $0x18] sm:$0xff pattern:$0x73625140]
        %v423 = vld.sshfl [vmem:[#allocation1 + $0x20] sm:$0xff pattern:$0x73625140]
        %v424 = vld.sshfl [vmem:[#allocation1 + $0x28] sm:$0xff pattern:$0x73625140]
        %v425 = vld.sshfl [vmem:[#allocation1 + $0x30] sm:$0xff pattern:$0x73625140]
        %v426 = vld.sshfl [vmem:[#allocation1 + $0x38] sm:$0xff pattern:$0x73625140]
        %427 = vst [vmem:[#allocation1] ss:$4 sm:$0xff] %v326
        %428 = vst [vmem:[%s347] ss:$4 sm:$0xff] %v327
        %v429 = vld.sshfl [vmem:[#allocation1] sm:$0xff pattern:$0x73625140]
        %v430 = vld.sshfl [vmem:[#allocation1 + $0x8] sm:$0xff pattern:$0x73625140]
        %v431 = vld.sshfl [vmem:[#allocation1 + $0x10] sm:$0xff pattern:$0x73625140]
        %v432 = vld.sshfl [vmem:[#allocation1 + $0x18] sm:$0xff pattern:$0x73625140]
        %v433 = vld.sshfl [vmem:[#allocation1 + $0x20] sm:$0xff pattern:$0x73625140]
        %v434 = vld.sshfl [vmem:[#allocation1 + $0x28] sm:$0xff pattern:$0x73625140]
        %v435 = vld.sshfl [vmem:[#allocation1 + $0x30] sm:$0xff pattern:$0x73625140]
        %v436 = vld.sshfl [vmem:[#allocation1 + $0x38] sm:$0xff pattern:$0x73625140]
        %v509 = vpack.c.bf16 %v349, %v349
        %v510 = vpack.c.bf16 %v350, %v350
        %v511 = vpack.c.bf16 %v351, %v351
        %v512 = vpack.c.bf16 %v352, %v352
        %v513 = vpack.c.bf16 %v353, %v353
        %v514 = vpack.c.bf16 %v354, %v354
        %v515 = vpack.c.bf16 %v355, %v355
        %v516 = vpack.c.bf16 %v356, %v356
        %v517 = vpack.c.bf16 %v359, %v359
        %v518 = vpack.c.bf16 %v360, %v360
        %v519 = vpack.c.bf16 %v361, %v361
        %v520 = vpack.c.bf16 %v362, %v362
        %v521 = vpack.c.bf16 %v363, %v363
        %v522 = vpack.c.bf16 %v364, %v364
        %v523 = vpack.c.bf16 %v365, %v365
        %v524 = vpack.c.bf16 %v366, %v366
        %v525 = vpack.c.bf16 %v369, %v369
        %v526 = vpack.c.bf16 %v370, %v370
        %v527 = vpack.c.bf16 %v371, %v371
        %v528 = vpack.c.bf16 %v372, %v372
        %v529 = vpack.c.bf16 %v373, %v373
        %v530 = vpack.c.bf16 %v374, %v374
        %v531 = vpack.c.bf16 %v375, %v375
        %v532 = vpack.c.bf16 %v376, %v376
        %v533 = vpack.c.bf16 %v379, %v379
        %v534 = vpack.c.bf16 %v380, %v380
        %v535 = vpack.c.bf16 %v381, %v381
        %v536 = vpack.c.bf16 %v382, %v382
        %v537 = vpack.c.bf16 %v383, %v383
        %v538 = vpack.c.bf16 %v384, %v384
        %v539 = vpack.c.bf16 %v385, %v385
        %v540 = vpack.c.bf16 %v386, %v386
        %v541 = vpack.c.bf16 %v389, %v389
        %v542 = vpack.c.bf16 %v390, %v390
        %v543 = vpack.c.bf16 %v391, %v391
        %v544 = vpack.c.bf16 %v392, %v392
        %v545 = vpack.c.bf16 %v393, %v393
        %v546 = vpack.c.bf16 %v394, %v394
        %v547 = vpack.c.bf16 %v395, %v395
        %v548 = vpack.c.bf16 %v396, %v396
        %v549 = vpack.c.bf16 %v399, %v399
        %v550 = vpack.c.bf16 %v400, %v400
        %v551 = vpack.c.bf16 %v401, %v401
        %v552 = vpack.c.bf16 %v402, %v402
        %v553 = vpack.c.bf16 %v403, %v403
        %v554 = vpack.c.bf16 %v404, %v404
        %v555 = vpack.c.bf16 %v405, %v405
        %v556 = vpack.c.bf16 %v406, %v406
        %v557 = vpack.c.bf16 %v409, %v409
        %v558 = vpack.c.bf16 %v410, %v410
        %v559 = vpack.c.bf16 %v411, %v411
        %v560 = vpack.c.bf16 %v412, %v412
        %v561 = vpack.c.bf16 %v413, %v413
        %v562 = vpack.c.bf16 %v414, %v414
        %v563 = vpack.c.bf16 %v415, %v415
        %v564 = vpack.c.bf16 %v416, %v416
        %v565 = vpack.c.bf16 %v419, %v419
        %v566 = vpack.c.bf16 %v420, %v420
        %v567 = vpack.c.bf16 %v421, %v421
        %v568 = vpack.c.bf16 %v422, %v422
        %v569 = vpack.c.bf16 %v423, %v423
        %v570 = vpack.c.bf16 %v424, %v424
        %v571 = vpack.c.bf16 %v425, %v425
        %v572 = vpack.c.bf16 %v426, %v426
        %v573 = vpack.c.bf16 %v429, %v429
        %v574 = vpack.c.bf16 %v430, %v430
        %v575 = vpack.c.bf16 %v431, %v431
        %v576 = vpack.c.bf16 %v432, %v432
        %v577 = vpack.c.bf16 %v433, %v433
        %v578 = vpack.c.bf16 %v434, %v434
        %v579 = vpack.c.bf16 %v435, %v435
        %v580 = vpack.c.bf16 %v436, %v436
        %v581 = vld [vmem:[%s245] sm:$0xff]
        %v582 = vld [vmem:[%s245 + $0x8] sm:$0xff]
        %v583 = vld [vmem:[%s245 + $0x10] sm:$0xff]
        %v584 = vld [vmem:[%s245 + $0x18] sm:$0xff]
        %v585 = vld [vmem:[%s245 + $0x20] sm:$0xff]
        %v586 = vld [vmem:[%s245 + $0x28] sm:$0xff]
        %v587 = vld [vmem:[%s245 + $0x30] sm:$0xff]
        %v588 = vld [vmem:[%s245 + $0x38] sm:$0xff]
        %v589 = vld [vmem:[%s245 + $0x40] sm:$0xff]
        %v590 = vld [vmem:[%s245 + $0x48] sm:$0xff]
        %v591 = vld [vmem:[%s245 + $0x50] sm:$0xff]
        %v592 = vld [vmem:[%s245 + $0x58] sm:$0xff]
        %v593 = vld [vmem:[%s245 + $0x60] sm:$0xff]
        %v594 = vld [vmem:[%s245 + $0x68] sm:$0xff]
        %v595 = vld [vmem:[%s245 + $0x70] sm:$0xff]
        %v596 = vld [vmem:[%s245 + $0x78] sm:$0xff]
        %v597 = vld [vmem:[%s245 + $0x80] sm:$0xff]
        %v598 = vld [vmem:[%s245 + $0x88] sm:$0xff]
        %v599 = vld [vmem:[%s245 + $0x90] sm:$0xff]
        %v600 = vld [vmem:[%s245 + $0x98] sm:$0xff]
        %v601 = vld [vmem:[%s245 + $0xa0] sm:$0xff]
        %v602 = vld [vmem:[%s245 + $0xa8] sm:$0xff]
        %v603 = vld [vmem:[%s245 + $0xb0] sm:$0xff]
        %v604 = vld [vmem:[%s245 + $0xb8] sm:$0xff]
        %v605 = vld [vmem:[%s245 + $0xc0] sm:$0xff]
        %v606 = vld [vmem:[%s245 + $0xc8] sm:$0xff]
        %v607 = vld [vmem:[%s245 + $0xd0] sm:$0xff]
        %v608 = vld [vmem:[%s245 + $0xd8] sm:$0xff]
        %v609 = vld [vmem:[%s245 + $0xe0] sm:$0xff]
        %v610 = vld [vmem:[%s245 + $0xe8] sm:$0xff]
        %v611 = vld [vmem:[%s245 + $0xf0] sm:$0xff]
        %v612 = vld [vmem:[%s245 + $0xf8] sm:$0xff]
        %v613 = vld [vmem:[%s245 + $0x100] sm:$0xff]
        %v614 = vld [vmem:[%s245 + $0x108] sm:$0xff]
        %v615 = vld [vmem:[%s245 + $0x110] sm:$0xff]
        %v616 = vld [vmem:[%s245 + $0x118] sm:$0xff]
        %v617 = vld [vmem:[%s245 + $0x120] sm:$0xff]
        %v618 = vld [vmem:[%s245 + $0x128] sm:$0xff]
        %v619 = vld [vmem:[%s245 + $0x130] sm:$0xff]
        %v620 = vld [vmem:[%s245 + $0x138] sm:$0xff]
        %v621 = vld [vmem:[%s245 + $0x140] sm:$0xff]
        %v622 = vld [vmem:[%s245 + $0x148] sm:$0xff]
        %v623 = vld [vmem:[%s245 + $0x150] sm:$0xff]
        %v624 = vld [vmem:[%s245 + $0x158] sm:$0xff]
        %v625 = vld [vmem:[%s245 + $0x160] sm:$0xff]
        %v626 = vld [vmem:[%s245 + $0x168] sm:$0xff]
        %v627 = vld [vmem:[%s245 + $0x170] sm:$0xff]
        %v628 = vld [vmem:[%s245 + $0x178] sm:$0xff]
        %v629 = vld [vmem:[%s245 + $0x180] sm:$0xff]
        %v630 = vld [vmem:[%s245 + $0x188] sm:$0xff]
        %v631 = vld [vmem:[%s245 + $0x190] sm:$0xff]
        %v632 = vld [vmem:[%s245 + $0x198] sm:$0xff]
        %v633 = vld [vmem:[%s245 + $0x1a0] sm:$0xff]
        %v634 = vld [vmem:[%s245 + $0x1a8] sm:$0xff]
        %v635 = vld [vmem:[%s245 + $0x1b0] sm:$0xff]
        %v636 = vld [vmem:[%s245 + $0x1b8] sm:$0xff]
        %v637 = vld [vmem:[%s245 + $0x1c0] sm:$0xff]
        %v638 = vld [vmem:[%s245 + $0x1c8] sm:$0xff]
        %v639 = vld [vmem:[%s245 + $0x1d0] sm:$0xff]
        %v640 = vld [vmem:[%s245 + $0x1d8] sm:$0xff]
        %v641 = vld [vmem:[%s245 + $0x1e0] sm:$0xff]
        %v642 = vld [vmem:[%s245 + $0x1e8] sm:$0xff]
        %v643 = vld [vmem:[%s245 + $0x1f0] sm:$0xff]
        %v644 = vld [vmem:[%s245 + $0x1f8] sm:$0xff]
        %v645 = vld [vmem:[%s245 + $0x200] sm:$0xff]
        %v646 = vld [vmem:[%s245 + $0x208] sm:$0xff]
        %v647 = vld [vmem:[%s245 + $0x210] sm:$0xff]
        %v648 = vld [vmem:[%s245 + $0x218] sm:$0xff]
        %v649 = vld [vmem:[%s245 + $0x220] sm:$0xff]
        %v650 = vld [vmem:[%s245 + $0x228] sm:$0xff]
        %v651 = vld [vmem:[%s245 + $0x230] sm:$0xff]
        %v652 = vld [vmem:[%s245 + $0x238] sm:$0xff]
        %v653 = vld [vmem:[%s245 + $0x240] sm:$0xff]
        %v654 = vld [vmem:[%s245 + $0x248] sm:$0xff]
        %v655 = vld [vmem:[%s245 + $0x250] sm:$0xff]
        %v656 = vld [vmem:[%s245 + $0x258] sm:$0xff]
        %v657 = vld [vmem:[%s245 + $0x260] sm:$0xff]
        %v658 = vld [vmem:[%s245 + $0x268] sm:$0xff]
        %v659 = vld [vmem:[%s245 + $0x270] sm:$0xff]
        %v660 = vld [vmem:[%s245 + $0x278] sm:$0xff]
        %v661 = vld [vmem:[%s245 + $0x280] sm:$0xff]
        %v662 = vld [vmem:[%s245 + $0x288] sm:$0xff]
        %v663 = vld [vmem:[%s245 + $0x290] sm:$0xff]
        %v664 = vld [vmem:[%s245 + $0x298] sm:$0xff]
        %v665 = vld [vmem:[%s245 + $0x2a0] sm:$0xff]
        %v666 = vld [vmem:[%s245 + $0x2a8] sm:$0xff]
        %v667 = vld [vmem:[%s245 + $0x2b0] sm:$0xff]
        %v668 = vld [vmem:[%s245 + $0x2b8] sm:$0xff]
        %v669 = vld [vmem:[%s245 + $0x2c0] sm:$0xff]
        %v670 = vld [vmem:[%s245 + $0x2c8] sm:$0xff]
        %v671 = vld [vmem:[%s245 + $0x2d0] sm:$0xff]
        %v672 = vld [vmem:[%s245 + $0x2d8] sm:$0xff]
        %v673 = vld [vmem:[%s245 + $0x2e0] sm:$0xff]
        %v674 = vld [vmem:[%s245 + $0x2e8] sm:$0xff]
        %v675 = vld [vmem:[%s245 + $0x2f0] sm:$0xff]
        %v676 = vld [vmem:[%s245 + $0x2f8] sm:$0xff]
        %v677 = vld [vmem:[%s245 + $0x300] sm:$0xff]
        %v678 = vld [vmem:[%s245 + $0x308] sm:$0xff]
        %v679 = vld [vmem:[%s245 + $0x310] sm:$0xff]
        %v680 = vld [vmem:[%s245 + $0x318] sm:$0xff]
        %v681 = vld [vmem:[%s245 + $0x320] sm:$0xff]
        %v682 = vld [vmem:[%s245 + $0x328] sm:$0xff]
        %v683 = vld [vmem:[%s245 + $0x330] sm:$0xff]
        %v684 = vld [vmem:[%s245 + $0x338] sm:$0xff]
        %v685 = vld [vmem:[%s245 + $0x340] sm:$0xff]
        %v686 = vld [vmem:[%s245 + $0x348] sm:$0xff]
        %v687 = vld [vmem:[%s245 + $0x350] sm:$0xff]
        %v688 = vld [vmem:[%s245 + $0x358] sm:$0xff]
        %v689 = vld [vmem:[%s245 + $0x360] sm:$0xff]
        %v690 = vld [vmem:[%s245 + $0x368] sm:$0xff]
        %v691 = vld [vmem:[%s245 + $0x370] sm:$0xff]
        %v692 = vld [vmem:[%s245 + $0x378] sm:$0xff]
        %v693 = vld [vmem:[%s245 + $0x380] sm:$0xff]
        %v694 = vld [vmem:[%s245 + $0x388] sm:$0xff]
        %v695 = vld [vmem:[%s245 + $0x390] sm:$0xff]
        %v696 = vld [vmem:[%s245 + $0x398] sm:$0xff]
        %v697 = vld [vmem:[%s245 + $0x3a0] sm:$0xff]
        %v698 = vld [vmem:[%s245 + $0x3a8] sm:$0xff]
        %v699 = vld [vmem:[%s245 + $0x3b0] sm:$0xff]
        %v700 = vld [vmem:[%s245 + $0x3b8] sm:$0xff]
        %v701 = vld [vmem:[%s245 + $0x3c0] sm:$0xff]
        %v702 = vld [vmem:[%s245 + $0x3c8] sm:$0xff]
        %v703 = vld [vmem:[%s245 + $0x3d0] sm:$0xff]
        %v704 = vld [vmem:[%s245 + $0x3d8] sm:$0xff]
        %v705 = vld [vmem:[%s245 + $0x3e0] sm:$0xff]
        %v706 = vld [vmem:[%s245 + $0x3e8] sm:$0xff]
        %v707 = vld [vmem:[%s245 + $0x3f0] sm:$0xff]
        %v708 = vld [vmem:[%s245 + $0x3f8] sm:$0xff]
        %v709 = vld [vmem:[%s245 + $0x400] sm:$0xff]
        %v710 = vld [vmem:[%s245 + $0x408] sm:$0xff]
        %v711 = vld [vmem:[%s245 + $0x410] sm:$0xff]
        %v712 = vld [vmem:[%s245 + $0x418] sm:$0xff]
        %v713 = vld [vmem:[%s245 + $0x420] sm:$0xff]
        %v714 = vld [vmem:[%s245 + $0x428] sm:$0xff]
        %v715 = vld [vmem:[%s245 + $0x430] sm:$0xff]
        %v716 = vld [vmem:[%s245 + $0x438] sm:$0xff]
        %v717 = vld [vmem:[%s245 + $0x440] sm:$0xff]
        %v718 = vld [vmem:[%s245 + $0x448] sm:$0xff]
        %v719 = vld [vmem:[%s245 + $0x450] sm:$0xff]
        %v720 = vld [vmem:[%s245 + $0x458] sm:$0xff]
        %v721 = vld [vmem:[%s245 + $0x460] sm:$0xff]
        %v722 = vld [vmem:[%s245 + $0x468] sm:$0xff]
        %v723 = vld [vmem:[%s245 + $0x470] sm:$0xff]
        %v724 = vld [vmem:[%s245 + $0x478] sm:$0xff]
        %v725 = vld [vmem:[%s245 + $0x480] sm:$0xff]
        %v726 = vld [vmem:[%s245 + $0x488] sm:$0xff]
        %v727 = vld [vmem:[%s245 + $0x490] sm:$0xff]
        %v728 = vld [vmem:[%s245 + $0x498] sm:$0xff]
        %v729 = vld [vmem:[%s245 + $0x4a0] sm:$0xff]
        %v730 = vld [vmem:[%s245 + $0x4a8] sm:$0xff]
        %v731 = vld [vmem:[%s245 + $0x4b0] sm:$0xff]
        %v732 = vld [vmem:[%s245 + $0x4b8] sm:$0xff]
        %v733 = vld [vmem:[%s245 + $0x4c0] sm:$0xff]
        %v734 = vld [vmem:[%s245 + $0x4c8] sm:$0xff]
        %v735 = vld [vmem:[%s245 + $0x4d0] sm:$0xff]
        %v736 = vld [vmem:[%s245 + $0x4d8] sm:$0xff]
        %v737 = vld [vmem:[%s245 + $0x4e0] sm:$0xff]
        %v738 = vld [vmem:[%s245 + $0x4e8] sm:$0xff]
        %v739 = vld [vmem:[%s245 + $0x4f0] sm:$0xff]
        %v740 = vld [vmem:[%s245 + $0x4f8] sm:$0xff]
        %v741 = vld [vmem:[%s245 + $0x500] sm:$0xff]
        %v742 = vld [vmem:[%s245 + $0x508] sm:$0xff]
        %v743 = vld [vmem:[%s245 + $0x510] sm:$0xff]
        %v744 = vld [vmem:[%s245 + $0x518] sm:$0xff]
        %v745 = vld [vmem:[%s245 + $0x520] sm:$0xff]
        %v746 = vld [vmem:[%s245 + $0x528] sm:$0xff]
        %v747 = vld [vmem:[%s245 + $0x530] sm:$0xff]
        %v748 = vld [vmem:[%s245 + $0x538] sm:$0xff]
        %v749 = vld [vmem:[%s245 + $0x540] sm:$0xff]
        %v750 = vld [vmem:[%s245 + $0x548] sm:$0xff]
        %v751 = vld [vmem:[%s245 + $0x550] sm:$0xff]
        %v752 = vld [vmem:[%s245 + $0x558] sm:$0xff]
        %v753 = vld [vmem:[%s245 + $0x560] sm:$0xff]
        %v754 = vld [vmem:[%s245 + $0x568] sm:$0xff]
        %v755 = vld [vmem:[%s245 + $0x570] sm:$0xff]
        %v756 = vld [vmem:[%s245 + $0x578] sm:$0xff]
        %v757 = vld [vmem:[%s245 + $0x580] sm:$0xff]
        %v758 = vld [vmem:[%s245 + $0x588] sm:$0xff]
        %v759 = vld [vmem:[%s245 + $0x590] sm:$0xff]
        %v760 = vld [vmem:[%s245 + $0x598] sm:$0xff]
        %v761 = vld [vmem:[%s245 + $0x5a0] sm:$0xff]
        %v762 = vld [vmem:[%s245 + $0x5a8] sm:$0xff]
        %v763 = vld [vmem:[%s245 + $0x5b0] sm:$0xff]
        %v764 = vld [vmem:[%s245 + $0x5b8] sm:$0xff]
        %v765 = vld [vmem:[%s245 + $0x5c0] sm:$0xff]
        %v766 = vld [vmem:[%s245 + $0x5c8] sm:$0xff]
        %v767 = vld [vmem:[%s245 + $0x5d0] sm:$0xff]
        %v768 = vld [vmem:[%s245 + $0x5d8] sm:$0xff]
        %v769 = vld [vmem:[%s245 + $0x5e0] sm:$0xff]
        %v770 = vld [vmem:[%s245 + $0x5e8] sm:$0xff]
        %v771 = vld [vmem:[%s245 + $0x5f0] sm:$0xff]
        %v772 = vld [vmem:[%s245 + $0x5f8] sm:$0xff]
        %v773 = vld [vmem:[%s245 + $0x600] sm:$0xff]
        %v774 = vld [vmem:[%s245 + $0x608] sm:$0xff]
        %v775 = vld [vmem:[%s245 + $0x610] sm:$0xff]
        %v776 = vld [vmem:[%s245 + $0x618] sm:$0xff]
        %v777 = vld [vmem:[%s245 + $0x620] sm:$0xff]
        %v778 = vld [vmem:[%s245 + $0x628] sm:$0xff]
        %v779 = vld [vmem:[%s245 + $0x630] sm:$0xff]
        %v780 = vld [vmem:[%s245 + $0x638] sm:$0xff]
        %v781 = vld [vmem:[%s245 + $0x640] sm:$0xff]
        %v782 = vld [vmem:[%s245 + $0x648] sm:$0xff]
        %v783 = vld [vmem:[%s245 + $0x650] sm:$0xff]
        %v784 = vld [vmem:[%s245 + $0x658] sm:$0xff]
        %v785 = vld [vmem:[%s245 + $0x660] sm:$0xff]
        %v786 = vld [vmem:[%s245 + $0x668] sm:$0xff]
        %v787 = vld [vmem:[%s245 + $0x670] sm:$0xff]
        %v788 = vld [vmem:[%s245 + $0x678] sm:$0xff]
        %v789 = vld [vmem:[%s245 + $0x680] sm:$0xff]
        %v790 = vld [vmem:[%s245 + $0x688] sm:$0xff]
        %v791 = vld [vmem:[%s245 + $0x690] sm:$0xff]
        %v792 = vld [vmem:[%s245 + $0x698] sm:$0xff]
        %v793 = vld [vmem:[%s245 + $0x6a0] sm:$0xff]
        %v794 = vld [vmem:[%s245 + $0x6a8] sm:$0xff]
        %v795 = vld [vmem:[%s245 + $0x6b0] sm:$0xff]
        %v796 = vld [vmem:[%s245 + $0x6b8] sm:$0xff]
        %v797 = vld [vmem:[%s245 + $0x6c0] sm:$0xff]
        %v798 = vld [vmem:[%s245 + $0x6c8] sm:$0xff]
        %v799 = vld [vmem:[%s245 + $0x6d0] sm:$0xff]
        %v800 = vld [vmem:[%s245 + $0x6d8] sm:$0xff]
        %v801 = vld [vmem:[%s245 + $0x6e0] sm:$0xff]
        %v802 = vld [vmem:[%s245 + $0x6e8] sm:$0xff]
        %v803 = vld [vmem:[%s245 + $0x6f0] sm:$0xff]
        %v804 = vld [vmem:[%s245 + $0x6f8] sm:$0xff]
        %v805 = vld [vmem:[%s245 + $0x700] sm:$0xff]
        %v806 = vld [vmem:[%s245 + $0x708] sm:$0xff]
        %v807 = vld [vmem:[%s245 + $0x710] sm:$0xff]
        %v808 = vld [vmem:[%s245 + $0x718] sm:$0xff]
        %v809 = vld [vmem:[%s245 + $0x720] sm:$0xff]
        %v810 = vld [vmem:[%s245 + $0x728] sm:$0xff]
        %v811 = vld [vmem:[%s245 + $0x730] sm:$0xff]
        %v812 = vld [vmem:[%s245 + $0x738] sm:$0xff]
        %v813 = vld [vmem:[%s245 + $0x740] sm:$0xff]
        %v814 = vld [vmem:[%s245 + $0x748] sm:$0xff]
        %v815 = vld [vmem:[%s245 + $0x750] sm:$0xff]
        %v816 = vld [vmem:[%s245 + $0x758] sm:$0xff]
        %v817 = vld [vmem:[%s245 + $0x760] sm:$0xff]
        %v818 = vld [vmem:[%s245 + $0x768] sm:$0xff]
        %v819 = vld [vmem:[%s245 + $0x770] sm:$0xff]
        %v820 = vld [vmem:[%s245 + $0x778] sm:$0xff]
        %v821 = vld [vmem:[%s245 + $0x780] sm:$0xff]
        %v822 = vld [vmem:[%s245 + $0x788] sm:$0xff]
        %v823 = vld [vmem:[%s245 + $0x790] sm:$0xff]
        %v824 = vld [vmem:[%s245 + $0x798] sm:$0xff]
        %v825 = vld [vmem:[%s245 + $0x7a0] sm:$0xff]
        %v826 = vld [vmem:[%s245 + $0x7a8] sm:$0xff]
        %v827 = vld [vmem:[%s245 + $0x7b0] sm:$0xff]
        %v828 = vld [vmem:[%s245 + $0x7b8] sm:$0xff]
        %v829 = vld [vmem:[%s245 + $0x7c0] sm:$0xff]
        %v830 = vld [vmem:[%s245 + $0x7c8] sm:$0xff]
        %v831 = vld [vmem:[%s245 + $0x7d0] sm:$0xff]
        %v832 = vld [vmem:[%s245 + $0x7d8] sm:$0xff]
        %v833 = vld [vmem:[%s245 + $0x7e0] sm:$0xff]
        %v834 = vld [vmem:[%s245 + $0x7e8] sm:$0xff]
        %v835 = vld [vmem:[%s245 + $0x7f0] sm:$0xff]
        %v836 = vld [vmem:[%s245 + $0x7f8] sm:$0xff]
        %v837 = vld [vmem:[%s245 + $0x800] sm:$0xff]
        %v838 = vld [vmem:[%s245 + $0x808] sm:$0xff]
        %v839 = vld [vmem:[%s245 + $0x810] sm:$0xff]
        %v840 = vld [vmem:[%s245 + $0x818] sm:$0xff]
        %v841 = vld [vmem:[%s245 + $0x820] sm:$0xff]
        %v842 = vld [vmem:[%s245 + $0x828] sm:$0xff]
        %v843 = vld [vmem:[%s245 + $0x830] sm:$0xff]
        %v844 = vld [vmem:[%s245 + $0x838] sm:$0xff]
        %v845 = vld [vmem:[%s245 + $0x840] sm:$0xff]
        %v846 = vld [vmem:[%s245 + $0x848] sm:$0xff]
        %v847 = vld [vmem:[%s245 + $0x850] sm:$0xff]
        %v848 = vld [vmem:[%s245 + $0x858] sm:$0xff]
        %v849 = vld [vmem:[%s245 + $0x860] sm:$0xff]
        %v850 = vld [vmem:[%s245 + $0x868] sm:$0xff]
        %v851 = vld [vmem:[%s245 + $0x870] sm:$0xff]
        %v852 = vld [vmem:[%s245 + $0x878] sm:$0xff]
        %v853 = vld [vmem:[%s245 + $0x880] sm:$0xff]
        %v854 = vld [vmem:[%s245 + $0x888] sm:$0xff]
        %v855 = vld [vmem:[%s245 + $0x890] sm:$0xff]
        %v856 = vld [vmem:[%s245 + $0x898] sm:$0xff]
        %v857 = vld [vmem:[%s245 + $0x8a0] sm:$0xff]
        %v858 = vld [vmem:[%s245 + $0x8a8] sm:$0xff]
        %v859 = vld [vmem:[%s245 + $0x8b0] sm:$0xff]
        %v860 = vld [vmem:[%s245 + $0x8b8] sm:$0xff]
        %v861 = vld [vmem:[%s245 + $0x8c0] sm:$0xff]
        %v862 = vld [vmem:[%s245 + $0x8c8] sm:$0xff]
        %v863 = vld [vmem:[%s245 + $0x8d0] sm:$0xff]
        %v864 = vld [vmem:[%s245 + $0x8d8] sm:$0xff]
        %v865 = vld [vmem:[%s245 + $0x8e0] sm:$0xff]
        %v866 = vld [vmem:[%s245 + $0x8e8] sm:$0xff]
        %v867 = vld [vmem:[%s245 + $0x8f0] sm:$0xff]
        %v868 = vld [vmem:[%s245 + $0x8f8] sm:$0xff]
        %v869 = vld [vmem:[%s245 + $0x900] sm:$0xff]
        %v870 = vld [vmem:[%s245 + $0x908] sm:$0xff]
        %v871 = vld [vmem:[%s245 + $0x910] sm:$0xff]
        %v872 = vld [vmem:[%s245 + $0x918] sm:$0xff]
        %v873 = vld [vmem:[%s245 + $0x920] sm:$0xff]
        %v874 = vld [vmem:[%s245 + $0x928] sm:$0xff]
        %v875 = vld [vmem:[%s245 + $0x930] sm:$0xff]
        %v876 = vld [vmem:[%s245 + $0x938] sm:$0xff]
        %v877 = vld [vmem:[%s245 + $0x940] sm:$0xff]
        %v878 = vld [vmem:[%s245 + $0x948] sm:$0xff]
        %v879 = vld [vmem:[%s245 + $0x950] sm:$0xff]
        %v880 = vld [vmem:[%s245 + $0x958] sm:$0xff]
        %v881 = vld [vmem:[%s245 + $0x960] sm:$0xff]
        %v882 = vld [vmem:[%s245 + $0x968] sm:$0xff]
        %v883 = vld [vmem:[%s245 + $0x970] sm:$0xff]
        %v884 = vld [vmem:[%s245 + $0x978] sm:$0xff]
        %v885 = vld [vmem:[%s245 + $0x980] sm:$0xff]
        %v886 = vld [vmem:[%s245 + $0x988] sm:$0xff]
        %v887 = vld [vmem:[%s245 + $0x990] sm:$0xff]
        %v888 = vld [vmem:[%s245 + $0x998] sm:$0xff]
        %v889 = vld [vmem:[%s245 + $0x9a0] sm:$0xff]
        %v890 = vld [vmem:[%s245 + $0x9a8] sm:$0xff]
        %v891 = vld [vmem:[%s245 + $0x9b0] sm:$0xff]
        %v892 = vld [vmem:[%s245 + $0x9b8] sm:$0xff]
        %v893 = vld [vmem:[%s245 + $0x9c0] sm:$0xff]
        %v894 = vld [vmem:[%s245 + $0x9c8] sm:$0xff]
        %v895 = vld [vmem:[%s245 + $0x9d0] sm:$0xff]
        %v896 = vld [vmem:[%s245 + $0x9d8] sm:$0xff]
        %v897 = vld [vmem:[%s245 + $0x9e0] sm:$0xff]
        %v898 = vld [vmem:[%s245 + $0x9e8] sm:$0xff]
        %v899 = vld [vmem:[%s245 + $0x9f0] sm:$0xff]
        %v900 = vld [vmem:[%s245 + $0x9f8] sm:$0xff]
        %v901 = vld [vmem:[%s245 + $0xa00] sm:$0xff]
        %v902 = vld [vmem:[%s245 + $0xa08] sm:$0xff]
        %v903 = vld [vmem:[%s245 + $0xa10] sm:$0xff]
        %v904 = vld [vmem:[%s245 + $0xa18] sm:$0xff]
        %v905 = vld [vmem:[%s245 + $0xa20] sm:$0xff]
        %v906 = vld [vmem:[%s245 + $0xa28] sm:$0xff]
        %v907 = vld [vmem:[%s245 + $0xa30] sm:$0xff]
        %v908 = vld [vmem:[%s245 + $0xa38] sm:$0xff]
        %v909 = vld [vmem:[%s245 + $0xa40] sm:$0xff]
        %v910 = vld [vmem:[%s245 + $0xa48] sm:$0xff]
        %v911 = vld [vmem:[%s245 + $0xa50] sm:$0xff]
        %v912 = vld [vmem:[%s245 + $0xa58] sm:$0xff]
        %v913 = vld [vmem:[%s245 + $0xa60] sm:$0xff]
        %v914 = vld [vmem:[%s245 + $0xa68] sm:$0xff]
        %v915 = vld [vmem:[%s245 + $0xa70] sm:$0xff]
        %v916 = vld [vmem:[%s245 + $0xa78] sm:$0xff]
        %v917 = vld [vmem:[%s245 + $0xa80] sm:$0xff]
        %v918 = vld [vmem:[%s245 + $0xa88] sm:$0xff]
        %v919 = vld [vmem:[%s245 + $0xa90] sm:$0xff]
        %v920 = vld [vmem:[%s245 + $0xa98] sm:$0xff]
        %v921 = vld [vmem:[%s245 + $0xaa0] sm:$0xff]
        %v922 = vld [vmem:[%s245 + $0xaa8] sm:$0xff]
        %v923 = vld [vmem:[%s245 + $0xab0] sm:$0xff]
        %v924 = vld [vmem:[%s245 + $0xab8] sm:$0xff]
        %v925 = vld [vmem:[%s245 + $0xac0] sm:$0xff]
        %v926 = vld [vmem:[%s245 + $0xac8] sm:$0xff]
        %v927 = vld [vmem:[%s245 + $0xad0] sm:$0xff]
        %v928 = vld [vmem:[%s245 + $0xad8] sm:$0xff]
        %v929 = vld [vmem:[%s245 + $0xae0] sm:$0xff]
        %v930 = vld [vmem:[%s245 + $0xae8] sm:$0xff]
        %v931 = vld [vmem:[%s245 + $0xaf0] sm:$0xff]
        %v932 = vld [vmem:[%s245 + $0xaf8] sm:$0xff]
        %v933 = vld [vmem:[%s245 + $0xb00] sm:$0xff]
        %v934 = vld [vmem:[%s245 + $0xb08] sm:$0xff]
        %v935 = vld [vmem:[%s245 + $0xb10] sm:$0xff]
        %v936 = vld [vmem:[%s245 + $0xb18] sm:$0xff]
        %v937 = vld [vmem:[%s245 + $0xb20] sm:$0xff]
        %v938 = vld [vmem:[%s245 + $0xb28] sm:$0xff]
        %v939 = vld [vmem:[%s245 + $0xb30] sm:$0xff]
        %v940 = vld [vmem:[%s245 + $0xb38] sm:$0xff]
        %v941 = vld [vmem:[%s245 + $0xb40] sm:$0xff]
        %v942 = vld [vmem:[%s245 + $0xb48] sm:$0xff]
        %v943 = vld [vmem:[%s245 + $0xb50] sm:$0xff]
        %v944 = vld [vmem:[%s245 + $0xb58] sm:$0xff]
        %v945 = vld [vmem:[%s245 + $0xb60] sm:$0xff]
        %v946 = vld [vmem:[%s245 + $0xb68] sm:$0xff]
        %v947 = vld [vmem:[%s245 + $0xb70] sm:$0xff]
        %v948 = vld [vmem:[%s245 + $0xb78] sm:$0xff]
        %v949 = vld [vmem:[%s245 + $0xb80] sm:$0xff]
        %v950 = vld [vmem:[%s245 + $0xb88] sm:$0xff]
        %v951 = vld [vmem:[%s245 + $0xb90] sm:$0xff]
        %v952 = vld [vmem:[%s245 + $0xb98] sm:$0xff]
        %v953 = vld [vmem:[%s245 + $0xba0] sm:$0xff]
        %v954 = vld [vmem:[%s245 + $0xba8] sm:$0xff]
        %v955 = vld [vmem:[%s245 + $0xbb0] sm:$0xff]
        %v956 = vld [vmem:[%s245 + $0xbb8] sm:$0xff]
        %v957 = vld [vmem:[%s245 + $0xbc0] sm:$0xff]
        %v958 = vld [vmem:[%s245 + $0xbc8] sm:$0xff]
        %v959 = vld [vmem:[%s245 + $0xbd0] sm:$0xff]
        %v960 = vld [vmem:[%s245 + $0xbd8] sm:$0xff]
        %v961 = vld [vmem:[%s245 + $0xbe0] sm:$0xff]
        %v962 = vld [vmem:[%s245 + $0xbe8] sm:$0xff]
        %v963 = vld [vmem:[%s245 + $0xbf0] sm:$0xff]
        %v964 = vld [vmem:[%s245 + $0xbf8] sm:$0xff]
        %v965 = vld [vmem:[%s245 + $0xc00] sm:$0xff]
        %v966 = vld [vmem:[%s245 + $0xc08] sm:$0xff]
        %v967 = vld [vmem:[%s245 + $0xc10] sm:$0xff]
        %v968 = vld [vmem:[%s245 + $0xc18] sm:$0xff]
        %v969 = vld [vmem:[%s245 + $0xc20] sm:$0xff]
        %v970 = vld [vmem:[%s245 + $0xc28] sm:$0xff]
        %v971 = vld [vmem:[%s245 + $0xc30] sm:$0xff]
        %v972 = vld [vmem:[%s245 + $0xc38] sm:$0xff]
        %v973 = vld [vmem:[%s245 + $0xc40] sm:$0xff]
        %v974 = vld [vmem:[%s245 + $0xc48] sm:$0xff]
        %v975 = vld [vmem:[%s245 + $0xc50] sm:$0xff]
        %v976 = vld [vmem:[%s245 + $0xc58] sm:$0xff]
        %v977 = vld [vmem:[%s245 + $0xc60] sm:$0xff]
        %v978 = vld [vmem:[%s245 + $0xc68] sm:$0xff]
        %v979 = vld [vmem:[%s245 + $0xc70] sm:$0xff]
        %v980 = vld [vmem:[%s245 + $0xc78] sm:$0xff]
        %v981 = vld [vmem:[%s245 + $0xc80] sm:$0xff]
        %v982 = vld [vmem:[%s245 + $0xc88] sm:$0xff]
        %v983 = vld [vmem:[%s245 + $0xc90] sm:$0xff]
        %v984 = vld [vmem:[%s245 + $0xc98] sm:$0xff]
        %v985 = vld [vmem:[%s245 + $0xca0] sm:$0xff]
        %v986 = vld [vmem:[%s245 + $0xca8] sm:$0xff]
        %v987 = vld [vmem:[%s245 + $0xcb0] sm:$0xff]
        %v988 = vld [vmem:[%s245 + $0xcb8] sm:$0xff]
        %v989 = vld [vmem:[%s245 + $0xcc0] sm:$0xff]
        %v990 = vld [vmem:[%s245 + $0xcc8] sm:$0xff]
        %v991 = vld [vmem:[%s245 + $0xcd0] sm:$0xff]
        %v992 = vld [vmem:[%s245 + $0xcd8] sm:$0xff]
        %v993 = vld [vmem:[%s245 + $0xce0] sm:$0xff]
        %v994 = vld [vmem:[%s245 + $0xce8] sm:$0xff]
        %v995 = vld [vmem:[%s245 + $0xcf0] sm:$0xff]
        %v996 = vld [vmem:[%s245 + $0xcf8] sm:$0xff]
        %v997 = vld [vmem:[%s245 + $0xd00] sm:$0xff]
        %v998 = vld [vmem:[%s245 + $0xd08] sm:$0xff]
        %v999 = vld [vmem:[%s245 + $0xd10] sm:$0xff]
        %v1000 = vld [vmem:[%s245 + $0xd18] sm:$0xff]
        %v1001 = vld [vmem:[%s245 + $0xd20] sm:$0xff]
        %v1002 = vld [vmem:[%s245 + $0xd28] sm:$0xff]
        %v1003 = vld [vmem:[%s245 + $0xd30] sm:$0xff]
        %v1004 = vld [vmem:[%s245 + $0xd38] sm:$0xff]
        %v1005 = vld [vmem:[%s245 + $0xd40] sm:$0xff]
        %v1006 = vld [vmem:[%s245 + $0xd48] sm:$0xff]
        %v1007 = vld [vmem:[%s245 + $0xd50] sm:$0xff]
        %v1008 = vld [vmem:[%s245 + $0xd58] sm:$0xff]
        %v1009 = vld [vmem:[%s245 + $0xd60] sm:$0xff]
        %v1010 = vld [vmem:[%s245 + $0xd68] sm:$0xff]
        %v1011 = vld [vmem:[%s245 + $0xd70] sm:$0xff]
        %v1012 = vld [vmem:[%s245 + $0xd78] sm:$0xff]
        %v1013 = vld [vmem:[%s245 + $0xd80] sm:$0xff]
        %v1014 = vld [vmem:[%s245 + $0xd88] sm:$0xff]
        %v1015 = vld [vmem:[%s245 + $0xd90] sm:$0xff]
        %v1016 = vld [vmem:[%s245 + $0xd98] sm:$0xff]
        %v1017 = vld [vmem:[%s245 + $0xda0] sm:$0xff]
        %v1018 = vld [vmem:[%s245 + $0xda8] sm:$0xff]
        %v1019 = vld [vmem:[%s245 + $0xdb0] sm:$0xff]
        %v1020 = vld [vmem:[%s245 + $0xdb8] sm:$0xff]
        %v1021 = vld [vmem:[%s245 + $0xdc0] sm:$0xff]
        %v1022 = vld [vmem:[%s245 + $0xdc8] sm:$0xff]
        %v1023 = vld [vmem:[%s245 + $0xdd0] sm:$0xff]
        %v1024 = vld [vmem:[%s245 + $0xdd8] sm:$0xff]
        %v1025 = vld [vmem:[%s245 + $0xde0] sm:$0xff]
        %v1026 = vld [vmem:[%s245 + $0xde8] sm:$0xff]
        %v1027 = vld [vmem:[%s245 + $0xdf0] sm:$0xff]
        %v1028 = vld [vmem:[%s245 + $0xdf8] sm:$0xff]
        %v1029 = vld [vmem:[%s245 + $0xe00] sm:$0xff]
        %v1030 = vld [vmem:[%s245 + $0xe08] sm:$0xff]
        %v1031 = vld [vmem:[%s245 + $0xe10] sm:$0xff]
        %v1032 = vld [vmem:[%s245 + $0xe18] sm:$0xff]
        %v1033 = vld [vmem:[%s245 + $0xe20] sm:$0xff]
        %v1034 = vld [vmem:[%s245 + $0xe28] sm:$0xff]
        %v1035 = vld [vmem:[%s245 + $0xe30] sm:$0xff]
        %v1036 = vld [vmem:[%s245 + $0xe38] sm:$0xff]
        %v1037 = vld [vmem:[%s245 + $0xe40] sm:$0xff]
        %v1038 = vld [vmem:[%s245 + $0xe48] sm:$0xff]
        %v1039 = vld [vmem:[%s245 + $0xe50] sm:$0xff]
        %v1040 = vld [vmem:[%s245 + $0xe58] sm:$0xff]
        %v1041 = vld [vmem:[%s245 + $0xe60] sm:$0xff]
        %v1042 = vld [vmem:[%s245 + $0xe68] sm:$0xff]
        %v1043 = vld [vmem:[%s245 + $0xe70] sm:$0xff]
        %v1044 = vld [vmem:[%s245 + $0xe78] sm:$0xff]
        %v1045 = vld [vmem:[%s245 + $0xe80] sm:$0xff]
        %v1046 = vld [vmem:[%s245 + $0xe88] sm:$0xff]
        %v1047 = vld [vmem:[%s245 + $0xe90] sm:$0xff]
        %v1048 = vld [vmem:[%s245 + $0xe98] sm:$0xff]
        %v1049 = vld [vmem:[%s245 + $0xea0] sm:$0xff]
        %v1050 = vld [vmem:[%s245 + $0xea8] sm:$0xff]
        %v1051 = vld [vmem:[%s245 + $0xeb0] sm:$0xff]
        %v1052 = vld [vmem:[%s245 + $0xeb8] sm:$0xff]
        %v1053 = vld [vmem:[%s245 + $0xec0] sm:$0xff]
        %v1054 = vld [vmem:[%s245 + $0xec8] sm:$0xff]
        %v1055 = vld [vmem:[%s245 + $0xed0] sm:$0xff]
        %v1056 = vld [vmem:[%s245 + $0xed8] sm:$0xff]
        %v1057 = vld [vmem:[%s245 + $0xee0] sm:$0xff]
        %v1058 = vld [vmem:[%s245 + $0xee8] sm:$0xff]
        %v1059 = vld [vmem:[%s245 + $0xef0] sm:$0xff]
        %v1060 = vld [vmem:[%s245 + $0xef8] sm:$0xff]
        %v1061 = vld [vmem:[%s245 + $0xf00] sm:$0xff]
        %v1062 = vld [vmem:[%s245 + $0xf08] sm:$0xff]
        %v1063 = vld [vmem:[%s245 + $0xf10] sm:$0xff]
        %v1064 = vld [vmem:[%s245 + $0xf18] sm:$0xff]
        %v1065 = vld [vmem:[%s245 + $0xf20] sm:$0xff]
        %v1066 = vld [vmem:[%s245 + $0xf28] sm:$0xff]
        %v1067 = vld [vmem:[%s245 + $0xf30] sm:$0xff]
        %v1068 = vld [vmem:[%s245 + $0xf38] sm:$0xff]
        %v1069 = vld [vmem:[%s245 + $0xf40] sm:$0xff]
        %v1070 = vld [vmem:[%s245 + $0xf48] sm:$0xff]
        %v1071 = vld [vmem:[%s245 + $0xf50] sm:$0xff]
        %v1072 = vld [vmem:[%s245 + $0xf58] sm:$0xff]
        %v1073 = vld [vmem:[%s245 + $0xf60] sm:$0xff]
        %v1074 = vld [vmem:[%s245 + $0xf68] sm:$0xff]
        %v1075 = vld [vmem:[%s245 + $0xf70] sm:$0xff]
        %v1076 = vld [vmem:[%s245 + $0xf78] sm:$0xff]
        %v1077 = vld [vmem:[%s245 + $0xf80] sm:$0xff]
        %v1078 = vld [vmem:[%s245 + $0xf88] sm:$0xff]
        %v1079 = vld [vmem:[%s245 + $0xf90] sm:$0xff]
        %v1080 = vld [vmem:[%s245 + $0xf98] sm:$0xff]
        %v1081 = vld [vmem:[%s245 + $0xfa0] sm:$0xff]
        %v1082 = vld [vmem:[%s245 + $0xfa8] sm:$0xff]
        %v1083 = vld [vmem:[%s245 + $0xfb0] sm:$0xff]
        %v1084 = vld [vmem:[%s245 + $0xfb8] sm:$0xff]
        %v1085 = vld [vmem:[%s245 + $0xfc0] sm:$0xff]
        %v1086 = vld [vmem:[%s245 + $0xfc8] sm:$0xff]
        %v1087 = vld [vmem:[%s245 + $0xfd0] sm:$0xff]
        %v1088 = vld [vmem:[%s245 + $0xfd8] sm:$0xff]
        %v1089 = vld [vmem:[%s245 + $0xfe0] sm:$0xff]
        %v1090 = vld [vmem:[%s245 + $0xfe8] sm:$0xff]
        %v1091 = vld [vmem:[%s245 + $0xff0] sm:$0xff]
        %v1092 = vld [vmem:[%s245 + $0xff8] sm:$0xff]
        %v1093 = vld [vmem:[%s245 + $0x1000] sm:$0xff]
        %v1094 = vld [vmem:[%s245 + $0x1008] sm:$0xff]
        %v1095 = vld [vmem:[%s245 + $0x1010] sm:$0xff]
        %v1096 = vld [vmem:[%s245 + $0x1018] sm:$0xff]
        %v1097 = vld [vmem:[%s245 + $0x1020] sm:$0xff]
        %v1098 = vld [vmem:[%s245 + $0x1028] sm:$0xff]
        %v1099 = vld [vmem:[%s245 + $0x1030] sm:$0xff]
        %v1100 = vld [vmem:[%s245 + $0x1038] sm:$0xff]
        %v1101 = vld [vmem:[%s245 + $0x1040] sm:$0xff]
        %v1102 = vld [vmem:[%s245 + $0x1048] sm:$0xff]
        %v1103 = vld [vmem:[%s245 + $0x1050] sm:$0xff]
        %v1104 = vld [vmem:[%s245 + $0x1058] sm:$0xff]
        %v1105 = vld [vmem:[%s245 + $0x1060] sm:$0xff]
        %v1106 = vld [vmem:[%s245 + $0x1068] sm:$0xff]
        %v1107 = vld [vmem:[%s245 + $0x1070] sm:$0xff]
        %v1108 = vld [vmem:[%s245 + $0x1078] sm:$0xff]
        %v1109 = vld [vmem:[%s245 + $0x1080] sm:$0xff]
        %v1110 = vld [vmem:[%s245 + $0x1088] sm:$0xff]
        %v1111 = vld [vmem:[%s245 + $0x1090] sm:$0xff]
        %v1112 = vld [vmem:[%s245 + $0x1098] sm:$0xff]
        %v1113 = vld [vmem:[%s245 + $0x10a0] sm:$0xff]
        %v1114 = vld [vmem:[%s245 + $0x10a8] sm:$0xff]
        %v1115 = vld [vmem:[%s245 + $0x10b0] sm:$0xff]
        %v1116 = vld [vmem:[%s245 + $0x10b8] sm:$0xff]
        %v1117 = vld [vmem:[%s245 + $0x10c0] sm:$0xff]
        %v1118 = vld [vmem:[%s245 + $0x10c8] sm:$0xff]
        %v1119 = vld [vmem:[%s245 + $0x10d0] sm:$0xff]
        %v1120 = vld [vmem:[%s245 + $0x10d8] sm:$0xff]
        %v1121 = vld [vmem:[%s245 + $0x10e0] sm:$0xff]
        %v1122 = vld [vmem:[%s245 + $0x10e8] sm:$0xff]
        %v1123 = vld [vmem:[%s245 + $0x10f0] sm:$0xff]
        %v1124 = vld [vmem:[%s245 + $0x10f8] sm:$0xff]
        %v1125 = vld [vmem:[%s245 + $0x1100] sm:$0xff]
        %v1126 = vld [vmem:[%s245 + $0x1108] sm:$0xff]
        %v1127 = vld [vmem:[%s245 + $0x1110] sm:$0xff]
        %v1128 = vld [vmem:[%s245 + $0x1118] sm:$0xff]
        %v1129 = vld [vmem:[%s245 + $0x1120] sm:$0xff]
        %v1130 = vld [vmem:[%s245 + $0x1128] sm:$0xff]
        %v1131 = vld [vmem:[%s245 + $0x1130] sm:$0xff]
        %v1132 = vld [vmem:[%s245 + $0x1138] sm:$0xff]
        %v1133 = vld [vmem:[%s245 + $0x1140] sm:$0xff]
        %v1134 = vld [vmem:[%s245 + $0x1148] sm:$0xff]
        %v1135 = vld [vmem:[%s245 + $0x1150] sm:$0xff]
        %v1136 = vld [vmem:[%s245 + $0x1158] sm:$0xff]
        %v1137 = vld [vmem:[%s245 + $0x1160] sm:$0xff]
        %v1138 = vld [vmem:[%s245 + $0x1168] sm:$0xff]
        %v1139 = vld [vmem:[%s245 + $0x1170] sm:$0xff]
        %v1140 = vld [vmem:[%s245 + $0x1178] sm:$0xff]
        %v1141 = vld [vmem:[%s245 + $0x1180] sm:$0xff]
        %v1142 = vld [vmem:[%s245 + $0x1188] sm:$0xff]
        %v1143 = vld [vmem:[%s245 + $0x1190] sm:$0xff]
        %v1144 = vld [vmem:[%s245 + $0x1198] sm:$0xff]
        %v1145 = vld [vmem:[%s245 + $0x11a0] sm:$0xff]
        %v1146 = vld [vmem:[%s245 + $0x11a8] sm:$0xff]
        %v1147 = vld [vmem:[%s245 + $0x11b0] sm:$0xff]
        %v1148 = vld [vmem:[%s245 + $0x11b8] sm:$0xff]
        %v1149 = vld [vmem:[%s245 + $0x11c0] sm:$0xff]
        %v1150 = vld [vmem:[%s245 + $0x11c8] sm:$0xff]
        %v1151 = vld [vmem:[%s245 + $0x11d0] sm:$0xff]
        %v1152 = vld [vmem:[%s245 + $0x11d8] sm:$0xff]
        %v1153 = vld [vmem:[%s245 + $0x11e0] sm:$0xff]
        %v1154 = vld [vmem:[%s245 + $0x11e8] sm:$0xff]
        %v1155 = vld [vmem:[%s245 + $0x11f0] sm:$0xff]
        %v1156 = vld [vmem:[%s245 + $0x11f8] sm:$0xff]
        %v1157 = vld [vmem:[%s245 + $0x1200] sm:$0xff]
        %v1158 = vld [vmem:[%s245 + $0x1208] sm:$0xff]
        %v1159 = vld [vmem:[%s245 + $0x1210] sm:$0xff]
        %v1160 = vld [vmem:[%s245 + $0x1218] sm:$0xff]
        %v1161 = vld [vmem:[%s245 + $0x1220] sm:$0xff]
        %v1162 = vld [vmem:[%s245 + $0x1228] sm:$0xff]
        %v1163 = vld [vmem:[%s245 + $0x1230] sm:$0xff]
        %v1164 = vld [vmem:[%s245 + $0x1238] sm:$0xff]
        %v1165 = vld [vmem:[%s245 + $0x1240] sm:$0xff]
        %v1166 = vld [vmem:[%s245 + $0x1248] sm:$0xff]
        %v1167 = vld [vmem:[%s245 + $0x1250] sm:$0xff]
        %v1168 = vld [vmem:[%s245 + $0x1258] sm:$0xff]
        %v1169 = vld [vmem:[%s245 + $0x1260] sm:$0xff]
        %v1170 = vld [vmem:[%s245 + $0x1268] sm:$0xff]
        %v1171 = vld [vmem:[%s245 + $0x1270] sm:$0xff]
        %v1172 = vld [vmem:[%s245 + $0x1278] sm:$0xff]
        %v1173 = vld [vmem:[%s245 + $0x1280] sm:$0xff]
        %v1174 = vld [vmem:[%s245 + $0x1288] sm:$0xff]
        %v1175 = vld [vmem:[%s245 + $0x1290] sm:$0xff]
        %v1176 = vld [vmem:[%s245 + $0x1298] sm:$0xff]
        %v1177 = vld [vmem:[%s245 + $0x12a0] sm:$0xff]
        %v1178 = vld [vmem:[%s245 + $0x12a8] sm:$0xff]
        %v1179 = vld [vmem:[%s245 + $0x12b0] sm:$0xff]
        %v1180 = vld [vmem:[%s245 + $0x12b8] sm:$0xff]
        %v1181 = vld [vmem:[%s245 + $0x12c0] sm:$0xff]
        %v1182 = vld [vmem:[%s245 + $0x12c8] sm:$0xff]
        %v1183 = vld [vmem:[%s245 + $0x12d0] sm:$0xff]
        %v1184 = vld [vmem:[%s245 + $0x12d8] sm:$0xff]
        %v1185 = vld [vmem:[%s245 + $0x12e0] sm:$0xff]
        %v1186 = vld [vmem:[%s245 + $0x12e8] sm:$0xff]
        %v1187 = vld [vmem:[%s245 + $0x12f0] sm:$0xff]
        %v1188 = vld [vmem:[%s245 + $0x12f8] sm:$0xff]
        %v1189 = vld [vmem:[%s245 + $0x1300] sm:$0xff]
        %v1190 = vld [vmem:[%s245 + $0x1308] sm:$0xff]
        %v1191 = vld [vmem:[%s245 + $0x1310] sm:$0xff]
        %v1192 = vld [vmem:[%s245 + $0x1318] sm:$0xff]
        %v1193 = vld [vmem:[%s245 + $0x1320] sm:$0xff]
        %v1194 = vld [vmem:[%s245 + $0x1328] sm:$0xff]
        %v1195 = vld [vmem:[%s245 + $0x1330] sm:$0xff]
        %v1196 = vld [vmem:[%s245 + $0x1338] sm:$0xff]
        %v1197 = vld [vmem:[%s245 + $0x1340] sm:$0xff]
        %v1198 = vld [vmem:[%s245 + $0x1348] sm:$0xff]
        %v1199 = vld [vmem:[%s245 + $0x1350] sm:$0xff]
        %v1200 = vld [vmem:[%s245 + $0x1358] sm:$0xff]
        %v1201 = vld [vmem:[%s245 + $0x1360] sm:$0xff]
        %v1202 = vld [vmem:[%s245 + $0x1368] sm:$0xff]
        %v1203 = vld [vmem:[%s245 + $0x1370] sm:$0xff]
        %v1204 = vld [vmem:[%s245 + $0x1378] sm:$0xff]
        %v1205 = vld [vmem:[%s245 + $0x1380] sm:$0xff]
        %v1206 = vld [vmem:[%s245 + $0x1388] sm:$0xff]
        %v1207 = vld [vmem:[%s245 + $0x1390] sm:$0xff]
        %v1208 = vld [vmem:[%s245 + $0x1398] sm:$0xff]
        %v1209 = vld [vmem:[%s245 + $0x13a0] sm:$0xff]
        %v1210 = vld [vmem:[%s245 + $0x13a8] sm:$0xff]
        %v1211 = vld [vmem:[%s245 + $0x13b0] sm:$0xff]
        %v1212 = vld [vmem:[%s245 + $0x13b8] sm:$0xff]
        %v1213 = vld [vmem:[%s245 + $0x13c0] sm:$0xff]
        %v1214 = vld [vmem:[%s245 + $0x13c8] sm:$0xff]
        %v1215 = vld [vmem:[%s245 + $0x13d0] sm:$0xff]
        %v1216 = vld [vmem:[%s245 + $0x13d8] sm:$0xff]
        %v1217 = vld [vmem:[%s245 + $0x13e0] sm:$0xff]
        %v1218 = vld [vmem:[%s245 + $0x13e8] sm:$0xff]
        %v1219 = vld [vmem:[%s245 + $0x13f0] sm:$0xff]
        %v1220 = vld [vmem:[%s245 + $0x13f8] sm:$0xff]
        %v1221 = vld [vmem:[%s245 + $0x1400] sm:$0xff]
        %v1222 = vld [vmem:[%s245 + $0x1408] sm:$0xff]
        %v1223 = vld [vmem:[%s245 + $0x1410] sm:$0xff]
        %v1224 = vld [vmem:[%s245 + $0x1418] sm:$0xff]
        %v1225 = vld [vmem:[%s245 + $0x1420] sm:$0xff]
        %v1226 = vld [vmem:[%s245 + $0x1428] sm:$0xff]
        %v1227 = vld [vmem:[%s245 + $0x1430] sm:$0xff]
        %v1228 = vld [vmem:[%s245 + $0x1438] sm:$0xff]
        %v1229 = vld [vmem:[%s245 + $0x1440] sm:$0xff]
        %v1230 = vld [vmem:[%s245 + $0x1448] sm:$0xff]
        %v1231 = vld [vmem:[%s245 + $0x1450] sm:$0xff]
        %v1232 = vld [vmem:[%s245 + $0x1458] sm:$0xff]
        %v1233 = vld [vmem:[%s245 + $0x1460] sm:$0xff]
        %v1234 = vld [vmem:[%s245 + $0x1468] sm:$0xff]
        %v1235 = vld [vmem:[%s245 + $0x1470] sm:$0xff]
        %v1236 = vld [vmem:[%s245 + $0x1478] sm:$0xff]
        %v1237 = vld [vmem:[%s245 + $0x1480] sm:$0xff]
        %v1238 = vld [vmem:[%s245 + $0x1488] sm:$0xff]
        %v1239 = vld [vmem:[%s245 + $0x1490] sm:$0xff]
        %v1240 = vld [vmem:[%s245 + $0x1498] sm:$0xff]
        %v1241 = vld [vmem:[%s245 + $0x14a0] sm:$0xff]
        %v1242 = vld [vmem:[%s245 + $0x14a8] sm:$0xff]
        %v1243 = vld [vmem:[%s245 + $0x14b0] sm:$0xff]
        %v1244 = vld [vmem:[%s245 + $0x14b8] sm:$0xff]
        %v1245 = vld [vmem:[%s245 + $0x14c0] sm:$0xff]
        %v1246 = vld [vmem:[%s245 + $0x14c8] sm:$0xff]
        %v1247 = vld [vmem:[%s245 + $0x14d0] sm:$0xff]
        %v1248 = vld [vmem:[%s245 + $0x14d8] sm:$0xff]
        %v1249 = vld [vmem:[%s245 + $0x14e0] sm:$0xff]
        %v1250 = vld [vmem:[%s245 + $0x14e8] sm:$0xff]
        %v1251 = vld [vmem:[%s245 + $0x14f0] sm:$0xff]
        %v1252 = vld [vmem:[%s245 + $0x14f8] sm:$0xff]
        %v1253 = vld [vmem:[%s245 + $0x1500] sm:$0xff]
        %v1254 = vld [vmem:[%s245 + $0x1508] sm:$0xff]
        %v1255 = vld [vmem:[%s245 + $0x1510] sm:$0xff]
        %v1256 = vld [vmem:[%s245 + $0x1518] sm:$0xff]
        %v1257 = vld [vmem:[%s245 + $0x1520] sm:$0xff]
        %v1258 = vld [vmem:[%s245 + $0x1528] sm:$0xff]
        %v1259 = vld [vmem:[%s245 + $0x1530] sm:$0xff]
        %v1260 = vld [vmem:[%s245 + $0x1538] sm:$0xff]
        %v1261 = vld [vmem:[%s245 + $0x1540] sm:$0xff]
        %v1262 = vld [vmem:[%s245 + $0x1548] sm:$0xff]
        %v1263 = vld [vmem:[%s245 + $0x1550] sm:$0xff]
        %v1264 = vld [vmem:[%s245 + $0x1558] sm:$0xff]
        %v1265 = vld [vmem:[%s245 + $0x1560] sm:$0xff]
        %v1266 = vld [vmem:[%s245 + $0x1568] sm:$0xff]
        %v1267 = vld [vmem:[%s245 + $0x1570] sm:$0xff]
        %v1268 = vld [vmem:[%s245 + $0x1578] sm:$0xff]
        %v1269 = vld [vmem:[%s245 + $0x1580] sm:$0xff]
        %v1270 = vld [vmem:[%s245 + $0x1588] sm:$0xff]
        %v1271 = vld [vmem:[%s245 + $0x1590] sm:$0xff]
        %v1272 = vld [vmem:[%s245 + $0x1598] sm:$0xff]
        %v1273 = vld [vmem:[%s245 + $0x15a0] sm:$0xff]
        %v1274 = vld [vmem:[%s245 + $0x15a8] sm:$0xff]
        %v1275 = vld [vmem:[%s245 + $0x15b0] sm:$0xff]
        %v1276 = vld [vmem:[%s245 + $0x15b8] sm:$0xff]
        %v1277 = vld [vmem:[%s245 + $0x15c0] sm:$0xff]
        %v1278 = vld [vmem:[%s245 + $0x15c8] sm:$0xff]
        %v1279 = vld [vmem:[%s245 + $0x15d0] sm:$0xff]
        %v1280 = vld [vmem:[%s245 + $0x15d8] sm:$0xff]
        %v1281 = vld [vmem:[%s245 + $0x15e0] sm:$0xff]
        %v1282 = vld [vmem:[%s245 + $0x15e8] sm:$0xff]
        %v1283 = vld [vmem:[%s245 + $0x15f0] sm:$0xff]
        %v1284 = vld [vmem:[%s245 + $0x15f8] sm:$0xff]
        %v1285 = vld [vmem:[%s245 + $0x1600] sm:$0xff]
        %v1286 = vld [vmem:[%s245 + $0x1608] sm:$0xff]
        %v1287 = vld [vmem:[%s245 + $0x1610] sm:$0xff]
        %v1288 = vld [vmem:[%s245 + $0x1618] sm:$0xff]
        %v1289 = vld [vmem:[%s245 + $0x1620] sm:$0xff]
        %v1290 = vld [vmem:[%s245 + $0x1628] sm:$0xff]
        %v1291 = vld [vmem:[%s245 + $0x1630] sm:$0xff]
        %v1292 = vld [vmem:[%s245 + $0x1638] sm:$0xff]
        %v1293 = vld [vmem:[%s245 + $0x1640] sm:$0xff]
        %v1294 = vld [vmem:[%s245 + $0x1648] sm:$0xff]
        %v1295 = vld [vmem:[%s245 + $0x1650] sm:$0xff]
        %v1296 = vld [vmem:[%s245 + $0x1658] sm:$0xff]
        %v1297 = vld [vmem:[%s245 + $0x1660] sm:$0xff]
        %v1298 = vld [vmem:[%s245 + $0x1668] sm:$0xff]
        %v1299 = vld [vmem:[%s245 + $0x1670] sm:$0xff]
        %v1300 = vld [vmem:[%s245 + $0x1678] sm:$0xff]
        %v1301 = vld [vmem:[%s245 + $0x1680] sm:$0xff]
        %v1302 = vld [vmem:[%s245 + $0x1688] sm:$0xff]
        %v1303 = vld [vmem:[%s245 + $0x1690] sm:$0xff]
        %v1304 = vld [vmem:[%s245 + $0x1698] sm:$0xff]
        %v1305 = vld [vmem:[%s245 + $0x16a0] sm:$0xff]
        %v1306 = vld [vmem:[%s245 + $0x16a8] sm:$0xff]
        %v1307 = vld [vmem:[%s245 + $0x16b0] sm:$0xff]
        %v1308 = vld [vmem:[%s245 + $0x16b8] sm:$0xff]
        %v1309 = vld [vmem:[%s245 + $0x16c0] sm:$0xff]
        %v1310 = vld [vmem:[%s245 + $0x16c8] sm:$0xff]
        %v1311 = vld [vmem:[%s245 + $0x16d0] sm:$0xff]
        %v1312 = vld [vmem:[%s245 + $0x16d8] sm:$0xff]
        %v1313 = vld [vmem:[%s245 + $0x16e0] sm:$0xff]
        %v1314 = vld [vmem:[%s245 + $0x16e8] sm:$0xff]
        %v1315 = vld [vmem:[%s245 + $0x16f0] sm:$0xff]
        %v1316 = vld [vmem:[%s245 + $0x16f8] sm:$0xff]
        %v1317 = vld [vmem:[%s245 + $0x1700] sm:$0xff]
        %v1318 = vld [vmem:[%s245 + $0x1708] sm:$0xff]
        %v1319 = vld [vmem:[%s245 + $0x1710] sm:$0xff]
        %v1320 = vld [vmem:[%s245 + $0x1718] sm:$0xff]
        %v1321 = vld [vmem:[%s245 + $0x1720] sm:$0xff]
        %v1322 = vld [vmem:[%s245 + $0x1728] sm:$0xff]
        %v1323 = vld [vmem:[%s245 + $0x1730] sm:$0xff]
        %v1324 = vld [vmem:[%s245 + $0x1738] sm:$0xff]
        %v1325 = vld [vmem:[%s245 + $0x1740] sm:$0xff]
        %v1326 = vld [vmem:[%s245 + $0x1748] sm:$0xff]
        %v1327 = vld [vmem:[%s245 + $0x1750] sm:$0xff]
        %v1328 = vld [vmem:[%s245 + $0x1758] sm:$0xff]
        %v1329 = vld [vmem:[%s245 + $0x1760] sm:$0xff]
        %v1330 = vld [vmem:[%s245 + $0x1768] sm:$0xff]
        %v1331 = vld [vmem:[%s245 + $0x1770] sm:$0xff]
        %v1332 = vld [vmem:[%s245 + $0x1778] sm:$0xff]
        %v1333 = vld [vmem:[%s245 + $0x1780] sm:$0xff]
        %v1334 = vld [vmem:[%s245 + $0x1788] sm:$0xff]
        %v1335 = vld [vmem:[%s245 + $0x1790] sm:$0xff]
        %v1336 = vld [vmem:[%s245 + $0x1798] sm:$0xff]
        %v1337 = vld [vmem:[%s245 + $0x17a0] sm:$0xff]
        %v1338 = vld [vmem:[%s245 + $0x17a8] sm:$0xff]
        %v1339 = vld [vmem:[%s245 + $0x17b0] sm:$0xff]
        %v1340 = vld [vmem:[%s245 + $0x17b8] sm:$0xff]
        %v1341 = vld [vmem:[%s245 + $0x17c0] sm:$0xff]
        %v1342 = vld [vmem:[%s245 + $0x17c8] sm:$0xff]
        %v1343 = vld [vmem:[%s245 + $0x17d0] sm:$0xff]
        %v1344 = vld [vmem:[%s245 + $0x17d8] sm:$0xff]
        %v1345 = vld [vmem:[%s245 + $0x17e0] sm:$0xff]
        %v1346 = vld [vmem:[%s245 + $0x17e8] sm:$0xff]
        %v1347 = vld [vmem:[%s245 + $0x17f0] sm:$0xff]
        %v1348 = vld [vmem:[%s245 + $0x17f8] sm:$0xff]
        %v1349 = vld [vmem:[%s245 + $0x1800] sm:$0xff]
        %v1350 = vld [vmem:[%s245 + $0x1808] sm:$0xff]
        %v1351 = vld [vmem:[%s245 + $0x1810] sm:$0xff]
        %v1352 = vld [vmem:[%s245 + $0x1818] sm:$0xff]
        %v1353 = vld [vmem:[%s245 + $0x1820] sm:$0xff]
        %v1354 = vld [vmem:[%s245 + $0x1828] sm:$0xff]
        %v1355 = vld [vmem:[%s245 + $0x1830] sm:$0xff]
        %v1356 = vld [vmem:[%s245 + $0x1838] sm:$0xff]
        %v1357 = vld [vmem:[%s245 + $0x1840] sm:$0xff]
        %v1358 = vld [vmem:[%s245 + $0x1848] sm:$0xff]
        %v1359 = vld [vmem:[%s245 + $0x1850] sm:$0xff]
        %v1360 = vld [vmem:[%s245 + $0x1858] sm:$0xff]
        %v1361 = vld [vmem:[%s245 + $0x1860] sm:$0xff]
        %v1362 = vld [vmem:[%s245 + $0x1868] sm:$0xff]
        %v1363 = vld [vmem:[%s245 + $0x1870] sm:$0xff]
        %v1364 = vld [vmem:[%s245 + $0x1878] sm:$0xff]
        %v1365 = vld [vmem:[%s245 + $0x1880] sm:$0xff]
        %v1366 = vld [vmem:[%s245 + $0x1888] sm:$0xff]
        %v1367 = vld [vmem:[%s245 + $0x1890] sm:$0xff]
        %v1368 = vld [vmem:[%s245 + $0x1898] sm:$0xff]
        %v1369 = vld [vmem:[%s245 + $0x18a0] sm:$0xff]
        %v1370 = vld [vmem:[%s245 + $0x18a8] sm:$0xff]
        %v1371 = vld [vmem:[%s245 + $0x18b0] sm:$0xff]
        %v1372 = vld [vmem:[%s245 + $0x18b8] sm:$0xff]
        %v1373 = vld [vmem:[%s245 + $0x18c0] sm:$0xff]
        %v1374 = vld [vmem:[%s245 + $0x18c8] sm:$0xff]
        %v1375 = vld [vmem:[%s245 + $0x18d0] sm:$0xff]
        %v1376 = vld [vmem:[%s245 + $0x18d8] sm:$0xff]
        %v1377 = vld [vmem:[%s245 + $0x18e0] sm:$0xff]
        %v1378 = vld [vmem:[%s245 + $0x18e8] sm:$0xff]
        %v1379 = vld [vmem:[%s245 + $0x18f0] sm:$0xff]
        %v1380 = vld [vmem:[%s245 + $0x18f8] sm:$0xff]
        %v1381 = vld [vmem:[%s245 + $0x1900] sm:$0xff]
        %v1382 = vld [vmem:[%s245 + $0x1908] sm:$0xff]
        %v1383 = vld [vmem:[%s245 + $0x1910] sm:$0xff]
        %v1384 = vld [vmem:[%s245 + $0x1918] sm:$0xff]
        %v1385 = vld [vmem:[%s245 + $0x1920] sm:$0xff]
        %v1386 = vld [vmem:[%s245 + $0x1928] sm:$0xff]
        %v1387 = vld [vmem:[%s245 + $0x1930] sm:$0xff]
        %v1388 = vld [vmem:[%s245 + $0x1938] sm:$0xff]
        %v1389 = vld [vmem:[%s245 + $0x1940] sm:$0xff]
        %v1390 = vld [vmem:[%s245 + $0x1948] sm:$0xff]
        %v1391 = vld [vmem:[%s245 + $0x1950] sm:$0xff]
        %v1392 = vld [vmem:[%s245 + $0x1958] sm:$0xff]
        %v1393 = vld [vmem:[%s245 + $0x1960] sm:$0xff]
        %v1394 = vld [vmem:[%s245 + $0x1968] sm:$0xff]
        %v1395 = vld [vmem:[%s245 + $0x1970] sm:$0xff]
        %v1396 = vld [vmem:[%s245 + $0x1978] sm:$0xff]
        %v1397 = vld [vmem:[%s245 + $0x1980] sm:$0xff]
        %v1398 = vld [vmem:[%s245 + $0x1988] sm:$0xff]
        %v1399 = vld [vmem:[%s245 + $0x1990] sm:$0xff]
        %v1400 = vld [vmem:[%s245 + $0x1998] sm:$0xff]
        %v1401 = vld [vmem:[%s245 + $0x19a0] sm:$0xff]
        %v1402 = vld [vmem:[%s245 + $0x19a8] sm:$0xff]
        %v1403 = vld [vmem:[%s245 + $0x19b0] sm:$0xff]
        %v1404 = vld [vmem:[%s245 + $0x19b8] sm:$0xff]
        %v1405 = vld [vmem:[%s245 + $0x19c0] sm:$0xff]
        %v1406 = vld [vmem:[%s245 + $0x19c8] sm:$0xff]
        %v1407 = vld [vmem:[%s245 + $0x19d0] sm:$0xff]
        %v1408 = vld [vmem:[%s245 + $0x19d8] sm:$0xff]
        %v1409 = vld [vmem:[%s245 + $0x19e0] sm:$0xff]
        %v1410 = vld [vmem:[%s245 + $0x19e8] sm:$0xff]
        %v1411 = vld [vmem:[%s245 + $0x19f0] sm:$0xff]
        %v1412 = vld [vmem:[%s245 + $0x19f8] sm:$0xff]
        %v1413 = vld [vmem:[%s245 + $0x1a00] sm:$0xff]
        %v1414 = vld [vmem:[%s245 + $0x1a08] sm:$0xff]
        %v1415 = vld [vmem:[%s245 + $0x1a10] sm:$0xff]
        %v1416 = vld [vmem:[%s245 + $0x1a18] sm:$0xff]
        %v1417 = vld [vmem:[%s245 + $0x1a20] sm:$0xff]
        %v1418 = vld [vmem:[%s245 + $0x1a28] sm:$0xff]
        %v1419 = vld [vmem:[%s245 + $0x1a30] sm:$0xff]
        %v1420 = vld [vmem:[%s245 + $0x1a38] sm:$0xff]
        %v1421 = vld [vmem:[%s245 + $0x1a40] sm:$0xff]
        %v1422 = vld [vmem:[%s245 + $0x1a48] sm:$0xff]
        %v1423 = vld [vmem:[%s245 + $0x1a50] sm:$0xff]
        %v1424 = vld [vmem:[%s245 + $0x1a58] sm:$0xff]
        %v1425 = vld [vmem:[%s245 + $0x1a60] sm:$0xff]
        %v1426 = vld [vmem:[%s245 + $0x1a68] sm:$0xff]
        %v1427 = vld [vmem:[%s245 + $0x1a70] sm:$0xff]
        %v1428 = vld [vmem:[%s245 + $0x1a78] sm:$0xff]
        %v1429 = vld [vmem:[%s245 + $0x1a80] sm:$0xff]
        %v1430 = vld [vmem:[%s245 + $0x1a88] sm:$0xff]
        %v1431 = vld [vmem:[%s245 + $0x1a90] sm:$0xff]
        %v1432 = vld [vmem:[%s245 + $0x1a98] sm:$0xff]
        %v1433 = vld [vmem:[%s245 + $0x1aa0] sm:$0xff]
        %v1434 = vld [vmem:[%s245 + $0x1aa8] sm:$0xff]
        %v1435 = vld [vmem:[%s245 + $0x1ab0] sm:$0xff]
        %v1436 = vld [vmem:[%s245 + $0x1ab8] sm:$0xff]
        %v1437 = vld [vmem:[%s245 + $0x1ac0] sm:$0xff]
        %v1438 = vld [vmem:[%s245 + $0x1ac8] sm:$0xff]
        %v1439 = vld [vmem:[%s245 + $0x1ad0] sm:$0xff]
        %v1440 = vld [vmem:[%s245 + $0x1ad8] sm:$0xff]
        %v1441 = vld [vmem:[%s245 + $0x1ae0] sm:$0xff]
        %v1442 = vld [vmem:[%s245 + $0x1ae8] sm:$0xff]
        %v1443 = vld [vmem:[%s245 + $0x1af0] sm:$0xff]
        %v1444 = vld [vmem:[%s245 + $0x1af8] sm:$0xff]
        %v1445 = vld [vmem:[%s245 + $0x1b00] sm:$0xff]
        %v1446 = vld [vmem:[%s245 + $0x1b08] sm:$0xff]
        %v1447 = vld [vmem:[%s245 + $0x1b10] sm:$0xff]
        %v1448 = vld [vmem:[%s245 + $0x1b18] sm:$0xff]
        %v1449 = vld [vmem:[%s245 + $0x1b20] sm:$0xff]
        %v1450 = vld [vmem:[%s245 + $0x1b28] sm:$0xff]
        %v1451 = vld [vmem:[%s245 + $0x1b30] sm:$0xff]
        %v1452 = vld [vmem:[%s245 + $0x1b38] sm:$0xff]
        %v1453 = vld [vmem:[%s245 + $0x1b40] sm:$0xff]
        %v1454 = vld [vmem:[%s245 + $0x1b48] sm:$0xff]
        %v1455 = vld [vmem:[%s245 + $0x1b50] sm:$0xff]
        %v1456 = vld [vmem:[%s245 + $0x1b58] sm:$0xff]
        %v1457 = vld [vmem:[%s245 + $0x1b60] sm:$0xff]
        %v1458 = vld [vmem:[%s245 + $0x1b68] sm:$0xff]
        %v1459 = vld [vmem:[%s245 + $0x1b70] sm:$0xff]
        %v1460 = vld [vmem:[%s245 + $0x1b78] sm:$0xff]
        %v1461 = vld [vmem:[%s245 + $0x1b80] sm:$0xff]
        %v1462 = vld [vmem:[%s245 + $0x1b88] sm:$0xff]
        %v1463 = vld [vmem:[%s245 + $0x1b90] sm:$0xff]
        %v1464 = vld [vmem:[%s245 + $0x1b98] sm:$0xff]
        %v1465 = vld [vmem:[%s245 + $0x1ba0] sm:$0xff]
        %v1466 = vld [vmem:[%s245 + $0x1ba8] sm:$0xff]
        %v1467 = vld [vmem:[%s245 + $0x1bb0] sm:$0xff]
        %v1468 = vld [vmem:[%s245 + $0x1bb8] sm:$0xff]
        %v1469 = vld [vmem:[%s245 + $0x1bc0] sm:$0xff]
        %v1470 = vld [vmem:[%s245 + $0x1bc8] sm:$0xff]
        %v1471 = vld [vmem:[%s245 + $0x1bd0] sm:$0xff]
        %v1472 = vld [vmem:[%s245 + $0x1bd8] sm:$0xff]
        %v1473 = vld [vmem:[%s245 + $0x1be0] sm:$0xff]
        %v1474 = vld [vmem:[%s245 + $0x1be8] sm:$0xff]
        %v1475 = vld [vmem:[%s245 + $0x1bf0] sm:$0xff]
        %v1476 = vld [vmem:[%s245 + $0x1bf8] sm:$0xff]
        %v1477 = vld [vmem:[%s245 + $0x1c00] sm:$0xff]
        %v1478 = vld [vmem:[%s245 + $0x1c08] sm:$0xff]
        %v1479 = vld [vmem:[%s245 + $0x1c10] sm:$0xff]
        %v1480 = vld [vmem:[%s245 + $0x1c18] sm:$0xff]
        %v1481 = vld [vmem:[%s245 + $0x1c20] sm:$0xff]
        %v1482 = vld [vmem:[%s245 + $0x1c28] sm:$0xff]
        %v1483 = vld [vmem:[%s245 + $0x1c30] sm:$0xff]
        %v1484 = vld [vmem:[%s245 + $0x1c38] sm:$0xff]
        %v1485 = vld [vmem:[%s245 + $0x1c40] sm:$0xff]
        %v1486 = vld [vmem:[%s245 + $0x1c48] sm:$0xff]
        %v1487 = vld [vmem:[%s245 + $0x1c50] sm:$0xff]
        %v1488 = vld [vmem:[%s245 + $0x1c58] sm:$0xff]
        %v1489 = vld [vmem:[%s245 + $0x1c60] sm:$0xff]
        %v1490 = vld [vmem:[%s245 + $0x1c68] sm:$0xff]
        %v1491 = vld [vmem:[%s245 + $0x1c70] sm:$0xff]
        %v1492 = vld [vmem:[%s245 + $0x1c78] sm:$0xff]
        %v1493 = vld [vmem:[%s245 + $0x1c80] sm:$0xff]
        %v1494 = vld [vmem:[%s245 + $0x1c88] sm:$0xff]
        %v1495 = vld [vmem:[%s245 + $0x1c90] sm:$0xff]
        %v1496 = vld [vmem:[%s245 + $0x1c98] sm:$0xff]
        %v1497 = vld [vmem:[%s245 + $0x1ca0] sm:$0xff]
        %v1498 = vld [vmem:[%s245 + $0x1ca8] sm:$0xff]
        %v1499 = vld [vmem:[%s245 + $0x1cb0] sm:$0xff]
        %v1500 = vld [vmem:[%s245 + $0x1cb8] sm:$0xff]
        %v1501 = vld [vmem:[%s245 + $0x1cc0] sm:$0xff]
        %v1502 = vld [vmem:[%s245 + $0x1cc8] sm:$0xff]
        %v1503 = vld [vmem:[%s245 + $0x1cd0] sm:$0xff]
        %v1504 = vld [vmem:[%s245 + $0x1cd8] sm:$0xff]
        %v1505 = vld [vmem:[%s245 + $0x1ce0] sm:$0xff]
        %v1506 = vld [vmem:[%s245 + $0x1ce8] sm:$0xff]
        %v1507 = vld [vmem:[%s245 + $0x1cf0] sm:$0xff]
        %v1508 = vld [vmem:[%s245 + $0x1cf8] sm:$0xff]
        %v1509 = vld [vmem:[%s245 + $0x1d00] sm:$0xff]
        %v1510 = vld [vmem:[%s245 + $0x1d08] sm:$0xff]
        %v1511 = vld [vmem:[%s245 + $0x1d10] sm:$0xff]
        %v1512 = vld [vmem:[%s245 + $0x1d18] sm:$0xff]
        %v1513 = vld [vmem:[%s245 + $0x1d20] sm:$0xff]
        %v1514 = vld [vmem:[%s245 + $0x1d28] sm:$0xff]
        %v1515 = vld [vmem:[%s245 + $0x1d30] sm:$0xff]
        %v1516 = vld [vmem:[%s245 + $0x1d38] sm:$0xff]
        %v1517 = vld [vmem:[%s245 + $0x1d40] sm:$0xff]
        %v1518 = vld [vmem:[%s245 + $0x1d48] sm:$0xff]
        %v1519 = vld [vmem:[%s245 + $0x1d50] sm:$0xff]
        %v1520 = vld [vmem:[%s245 + $0x1d58] sm:$0xff]
        %v1521 = vld [vmem:[%s245 + $0x1d60] sm:$0xff]
        %v1522 = vld [vmem:[%s245 + $0x1d68] sm:$0xff]
        %v1523 = vld [vmem:[%s245 + $0x1d70] sm:$0xff]
        %v1524 = vld [vmem:[%s245 + $0x1d78] sm:$0xff]
        %v1525 = vld [vmem:[%s245 + $0x1d80] sm:$0xff]
        %v1526 = vld [vmem:[%s245 + $0x1d88] sm:$0xff]
        %v1527 = vld [vmem:[%s245 + $0x1d90] sm:$0xff]
        %v1528 = vld [vmem:[%s245 + $0x1d98] sm:$0xff]
        %v1529 = vld [vmem:[%s245 + $0x1da0] sm:$0xff]
        %v1530 = vld [vmem:[%s245 + $0x1da8] sm:$0xff]
        %v1531 = vld [vmem:[%s245 + $0x1db0] sm:$0xff]
        %v1532 = vld [vmem:[%s245 + $0x1db8] sm:$0xff]
        %v1533 = vld [vmem:[%s245 + $0x1dc0] sm:$0xff]
        %v1534 = vld [vmem:[%s245 + $0x1dc8] sm:$0xff]
        %v1535 = vld [vmem:[%s245 + $0x1dd0] sm:$0xff]
        %v1536 = vld [vmem:[%s245 + $0x1dd8] sm:$0xff]
        %v1537 = vld [vmem:[%s245 + $0x1de0] sm:$0xff]
        %v1538 = vld [vmem:[%s245 + $0x1de8] sm:$0xff]
        %v1539 = vld [vmem:[%s245 + $0x1df0] sm:$0xff]
        %v1540 = vld [vmem:[%s245 + $0x1df8] sm:$0xff]
        %v1541 = vld [vmem:[%s245 + $0x1e00] sm:$0xff]
        %v1542 = vld [vmem:[%s245 + $0x1e08] sm:$0xff]
        %v1543 = vld [vmem:[%s245 + $0x1e10] sm:$0xff]
        %v1544 = vld [vmem:[%s245 + $0x1e18] sm:$0xff]
        %v1545 = vld [vmem:[%s245 + $0x1e20] sm:$0xff]
        %v1546 = vld [vmem:[%s245 + $0x1e28] sm:$0xff]
        %v1547 = vld [vmem:[%s245 + $0x1e30] sm:$0xff]
        %v1548 = vld [vmem:[%s245 + $0x1e38] sm:$0xff]
        %v1549 = vld [vmem:[%s245 + $0x1e40] sm:$0xff]
        %v1550 = vld [vmem:[%s245 + $0x1e48] sm:$0xff]
        %v1551 = vld [vmem:[%s245 + $0x1e50] sm:$0xff]
        %v1552 = vld [vmem:[%s245 + $0x1e58] sm:$0xff]
        %v1553 = vld [vmem:[%s245 + $0x1e60] sm:$0xff]
        %v1554 = vld [vmem:[%s245 + $0x1e68] sm:$0xff]
        %v1555 = vld [vmem:[%s245 + $0x1e70] sm:$0xff]
        %v1556 = vld [vmem:[%s245 + $0x1e78] sm:$0xff]
        %v1557 = vld [vmem:[%s245 + $0x1e80] sm:$0xff]
        %v1558 = vld [vmem:[%s245 + $0x1e88] sm:$0xff]
        %v1559 = vld [vmem:[%s245 + $0x1e90] sm:$0xff]
        %v1560 = vld [vmem:[%s245 + $0x1e98] sm:$0xff]
        %v1561 = vld [vmem:[%s245 + $0x1ea0] sm:$0xff]
        %v1562 = vld [vmem:[%s245 + $0x1ea8] sm:$0xff]
        %v1563 = vld [vmem:[%s245 + $0x1eb0] sm:$0xff]
        %v1564 = vld [vmem:[%s245 + $0x1eb8] sm:$0xff]
        %v1565 = vld [vmem:[%s245 + $0x1ec0] sm:$0xff]
        %v1566 = vld [vmem:[%s245 + $0x1ec8] sm:$0xff]
        %v1567 = vld [vmem:[%s245 + $0x1ed0] sm:$0xff]
        %v1568 = vld [vmem:[%s245 + $0x1ed8] sm:$0xff]
        %v1569 = vld [vmem:[%s245 + $0x1ee0] sm:$0xff]
        %v1570 = vld [vmem:[%s245 + $0x1ee8] sm:$0xff]
        %v1571 = vld [vmem:[%s245 + $0x1ef0] sm:$0xff]
        %v1572 = vld [vmem:[%s245 + $0x1ef8] sm:$0xff]
        %v1573 = vld [vmem:[%s245 + $0x1f00] sm:$0xff]
        %v1574 = vld [vmem:[%s245 + $0x1f08] sm:$0xff]
        %v1575 = vld [vmem:[%s245 + $0x1f10] sm:$0xff]
        %v1576 = vld [vmem:[%s245 + $0x1f18] sm:$0xff]
        %v1577 = vld [vmem:[%s245 + $0x1f20] sm:$0xff]
        %v1578 = vld [vmem:[%s245 + $0x1f28] sm:$0xff]
        %v1579 = vld [vmem:[%s245 + $0x1f30] sm:$0xff]
        %v1580 = vld [vmem:[%s245 + $0x1f38] sm:$0xff]
        %v1581 = vld [vmem:[%s245 + $0x1f40] sm:$0xff]
        %v1582 = vld [vmem:[%s245 + $0x1f48] sm:$0xff]
        %v1583 = vld [vmem:[%s245 + $0x1f50] sm:$0xff]
        %v1584 = vld [vmem:[%s245 + $0x1f58] sm:$0xff]
        %v1585 = vld [vmem:[%s245 + $0x1f60] sm:$0xff]
        %v1586 = vld [vmem:[%s245 + $0x1f68] sm:$0xff]
        %v1587 = vld [vmem:[%s245 + $0x1f70] sm:$0xff]
        %v1588 = vld [vmem:[%s245 + $0x1f78] sm:$0xff]
        %v1589 = vld [vmem:[%s245 + $0x1f80] sm:$0xff]
        %v1590 = vld [vmem:[%s245 + $0x1f88] sm:$0xff]
        %v1591 = vld [vmem:[%s245 + $0x1f90] sm:$0xff]
        %v1592 = vld [vmem:[%s245 + $0x1f98] sm:$0xff]
        %v1593 = vld [vmem:[%s245 + $0x1fa0] sm:$0xff]
        %v1594 = vld [vmem:[%s245 + $0x1fa8] sm:$0xff]
        %v1595 = vld [vmem:[%s245 + $0x1fb0] sm:$0xff]
        %v1596 = vld [vmem:[%s245 + $0x1fb8] sm:$0xff]
        %v1597 = vld [vmem:[%s245 + $0x1fc0] sm:$0xff]
        %v1598 = vld [vmem:[%s245 + $0x1fc8] sm:$0xff]
        %v1599 = vld [vmem:[%s245 + $0x1fd0] sm:$0xff]
        %v1600 = vld [vmem:[%s245 + $0x1fd8] sm:$0xff]
        %v1601 = vld [vmem:[%s245 + $0x1fe0] sm:$0xff]
        %v1602 = vld [vmem:[%s245 + $0x1fe8] sm:$0xff]
        %v1603 = vld [vmem:[%s245 + $0x1ff0] sm:$0xff]
        %v1604 = vld [vmem:[%s245 + $0x1ff8] sm:$0xff]
        %v1605 = vld [vmem:[%s245 + $0x2000] sm:$0xff]
        %v1606 = vld [vmem:[%s245 + $0x2008] sm:$0xff]
        %v1607 = vld [vmem:[%s245 + $0x2010] sm:$0xff]
        %v1608 = vld [vmem:[%s245 + $0x2018] sm:$0xff]
        %v1609 = vld [vmem:[%s245 + $0x2020] sm:$0xff]
        %v1610 = vld [vmem:[%s245 + $0x2028] sm:$0xff]
        %v1611 = vld [vmem:[%s245 + $0x2030] sm:$0xff]
        %v1612 = vld [vmem:[%s245 + $0x2038] sm:$0xff]
        %v1613 = vld [vmem:[%s245 + $0x2040] sm:$0xff]
        %v1614 = vld [vmem:[%s245 + $0x2048] sm:$0xff]
        %v1615 = vld [vmem:[%s245 + $0x2050] sm:$0xff]
        %v1616 = vld [vmem:[%s245 + $0x2058] sm:$0xff]
        %v1617 = vld [vmem:[%s245 + $0x2060] sm:$0xff]
        %v1618 = vld [vmem:[%s245 + $0x2068] sm:$0xff]
        %v1619 = vld [vmem:[%s245 + $0x2070] sm:$0xff]
        %v1620 = vld [vmem:[%s245 + $0x2078] sm:$0xff]
        %v1621 = vld [vmem:[%s245 + $0x2080] sm:$0xff]
        %v1622 = vld [vmem:[%s245 + $0x2088] sm:$0xff]
        %v1623 = vld [vmem:[%s245 + $0x2090] sm:$0xff]
        %v1624 = vld [vmem:[%s245 + $0x2098] sm:$0xff]
        %v1625 = vld [vmem:[%s245 + $0x20a0] sm:$0xff]
        %v1626 = vld [vmem:[%s245 + $0x20a8] sm:$0xff]
        %v1627 = vld [vmem:[%s245 + $0x20b0] sm:$0xff]
        %v1628 = vld [vmem:[%s245 + $0x20b8] sm:$0xff]
        %v1629 = vld [vmem:[%s245 + $0x20c0] sm:$0xff]
        %v1630 = vld [vmem:[%s245 + $0x20c8] sm:$0xff]
        %v1631 = vld [vmem:[%s245 + $0x20d0] sm:$0xff]
        %v1632 = vld [vmem:[%s245 + $0x20d8] sm:$0xff]
        %v1633 = vld [vmem:[%s245 + $0x20e0] sm:$0xff]
        %v1634 = vld [vmem:[%s245 + $0x20e8] sm:$0xff]
        %v1635 = vld [vmem:[%s245 + $0x20f0] sm:$0xff]
        %v1636 = vld [vmem:[%s245 + $0x20f8] sm:$0xff]
        %v1637 = vld [vmem:[%s245 + $0x2100] sm:$0xff]
        %v1638 = vld [vmem:[%s245 + $0x2108] sm:$0xff]
        %v1639 = vld [vmem:[%s245 + $0x2110] sm:$0xff]
        %v1640 = vld [vmem:[%s245 + $0x2118] sm:$0xff]
        %v1641 = vld [vmem:[%s245 + $0x2120] sm:$0xff]
        %v1642 = vld [vmem:[%s245 + $0x2128] sm:$0xff]
        %v1643 = vld [vmem:[%s245 + $0x2130] sm:$0xff]
        %v1644 = vld [vmem:[%s245 + $0x2138] sm:$0xff]
        %v1645 = vld [vmem:[%s245 + $0x2140] sm:$0xff]
        %v1646 = vld [vmem:[%s245 + $0x2148] sm:$0xff]
        %v1647 = vld [vmem:[%s245 + $0x2150] sm:$0xff]
        %v1648 = vld [vmem:[%s245 + $0x2158] sm:$0xff]
        %v1649 = vld [vmem:[%s245 + $0x2160] sm:$0xff]
        %v1650 = vld [vmem:[%s245 + $0x2168] sm:$0xff]
        %v1651 = vld [vmem:[%s245 + $0x2170] sm:$0xff]
        %v1652 = vld [vmem:[%s245 + $0x2178] sm:$0xff]
        %v1653 = vld [vmem:[%s245 + $0x2180] sm:$0xff]
        %v1654 = vld [vmem:[%s245 + $0x2188] sm:$0xff]
        %v1655 = vld [vmem:[%s245 + $0x2190] sm:$0xff]
        %v1656 = vld [vmem:[%s245 + $0x2198] sm:$0xff]
        %v1657 = vld [vmem:[%s245 + $0x21a0] sm:$0xff]
        %v1658 = vld [vmem:[%s245 + $0x21a8] sm:$0xff]
        %v1659 = vld [vmem:[%s245 + $0x21b0] sm:$0xff]
        %v1660 = vld [vmem:[%s245 + $0x21b8] sm:$0xff]
        %v1661 = vld [vmem:[%s245 + $0x21c0] sm:$0xff]
        %v1662 = vld [vmem:[%s245 + $0x21c8] sm:$0xff]
        %v1663 = vld [vmem:[%s245 + $0x21d0] sm:$0xff]
        %v1664 = vld [vmem:[%s245 + $0x21d8] sm:$0xff]
        %v1665 = vld [vmem:[%s245 + $0x21e0] sm:$0xff]
        %v1666 = vld [vmem:[%s245 + $0x21e8] sm:$0xff]
        %v1667 = vld [vmem:[%s245 + $0x21f0] sm:$0xff]
        %v1668 = vld [vmem:[%s245 + $0x21f8] sm:$0xff]
        %v1669 = vld [vmem:[%s245 + $0x2200] sm:$0xff]
        %v1670 = vld [vmem:[%s245 + $0x2208] sm:$0xff]
        %v1671 = vld [vmem:[%s245 + $0x2210] sm:$0xff]
        %v1672 = vld [vmem:[%s245 + $0x2218] sm:$0xff]
        %v1673 = vld [vmem:[%s245 + $0x2220] sm:$0xff]
        %v1674 = vld [vmem:[%s245 + $0x2228] sm:$0xff]
        %v1675 = vld [vmem:[%s245 + $0x2230] sm:$0xff]
        %v1676 = vld [vmem:[%s245 + $0x2238] sm:$0xff]
        %v1677 = vld [vmem:[%s245 + $0x2240] sm:$0xff]
        %v1678 = vld [vmem:[%s245 + $0x2248] sm:$0xff]
        %v1679 = vld [vmem:[%s245 + $0x2250] sm:$0xff]
        %v1680 = vld [vmem:[%s245 + $0x2258] sm:$0xff]
        %v1681 = vld [vmem:[%s245 + $0x2260] sm:$0xff]
        %v1682 = vld [vmem:[%s245 + $0x2268] sm:$0xff]
        %v1683 = vld [vmem:[%s245 + $0x2270] sm:$0xff]
        %v1684 = vld [vmem:[%s245 + $0x2278] sm:$0xff]
        %v1685 = vld [vmem:[%s245 + $0x2280] sm:$0xff]
        %v1686 = vld [vmem:[%s245 + $0x2288] sm:$0xff]
        %v1687 = vld [vmem:[%s245 + $0x2290] sm:$0xff]
        %v1688 = vld [vmem:[%s245 + $0x2298] sm:$0xff]
        %v1689 = vld [vmem:[%s245 + $0x22a0] sm:$0xff]
        %v1690 = vld [vmem:[%s245 + $0x22a8] sm:$0xff]
        %v1691 = vld [vmem:[%s245 + $0x22b0] sm:$0xff]
        %v1692 = vld [vmem:[%s245 + $0x22b8] sm:$0xff]
        %v1693 = vld [vmem:[%s245 + $0x22c0] sm:$0xff]
        %v1694 = vld [vmem:[%s245 + $0x22c8] sm:$0xff]
        %v1695 = vld [vmem:[%s245 + $0x22d0] sm:$0xff]
        %v1696 = vld [vmem:[%s245 + $0x22d8] sm:$0xff]
        %v1697 = vld [vmem:[%s245 + $0x22e0] sm:$0xff]
        %v1698 = vld [vmem:[%s245 + $0x22e8] sm:$0xff]
        %v1699 = vld [vmem:[%s245 + $0x22f0] sm:$0xff]
        %v1700 = vld [vmem:[%s245 + $0x22f8] sm:$0xff]
        %v1701 = vld [vmem:[%s245 + $0x2300] sm:$0xff]
        %v1702 = vld [vmem:[%s245 + $0x2308] sm:$0xff]
        %v1703 = vld [vmem:[%s245 + $0x2310] sm:$0xff]
        %v1704 = vld [vmem:[%s245 + $0x2318] sm:$0xff]
        %v1705 = vld [vmem:[%s245 + $0x2320] sm:$0xff]
        %v1706 = vld [vmem:[%s245 + $0x2328] sm:$0xff]
        %v1707 = vld [vmem:[%s245 + $0x2330] sm:$0xff]
        %v1708 = vld [vmem:[%s245 + $0x2338] sm:$0xff]
        %v1709 = vld [vmem:[%s245 + $0x2340] sm:$0xff]
        %v1710 = vld [vmem:[%s245 + $0x2348] sm:$0xff]
        %v1711 = vld [vmem:[%s245 + $0x2350] sm:$0xff]
        %v1712 = vld [vmem:[%s245 + $0x2358] sm:$0xff]
        %v1713 = vld [vmem:[%s245 + $0x2360] sm:$0xff]
        %v1714 = vld [vmem:[%s245 + $0x2368] sm:$0xff]
        %v1715 = vld [vmem:[%s245 + $0x2370] sm:$0xff]
        %v1716 = vld [vmem:[%s245 + $0x2378] sm:$0xff]
        %v1717 = vld [vmem:[%s245 + $0x2380] sm:$0xff]
        %v1718 = vld [vmem:[%s245 + $0x2388] sm:$0xff]
        %v1719 = vld [vmem:[%s245 + $0x2390] sm:$0xff]
        %v1720 = vld [vmem:[%s245 + $0x2398] sm:$0xff]
        %v1721 = vld [vmem:[%s245 + $0x23a0] sm:$0xff]
        %v1722 = vld [vmem:[%s245 + $0x23a8] sm:$0xff]
        %v1723 = vld [vmem:[%s245 + $0x23b0] sm:$0xff]
        %v1724 = vld [vmem:[%s245 + $0x23b8] sm:$0xff]
        %v1725 = vld [vmem:[%s245 + $0x23c0] sm:$0xff]
        %v1726 = vld [vmem:[%s245 + $0x23c8] sm:$0xff]
        %v1727 = vld [vmem:[%s245 + $0x23d0] sm:$0xff]
        %v1728 = vld [vmem:[%s245 + $0x23d8] sm:$0xff]
        %v1729 = vld [vmem:[%s245 + $0x23e0] sm:$0xff]
        %v1730 = vld [vmem:[%s245 + $0x23e8] sm:$0xff]
        %v1731 = vld [vmem:[%s245 + $0x23f0] sm:$0xff]
        %v1732 = vld [vmem:[%s245 + $0x23f8] sm:$0xff]
        %v2885 = vunpack.c.l.b16 %v581
        %v2886 = vunpack.c.h.b16 %v581
        %v2887 = vunpack.c.l.b16 %v582
        %v2888 = vunpack.c.h.b16 %v582
        %v2889 = vunpack.c.l.b16 %v583
        %v2890 = vunpack.c.h.b16 %v583
        %v2891 = vunpack.c.l.b16 %v584
        %v2892 = vunpack.c.h.b16 %v584
        %v2893 = vunpack.c.l.b16 %v585
        %v2894 = vunpack.c.h.b16 %v585
        %v2895 = vunpack.c.l.b16 %v586
        %v2896 = vunpack.c.h.b16 %v586
        %v2897 = vunpack.c.l.b16 %v587
        %v2898 = vunpack.c.h.b16 %v587
        %v2899 = vunpack.c.l.b16 %v588
        %v2900 = vunpack.c.h.b16 %v588
        %v2901 = vunpack.c.l.b16 %v589
        %v2902 = vunpack.c.h.b16 %v589
        %v2903 = vunpack.c.l.b16 %v590
        %v2904 = vunpack.c.h.b16 %v590
        %v2905 = vunpack.c.l.b16 %v591
        %v2906 = vunpack.c.h.b16 %v591
        %v2907 = vunpack.c.l.b16 %v592
        %v2908 = vunpack.c.h.b16 %v592
        %v2909 = vunpack.c.l.b16 %v593
        %v2910 = vunpack.c.h.b16 %v593
        %v2911 = vunpack.c.l.b16 %v594
        %v2912 = vunpack.c.h.b16 %v594
        %v2913 = vunpack.c.l.b16 %v595
        %v2914 = vunpack.c.h.b16 %v595
        %v2915 = vunpack.c.l.b16 %v596
        %v2916 = vunpack.c.h.b16 %v596
        %v2917 = vunpack.c.l.b16 %v597
        %v2918 = vunpack.c.h.b16 %v597
        %v2919 = vunpack.c.l.b16 %v598
        %v2920 = vunpack.c.h.b16 %v598
        %v2921 = vunpack.c.l.b16 %v599
        %v2922 = vunpack.c.h.b16 %v599
        %v2923 = vunpack.c.l.b16 %v600
        %v2924 = vunpack.c.h.b16 %v600
        %v2925 = vunpack.c.l.b16 %v601
        %v2926 = vunpack.c.h.b16 %v601
        %v2927 = vunpack.c.l.b16 %v602
        %v2928 = vunpack.c.h.b16 %v602
        %v2929 = vunpack.c.l.b16 %v603
        %v2930 = vunpack.c.h.b16 %v603
        %v2931 = vunpack.c.l.b16 %v604
        %v2932 = vunpack.c.h.b16 %v604
        %v2933 = vunpack.c.l.b16 %v605
        %v2934 = vunpack.c.h.b16 %v605
        %v2935 = vunpack.c.l.b16 %v606
        %v2936 = vunpack.c.h.b16 %v606
        %v2937 = vunpack.c.l.b16 %v607
        %v2938 = vunpack.c.h.b16 %v607
        %v2939 = vunpack.c.l.b16 %v608
        %v2940 = vunpack.c.h.b16 %v608
        %v2941 = vunpack.c.l.b16 %v609
        %v2942 = vunpack.c.h.b16 %v609
        %v2943 = vunpack.c.l.b16 %v610
        %v2944 = vunpack.c.h.b16 %v610
        %v2945 = vunpack.c.l.b16 %v611
        %v2946 = vunpack.c.h.b16 %v611
        %v2947 = vunpack.c.l.b16 %v612
        %v2948 = vunpack.c.h.b16 %v612
        %v2949 = vunpack.c.l.b16 %v613
        %v2950 = vunpack.c.h.b16 %v613
        %v2951 = vunpack.c.l.b16 %v614
        %v2952 = vunpack.c.h.b16 %v614
        %v2953 = vunpack.c.l.b16 %v615
        %v2954 = vunpack.c.h.b16 %v615
        %v2955 = vunpack.c.l.b16 %v616
        %v2956 = vunpack.c.h.b16 %v616
        %v2957 = vunpack.c.l.b16 %v617
        %v2958 = vunpack.c.h.b16 %v617
        %v2959 = vunpack.c.l.b16 %v618
        %v2960 = vunpack.c.h.b16 %v618
        %v2961 = vunpack.c.l.b16 %v619
        %v2962 = vunpack.c.h.b16 %v619
        %v2963 = vunpack.c.l.b16 %v620
        %v2964 = vunpack.c.h.b16 %v620
        %v2965 = vunpack.c.l.b16 %v621
        %v2966 = vunpack.c.h.b16 %v621
        %v2967 = vunpack.c.l.b16 %v622
        %v2968 = vunpack.c.h.b16 %v622
        %v2969 = vunpack.c.l.b16 %v623
        %v2970 = vunpack.c.h.b16 %v623
        %v2971 = vunpack.c.l.b16 %v624
        %v2972 = vunpack.c.h.b16 %v624
        %v2973 = vunpack.c.l.b16 %v625
        %v2974 = vunpack.c.h.b16 %v625
        %v2975 = vunpack.c.l.b16 %v626
        %v2976 = vunpack.c.h.b16 %v626
        %v2977 = vunpack.c.l.b16 %v627
        %v2978 = vunpack.c.h.b16 %v627
        %v2979 = vunpack.c.l.b16 %v628
        %v2980 = vunpack.c.h.b16 %v628
        %v2981 = vunpack.c.l.b16 %v629
        %v2982 = vunpack.c.h.b16 %v629
        %v2983 = vunpack.c.l.b16 %v630
        %v2984 = vunpack.c.h.b16 %v630
        %v2985 = vunpack.c.l.b16 %v631
        %v2986 = vunpack.c.h.b16 %v631
        %v2987 = vunpack.c.l.b16 %v632
        %v2988 = vunpack.c.h.b16 %v632
        %v2989 = vunpack.c.l.b16 %v633
        %v2990 = vunpack.c.h.b16 %v633
        %v2991 = vunpack.c.l.b16 %v634
        %v2992 = vunpack.c.h.b16 %v634
        %v2993 = vunpack.c.l.b16 %v635
        %v2994 = vunpack.c.h.b16 %v635
        %v2995 = vunpack.c.l.b16 %v636
        %v2996 = vunpack.c.h.b16 %v636
        %v2997 = vunpack.c.l.b16 %v637
        %v2998 = vunpack.c.h.b16 %v637
        %v2999 = vunpack.c.l.b16 %v638
        %v3000 = vunpack.c.h.b16 %v638
        %v3001 = vunpack.c.l.b16 %v639
        %v3002 = vunpack.c.h.b16 %v639
        %v3003 = vunpack.c.l.b16 %v640
        %v3004 = vunpack.c.h.b16 %v640
        %v3005 = vunpack.c.l.b16 %v641
        %v3006 = vunpack.c.h.b16 %v641
        %v3007 = vunpack.c.l.b16 %v642
        %v3008 = vunpack.c.h.b16 %v642
        %v3009 = vunpack.c.l.b16 %v643
        %v3010 = vunpack.c.h.b16 %v643
        %v3011 = vunpack.c.l.b16 %v644
        %v3012 = vunpack.c.h.b16 %v644
        %v3013 = vunpack.c.l.b16 %v645
        %v3014 = vunpack.c.h.b16 %v645
        %v3015 = vunpack.c.l.b16 %v646
        %v3016 = vunpack.c.h.b16 %v646
        %v3017 = vunpack.c.l.b16 %v647
        %v3018 = vunpack.c.h.b16 %v647
        %v3019 = vunpack.c.l.b16 %v648
        %v3020 = vunpack.c.h.b16 %v648
        %v3021 = vunpack.c.l.b16 %v649
        %v3022 = vunpack.c.h.b16 %v649
        %v3023 = vunpack.c.l.b16 %v650
        %v3024 = vunpack.c.h.b16 %v650
        %v3025 = vunpack.c.l.b16 %v651
        %v3026 = vunpack.c.h.b16 %v651
        %v3027 = vunpack.c.l.b16 %v652
        %v3028 = vunpack.c.h.b16 %v652
        %v3029 = vunpack.c.l.b16 %v653
        %v3030 = vunpack.c.h.b16 %v653
        %v3031 = vunpack.c.l.b16 %v654
        %v3032 = vunpack.c.h.b16 %v654
        %v3033 = vunpack.c.l.b16 %v655
        %v3034 = vunpack.c.h.b16 %v655
        %v3035 = vunpack.c.l.b16 %v656
        %v3036 = vunpack.c.h.b16 %v656
        %v3037 = vunpack.c.l.b16 %v657
        %v3038 = vunpack.c.h.b16 %v657
        %v3039 = vunpack.c.l.b16 %v658
        %v3040 = vunpack.c.h.b16 %v658
        %v3041 = vunpack.c.l.b16 %v659
        %v3042 = vunpack.c.h.b16 %v659
        %v3043 = vunpack.c.l.b16 %v660
        %v3044 = vunpack.c.h.b16 %v660
        %v3045 = vunpack.c.l.b16 %v661
        %v3046 = vunpack.c.h.b16 %v661
        %v3047 = vunpack.c.l.b16 %v662
        %v3048 = vunpack.c.h.b16 %v662
        %v3049 = vunpack.c.l.b16 %v663
        %v3050 = vunpack.c.h.b16 %v663
        %v3051 = vunpack.c.l.b16 %v664
        %v3052 = vunpack.c.h.b16 %v664
        %v3053 = vunpack.c.l.b16 %v665
        %v3054 = vunpack.c.h.b16 %v665
        %v3055 = vunpack.c.l.b16 %v666
        %v3056 = vunpack.c.h.b16 %v666
        %v3057 = vunpack.c.l.b16 %v667
        %v3058 = vunpack.c.h.b16 %v667
        %v3059 = vunpack.c.l.b16 %v668
        %v3060 = vunpack.c.h.b16 %v668
        %v3061 = vunpack.c.l.b16 %v669
        %v3062 = vunpack.c.h.b16 %v669
        %v3063 = vunpack.c.l.b16 %v670
        %v3064 = vunpack.c.h.b16 %v670
        %v3065 = vunpack.c.l.b16 %v671
        %v3066 = vunpack.c.h.b16 %v671
        %v3067 = vunpack.c.l.b16 %v672
        %v3068 = vunpack.c.h.b16 %v672
        %v3069 = vunpack.c.l.b16 %v673
        %v3070 = vunpack.c.h.b16 %v673
        %v3071 = vunpack.c.l.b16 %v674
        %v3072 = vunpack.c.h.b16 %v674
        %v3073 = vunpack.c.l.b16 %v675
        %v3074 = vunpack.c.h.b16 %v675
        %v3075 = vunpack.c.l.b16 %v676
        %v3076 = vunpack.c.h.b16 %v676
        %v3077 = vunpack.c.l.b16 %v677
        %v3078 = vunpack.c.h.b16 %v677
        %v3079 = vunpack.c.l.b16 %v678
        %v3080 = vunpack.c.h.b16 %v678
        %v3081 = vunpack.c.l.b16 %v679
        %v3082 = vunpack.c.h.b16 %v679
        %v3083 = vunpack.c.l.b16 %v680
        %v3084 = vunpack.c.h.b16 %v680
        %v3085 = vunpack.c.l.b16 %v681
        %v3086 = vunpack.c.h.b16 %v681
        %v3087 = vunpack.c.l.b16 %v682
        %v3088 = vunpack.c.h.b16 %v682
        %v3089 = vunpack.c.l.b16 %v683
        %v3090 = vunpack.c.h.b16 %v683
        %v3091 = vunpack.c.l.b16 %v684
        %v3092 = vunpack.c.h.b16 %v684
        %v3093 = vunpack.c.l.b16 %v685
        %v3094 = vunpack.c.h.b16 %v685
        %v3095 = vunpack.c.l.b16 %v686
        %v3096 = vunpack.c.h.b16 %v686
        %v3097 = vunpack.c.l.b16 %v687
        %v3098 = vunpack.c.h.b16 %v687
        %v3099 = vunpack.c.l.b16 %v688
        %v3100 = vunpack.c.h.b16 %v688
        %v3101 = vunpack.c.l.b16 %v689
        %v3102 = vunpack.c.h.b16 %v689
        %v3103 = vunpack.c.l.b16 %v690
        %v3104 = vunpack.c.h.b16 %v690
        %v3105 = vunpack.c.l.b16 %v691
        %v3106 = vunpack.c.h.b16 %v691
        %v3107 = vunpack.c.l.b16 %v692
        %v3108 = vunpack.c.h.b16 %v692
        %v3109 = vunpack.c.l.b16 %v693
        %v3110 = vunpack.c.h.b16 %v693
        %v3111 = vunpack.c.l.b16 %v694
        %v3112 = vunpack.c.h.b16 %v694
        %v3113 = vunpack.c.l.b16 %v695
        %v3114 = vunpack.c.h.b16 %v695
        %v3115 = vunpack.c.l.b16 %v696
        %v3116 = vunpack.c.h.b16 %v696
        %v3117 = vunpack.c.l.b16 %v697
        %v3118 = vunpack.c.h.b16 %v697
        %v3119 = vunpack.c.l.b16 %v698
        %v3120 = vunpack.c.h.b16 %v698
        %v3121 = vunpack.c.l.b16 %v699
        %v3122 = vunpack.c.h.b16 %v699
        %v3123 = vunpack.c.l.b16 %v700
        %v3124 = vunpack.c.h.b16 %v700
        %v3125 = vunpack.c.l.b16 %v701
        %v3126 = vunpack.c.h.b16 %v701
        %v3127 = vunpack.c.l.b16 %v702
        %v3128 = vunpack.c.h.b16 %v702
        %v3129 = vunpack.c.l.b16 %v703
        %v3130 = vunpack.c.h.b16 %v703
        %v3131 = vunpack.c.l.b16 %v704
        %v3132 = vunpack.c.h.b16 %v704
        %v3133 = vunpack.c.l.b16 %v705
        %v3134 = vunpack.c.h.b16 %v705
        %v3135 = vunpack.c.l.b16 %v706
        %v3136 = vunpack.c.h.b16 %v706
        %v3137 = vunpack.c.l.b16 %v707
        %v3138 = vunpack.c.h.b16 %v707
        %v3139 = vunpack.c.l.b16 %v708
        %v3140 = vunpack.c.h.b16 %v708
        %v3141 = vunpack.c.l.b16 %v709
        %v3142 = vunpack.c.h.b16 %v709
        %v3143 = vunpack.c.l.b16 %v710
        %v3144 = vunpack.c.h.b16 %v710
        %v3145 = vunpack.c.l.b16 %v711
        %v3146 = vunpack.c.h.b16 %v711
        %v3147 = vunpack.c.l.b16 %v712
        %v3148 = vunpack.c.h.b16 %v712
        %v3149 = vunpack.c.l.b16 %v713
        %v3150 = vunpack.c.h.b16 %v713
        %v3151 = vunpack.c.l.b16 %v714
        %v3152 = vunpack.c.h.b16 %v714
        %v3153 = vunpack.c.l.b16 %v715
        %v3154 = vunpack.c.h.b16 %v715
        %v3155 = vunpack.c.l.b16 %v716
        %v3156 = vunpack.c.h.b16 %v716
        %v3157 = vunpack.c.l.b16 %v717
        %v3158 = vunpack.c.h.b16 %v717
        %v3159 = vunpack.c.l.b16 %v718
        %v3160 = vunpack.c.h.b16 %v718
        %v3161 = vunpack.c.l.b16 %v719
        %v3162 = vunpack.c.h.b16 %v719
        %v3163 = vunpack.c.l.b16 %v720
        %v3164 = vunpack.c.h.b16 %v720
        %v3165 = vunpack.c.l.b16 %v721
        %v3166 = vunpack.c.h.b16 %v721
        %v3167 = vunpack.c.l.b16 %v722
        %v3168 = vunpack.c.h.b16 %v722
        %v3169 = vunpack.c.l.b16 %v723
        %v3170 = vunpack.c.h.b16 %v723
        %v3171 = vunpack.c.l.b16 %v724
        %v3172 = vunpack.c.h.b16 %v724
        %v3173 = vunpack.c.l.b16 %v725
        %v3174 = vunpack.c.h.b16 %v725
        %v3175 = vunpack.c.l.b16 %v726
        %v3176 = vunpack.c.h.b16 %v726
        %v3177 = vunpack.c.l.b16 %v727
        %v3178 = vunpack.c.h.b16 %v727
        %v3179 = vunpack.c.l.b16 %v728
        %v3180 = vunpack.c.h.b16 %v728
        %v3181 = vunpack.c.l.b16 %v729
        %v3182 = vunpack.c.h.b16 %v729
        %v3183 = vunpack.c.l.b16 %v730
        %v3184 = vunpack.c.h.b16 %v730
        %v3185 = vunpack.c.l.b16 %v731
        %v3186 = vunpack.c.h.b16 %v731
        %v3187 = vunpack.c.l.b16 %v732
        %v3188 = vunpack.c.h.b16 %v732
        %v3189 = vunpack.c.l.b16 %v733
        %v3190 = vunpack.c.h.b16 %v733
        %v3191 = vunpack.c.l.b16 %v734
        %v3192 = vunpack.c.h.b16 %v734
        %v3193 = vunpack.c.l.b16 %v735
        %v3194 = vunpack.c.h.b16 %v735
        %v3195 = vunpack.c.l.b16 %v736
        %v3196 = vunpack.c.h.b16 %v736
        %v3197 = vunpack.c.l.b16 %v737
        %v3198 = vunpack.c.h.b16 %v737
        %v3199 = vunpack.c.l.b16 %v738
        %v3200 = vunpack.c.h.b16 %v738
        %v3201 = vunpack.c.l.b16 %v739
        %v3202 = vunpack.c.h.b16 %v739
        %v3203 = vunpack.c.l.b16 %v740
        %v3204 = vunpack.c.h.b16 %v740
        %v3205 = vunpack.c.l.b16 %v741
        %v3206 = vunpack.c.h.b16 %v741
        %v3207 = vunpack.c.l.b16 %v742
        %v3208 = vunpack.c.h.b16 %v742
        %v3209 = vunpack.c.l.b16 %v743
        %v3210 = vunpack.c.h.b16 %v743
        %v3211 = vunpack.c.l.b16 %v744
        %v3212 = vunpack.c.h.b16 %v744
        %v3213 = vunpack.c.l.b16 %v745
        %v3214 = vunpack.c.h.b16 %v745
        %v3215 = vunpack.c.l.b16 %v746
        %v3216 = vunpack.c.h.b16 %v746
        %v3217 = vunpack.c.l.b16 %v747
        %v3218 = vunpack.c.h.b16 %v747
        %v3219 = vunpack.c.l.b16 %v748
        %v3220 = vunpack.c.h.b16 %v748
        %v3221 = vunpack.c.l.b16 %v749
        %v3222 = vunpack.c.h.b16 %v749
        %v3223 = vunpack.c.l.b16 %v750
        %v3224 = vunpack.c.h.b16 %v750
        %v3225 = vunpack.c.l.b16 %v751
        %v3226 = vunpack.c.h.b16 %v751
        %v3227 = vunpack.c.l.b16 %v752
        %v3228 = vunpack.c.h.b16 %v752
        %v3229 = vunpack.c.l.b16 %v753
        %v3230 = vunpack.c.h.b16 %v753
        %v3231 = vunpack.c.l.b16 %v754
        %v3232 = vunpack.c.h.b16 %v754
        %v3233 = vunpack.c.l.b16 %v755
        %v3234 = vunpack.c.h.b16 %v755
        %v3235 = vunpack.c.l.b16 %v756
        %v3236 = vunpack.c.h.b16 %v756
        %v3237 = vunpack.c.l.b16 %v757
        %v3238 = vunpack.c.h.b16 %v757
        %v3239 = vunpack.c.l.b16 %v758
        %v3240 = vunpack.c.h.b16 %v758
        %v3241 = vunpack.c.l.b16 %v759
        %v3242 = vunpack.c.h.b16 %v759
        %v3243 = vunpack.c.l.b16 %v760
        %v3244 = vunpack.c.h.b16 %v760
        %v3245 = vunpack.c.l.b16 %v761
        %v3246 = vunpack.c.h.b16 %v761
        %v3247 = vunpack.c.l.b16 %v762
        %v3248 = vunpack.c.h.b16 %v762
        %v3249 = vunpack.c.l.b16 %v763
        %v3250 = vunpack.c.h.b16 %v763
        %v3251 = vunpack.c.l.b16 %v764
        %v3252 = vunpack.c.h.b16 %v764
        %v3253 = vunpack.c.l.b16 %v765
        %v3254 = vunpack.c.h.b16 %v765
        %v3255 = vunpack.c.l.b16 %v766
        %v3256 = vunpack.c.h.b16 %v766
        %v3257 = vunpack.c.l.b16 %v767
        %v3258 = vunpack.c.h.b16 %v767
        %v3259 = vunpack.c.l.b16 %v768
        %v3260 = vunpack.c.h.b16 %v768
        %v3261 = vunpack.c.l.b16 %v769
        %v3262 = vunpack.c.h.b16 %v769
        %v3263 = vunpack.c.l.b16 %v770
        %v3264 = vunpack.c.h.b16 %v770
        %v3265 = vunpack.c.l.b16 %v771
        %v3266 = vunpack.c.h.b16 %v771
        %v3267 = vunpack.c.l.b16 %v772
        %v3268 = vunpack.c.h.b16 %v772
        %v3269 = vunpack.c.l.b16 %v773
        %v3270 = vunpack.c.h.b16 %v773
        %v3271 = vunpack.c.l.b16 %v774
        %v3272 = vunpack.c.h.b16 %v774
        %v3273 = vunpack.c.l.b16 %v775
        %v3274 = vunpack.c.h.b16 %v775
        %v3275 = vunpack.c.l.b16 %v776
        %v3276 = vunpack.c.h.b16 %v776
        %v3277 = vunpack.c.l.b16 %v777
        %v3278 = vunpack.c.h.b16 %v777
        %v3279 = vunpack.c.l.b16 %v778
        %v3280 = vunpack.c.h.b16 %v778
        %v3281 = vunpack.c.l.b16 %v779
        %v3282 = vunpack.c.h.b16 %v779
        %v3283 = vunpack.c.l.b16 %v780
        %v3284 = vunpack.c.h.b16 %v780
        %v3285 = vunpack.c.l.b16 %v781
        %v3286 = vunpack.c.h.b16 %v781
        %v3287 = vunpack.c.l.b16 %v782
        %v3288 = vunpack.c.h.b16 %v782
        %v3289 = vunpack.c.l.b16 %v783
        %v3290 = vunpack.c.h.b16 %v783
        %v3291 = vunpack.c.l.b16 %v784
        %v3292 = vunpack.c.h.b16 %v784
        %v3293 = vunpack.c.l.b16 %v785
        %v3294 = vunpack.c.h.b16 %v785
        %v3295 = vunpack.c.l.b16 %v786
        %v3296 = vunpack.c.h.b16 %v786
        %v3297 = vunpack.c.l.b16 %v787
        %v3298 = vunpack.c.h.b16 %v787
        %v3299 = vunpack.c.l.b16 %v788
        %v3300 = vunpack.c.h.b16 %v788
        %v3301 = vunpack.c.l.b16 %v789
        %v3302 = vunpack.c.h.b16 %v789
        %v3303 = vunpack.c.l.b16 %v790
        %v3304 = vunpack.c.h.b16 %v790
        %v3305 = vunpack.c.l.b16 %v791
        %v3306 = vunpack.c.h.b16 %v791
        %v3307 = vunpack.c.l.b16 %v792
        %v3308 = vunpack.c.h.b16 %v792
        %v3309 = vunpack.c.l.b16 %v793
        %v3310 = vunpack.c.h.b16 %v793
        %v3311 = vunpack.c.l.b16 %v794
        %v3312 = vunpack.c.h.b16 %v794
        %v3313 = vunpack.c.l.b16 %v795
        %v3314 = vunpack.c.h.b16 %v795
        %v3315 = vunpack.c.l.b16 %v796
        %v3316 = vunpack.c.h.b16 %v796
        %v3317 = vunpack.c.l.b16 %v797
        %v3318 = vunpack.c.h.b16 %v797
        %v3319 = vunpack.c.l.b16 %v798
        %v3320 = vunpack.c.h.b16 %v798
        %v3321 = vunpack.c.l.b16 %v799
        %v3322 = vunpack.c.h.b16 %v799
        %v3323 = vunpack.c.l.b16 %v800
        %v3324 = vunpack.c.h.b16 %v800
        %v3325 = vunpack.c.l.b16 %v801
        %v3326 = vunpack.c.h.b16 %v801
        %v3327 = vunpack.c.l.b16 %v802
        %v3328 = vunpack.c.h.b16 %v802
        %v3329 = vunpack.c.l.b16 %v803
        %v3330 = vunpack.c.h.b16 %v803
        %v3331 = vunpack.c.l.b16 %v804
        %v3332 = vunpack.c.h.b16 %v804
        %v3333 = vunpack.c.l.b16 %v805
        %v3334 = vunpack.c.h.b16 %v805
        %v3335 = vunpack.c.l.b16 %v806
        %v3336 = vunpack.c.h.b16 %v806
        %v3337 = vunpack.c.l.b16 %v807
        %v3338 = vunpack.c.h.b16 %v807
        %v3339 = vunpack.c.l.b16 %v808
        %v3340 = vunpack.c.h.b16 %v808
        %v3341 = vunpack.c.l.b16 %v809
        %v3342 = vunpack.c.h.b16 %v809
        %v3343 = vunpack.c.l.b16 %v810
        %v3344 = vunpack.c.h.b16 %v810
        %v3345 = vunpack.c.l.b16 %v811
        %v3346 = vunpack.c.h.b16 %v811
        %v3347 = vunpack.c.l.b16 %v812
        %v3348 = vunpack.c.h.b16 %v812
        %v3349 = vunpack.c.l.b16 %v813
        %v3350 = vunpack.c.h.b16 %v813
        %v3351 = vunpack.c.l.b16 %v814
        %v3352 = vunpack.c.h.b16 %v814
        %v3353 = vunpack.c.l.b16 %v815
        %v3354 = vunpack.c.h.b16 %v815
        %v3355 = vunpack.c.l.b16 %v816
        %v3356 = vunpack.c.h.b16 %v816
        %v3357 = vunpack.c.l.b16 %v817
        %v3358 = vunpack.c.h.b16 %v817
        %v3359 = vunpack.c.l.b16 %v818
        %v3360 = vunpack.c.h.b16 %v818
        %v3361 = vunpack.c.l.b16 %v819
        %v3362 = vunpack.c.h.b16 %v819
        %v3363 = vunpack.c.l.b16 %v820
        %v3364 = vunpack.c.h.b16 %v820
        %v3365 = vunpack.c.l.b16 %v821
        %v3366 = vunpack.c.h.b16 %v821
        %v3367 = vunpack.c.l.b16 %v822
        %v3368 = vunpack.c.h.b16 %v822
        %v3369 = vunpack.c.l.b16 %v823
        %v3370 = vunpack.c.h.b16 %v823
        %v3371 = vunpack.c.l.b16 %v824
        %v3372 = vunpack.c.h.b16 %v824
        %v3373 = vunpack.c.l.b16 %v825
        %v3374 = vunpack.c.h.b16 %v825
        %v3375 = vunpack.c.l.b16 %v826
        %v3376 = vunpack.c.h.b16 %v826
        %v3377 = vunpack.c.l.b16 %v827
        %v3378 = vunpack.c.h.b16 %v827
        %v3379 = vunpack.c.l.b16 %v828
        %v3380 = vunpack.c.h.b16 %v828
        %v3381 = vunpack.c.l.b16 %v829
        %v3382 = vunpack.c.h.b16 %v829
        %v3383 = vunpack.c.l.b16 %v830
        %v3384 = vunpack.c.h.b16 %v830
        %v3385 = vunpack.c.l.b16 %v831
        %v3386 = vunpack.c.h.b16 %v831
        %v3387 = vunpack.c.l.b16 %v832
        %v3388 = vunpack.c.h.b16 %v832
        %v3389 = vunpack.c.l.b16 %v833
        %v3390 = vunpack.c.h.b16 %v833
        %v3391 = vunpack.c.l.b16 %v834
        %v3392 = vunpack.c.h.b16 %v834
        %v3393 = vunpack.c.l.b16 %v835
        %v3394 = vunpack.c.h.b16 %v835
        %v3395 = vunpack.c.l.b16 %v836
        %v3396 = vunpack.c.h.b16 %v836
        %v3397 = vunpack.c.l.b16 %v837
        %v3398 = vunpack.c.h.b16 %v837
        %v3399 = vunpack.c.l.b16 %v838
        %v3400 = vunpack.c.h.b16 %v838
        %v3401 = vunpack.c.l.b16 %v839
        %v3402 = vunpack.c.h.b16 %v839
        %v3403 = vunpack.c.l.b16 %v840
        %v3404 = vunpack.c.h.b16 %v840
        %v3405 = vunpack.c.l.b16 %v841
        %v3406 = vunpack.c.h.b16 %v841
        %v3407 = vunpack.c.l.b16 %v842
        %v3408 = vunpack.c.h.b16 %v842
        %v3409 = vunpack.c.l.b16 %v843
        %v3410 = vunpack.c.h.b16 %v843
        %v3411 = vunpack.c.l.b16 %v844
        %v3412 = vunpack.c.h.b16 %v844
        %v3413 = vunpack.c.l.b16 %v845
        %v3414 = vunpack.c.h.b16 %v845
        %v3415 = vunpack.c.l.b16 %v846
        %v3416 = vunpack.c.h.b16 %v846
        %v3417 = vunpack.c.l.b16 %v847
        %v3418 = vunpack.c.h.b16 %v847
        %v3419 = vunpack.c.l.b16 %v848
        %v3420 = vunpack.c.h.b16 %v848
        %v3421 = vunpack.c.l.b16 %v849
        %v3422 = vunpack.c.h.b16 %v849
        %v3423 = vunpack.c.l.b16 %v850
        %v3424 = vunpack.c.h.b16 %v850
        %v3425 = vunpack.c.l.b16 %v851
        %v3426 = vunpack.c.h.b16 %v851
        %v3427 = vunpack.c.l.b16 %v852
        %v3428 = vunpack.c.h.b16 %v852
        %v3429 = vunpack.c.l.b16 %v853
        %v3430 = vunpack.c.h.b16 %v853
        %v3431 = vunpack.c.l.b16 %v854
        %v3432 = vunpack.c.h.b16 %v854
        %v3433 = vunpack.c.l.b16 %v855
        %v3434 = vunpack.c.h.b16 %v855
        %v3435 = vunpack.c.l.b16 %v856
        %v3436 = vunpack.c.h.b16 %v856
        %v3437 = vunpack.c.l.b16 %v857
        %v3438 = vunpack.c.h.b16 %v857
        %v3439 = vunpack.c.l.b16 %v858
        %v3440 = vunpack.c.h.b16 %v858
        %v3441 = vunpack.c.l.b16 %v859
        %v3442 = vunpack.c.h.b16 %v859
        %v3443 = vunpack.c.l.b16 %v860
        %v3444 = vunpack.c.h.b16 %v860
        %v3445 = vunpack.c.l.b16 %v861
        %v3446 = vunpack.c.h.b16 %v861
        %v3447 = vunpack.c.l.b16 %v862
        %v3448 = vunpack.c.h.b16 %v862
        %v3449 = vunpack.c.l.b16 %v863
        %v3450 = vunpack.c.h.b16 %v863
        %v3451 = vunpack.c.l.b16 %v864
        %v3452 = vunpack.c.h.b16 %v864
        %v3453 = vunpack.c.l.b16 %v865
        %v3454 = vunpack.c.h.b16 %v865
        %v3455 = vunpack.c.l.b16 %v866
        %v3456 = vunpack.c.h.b16 %v866
        %v3457 = vunpack.c.l.b16 %v867
        %v3458 = vunpack.c.h.b16 %v867
        %v3459 = vunpack.c.l.b16 %v868
        %v3460 = vunpack.c.h.b16 %v868
        %v3461 = vunpack.c.l.b16 %v869
        %v3462 = vunpack.c.h.b16 %v869
        %v3463 = vunpack.c.l.b16 %v870
        %v3464 = vunpack.c.h.b16 %v870
        %v3465 = vunpack.c.l.b16 %v871
        %v3466 = vunpack.c.h.b16 %v871
        %v3467 = vunpack.c.l.b16 %v872
        %v3468 = vunpack.c.h.b16 %v872
        %v3469 = vunpack.c.l.b16 %v873
        %v3470 = vunpack.c.h.b16 %v873
        %v3471 = vunpack.c.l.b16 %v874
        %v3472 = vunpack.c.h.b16 %v874
        %v3473 = vunpack.c.l.b16 %v875
        %v3474 = vunpack.c.h.b16 %v875
        %v3475 = vunpack.c.l.b16 %v876
        %v3476 = vunpack.c.h.b16 %v876
        %v3477 = vunpack.c.l.b16 %v877
        %v3478 = vunpack.c.h.b16 %v877
        %v3479 = vunpack.c.l.b16 %v878
        %v3480 = vunpack.c.h.b16 %v878
        %v3481 = vunpack.c.l.b16 %v879
        %v3482 = vunpack.c.h.b16 %v879
        %v3483 = vunpack.c.l.b16 %v880
        %v3484 = vunpack.c.h.b16 %v880
        %v3485 = vunpack.c.l.b16 %v881
        %v3486 = vunpack.c.h.b16 %v881
        %v3487 = vunpack.c.l.b16 %v882
        %v3488 = vunpack.c.h.b16 %v882
        %v3489 = vunpack.c.l.b16 %v883
        %v3490 = vunpack.c.h.b16 %v883
        %v3491 = vunpack.c.l.b16 %v884
        %v3492 = vunpack.c.h.b16 %v884
        %v3493 = vunpack.c.l.b16 %v885
        %v3494 = vunpack.c.h.b16 %v885
        %v3495 = vunpack.c.l.b16 %v886
        %v3496 = vunpack.c.h.b16 %v886
        %v3497 = vunpack.c.l.b16 %v887
        %v3498 = vunpack.c.h.b16 %v887
        %v3499 = vunpack.c.l.b16 %v888
        %v3500 = vunpack.c.h.b16 %v888
        %v3501 = vunpack.c.l.b16 %v889
        %v3502 = vunpack.c.h.b16 %v889
        %v3503 = vunpack.c.l.b16 %v890
        %v3504 = vunpack.c.h.b16 %v890
        %v3505 = vunpack.c.l.b16 %v891
        %v3506 = vunpack.c.h.b16 %v891
        %v3507 = vunpack.c.l.b16 %v892
        %v3508 = vunpack.c.h.b16 %v892
        %v3509 = vunpack.c.l.b16 %v893
        %v3510 = vunpack.c.h.b16 %v893
        %v3511 = vunpack.c.l.b16 %v894
        %v3512 = vunpack.c.h.b16 %v894
        %v3513 = vunpack.c.l.b16 %v895
        %v3514 = vunpack.c.h.b16 %v895
        %v3515 = vunpack.c.l.b16 %v896
        %v3516 = vunpack.c.h.b16 %v896
        %v3517 = vunpack.c.l.b16 %v897
        %v3518 = vunpack.c.h.b16 %v897
        %v3519 = vunpack.c.l.b16 %v898
        %v3520 = vunpack.c.h.b16 %v898
        %v3521 = vunpack.c.l.b16 %v899
        %v3522 = vunpack.c.h.b16 %v899
        %v3523 = vunpack.c.l.b16 %v900
        %v3524 = vunpack.c.h.b16 %v900
        %v3525 = vunpack.c.l.b16 %v901
        %v3526 = vunpack.c.h.b16 %v901
        %v3527 = vunpack.c.l.b16 %v902
        %v3528 = vunpack.c.h.b16 %v902
        %v3529 = vunpack.c.l.b16 %v903
        %v3530 = vunpack.c.h.b16 %v903
        %v3531 = vunpack.c.l.b16 %v904
        %v3532 = vunpack.c.h.b16 %v904
        %v3533 = vunpack.c.l.b16 %v905
        %v3534 = vunpack.c.h.b16 %v905
        %v3535 = vunpack.c.l.b16 %v906
        %v3536 = vunpack.c.h.b16 %v906
        %v3537 = vunpack.c.l.b16 %v907
        %v3538 = vunpack.c.h.b16 %v907
        %v3539 = vunpack.c.l.b16 %v908
        %v3540 = vunpack.c.h.b16 %v908
        %v3541 = vunpack.c.l.b16 %v909
        %v3542 = vunpack.c.h.b16 %v909
        %v3543 = vunpack.c.l.b16 %v910
        %v3544 = vunpack.c.h.b16 %v910
        %v3545 = vunpack.c.l.b16 %v911
        %v3546 = vunpack.c.h.b16 %v911
        %v3547 = vunpack.c.l.b16 %v912
        %v3548 = vunpack.c.h.b16 %v912
        %v3549 = vunpack.c.l.b16 %v913
        %v3550 = vunpack.c.h.b16 %v913
        %v3551 = vunpack.c.l.b16 %v914
        %v3552 = vunpack.c.h.b16 %v914
        %v3553 = vunpack.c.l.b16 %v915
        %v3554 = vunpack.c.h.b16 %v915
        %v3555 = vunpack.c.l.b16 %v916
        %v3556 = vunpack.c.h.b16 %v916
        %v3557 = vunpack.c.l.b16 %v917
        %v3558 = vunpack.c.h.b16 %v917
        %v3559 = vunpack.c.l.b16 %v918
        %v3560 = vunpack.c.h.b16 %v918
        %v3561 = vunpack.c.l.b16 %v919
        %v3562 = vunpack.c.h.b16 %v919
        %v3563 = vunpack.c.l.b16 %v920
        %v3564 = vunpack.c.h.b16 %v920
        %v3565 = vunpack.c.l.b16 %v921
        %v3566 = vunpack.c.h.b16 %v921
        %v3567 = vunpack.c.l.b16 %v922
        %v3568 = vunpack.c.h.b16 %v922
        %v3569 = vunpack.c.l.b16 %v923
        %v3570 = vunpack.c.h.b16 %v923
        %v3571 = vunpack.c.l.b16 %v924
        %v3572 = vunpack.c.h.b16 %v924
        %v3573 = vunpack.c.l.b16 %v925
        %v3574 = vunpack.c.h.b16 %v925
        %v3575 = vunpack.c.l.b16 %v926
        %v3576 = vunpack.c.h.b16 %v926
        %v3577 = vunpack.c.l.b16 %v927
        %v3578 = vunpack.c.h.b16 %v927
        %v3579 = vunpack.c.l.b16 %v928
        %v3580 = vunpack.c.h.b16 %v928
        %v3581 = vunpack.c.l.b16 %v929
        %v3582 = vunpack.c.h.b16 %v929
        %v3583 = vunpack.c.l.b16 %v930
        %v3584 = vunpack.c.h.b16 %v930
        %v3585 = vunpack.c.l.b16 %v931
        %v3586 = vunpack.c.h.b16 %v931
        %v3587 = vunpack.c.l.b16 %v932
        %v3588 = vunpack.c.h.b16 %v932
        %v3589 = vunpack.c.l.b16 %v933
        %v3590 = vunpack.c.h.b16 %v933
        %v3591 = vunpack.c.l.b16 %v934
        %v3592 = vunpack.c.h.b16 %v934
        %v3593 = vunpack.c.l.b16 %v935
        %v3594 = vunpack.c.h.b16 %v935
        %v3595 = vunpack.c.l.b16 %v936
        %v3596 = vunpack.c.h.b16 %v936
        %v3597 = vunpack.c.l.b16 %v937
        %v3598 = vunpack.c.h.b16 %v937
        %v3599 = vunpack.c.l.b16 %v938
        %v3600 = vunpack.c.h.b16 %v938
        %v3601 = vunpack.c.l.b16 %v939
        %v3602 = vunpack.c.h.b16 %v939
        %v3603 = vunpack.c.l.b16 %v940
        %v3604 = vunpack.c.h.b16 %v940
        %v3605 = vunpack.c.l.b16 %v941
        %v3606 = vunpack.c.h.b16 %v941
        %v3607 = vunpack.c.l.b16 %v942
        %v3608 = vunpack.c.h.b16 %v942
        %v3609 = vunpack.c.l.b16 %v943
        %v3610 = vunpack.c.h.b16 %v943
        %v3611 = vunpack.c.l.b16 %v944
        %v3612 = vunpack.c.h.b16 %v944
        %v3613 = vunpack.c.l.b16 %v945
        %v3614 = vunpack.c.h.b16 %v945
        %v3615 = vunpack.c.l.b16 %v946
        %v3616 = vunpack.c.h.b16 %v946
        %v3617 = vunpack.c.l.b16 %v947
        %v3618 = vunpack.c.h.b16 %v947
        %v3619 = vunpack.c.l.b16 %v948
        %v3620 = vunpack.c.h.b16 %v948
        %v3621 = vunpack.c.l.b16 %v949
        %v3622 = vunpack.c.h.b16 %v949
        %v3623 = vunpack.c.l.b16 %v950
        %v3624 = vunpack.c.h.b16 %v950
        %v3625 = vunpack.c.l.b16 %v951
        %v3626 = vunpack.c.h.b16 %v951
        %v3627 = vunpack.c.l.b16 %v952
        %v3628 = vunpack.c.h.b16 %v952
        %v3629 = vunpack.c.l.b16 %v953
        %v3630 = vunpack.c.h.b16 %v953
        %v3631 = vunpack.c.l.b16 %v954
        %v3632 = vunpack.c.h.b16 %v954
        %v3633 = vunpack.c.l.b16 %v955
        %v3634 = vunpack.c.h.b16 %v955
        %v3635 = vunpack.c.l.b16 %v956
        %v3636 = vunpack.c.h.b16 %v956
        %v3637 = vunpack.c.l.b16 %v957
        %v3638 = vunpack.c.h.b16 %v957
        %v3639 = vunpack.c.l.b16 %v958
        %v3640 = vunpack.c.h.b16 %v958
        %v3641 = vunpack.c.l.b16 %v959
        %v3642 = vunpack.c.h.b16 %v959
        %v3643 = vunpack.c.l.b16 %v960
        %v3644 = vunpack.c.h.b16 %v960
        %v3645 = vunpack.c.l.b16 %v961
        %v3646 = vunpack.c.h.b16 %v961
        %v3647 = vunpack.c.l.b16 %v962
        %v3648 = vunpack.c.h.b16 %v962
        %v3649 = vunpack.c.l.b16 %v963
        %v3650 = vunpack.c.h.b16 %v963
        %v3651 = vunpack.c.l.b16 %v964
        %v3652 = vunpack.c.h.b16 %v964
        %v3653 = vunpack.c.l.b16 %v965
        %v3654 = vunpack.c.h.b16 %v965
        %v3655 = vunpack.c.l.b16 %v966
        %v3656 = vunpack.c.h.b16 %v966
        %v3657 = vunpack.c.l.b16 %v967
        %v3658 = vunpack.c.h.b16 %v967
        %v3659 = vunpack.c.l.b16 %v968
        %v3660 = vunpack.c.h.b16 %v968
        %v3661 = vunpack.c.l.b16 %v969
        %v3662 = vunpack.c.h.b16 %v969
        %v3663 = vunpack.c.l.b16 %v970
        %v3664 = vunpack.c.h.b16 %v970
        %v3665 = vunpack.c.l.b16 %v971
        %v3666 = vunpack.c.h.b16 %v971
        %v3667 = vunpack.c.l.b16 %v972
        %v3668 = vunpack.c.h.b16 %v972
        %v3669 = vunpack.c.l.b16 %v973
        %v3670 = vunpack.c.h.b16 %v973
        %v3671 = vunpack.c.l.b16 %v974
        %v3672 = vunpack.c.h.b16 %v974
        %v3673 = vunpack.c.l.b16 %v975
        %v3674 = vunpack.c.h.b16 %v975
        %v3675 = vunpack.c.l.b16 %v976
        %v3676 = vunpack.c.h.b16 %v976
        %v3677 = vunpack.c.l.b16 %v977
        %v3678 = vunpack.c.h.b16 %v977
        %v3679 = vunpack.c.l.b16 %v978
        %v3680 = vunpack.c.h.b16 %v978
        %v3681 = vunpack.c.l.b16 %v979
        %v3682 = vunpack.c.h.b16 %v979
        %v3683 = vunpack.c.l.b16 %v980
        %v3684 = vunpack.c.h.b16 %v980
        %v3685 = vunpack.c.l.b16 %v981
        %v3686 = vunpack.c.h.b16 %v981
        %v3687 = vunpack.c.l.b16 %v982
        %v3688 = vunpack.c.h.b16 %v982
        %v3689 = vunpack.c.l.b16 %v983
        %v3690 = vunpack.c.h.b16 %v983
        %v3691 = vunpack.c.l.b16 %v984
        %v3692 = vunpack.c.h.b16 %v984
        %v3693 = vunpack.c.l.b16 %v985
        %v3694 = vunpack.c.h.b16 %v985
        %v3695 = vunpack.c.l.b16 %v986
        %v3696 = vunpack.c.h.b16 %v986
        %v3697 = vunpack.c.l.b16 %v987
        %v3698 = vunpack.c.h.b16 %v987
        %v3699 = vunpack.c.l.b16 %v988
        %v3700 = vunpack.c.h.b16 %v988
        %v3701 = vunpack.c.l.b16 %v989
        %v3702 = vunpack.c.h.b16 %v989
        %v3703 = vunpack.c.l.b16 %v990
        %v3704 = vunpack.c.h.b16 %v990
        %v3705 = vunpack.c.l.b16 %v991
        %v3706 = vunpack.c.h.b16 %v991
        %v3707 = vunpack.c.l.b16 %v992
        %v3708 = vunpack.c.h.b16 %v992
        %v3709 = vunpack.c.l.b16 %v993
        %v3710 = vunpack.c.h.b16 %v993
        %v3711 = vunpack.c.l.b16 %v994
        %v3712 = vunpack.c.h.b16 %v994
        %v3713 = vunpack.c.l.b16 %v995
        %v3714 = vunpack.c.h.b16 %v995
        %v3715 = vunpack.c.l.b16 %v996
        %v3716 = vunpack.c.h.b16 %v996
        %v3717 = vunpack.c.l.b16 %v997
        %v3718 = vunpack.c.h.b16 %v997
        %v3719 = vunpack.c.l.b16 %v998
        %v3720 = vunpack.c.h.b16 %v998
        %v3721 = vunpack.c.l.b16 %v999
        %v3722 = vunpack.c.h.b16 %v999
        %v3723 = vunpack.c.l.b16 %v1000
        %v3724 = vunpack.c.h.b16 %v1000
        %v3725 = vunpack.c.l.b16 %v1001
        %v3726 = vunpack.c.h.b16 %v1001
        %v3727 = vunpack.c.l.b16 %v1002
        %v3728 = vunpack.c.h.b16 %v1002
        %v3729 = vunpack.c.l.b16 %v1003
        %v3730 = vunpack.c.h.b16 %v1003
        %v3731 = vunpack.c.l.b16 %v1004
        %v3732 = vunpack.c.h.b16 %v1004
        %v3733 = vunpack.c.l.b16 %v1005
        %v3734 = vunpack.c.h.b16 %v1005
        %v3735 = vunpack.c.l.b16 %v1006
        %v3736 = vunpack.c.h.b16 %v1006
        %v3737 = vunpack.c.l.b16 %v1007
        %v3738 = vunpack.c.h.b16 %v1007
        %v3739 = vunpack.c.l.b16 %v1008
        %v3740 = vunpack.c.h.b16 %v1008
        %v3741 = vunpack.c.l.b16 %v1009
        %v3742 = vunpack.c.h.b16 %v1009
        %v3743 = vunpack.c.l.b16 %v1010
        %v3744 = vunpack.c.h.b16 %v1010
        %v3745 = vunpack.c.l.b16 %v1011
        %v3746 = vunpack.c.h.b16 %v1011
        %v3747 = vunpack.c.l.b16 %v1012
        %v3748 = vunpack.c.h.b16 %v1012
        %v3749 = vunpack.c.l.b16 %v1013
        %v3750 = vunpack.c.h.b16 %v1013
        %v3751 = vunpack.c.l.b16 %v1014
        %v3752 = vunpack.c.h.b16 %v1014
        %v3753 = vunpack.c.l.b16 %v1015
        %v3754 = vunpack.c.h.b16 %v1015
        %v3755 = vunpack.c.l.b16 %v1016
        %v3756 = vunpack.c.h.b16 %v1016
        %v3757 = vunpack.c.l.b16 %v1017
        %v3758 = vunpack.c.h.b16 %v1017
        %v3759 = vunpack.c.l.b16 %v1018
        %v3760 = vunpack.c.h.b16 %v1018
        %v3761 = vunpack.c.l.b16 %v1019
        %v3762 = vunpack.c.h.b16 %v1019
        %v3763 = vunpack.c.l.b16 %v1020
        %v3764 = vunpack.c.h.b16 %v1020
        %v3765 = vunpack.c.l.b16 %v1021
        %v3766 = vunpack.c.h.b16 %v1021
        %v3767 = vunpack.c.l.b16 %v1022
        %v3768 = vunpack.c.h.b16 %v1022
        %v3769 = vunpack.c.l.b16 %v1023
        %v3770 = vunpack.c.h.b16 %v1023
        %v3771 = vunpack.c.l.b16 %v1024
        %v3772 = vunpack.c.h.b16 %v1024
        %v3773 = vunpack.c.l.b16 %v1025
        %v3774 = vunpack.c.h.b16 %v1025
        %v3775 = vunpack.c.l.b16 %v1026
        %v3776 = vunpack.c.h.b16 %v1026
        %v3777 = vunpack.c.l.b16 %v1027
        %v3778 = vunpack.c.h.b16 %v1027
        %v3779 = vunpack.c.l.b16 %v1028
        %v3780 = vunpack.c.h.b16 %v1028
        %v3781 = vunpack.c.l.b16 %v1029
        %v3782 = vunpack.c.h.b16 %v1029
        %v3783 = vunpack.c.l.b16 %v1030
        %v3784 = vunpack.c.h.b16 %v1030
        %v3785 = vunpack.c.l.b16 %v1031
        %v3786 = vunpack.c.h.b16 %v1031
        %v3787 = vunpack.c.l.b16 %v1032
        %v3788 = vunpack.c.h.b16 %v1032
        %v3789 = vunpack.c.l.b16 %v1033
        %v3790 = vunpack.c.h.b16 %v1033
        %v3791 = vunpack.c.l.b16 %v1034
        %v3792 = vunpack.c.h.b16 %v1034
        %v3793 = vunpack.c.l.b16 %v1035
        %v3794 = vunpack.c.h.b16 %v1035
        %v3795 = vunpack.c.l.b16 %v1036
        %v3796 = vunpack.c.h.b16 %v1036
        %v3797 = vunpack.c.l.b16 %v1037
        %v3798 = vunpack.c.h.b16 %v1037
        %v3799 = vunpack.c.l.b16 %v1038
        %v3800 = vunpack.c.h.b16 %v1038
        %v3801 = vunpack.c.l.b16 %v1039
        %v3802 = vunpack.c.h.b16 %v1039
        %v3803 = vunpack.c.l.b16 %v1040
        %v3804 = vunpack.c.h.b16 %v1040
        %v3805 = vunpack.c.l.b16 %v1041
        %v3806 = vunpack.c.h.b16 %v1041
        %v3807 = vunpack.c.l.b16 %v1042
        %v3808 = vunpack.c.h.b16 %v1042
        %v3809 = vunpack.c.l.b16 %v1043
        %v3810 = vunpack.c.h.b16 %v1043
        %v3811 = vunpack.c.l.b16 %v1044
        %v3812 = vunpack.c.h.b16 %v1044
        %v3813 = vunpack.c.l.b16 %v1045
        %v3814 = vunpack.c.h.b16 %v1045
        %v3815 = vunpack.c.l.b16 %v1046
        %v3816 = vunpack.c.h.b16 %v1046
        %v3817 = vunpack.c.l.b16 %v1047
        %v3818 = vunpack.c.h.b16 %v1047
        %v3819 = vunpack.c.l.b16 %v1048
        %v3820 = vunpack.c.h.b16 %v1048
        %v3821 = vunpack.c.l.b16 %v1049
        %v3822 = vunpack.c.h.b16 %v1049
        %v3823 = vunpack.c.l.b16 %v1050
        %v3824 = vunpack.c.h.b16 %v1050
        %v3825 = vunpack.c.l.b16 %v1051
        %v3826 = vunpack.c.h.b16 %v1051
        %v3827 = vunpack.c.l.b16 %v1052
        %v3828 = vunpack.c.h.b16 %v1052
        %v3829 = vunpack.c.l.b16 %v1053
        %v3830 = vunpack.c.h.b16 %v1053
        %v3831 = vunpack.c.l.b16 %v1054
        %v3832 = vunpack.c.h.b16 %v1054
        %v3833 = vunpack.c.l.b16 %v1055
        %v3834 = vunpack.c.h.b16 %v1055
        %v3835 = vunpack.c.l.b16 %v1056
        %v3836 = vunpack.c.h.b16 %v1056
        %v3837 = vunpack.c.l.b16 %v1057
        %v3838 = vunpack.c.h.b16 %v1057
        %v3839 = vunpack.c.l.b16 %v1058
        %v3840 = vunpack.c.h.b16 %v1058
        %v3841 = vunpack.c.l.b16 %v1059
        %v3842 = vunpack.c.h.b16 %v1059
        %v3843 = vunpack.c.l.b16 %v1060
        %v3844 = vunpack.c.h.b16 %v1060
        %v3845 = vunpack.c.l.b16 %v1061
        %v3846 = vunpack.c.h.b16 %v1061
        %v3847 = vunpack.c.l.b16 %v1062
        %v3848 = vunpack.c.h.b16 %v1062
        %v3849 = vunpack.c.l.b16 %v1063
        %v3850 = vunpack.c.h.b16 %v1063
        %v3851 = vunpack.c.l.b16 %v1064
        %v3852 = vunpack.c.h.b16 %v1064
        %v3853 = vunpack.c.l.b16 %v1065
        %v3854 = vunpack.c.h.b16 %v1065
        %v3855 = vunpack.c.l.b16 %v1066
        %v3856 = vunpack.c.h.b16 %v1066
        %v3857 = vunpack.c.l.b16 %v1067
        %v3858 = vunpack.c.h.b16 %v1067
        %v3859 = vunpack.c.l.b16 %v1068
        %v3860 = vunpack.c.h.b16 %v1068
        %v3861 = vunpack.c.l.b16 %v1069
        %v3862 = vunpack.c.h.b16 %v1069
        %v3863 = vunpack.c.l.b16 %v1070
        %v3864 = vunpack.c.h.b16 %v1070
        %v3865 = vunpack.c.l.b16 %v1071
        %v3866 = vunpack.c.h.b16 %v1071
        %v3867 = vunpack.c.l.b16 %v1072
        %v3868 = vunpack.c.h.b16 %v1072
        %v3869 = vunpack.c.l.b16 %v1073
        %v3870 = vunpack.c.h.b16 %v1073
        %v3871 = vunpack.c.l.b16 %v1074
        %v3872 = vunpack.c.h.b16 %v1074
        %v3873 = vunpack.c.l.b16 %v1075
        %v3874 = vunpack.c.h.b16 %v1075
        %v3875 = vunpack.c.l.b16 %v1076
        %v3876 = vunpack.c.h.b16 %v1076
        %v3877 = vunpack.c.l.b16 %v1077
        %v3878 = vunpack.c.h.b16 %v1077
        %v3879 = vunpack.c.l.b16 %v1078
        %v3880 = vunpack.c.h.b16 %v1078
        %v3881 = vunpack.c.l.b16 %v1079
        %v3882 = vunpack.c.h.b16 %v1079
        %v3883 = vunpack.c.l.b16 %v1080
        %v3884 = vunpack.c.h.b16 %v1080
        %v3885 = vunpack.c.l.b16 %v1081
        %v3886 = vunpack.c.h.b16 %v1081
        %v3887 = vunpack.c.l.b16 %v1082
        %v3888 = vunpack.c.h.b16 %v1082
        %v3889 = vunpack.c.l.b16 %v1083
        %v3890 = vunpack.c.h.b16 %v1083
        %v3891 = vunpack.c.l.b16 %v1084
        %v3892 = vunpack.c.h.b16 %v1084
        %v3893 = vunpack.c.l.b16 %v1085
        %v3894 = vunpack.c.h.b16 %v1085
        %v3895 = vunpack.c.l.b16 %v1086
        %v3896 = vunpack.c.h.b16 %v1086
        %v3897 = vunpack.c.l.b16 %v1087
        %v3898 = vunpack.c.h.b16 %v1087
        %v3899 = vunpack.c.l.b16 %v1088
        %v3900 = vunpack.c.h.b16 %v1088
        %v3901 = vunpack.c.l.b16 %v1089
        %v3902 = vunpack.c.h.b16 %v1089
        %v3903 = vunpack.c.l.b16 %v1090
        %v3904 = vunpack.c.h.b16 %v1090
        %v3905 = vunpack.c.l.b16 %v1091
        %v3906 = vunpack.c.h.b16 %v1091
        %v3907 = vunpack.c.l.b16 %v1092
        %v3908 = vunpack.c.h.b16 %v1092
        %v3909 = vunpack.c.l.b16 %v1093
        %v3910 = vunpack.c.h.b16 %v1093
        %v3911 = vunpack.c.l.b16 %v1094
        %v3912 = vunpack.c.h.b16 %v1094
        %v3913 = vunpack.c.l.b16 %v1095
        %v3914 = vunpack.c.h.b16 %v1095
        %v3915 = vunpack.c.l.b16 %v1096
        %v3916 = vunpack.c.h.b16 %v1096
        %v3917 = vunpack.c.l.b16 %v1097
        %v3918 = vunpack.c.h.b16 %v1097
        %v3919 = vunpack.c.l.b16 %v1098
        %v3920 = vunpack.c.h.b16 %v1098
        %v3921 = vunpack.c.l.b16 %v1099
        %v3922 = vunpack.c.h.b16 %v1099
        %v3923 = vunpack.c.l.b16 %v1100
        %v3924 = vunpack.c.h.b16 %v1100
        %v3925 = vunpack.c.l.b16 %v1101
        %v3926 = vunpack.c.h.b16 %v1101
        %v3927 = vunpack.c.l.b16 %v1102
        %v3928 = vunpack.c.h.b16 %v1102
        %v3929 = vunpack.c.l.b16 %v1103
        %v3930 = vunpack.c.h.b16 %v1103
        %v3931 = vunpack.c.l.b16 %v1104
        %v3932 = vunpack.c.h.b16 %v1104
        %v3933 = vunpack.c.l.b16 %v1105
        %v3934 = vunpack.c.h.b16 %v1105
        %v3935 = vunpack.c.l.b16 %v1106
        %v3936 = vunpack.c.h.b16 %v1106
        %v3937 = vunpack.c.l.b16 %v1107
        %v3938 = vunpack.c.h.b16 %v1107
        %v3939 = vunpack.c.l.b16 %v1108
        %v3940 = vunpack.c.h.b16 %v1108
        %v3941 = vunpack.c.l.b16 %v1109
        %v3942 = vunpack.c.h.b16 %v1109
        %v3943 = vunpack.c.l.b16 %v1110
        %v3944 = vunpack.c.h.b16 %v1110
        %v3945 = vunpack.c.l.b16 %v1111
        %v3946 = vunpack.c.h.b16 %v1111
        %v3947 = vunpack.c.l.b16 %v1112
        %v3948 = vunpack.c.h.b16 %v1112
        %v3949 = vunpack.c.l.b16 %v1113
        %v3950 = vunpack.c.h.b16 %v1113
        %v3951 = vunpack.c.l.b16 %v1114
        %v3952 = vunpack.c.h.b16 %v1114
        %v3953 = vunpack.c.l.b16 %v1115
        %v3954 = vunpack.c.h.b16 %v1115
        %v3955 = vunpack.c.l.b16 %v1116
        %v3956 = vunpack.c.h.b16 %v1116
        %v3957 = vunpack.c.l.b16 %v1117
        %v3958 = vunpack.c.h.b16 %v1117
        %v3959 = vunpack.c.l.b16 %v1118
        %v3960 = vunpack.c.h.b16 %v1118
        %v3961 = vunpack.c.l.b16 %v1119
        %v3962 = vunpack.c.h.b16 %v1119
        %v3963 = vunpack.c.l.b16 %v1120
        %v3964 = vunpack.c.h.b16 %v1120
        %v3965 = vunpack.c.l.b16 %v1121
        %v3966 = vunpack.c.h.b16 %v1121
        %v3967 = vunpack.c.l.b16 %v1122
        %v3968 = vunpack.c.h.b16 %v1122
        %v3969 = vunpack.c.l.b16 %v1123
        %v3970 = vunpack.c.h.b16 %v1123
        %v3971 = vunpack.c.l.b16 %v1124
        %v3972 = vunpack.c.h.b16 %v1124
        %v3973 = vunpack.c.l.b16 %v1125
        %v3974 = vunpack.c.h.b16 %v1125
        %v3975 = vunpack.c.l.b16 %v1126
        %v3976 = vunpack.c.h.b16 %v1126
        %v3977 = vunpack.c.l.b16 %v1127
        %v3978 = vunpack.c.h.b16 %v1127
        %v3979 = vunpack.c.l.b16 %v1128
        %v3980 = vunpack.c.h.b16 %v1128
        %v3981 = vunpack.c.l.b16 %v1129
        %v3982 = vunpack.c.h.b16 %v1129
        %v3983 = vunpack.c.l.b16 %v1130
        %v3984 = vunpack.c.h.b16 %v1130
        %v3985 = vunpack.c.l.b16 %v1131
        %v3986 = vunpack.c.h.b16 %v1131
        %v3987 = vunpack.c.l.b16 %v1132
        %v3988 = vunpack.c.h.b16 %v1132
        %v3989 = vunpack.c.l.b16 %v1133
        %v3990 = vunpack.c.h.b16 %v1133
        %v3991 = vunpack.c.l.b16 %v1134
        %v3992 = vunpack.c.h.b16 %v1134
        %v3993 = vunpack.c.l.b16 %v1135
        %v3994 = vunpack.c.h.b16 %v1135
        %v3995 = vunpack.c.l.b16 %v1136
        %v3996 = vunpack.c.h.b16 %v1136
        %v3997 = vunpack.c.l.b16 %v1137
        %v3998 = vunpack.c.h.b16 %v1137
        %v3999 = vunpack.c.l.b16 %v1138
        %v4000 = vunpack.c.h.b16 %v1138
        %v4001 = vunpack.c.l.b16 %v1139
        %v4002 = vunpack.c.h.b16 %v1139
        %v4003 = vunpack.c.l.b16 %v1140
        %v4004 = vunpack.c.h.b16 %v1140
        %v4005 = vunpack.c.l.b16 %v1141
        %v4006 = vunpack.c.h.b16 %v1141
        %v4007 = vunpack.c.l.b16 %v1142
        %v4008 = vunpack.c.h.b16 %v1142
        %v4009 = vunpack.c.l.b16 %v1143
        %v4010 = vunpack.c.h.b16 %v1143
        %v4011 = vunpack.c.l.b16 %v1144
        %v4012 = vunpack.c.h.b16 %v1144
        %v4013 = vunpack.c.l.b16 %v1145
        %v4014 = vunpack.c.h.b16 %v1145
        %v4015 = vunpack.c.l.b16 %v1146
        %v4016 = vunpack.c.h.b16 %v1146
        %v4017 = vunpack.c.l.b16 %v1147
        %v4018 = vunpack.c.h.b16 %v1147
        %v4019 = vunpack.c.l.b16 %v1148
        %v4020 = vunpack.c.h.b16 %v1148
        %v4021 = vunpack.c.l.b16 %v1149
        %v4022 = vunpack.c.h.b16 %v1149
        %v4023 = vunpack.c.l.b16 %v1150
        %v4024 = vunpack.c.h.b16 %v1150
        %v4025 = vunpack.c.l.b16 %v1151
        %v4026 = vunpack.c.h.b16 %v1151
        %v4027 = vunpack.c.l.b16 %v1152
        %v4028 = vunpack.c.h.b16 %v1152
        %v4029 = vunpack.c.l.b16 %v1153
        %v4030 = vunpack.c.h.b16 %v1153
        %v4031 = vunpack.c.l.b16 %v1154
        %v4032 = vunpack.c.h.b16 %v1154
        %v4033 = vunpack.c.l.b16 %v1155
        %v4034 = vunpack.c.h.b16 %v1155
        %v4035 = vunpack.c.l.b16 %v1156
        %v4036 = vunpack.c.h.b16 %v1156
        %v4037 = vunpack.c.l.b16 %v1157
        %v4038 = vunpack.c.h.b16 %v1157
        %v4039 = vunpack.c.l.b16 %v1158
        %v4040 = vunpack.c.h.b16 %v1158
        %v4041 = vunpack.c.l.b16 %v1159
        %v4042 = vunpack.c.h.b16 %v1159
        %v4043 = vunpack.c.l.b16 %v1160
        %v4044 = vunpack.c.h.b16 %v1160
        %v4045 = vunpack.c.l.b16 %v1161
        %v4046 = vunpack.c.h.b16 %v1161
        %v4047 = vunpack.c.l.b16 %v1162
        %v4048 = vunpack.c.h.b16 %v1162
        %v4049 = vunpack.c.l.b16 %v1163
        %v4050 = vunpack.c.h.b16 %v1163
        %v4051 = vunpack.c.l.b16 %v1164
        %v4052 = vunpack.c.h.b16 %v1164
        %v4053 = vunpack.c.l.b16 %v1165
        %v4054 = vunpack.c.h.b16 %v1165
        %v4055 = vunpack.c.l.b16 %v1166
        %v4056 = vunpack.c.h.b16 %v1166
        %v4057 = vunpack.c.l.b16 %v1167
        %v4058 = vunpack.c.h.b16 %v1167
        %v4059 = vunpack.c.l.b16 %v1168
        %v4060 = vunpack.c.h.b16 %v1168
        %v4061 = vunpack.c.l.b16 %v1169
        %v4062 = vunpack.c.h.b16 %v1169
        %v4063 = vunpack.c.l.b16 %v1170
        %v4064 = vunpack.c.h.b16 %v1170
        %v4065 = vunpack.c.l.b16 %v1171
        %v4066 = vunpack.c.h.b16 %v1171
        %v4067 = vunpack.c.l.b16 %v1172
        %v4068 = vunpack.c.h.b16 %v1172
        %v4069 = vunpack.c.l.b16 %v1173
        %v4070 = vunpack.c.h.b16 %v1173
        %v4071 = vunpack.c.l.b16 %v1174
        %v4072 = vunpack.c.h.b16 %v1174
        %v4073 = vunpack.c.l.b16 %v1175
        %v4074 = vunpack.c.h.b16 %v1175
        %v4075 = vunpack.c.l.b16 %v1176
        %v4076 = vunpack.c.h.b16 %v1176
        %v4077 = vunpack.c.l.b16 %v1177
        %v4078 = vunpack.c.h.b16 %v1177
        %v4079 = vunpack.c.l.b16 %v1178
        %v4080 = vunpack.c.h.b16 %v1178
        %v4081 = vunpack.c.l.b16 %v1179
        %v4082 = vunpack.c.h.b16 %v1179
        %v4083 = vunpack.c.l.b16 %v1180
        %v4084 = vunpack.c.h.b16 %v1180
        %v4085 = vunpack.c.l.b16 %v1181
        %v4086 = vunpack.c.h.b16 %v1181
        %v4087 = vunpack.c.l.b16 %v1182
        %v4088 = vunpack.c.h.b16 %v1182
        %v4089 = vunpack.c.l.b16 %v1183
        %v4090 = vunpack.c.h.b16 %v1183
        %v4091 = vunpack.c.l.b16 %v1184
        %v4092 = vunpack.c.h.b16 %v1184
        %v4093 = vunpack.c.l.b16 %v1185
        %v4094 = vunpack.c.h.b16 %v1185
        %v4095 = vunpack.c.l.b16 %v1186
        %v4096 = vunpack.c.h.b16 %v1186
        %v4097 = vunpack.c.l.b16 %v1187
        %v4098 = vunpack.c.h.b16 %v1187
        %v4099 = vunpack.c.l.b16 %v1188
        %v4100 = vunpack.c.h.b16 %v1188
        %v4101 = vunpack.c.l.b16 %v1189
        %v4102 = vunpack.c.h.b16 %v1189
        %v4103 = vunpack.c.l.b16 %v1190
        %v4104 = vunpack.c.h.b16 %v1190
        %v4105 = vunpack.c.l.b16 %v1191
        %v4106 = vunpack.c.h.b16 %v1191
        %v4107 = vunpack.c.l.b16 %v1192
        %v4108 = vunpack.c.h.b16 %v1192
        %v4109 = vunpack.c.l.b16 %v1193
        %v4110 = vunpack.c.h.b16 %v1193
        %v4111 = vunpack.c.l.b16 %v1194
        %v4112 = vunpack.c.h.b16 %v1194
        %v4113 = vunpack.c.l.b16 %v1195
        %v4114 = vunpack.c.h.b16 %v1195
        %v4115 = vunpack.c.l.b16 %v1196
        %v4116 = vunpack.c.h.b16 %v1196
        %v4117 = vunpack.c.l.b16 %v1197
        %v4118 = vunpack.c.h.b16 %v1197
        %v4119 = vunpack.c.l.b16 %v1198
        %v4120 = vunpack.c.h.b16 %v1198
        %v4121 = vunpack.c.l.b16 %v1199
        %v4122 = vunpack.c.h.b16 %v1199
        %v4123 = vunpack.c.l.b16 %v1200
        %v4124 = vunpack.c.h.b16 %v1200
        %v4125 = vunpack.c.l.b16 %v1201
        %v4126 = vunpack.c.h.b16 %v1201
        %v4127 = vunpack.c.l.b16 %v1202
        %v4128 = vunpack.c.h.b16 %v1202
        %v4129 = vunpack.c.l.b16 %v1203
        %v4130 = vunpack.c.h.b16 %v1203
        %v4131 = vunpack.c.l.b16 %v1204
        %v4132 = vunpack.c.h.b16 %v1204
        %v4133 = vunpack.c.l.b16 %v1205
        %v4134 = vunpack.c.h.b16 %v1205
        %v4135 = vunpack.c.l.b16 %v1206
        %v4136 = vunpack.c.h.b16 %v1206
        %v4137 = vunpack.c.l.b16 %v1207
        %v4138 = vunpack.c.h.b16 %v1207
        %v4139 = vunpack.c.l.b16 %v1208
        %v4140 = vunpack.c.h.b16 %v1208
        %v4141 = vunpack.c.l.b16 %v1209
        %v4142 = vunpack.c.h.b16 %v1209
        %v4143 = vunpack.c.l.b16 %v1210
        %v4144 = vunpack.c.h.b16 %v1210
        %v4145 = vunpack.c.l.b16 %v1211
        %v4146 = vunpack.c.h.b16 %v1211
        %v4147 = vunpack.c.l.b16 %v1212
        %v4148 = vunpack.c.h.b16 %v1212
        %v4149 = vunpack.c.l.b16 %v1213
        %v4150 = vunpack.c.h.b16 %v1213
        %v4151 = vunpack.c.l.b16 %v1214
        %v4152 = vunpack.c.h.b16 %v1214
        %v4153 = vunpack.c.l.b16 %v1215
        %v4154 = vunpack.c.h.b16 %v1215
        %v4155 = vunpack.c.l.b16 %v1216
        %v4156 = vunpack.c.h.b16 %v1216
        %v4157 = vunpack.c.l.b16 %v1217
        %v4158 = vunpack.c.h.b16 %v1217
        %v4159 = vunpack.c.l.b16 %v1218
        %v4160 = vunpack.c.h.b16 %v1218
        %v4161 = vunpack.c.l.b16 %v1219
        %v4162 = vunpack.c.h.b16 %v1219
        %v4163 = vunpack.c.l.b16 %v1220
        %v4164 = vunpack.c.h.b16 %v1220
        %v4165 = vunpack.c.l.b16 %v1221
        %v4166 = vunpack.c.h.b16 %v1221
        %v4167 = vunpack.c.l.b16 %v1222
        %v4168 = vunpack.c.h.b16 %v1222
        %v4169 = vunpack.c.l.b16 %v1223
        %v4170 = vunpack.c.h.b16 %v1223
        %v4171 = vunpack.c.l.b16 %v1224
        %v4172 = vunpack.c.h.b16 %v1224
        %v4173 = vunpack.c.l.b16 %v1225
        %v4174 = vunpack.c.h.b16 %v1225
        %v4175 = vunpack.c.l.b16 %v1226
        %v4176 = vunpack.c.h.b16 %v1226
        %v4177 = vunpack.c.l.b16 %v1227
        %v4178 = vunpack.c.h.b16 %v1227
        %v4179 = vunpack.c.l.b16 %v1228
        %v4180 = vunpack.c.h.b16 %v1228
        %v4181 = vunpack.c.l.b16 %v1229
        %v4182 = vunpack.c.h.b16 %v1229
        %v4183 = vunpack.c.l.b16 %v1230
        %v4184 = vunpack.c.h.b16 %v1230
        %v4185 = vunpack.c.l.b16 %v1231
        %v4186 = vunpack.c.h.b16 %v1231
        %v4187 = vunpack.c.l.b16 %v1232
        %v4188 = vunpack.c.h.b16 %v1232
        %v4189 = vunpack.c.l.b16 %v1233
        %v4190 = vunpack.c.h.b16 %v1233
        %v4191 = vunpack.c.l.b16 %v1234
        %v4192 = vunpack.c.h.b16 %v1234
        %v4193 = vunpack.c.l.b16 %v1235
        %v4194 = vunpack.c.h.b16 %v1235
        %v4195 = vunpack.c.l.b16 %v1236
        %v4196 = vunpack.c.h.b16 %v1236
        %v4197 = vunpack.c.l.b16 %v1237
        %v4198 = vunpack.c.h.b16 %v1237
        %v4199 = vunpack.c.l.b16 %v1238
        %v4200 = vunpack.c.h.b16 %v1238
        %v4201 = vunpack.c.l.b16 %v1239
        %v4202 = vunpack.c.h.b16 %v1239
        %v4203 = vunpack.c.l.b16 %v1240
        %v4204 = vunpack.c.h.b16 %v1240
        %v4205 = vunpack.c.l.b16 %v1241
        %v4206 = vunpack.c.h.b16 %v1241
        %v4207 = vunpack.c.l.b16 %v1242
        %v4208 = vunpack.c.h.b16 %v1242
        %v4209 = vunpack.c.l.b16 %v1243
        %v4210 = vunpack.c.h.b16 %v1243
        %v4211 = vunpack.c.l.b16 %v1244
        %v4212 = vunpack.c.h.b16 %v1244
        %v4213 = vunpack.c.l.b16 %v1245
        %v4214 = vunpack.c.h.b16 %v1245
        %v4215 = vunpack.c.l.b16 %v1246
        %v4216 = vunpack.c.h.b16 %v1246
        %v4217 = vunpack.c.l.b16 %v1247
        %v4218 = vunpack.c.h.b16 %v1247
        %v4219 = vunpack.c.l.b16 %v1248
        %v4220 = vunpack.c.h.b16 %v1248
        %v4221 = vunpack.c.l.b16 %v1249
        %v4222 = vunpack.c.h.b16 %v1249
        %v4223 = vunpack.c.l.b16 %v1250
        %v4224 = vunpack.c.h.b16 %v1250
        %v4225 = vunpack.c.l.b16 %v1251
        %v4226 = vunpack.c.h.b16 %v1251
        %v4227 = vunpack.c.l.b16 %v1252
        %v4228 = vunpack.c.h.b16 %v1252
        %v4229 = vunpack.c.l.b16 %v1253
        %v4230 = vunpack.c.h.b16 %v1253
        %v4231 = vunpack.c.l.b16 %v1254
        %v4232 = vunpack.c.h.b16 %v1254
        %v4233 = vunpack.c.l.b16 %v1255
        %v4234 = vunpack.c.h.b16 %v1255
        %v4235 = vunpack.c.l.b16 %v1256
        %v4236 = vunpack.c.h.b16 %v1256
        %v4237 = vunpack.c.l.b16 %v1257
        %v4238 = vunpack.c.h.b16 %v1257
        %v4239 = vunpack.c.l.b16 %v1258
        %v4240 = vunpack.c.h.b16 %v1258
        %v4241 = vunpack.c.l.b16 %v1259
        %v4242 = vunpack.c.h.b16 %v1259
        %v4243 = vunpack.c.l.b16 %v1260
        %v4244 = vunpack.c.h.b16 %v1260
        %v4245 = vunpack.c.l.b16 %v1261
        %v4246 = vunpack.c.h.b16 %v1261
        %v4247 = vunpack.c.l.b16 %v1262
        %v4248 = vunpack.c.h.b16 %v1262
        %v4249 = vunpack.c.l.b16 %v1263
        %v4250 = vunpack.c.h.b16 %v1263
        %v4251 = vunpack.c.l.b16 %v1264
        %v4252 = vunpack.c.h.b16 %v1264
        %v4253 = vunpack.c.l.b16 %v1265
        %v4254 = vunpack.c.h.b16 %v1265
        %v4255 = vunpack.c.l.b16 %v1266
        %v4256 = vunpack.c.h.b16 %v1266
        %v4257 = vunpack.c.l.b16 %v1267
        %v4258 = vunpack.c.h.b16 %v1267
        %v4259 = vunpack.c.l.b16 %v1268
        %v4260 = vunpack.c.h.b16 %v1268
        %v4261 = vunpack.c.l.b16 %v1269
        %v4262 = vunpack.c.h.b16 %v1269
        %v4263 = vunpack.c.l.b16 %v1270
        %v4264 = vunpack.c.h.b16 %v1270
        %v4265 = vunpack.c.l.b16 %v1271
        %v4266 = vunpack.c.h.b16 %v1271
        %v4267 = vunpack.c.l.b16 %v1272
        %v4268 = vunpack.c.h.b16 %v1272
        %v4269 = vunpack.c.l.b16 %v1273
        %v4270 = vunpack.c.h.b16 %v1273
        %v4271 = vunpack.c.l.b16 %v1274
        %v4272 = vunpack.c.h.b16 %v1274
        %v4273 = vunpack.c.l.b16 %v1275
        %v4274 = vunpack.c.h.b16 %v1275
        %v4275 = vunpack.c.l.b16 %v1276
        %v4276 = vunpack.c.h.b16 %v1276
        %v4277 = vunpack.c.l.b16 %v1277
        %v4278 = vunpack.c.h.b16 %v1277
        %v4279 = vunpack.c.l.b16 %v1278
        %v4280 = vunpack.c.h.b16 %v1278
        %v4281 = vunpack.c.l.b16 %v1279
        %v4282 = vunpack.c.h.b16 %v1279
        %v4283 = vunpack.c.l.b16 %v1280
        %v4284 = vunpack.c.h.b16 %v1280
        %v4285 = vunpack.c.l.b16 %v1281
        %v4286 = vunpack.c.h.b16 %v1281
        %v4287 = vunpack.c.l.b16 %v1282
        %v4288 = vunpack.c.h.b16 %v1282
        %v4289 = vunpack.c.l.b16 %v1283
        %v4290 = vunpack.c.h.b16 %v1283
        %v4291 = vunpack.c.l.b16 %v1284
        %v4292 = vunpack.c.h.b16 %v1284
        %v4293 = vunpack.c.l.b16 %v1285
        %v4294 = vunpack.c.h.b16 %v1285
        %v4295 = vunpack.c.l.b16 %v1286
        %v4296 = vunpack.c.h.b16 %v1286
        %v4297 = vunpack.c.l.b16 %v1287
        %v4298 = vunpack.c.h.b16 %v1287
        %v4299 = vunpack.c.l.b16 %v1288
        %v4300 = vunpack.c.h.b16 %v1288
        %v4301 = vunpack.c.l.b16 %v1289
        %v4302 = vunpack.c.h.b16 %v1289
        %v4303 = vunpack.c.l.b16 %v1290
        %v4304 = vunpack.c.h.b16 %v1290
        %v4305 = vunpack.c.l.b16 %v1291
        %v4306 = vunpack.c.h.b16 %v1291
        %v4307 = vunpack.c.l.b16 %v1292
        %v4308 = vunpack.c.h.b16 %v1292
        %v4309 = vunpack.c.l.b16 %v1293
        %v4310 = vunpack.c.h.b16 %v1293
        %v4311 = vunpack.c.l.b16 %v1294
        %v4312 = vunpack.c.h.b16 %v1294
        %v4313 = vunpack.c.l.b16 %v1295
        %v4314 = vunpack.c.h.b16 %v1295
        %v4315 = vunpack.c.l.b16 %v1296
        %v4316 = vunpack.c.h.b16 %v1296
        %v4317 = vunpack.c.l.b16 %v1297
        %v4318 = vunpack.c.h.b16 %v1297
        %v4319 = vunpack.c.l.b16 %v1298
        %v4320 = vunpack.c.h.b16 %v1298
        %v4321 = vunpack.c.l.b16 %v1299
        %v4322 = vunpack.c.h.b16 %v1299
        %v4323 = vunpack.c.l.b16 %v1300
        %v4324 = vunpack.c.h.b16 %v1300
        %v4325 = vunpack.c.l.b16 %v1301
        %v4326 = vunpack.c.h.b16 %v1301
        %v4327 = vunpack.c.l.b16 %v1302
        %v4328 = vunpack.c.h.b16 %v1302
        %v4329 = vunpack.c.l.b16 %v1303
        %v4330 = vunpack.c.h.b16 %v1303
        %v4331 = vunpack.c.l.b16 %v1304
        %v4332 = vunpack.c.h.b16 %v1304
        %v4333 = vunpack.c.l.b16 %v1305
        %v4334 = vunpack.c.h.b16 %v1305
        %v4335 = vunpack.c.l.b16 %v1306
        %v4336 = vunpack.c.h.b16 %v1306
        %v4337 = vunpack.c.l.b16 %v1307
        %v4338 = vunpack.c.h.b16 %v1307
        %v4339 = vunpack.c.l.b16 %v1308
        %v4340 = vunpack.c.h.b16 %v1308
        %v4341 = vunpack.c.l.b16 %v1309
        %v4342 = vunpack.c.h.b16 %v1309
        %v4343 = vunpack.c.l.b16 %v1310
        %v4344 = vunpack.c.h.b16 %v1310
        %v4345 = vunpack.c.l.b16 %v1311
        %v4346 = vunpack.c.h.b16 %v1311
        %v4347 = vunpack.c.l.b16 %v1312
        %v4348 = vunpack.c.h.b16 %v1312
        %v4349 = vunpack.c.l.b16 %v1313
        %v4350 = vunpack.c.h.b16 %v1313
        %v4351 = vunpack.c.l.b16 %v1314
        %v4352 = vunpack.c.h.b16 %v1314
        %v4353 = vunpack.c.l.b16 %v1315
        %v4354 = vunpack.c.h.b16 %v1315
        %v4355 = vunpack.c.l.b16 %v1316
        %v4356 = vunpack.c.h.b16 %v1316
        %v4357 = vunpack.c.l.b16 %v1317
        %v4358 = vunpack.c.h.b16 %v1317
        %v4359 = vunpack.c.l.b16 %v1318
        %v4360 = vunpack.c.h.b16 %v1318
        %v4361 = vunpack.c.l.b16 %v1319
        %v4362 = vunpack.c.h.b16 %v1319
        %v4363 = vunpack.c.l.b16 %v1320
        %v4364 = vunpack.c.h.b16 %v1320
        %v4365 = vunpack.c.l.b16 %v1321
        %v4366 = vunpack.c.h.b16 %v1321
        %v4367 = vunpack.c.l.b16 %v1322
        %v4368 = vunpack.c.h.b16 %v1322
        %v4369 = vunpack.c.l.b16 %v1323
        %v4370 = vunpack.c.h.b16 %v1323
        %v4371 = vunpack.c.l.b16 %v1324
        %v4372 = vunpack.c.h.b16 %v1324
        %v4373 = vunpack.c.l.b16 %v1325
        %v4374 = vunpack.c.h.b16 %v1325
        %v4375 = vunpack.c.l.b16 %v1326
        %v4376 = vunpack.c.h.b16 %v1326
        %v4377 = vunpack.c.l.b16 %v1327
        %v4378 = vunpack.c.h.b16 %v1327
        %v4379 = vunpack.c.l.b16 %v1328
        %v4380 = vunpack.c.h.b16 %v1328
        %v4381 = vunpack.c.l.b16 %v1329
        %v4382 = vunpack.c.h.b16 %v1329
        %v4383 = vunpack.c.l.b16 %v1330
        %v4384 = vunpack.c.h.b16 %v1330
        %v4385 = vunpack.c.l.b16 %v1331
        %v4386 = vunpack.c.h.b16 %v1331
        %v4387 = vunpack.c.l.b16 %v1332
        %v4388 = vunpack.c.h.b16 %v1332
        %v4389 = vunpack.c.l.b16 %v1333
        %v4390 = vunpack.c.h.b16 %v1333
        %v4391 = vunpack.c.l.b16 %v1334
        %v4392 = vunpack.c.h.b16 %v1334
        %v4393 = vunpack.c.l.b16 %v1335
        %v4394 = vunpack.c.h.b16 %v1335
        %v4395 = vunpack.c.l.b16 %v1336
        %v4396 = vunpack.c.h.b16 %v1336
        %v4397 = vunpack.c.l.b16 %v1337
        %v4398 = vunpack.c.h.b16 %v1337
        %v4399 = vunpack.c.l.b16 %v1338
        %v4400 = vunpack.c.h.b16 %v1338
        %v4401 = vunpack.c.l.b16 %v1339
        %v4402 = vunpack.c.h.b16 %v1339
        %v4403 = vunpack.c.l.b16 %v1340
        %v4404 = vunpack.c.h.b16 %v1340
        %v4405 = vunpack.c.l.b16 %v1341
        %v4406 = vunpack.c.h.b16 %v1341
        %v4407 = vunpack.c.l.b16 %v1342
        %v4408 = vunpack.c.h.b16 %v1342
        %v4409 = vunpack.c.l.b16 %v1343
        %v4410 = vunpack.c.h.b16 %v1343
        %v4411 = vunpack.c.l.b16 %v1344
        %v4412 = vunpack.c.h.b16 %v1344
        %v4413 = vunpack.c.l.b16 %v1345
        %v4414 = vunpack.c.h.b16 %v1345
        %v4415 = vunpack.c.l.b16 %v1346
        %v4416 = vunpack.c.h.b16 %v1346
        %v4417 = vunpack.c.l.b16 %v1347
        %v4418 = vunpack.c.h.b16 %v1347
        %v4419 = vunpack.c.l.b16 %v1348
        %v4420 = vunpack.c.h.b16 %v1348
        %v4421 = vunpack.c.l.b16 %v1349
        %v4422 = vunpack.c.h.b16 %v1349
        %v4423 = vunpack.c.l.b16 %v1350
        %v4424 = vunpack.c.h.b16 %v1350
        %v4425 = vunpack.c.l.b16 %v1351
        %v4426 = vunpack.c.h.b16 %v1351
        %v4427 = vunpack.c.l.b16 %v1352
        %v4428 = vunpack.c.h.b16 %v1352
        %v4429 = vunpack.c.l.b16 %v1353
        %v4430 = vunpack.c.h.b16 %v1353
        %v4431 = vunpack.c.l.b16 %v1354
        %v4432 = vunpack.c.h.b16 %v1354
        %v4433 = vunpack.c.l.b16 %v1355
        %v4434 = vunpack.c.h.b16 %v1355
        %v4435 = vunpack.c.l.b16 %v1356
        %v4436 = vunpack.c.h.b16 %v1356
        %v4437 = vunpack.c.l.b16 %v1357
        %v4438 = vunpack.c.h.b16 %v1357
        %v4439 = vunpack.c.l.b16 %v1358
        %v4440 = vunpack.c.h.b16 %v1358
        %v4441 = vunpack.c.l.b16 %v1359
        %v4442 = vunpack.c.h.b16 %v1359
        %v4443 = vunpack.c.l.b16 %v1360
        %v4444 = vunpack.c.h.b16 %v1360
        %v4445 = vunpack.c.l.b16 %v1361
        %v4446 = vunpack.c.h.b16 %v1361
        %v4447 = vunpack.c.l.b16 %v1362
        %v4448 = vunpack.c.h.b16 %v1362
        %v4449 = vunpack.c.l.b16 %v1363
        %v4450 = vunpack.c.h.b16 %v1363
        %v4451 = vunpack.c.l.b16 %v1364
        %v4452 = vunpack.c.h.b16 %v1364
        %v4453 = vunpack.c.l.b16 %v1365
        %v4454 = vunpack.c.h.b16 %v1365
        %v4455 = vunpack.c.l.b16 %v1366
        %v4456 = vunpack.c.h.b16 %v1366
        %v4457 = vunpack.c.l.b16 %v1367
        %v4458 = vunpack.c.h.b16 %v1367
        %v4459 = vunpack.c.l.b16 %v1368
        %v4460 = vunpack.c.h.b16 %v1368
        %v4461 = vunpack.c.l.b16 %v1369
        %v4462 = vunpack.c.h.b16 %v1369
        %v4463 = vunpack.c.l.b16 %v1370
        %v4464 = vunpack.c.h.b16 %v1370
        %v4465 = vunpack.c.l.b16 %v1371
        %v4466 = vunpack.c.h.b16 %v1371
        %v4467 = vunpack.c.l.b16 %v1372
        %v4468 = vunpack.c.h.b16 %v1372
        %v4469 = vunpack.c.l.b16 %v1373
        %v4470 = vunpack.c.h.b16 %v1373
        %v4471 = vunpack.c.l.b16 %v1374
        %v4472 = vunpack.c.h.b16 %v1374
        %v4473 = vunpack.c.l.b16 %v1375
        %v4474 = vunpack.c.h.b16 %v1375
        %v4475 = vunpack.c.l.b16 %v1376
        %v4476 = vunpack.c.h.b16 %v1376
        %v4477 = vunpack.c.l.b16 %v1377
        %v4478 = vunpack.c.h.b16 %v1377
        %v4479 = vunpack.c.l.b16 %v1378
        %v4480 = vunpack.c.h.b16 %v1378
        %v4481 = vunpack.c.l.b16 %v1379
        %v4482 = vunpack.c.h.b16 %v1379
        %v4483 = vunpack.c.l.b16 %v1380
        %v4484 = vunpack.c.h.b16 %v1380
        %v4485 = vunpack.c.l.b16 %v1381
        %v4486 = vunpack.c.h.b16 %v1381
        %v4487 = vunpack.c.l.b16 %v1382
        %v4488 = vunpack.c.h.b16 %v1382
        %v4489 = vunpack.c.l.b16 %v1383
        %v4490 = vunpack.c.h.b16 %v1383
        %v4491 = vunpack.c.l.b16 %v1384
        %v4492 = vunpack.c.h.b16 %v1384
        %v4493 = vunpack.c.l.b16 %v1385
        %v4494 = vunpack.c.h.b16 %v1385
        %v4495 = vunpack.c.l.b16 %v1386
        %v4496 = vunpack.c.h.b16 %v1386
        %v4497 = vunpack.c.l.b16 %v1387
        %v4498 = vunpack.c.h.b16 %v1387
        %v4499 = vunpack.c.l.b16 %v1388
        %v4500 = vunpack.c.h.b16 %v1388
        %v4501 = vunpack.c.l.b16 %v1389
        %v4502 = vunpack.c.h.b16 %v1389
        %v4503 = vunpack.c.l.b16 %v1390
        %v4504 = vunpack.c.h.b16 %v1390
        %v4505 = vunpack.c.l.b16 %v1391
        %v4506 = vunpack.c.h.b16 %v1391
        %v4507 = vunpack.c.l.b16 %v1392
        %v4508 = vunpack.c.h.b16 %v1392
        %v4509 = vunpack.c.l.b16 %v1393
        %v4510 = vunpack.c.h.b16 %v1393
        %v4511 = vunpack.c.l.b16 %v1394
        %v4512 = vunpack.c.h.b16 %v1394
        %v4513 = vunpack.c.l.b16 %v1395
        %v4514 = vunpack.c.h.b16 %v1395
        %v4515 = vunpack.c.l.b16 %v1396
        %v4516 = vunpack.c.h.b16 %v1396
        %v4517 = vunpack.c.l.b16 %v1397
        %v4518 = vunpack.c.h.b16 %v1397
        %v4519 = vunpack.c.l.b16 %v1398
        %v4520 = vunpack.c.h.b16 %v1398
        %v4521 = vunpack.c.l.b16 %v1399
        %v4522 = vunpack.c.h.b16 %v1399
        %v4523 = vunpack.c.l.b16 %v1400
        %v4524 = vunpack.c.h.b16 %v1400
        %v4525 = vunpack.c.l.b16 %v1401
        %v4526 = vunpack.c.h.b16 %v1401
        %v4527 = vunpack.c.l.b16 %v1402
        %v4528 = vunpack.c.h.b16 %v1402
        %v4529 = vunpack.c.l.b16 %v1403
        %v4530 = vunpack.c.h.b16 %v1403
        %v4531 = vunpack.c.l.b16 %v1404
        %v4532 = vunpack.c.h.b16 %v1404
        %v4533 = vunpack.c.l.b16 %v1405
        %v4534 = vunpack.c.h.b16 %v1405
        %v4535 = vunpack.c.l.b16 %v1406
        %v4536 = vunpack.c.h.b16 %v1406
        %v4537 = vunpack.c.l.b16 %v1407
        %v4538 = vunpack.c.h.b16 %v1407
        %v4539 = vunpack.c.l.b16 %v1408
        %v4540 = vunpack.c.h.b16 %v1408
        %v4541 = vunpack.c.l.b16 %v1409
        %v4542 = vunpack.c.h.b16 %v1409
        %v4543 = vunpack.c.l.b16 %v1410
        %v4544 = vunpack.c.h.b16 %v1410
        %v4545 = vunpack.c.l.b16 %v1411
        %v4546 = vunpack.c.h.b16 %v1411
        %v4547 = vunpack.c.l.b16 %v1412
        %v4548 = vunpack.c.h.b16 %v1412
        %v4549 = vunpack.c.l.b16 %v1413
        %v4550 = vunpack.c.h.b16 %v1413
        %v4551 = vunpack.c.l.b16 %v1414
        %v4552 = vunpack.c.h.b16 %v1414
        %v4553 = vunpack.c.l.b16 %v1415
        %v4554 = vunpack.c.h.b16 %v1415
        %v4555 = vunpack.c.l.b16 %v1416
        %v4556 = vunpack.c.h.b16 %v1416
        %v4557 = vunpack.c.l.b16 %v1417
        %v4558 = vunpack.c.h.b16 %v1417
        %v4559 = vunpack.c.l.b16 %v1418
        %v4560 = vunpack.c.h.b16 %v1418
        %v4561 = vunpack.c.l.b16 %v1419
        %v4562 = vunpack.c.h.b16 %v1419
        %v4563 = vunpack.c.l.b16 %v1420
        %v4564 = vunpack.c.h.b16 %v1420
        %v4565 = vunpack.c.l.b16 %v1421
        %v4566 = vunpack.c.h.b16 %v1421
        %v4567 = vunpack.c.l.b16 %v1422
        %v4568 = vunpack.c.h.b16 %v1422
        %v4569 = vunpack.c.l.b16 %v1423
        %v4570 = vunpack.c.h.b16 %v1423
        %v4571 = vunpack.c.l.b16 %v1424
        %v4572 = vunpack.c.h.b16 %v1424
        %v4573 = vunpack.c.l.b16 %v1425
        %v4574 = vunpack.c.h.b16 %v1425
        %v4575 = vunpack.c.l.b16 %v1426
        %v4576 = vunpack.c.h.b16 %v1426
        %v4577 = vunpack.c.l.b16 %v1427
        %v4578 = vunpack.c.h.b16 %v1427
        %v4579 = vunpack.c.l.b16 %v1428
        %v4580 = vunpack.c.h.b16 %v1428
        %v4581 = vunpack.c.l.b16 %v1429
        %v4582 = vunpack.c.h.b16 %v1429
        %v4583 = vunpack.c.l.b16 %v1430
        %v4584 = vunpack.c.h.b16 %v1430
        %v4585 = vunpack.c.l.b16 %v1431
        %v4586 = vunpack.c.h.b16 %v1431
        %v4587 = vunpack.c.l.b16 %v1432
        %v4588 = vunpack.c.h.b16 %v1432
        %v4589 = vunpack.c.l.b16 %v1433
        %v4590 = vunpack.c.h.b16 %v1433
        %v4591 = vunpack.c.l.b16 %v1434
        %v4592 = vunpack.c.h.b16 %v1434
        %v4593 = vunpack.c.l.b16 %v1435
        %v4594 = vunpack.c.h.b16 %v1435
        %v4595 = vunpack.c.l.b16 %v1436
        %v4596 = vunpack.c.h.b16 %v1436
        %v4597 = vunpack.c.l.b16 %v1437
        %v4598 = vunpack.c.h.b16 %v1437
        %v4599 = vunpack.c.l.b16 %v1438
        %v4600 = vunpack.c.h.b16 %v1438
        %v4601 = vunpack.c.l.b16 %v1439
        %v4602 = vunpack.c.h.b16 %v1439
        %v4603 = vunpack.c.l.b16 %v1440
        %v4604 = vunpack.c.h.b16 %v1440
        %v4605 = vunpack.c.l.b16 %v1441
        %v4606 = vunpack.c.h.b16 %v1441
        %v4607 = vunpack.c.l.b16 %v1442
        %v4608 = vunpack.c.h.b16 %v1442
        %v4609 = vunpack.c.l.b16 %v1443
        %v4610 = vunpack.c.h.b16 %v1443
        %v4611 = vunpack.c.l.b16 %v1444
        %v4612 = vunpack.c.h.b16 %v1444
        %v4613 = vunpack.c.l.b16 %v1445
        %v4614 = vunpack.c.h.b16 %v1445
        %v4615 = vunpack.c.l.b16 %v1446
        %v4616 = vunpack.c.h.b16 %v1446
        %v4617 = vunpack.c.l.b16 %v1447
        %v4618 = vunpack.c.h.b16 %v1447
        %v4619 = vunpack.c.l.b16 %v1448
        %v4620 = vunpack.c.h.b16 %v1448
        %v4621 = vunpack.c.l.b16 %v1449
        %v4622 = vunpack.c.h.b16 %v1449
        %v4623 = vunpack.c.l.b16 %v1450
        %v4624 = vunpack.c.h.b16 %v1450
        %v4625 = vunpack.c.l.b16 %v1451
        %v4626 = vunpack.c.h.b16 %v1451
        %v4627 = vunpack.c.l.b16 %v1452
        %v4628 = vunpack.c.h.b16 %v1452
        %v4629 = vunpack.c.l.b16 %v1453
        %v4630 = vunpack.c.h.b16 %v1453
        %v4631 = vunpack.c.l.b16 %v1454
        %v4632 = vunpack.c.h.b16 %v1454
        %v4633 = vunpack.c.l.b16 %v1455
        %v4634 = vunpack.c.h.b16 %v1455
        %v4635 = vunpack.c.l.b16 %v1456
        %v4636 = vunpack.c.h.b16 %v1456
        %v4637 = vunpack.c.l.b16 %v1457
        %v4638 = vunpack.c.h.b16 %v1457
        %v4639 = vunpack.c.l.b16 %v1458
        %v4640 = vunpack.c.h.b16 %v1458
        %v4641 = vunpack.c.l.b16 %v1459
        %v4642 = vunpack.c.h.b16 %v1459
        %v4643 = vunpack.c.l.b16 %v1460
        %v4644 = vunpack.c.h.b16 %v1460
        %v4645 = vunpack.c.l.b16 %v1461
        %v4646 = vunpack.c.h.b16 %v1461
        %v4647 = vunpack.c.l.b16 %v1462
        %v4648 = vunpack.c.h.b16 %v1462
        %v4649 = vunpack.c.l.b16 %v1463
        %v4650 = vunpack.c.h.b16 %v1463
        %v4651 = vunpack.c.l.b16 %v1464
        %v4652 = vunpack.c.h.b16 %v1464
        %v4653 = vunpack.c.l.b16 %v1465
        %v4654 = vunpack.c.h.b16 %v1465
        %v4655 = vunpack.c.l.b16 %v1466
        %v4656 = vunpack.c.h.b16 %v1466
        %v4657 = vunpack.c.l.b16 %v1467
        %v4658 = vunpack.c.h.b16 %v1467
        %v4659 = vunpack.c.l.b16 %v1468
        %v4660 = vunpack.c.h.b16 %v1468
        %v4661 = vunpack.c.l.b16 %v1469
        %v4662 = vunpack.c.h.b16 %v1469
        %v4663 = vunpack.c.l.b16 %v1470
        %v4664 = vunpack.c.h.b16 %v1470
        %v4665 = vunpack.c.l.b16 %v1471
        %v4666 = vunpack.c.h.b16 %v1471
        %v4667 = vunpack.c.l.b16 %v1472
        %v4668 = vunpack.c.h.b16 %v1472
        %v4669 = vunpack.c.l.b16 %v1473
        %v4670 = vunpack.c.h.b16 %v1473
        %v4671 = vunpack.c.l.b16 %v1474
        %v4672 = vunpack.c.h.b16 %v1474
        %v4673 = vunpack.c.l.b16 %v1475
        %v4674 = vunpack.c.h.b16 %v1475
        %v4675 = vunpack.c.l.b16 %v1476
        %v4676 = vunpack.c.h.b16 %v1476
        %v4677 = vunpack.c.l.b16 %v1477
        %v4678 = vunpack.c.h.b16 %v1477
        %v4679 = vunpack.c.l.b16 %v1478
        %v4680 = vunpack.c.h.b16 %v1478
        %v4681 = vunpack.c.l.b16 %v1479
        %v4682 = vunpack.c.h.b16 %v1479
        %v4683 = vunpack.c.l.b16 %v1480
        %v4684 = vunpack.c.h.b16 %v1480
        %v4685 = vunpack.c.l.b16 %v1481
        %v4686 = vunpack.c.h.b16 %v1481
        %v4687 = vunpack.c.l.b16 %v1482
        %v4688 = vunpack.c.h.b16 %v1482
        %v4689 = vunpack.c.l.b16 %v1483
        %v4690 = vunpack.c.h.b16 %v1483
        %v4691 = vunpack.c.l.b16 %v1484
        %v4692 = vunpack.c.h.b16 %v1484
        %v4693 = vunpack.c.l.b16 %v1485
        %v4694 = vunpack.c.h.b16 %v1485
        %v4695 = vunpack.c.l.b16 %v1486
        %v4696 = vunpack.c.h.b16 %v1486
        %v4697 = vunpack.c.l.b16 %v1487
        %v4698 = vunpack.c.h.b16 %v1487
        %v4699 = vunpack.c.l.b16 %v1488
        %v4700 = vunpack.c.h.b16 %v1488
        %v4701 = vunpack.c.l.b16 %v1489
        %v4702 = vunpack.c.h.b16 %v1489
        %v4703 = vunpack.c.l.b16 %v1490
        %v4704 = vunpack.c.h.b16 %v1490
        %v4705 = vunpack.c.l.b16 %v1491
        %v4706 = vunpack.c.h.b16 %v1491
        %v4707 = vunpack.c.l.b16 %v1492
        %v4708 = vunpack.c.h.b16 %v1492
        %v4709 = vunpack.c.l.b16 %v1493
        %v4710 = vunpack.c.h.b16 %v1493
        %v4711 = vunpack.c.l.b16 %v1494
        %v4712 = vunpack.c.h.b16 %v1494
        %v4713 = vunpack.c.l.b16 %v1495
        %v4714 = vunpack.c.h.b16 %v1495
        %v4715 = vunpack.c.l.b16 %v1496
        %v4716 = vunpack.c.h.b16 %v1496
        %v4717 = vunpack.c.l.b16 %v1497
        %v4718 = vunpack.c.h.b16 %v1497
        %v4719 = vunpack.c.l.b16 %v1498
        %v4720 = vunpack.c.h.b16 %v1498
        %v4721 = vunpack.c.l.b16 %v1499
        %v4722 = vunpack.c.h.b16 %v1499
        %v4723 = vunpack.c.l.b16 %v1500
        %v4724 = vunpack.c.h.b16 %v1500
        %v4725 = vunpack.c.l.b16 %v1501
        %v4726 = vunpack.c.h.b16 %v1501
        %v4727 = vunpack.c.l.b16 %v1502
        %v4728 = vunpack.c.h.b16 %v1502
        %v4729 = vunpack.c.l.b16 %v1503
        %v4730 = vunpack.c.h.b16 %v1503
        %v4731 = vunpack.c.l.b16 %v1504
        %v4732 = vunpack.c.h.b16 %v1504
        %v4733 = vunpack.c.l.b16 %v1505
        %v4734 = vunpack.c.h.b16 %v1505
        %v4735 = vunpack.c.l.b16 %v1506
        %v4736 = vunpack.c.h.b16 %v1506
        %v4737 = vunpack.c.l.b16 %v1507
        %v4738 = vunpack.c.h.b16 %v1507
        %v4739 = vunpack.c.l.b16 %v1508
        %v4740 = vunpack.c.h.b16 %v1508
        %v4741 = vunpack.c.l.b16 %v1509
        %v4742 = vunpack.c.h.b16 %v1509
        %v4743 = vunpack.c.l.b16 %v1510
        %v4744 = vunpack.c.h.b16 %v1510
        %v4745 = vunpack.c.l.b16 %v1511
        %v4746 = vunpack.c.h.b16 %v1511
        %v4747 = vunpack.c.l.b16 %v1512
        %v4748 = vunpack.c.h.b16 %v1512
        %v4749 = vunpack.c.l.b16 %v1513
        %v4750 = vunpack.c.h.b16 %v1513
        %v4751 = vunpack.c.l.b16 %v1514
        %v4752 = vunpack.c.h.b16 %v1514
        %v4753 = vunpack.c.l.b16 %v1515
        %v4754 = vunpack.c.h.b16 %v1515
        %v4755 = vunpack.c.l.b16 %v1516
        %v4756 = vunpack.c.h.b16 %v1516
        %v4757 = vunpack.c.l.b16 %v1517
        %v4758 = vunpack.c.h.b16 %v1517
        %v4759 = vunpack.c.l.b16 %v1518
        %v4760 = vunpack.c.h.b16 %v1518
        %v4761 = vunpack.c.l.b16 %v1519
        %v4762 = vunpack.c.h.b16 %v1519
        %v4763 = vunpack.c.l.b16 %v1520
        %v4764 = vunpack.c.h.b16 %v1520
        %v4765 = vunpack.c.l.b16 %v1521
        %v4766 = vunpack.c.h.b16 %v1521
        %v4767 = vunpack.c.l.b16 %v1522
        %v4768 = vunpack.c.h.b16 %v1522
        %v4769 = vunpack.c.l.b16 %v1523
        %v4770 = vunpack.c.h.b16 %v1523
        %v4771 = vunpack.c.l.b16 %v1524
        %v4772 = vunpack.c.h.b16 %v1524
        %v4773 = vunpack.c.l.b16 %v1525
        %v4774 = vunpack.c.h.b16 %v1525
        %v4775 = vunpack.c.l.b16 %v1526
        %v4776 = vunpack.c.h.b16 %v1526
        %v4777 = vunpack.c.l.b16 %v1527
        %v4778 = vunpack.c.h.b16 %v1527
        %v4779 = vunpack.c.l.b16 %v1528
        %v4780 = vunpack.c.h.b16 %v1528
        %v4781 = vunpack.c.l.b16 %v1529
        %v4782 = vunpack.c.h.b16 %v1529
        %v4783 = vunpack.c.l.b16 %v1530
        %v4784 = vunpack.c.h.b16 %v1530
        %v4785 = vunpack.c.l.b16 %v1531
        %v4786 = vunpack.c.h.b16 %v1531
        %v4787 = vunpack.c.l.b16 %v1532
        %v4788 = vunpack.c.h.b16 %v1532
        %v4789 = vunpack.c.l.b16 %v1533
        %v4790 = vunpack.c.h.b16 %v1533
        %v4791 = vunpack.c.l.b16 %v1534
        %v4792 = vunpack.c.h.b16 %v1534
        %v4793 = vunpack.c.l.b16 %v1535
        %v4794 = vunpack.c.h.b16 %v1535
        %v4795 = vunpack.c.l.b16 %v1536
        %v4796 = vunpack.c.h.b16 %v1536
        %v4797 = vunpack.c.l.b16 %v1537
        %v4798 = vunpack.c.h.b16 %v1537
        %v4799 = vunpack.c.l.b16 %v1538
        %v4800 = vunpack.c.h.b16 %v1538
        %v4801 = vunpack.c.l.b16 %v1539
        %v4802 = vunpack.c.h.b16 %v1539
        %v4803 = vunpack.c.l.b16 %v1540
        %v4804 = vunpack.c.h.b16 %v1540
        %v4805 = vunpack.c.l.b16 %v1541
        %v4806 = vunpack.c.h.b16 %v1541
        %v4807 = vunpack.c.l.b16 %v1542
        %v4808 = vunpack.c.h.b16 %v1542
        %v4809 = vunpack.c.l.b16 %v1543
        %v4810 = vunpack.c.h.b16 %v1543
        %v4811 = vunpack.c.l.b16 %v1544
        %v4812 = vunpack.c.h.b16 %v1544
        %v4813 = vunpack.c.l.b16 %v1545
        %v4814 = vunpack.c.h.b16 %v1545
        %v4815 = vunpack.c.l.b16 %v1546
        %v4816 = vunpack.c.h.b16 %v1546
        %v4817 = vunpack.c.l.b16 %v1547
        %v4818 = vunpack.c.h.b16 %v1547
        %v4819 = vunpack.c.l.b16 %v1548
        %v4820 = vunpack.c.h.b16 %v1548
        %v4821 = vunpack.c.l.b16 %v1549
        %v4822 = vunpack.c.h.b16 %v1549
        %v4823 = vunpack.c.l.b16 %v1550
        %v4824 = vunpack.c.h.b16 %v1550
        %v4825 = vunpack.c.l.b16 %v1551
        %v4826 = vunpack.c.h.b16 %v1551
        %v4827 = vunpack.c.l.b16 %v1552
        %v4828 = vunpack.c.h.b16 %v1552
        %v4829 = vunpack.c.l.b16 %v1553
        %v4830 = vunpack.c.h.b16 %v1553
        %v4831 = vunpack.c.l.b16 %v1554
        %v4832 = vunpack.c.h.b16 %v1554
        %v4833 = vunpack.c.l.b16 %v1555
        %v4834 = vunpack.c.h.b16 %v1555
        %v4835 = vunpack.c.l.b16 %v1556
        %v4836 = vunpack.c.h.b16 %v1556
        %v4837 = vunpack.c.l.b16 %v1557
        %v4838 = vunpack.c.h.b16 %v1557
        %v4839 = vunpack.c.l.b16 %v1558
        %v4840 = vunpack.c.h.b16 %v1558
        %v4841 = vunpack.c.l.b16 %v1559
        %v4842 = vunpack.c.h.b16 %v1559
        %v4843 = vunpack.c.l.b16 %v1560
        %v4844 = vunpack.c.h.b16 %v1560
        %v4845 = vunpack.c.l.b16 %v1561
        %v4846 = vunpack.c.h.b16 %v1561
        %v4847 = vunpack.c.l.b16 %v1562
        %v4848 = vunpack.c.h.b16 %v1562
        %v4849 = vunpack.c.l.b16 %v1563
        %v4850 = vunpack.c.h.b16 %v1563
        %v4851 = vunpack.c.l.b16 %v1564
        %v4852 = vunpack.c.h.b16 %v1564
        %v4853 = vunpack.c.l.b16 %v1565
        %v4854 = vunpack.c.h.b16 %v1565
        %v4855 = vunpack.c.l.b16 %v1566
        %v4856 = vunpack.c.h.b16 %v1566
        %v4857 = vunpack.c.l.b16 %v1567
        %v4858 = vunpack.c.h.b16 %v1567
        %v4859 = vunpack.c.l.b16 %v1568
        %v4860 = vunpack.c.h.b16 %v1568
        %v4861 = vunpack.c.l.b16 %v1569
        %v4862 = vunpack.c.h.b16 %v1569
        %v4863 = vunpack.c.l.b16 %v1570
        %v4864 = vunpack.c.h.b16 %v1570
        %v4865 = vunpack.c.l.b16 %v1571
        %v4866 = vunpack.c.h.b16 %v1571
        %v4867 = vunpack.c.l.b16 %v1572
        %v4868 = vunpack.c.h.b16 %v1572
        %v4869 = vunpack.c.l.b16 %v1573
        %v4870 = vunpack.c.h.b16 %v1573
        %v4871 = vunpack.c.l.b16 %v1574
        %v4872 = vunpack.c.h.b16 %v1574
        %v4873 = vunpack.c.l.b16 %v1575
        %v4874 = vunpack.c.h.b16 %v1575
        %v4875 = vunpack.c.l.b16 %v1576
        %v4876 = vunpack.c.h.b16 %v1576
        %v4877 = vunpack.c.l.b16 %v1577
        %v4878 = vunpack.c.h.b16 %v1577
        %v4879 = vunpack.c.l.b16 %v1578
        %v4880 = vunpack.c.h.b16 %v1578
        %v4881 = vunpack.c.l.b16 %v1579
        %v4882 = vunpack.c.h.b16 %v1579
        %v4883 = vunpack.c.l.b16 %v1580
        %v4884 = vunpack.c.h.b16 %v1580
        %v4885 = vunpack.c.l.b16 %v1581
        %v4886 = vunpack.c.h.b16 %v1581
        %v4887 = vunpack.c.l.b16 %v1582
        %v4888 = vunpack.c.h.b16 %v1582
        %v4889 = vunpack.c.l.b16 %v1583
        %v4890 = vunpack.c.h.b16 %v1583
        %v4891 = vunpack.c.l.b16 %v1584
        %v4892 = vunpack.c.h.b16 %v1584
        %v4893 = vunpack.c.l.b16 %v1585
        %v4894 = vunpack.c.h.b16 %v1585
        %v4895 = vunpack.c.l.b16 %v1586
        %v4896 = vunpack.c.h.b16 %v1586
        %v4897 = vunpack.c.l.b16 %v1587
        %v4898 = vunpack.c.h.b16 %v1587
        %v4899 = vunpack.c.l.b16 %v1588
        %v4900 = vunpack.c.h.b16 %v1588
        %v4901 = vunpack.c.l.b16 %v1589
        %v4902 = vunpack.c.h.b16 %v1589
        %v4903 = vunpack.c.l.b16 %v1590
        %v4904 = vunpack.c.h.b16 %v1590
        %v4905 = vunpack.c.l.b16 %v1591
        %v4906 = vunpack.c.h.b16 %v1591
        %v4907 = vunpack.c.l.b16 %v1592
        %v4908 = vunpack.c.h.b16 %v1592
        %v4909 = vunpack.c.l.b16 %v1593
        %v4910 = vunpack.c.h.b16 %v1593
        %v4911 = vunpack.c.l.b16 %v1594
        %v4912 = vunpack.c.h.b16 %v1594
        %v4913 = vunpack.c.l.b16 %v1595
        %v4914 = vunpack.c.h.b16 %v1595
        %v4915 = vunpack.c.l.b16 %v1596
        %v4916 = vunpack.c.h.b16 %v1596
        %v4917 = vunpack.c.l.b16 %v1597
        %v4918 = vunpack.c.h.b16 %v1597
        %v4919 = vunpack.c.l.b16 %v1598
        %v4920 = vunpack.c.h.b16 %v1598
        %v4921 = vunpack.c.l.b16 %v1599
        %v4922 = vunpack.c.h.b16 %v1599
        %v4923 = vunpack.c.l.b16 %v1600
        %v4924 = vunpack.c.h.b16 %v1600
        %v4925 = vunpack.c.l.b16 %v1601
        %v4926 = vunpack.c.h.b16 %v1601
        %v4927 = vunpack.c.l.b16 %v1602
        %v4928 = vunpack.c.h.b16 %v1602
        %v4929 = vunpack.c.l.b16 %v1603
        %v4930 = vunpack.c.h.b16 %v1603
        %v4931 = vunpack.c.l.b16 %v1604
        %v4932 = vunpack.c.h.b16 %v1604
        %v4933 = vunpack.c.l.b16 %v1605
        %v4934 = vunpack.c.h.b16 %v1605
        %v4935 = vunpack.c.l.b16 %v1606
        %v4936 = vunpack.c.h.b16 %v1606
        %v4937 = vunpack.c.l.b16 %v1607
        %v4938 = vunpack.c.h.b16 %v1607
        %v4939 = vunpack.c.l.b16 %v1608
        %v4940 = vunpack.c.h.b16 %v1608
        %v4941 = vunpack.c.l.b16 %v1609
        %v4942 = vunpack.c.h.b16 %v1609
        %v4943 = vunpack.c.l.b16 %v1610
        %v4944 = vunpack.c.h.b16 %v1610
        %v4945 = vunpack.c.l.b16 %v1611
        %v4946 = vunpack.c.h.b16 %v1611
        %v4947 = vunpack.c.l.b16 %v1612
        %v4948 = vunpack.c.h.b16 %v1612
        %v4949 = vunpack.c.l.b16 %v1613
        %v4950 = vunpack.c.h.b16 %v1613
        %v4951 = vunpack.c.l.b16 %v1614
        %v4952 = vunpack.c.h.b16 %v1614
        %v4953 = vunpack.c.l.b16 %v1615
        %v4954 = vunpack.c.h.b16 %v1615
        %v4955 = vunpack.c.l.b16 %v1616
        %v4956 = vunpack.c.h.b16 %v1616
        %v4957 = vunpack.c.l.b16 %v1617
        %v4958 = vunpack.c.h.b16 %v1617
        %v4959 = vunpack.c.l.b16 %v1618
        %v4960 = vunpack.c.h.b16 %v1618
        %v4961 = vunpack.c.l.b16 %v1619
        %v4962 = vunpack.c.h.b16 %v1619
        %v4963 = vunpack.c.l.b16 %v1620
        %v4964 = vunpack.c.h.b16 %v1620
        %v4965 = vunpack.c.l.b16 %v1621
        %v4966 = vunpack.c.h.b16 %v1621
        %v4967 = vunpack.c.l.b16 %v1622
        %v4968 = vunpack.c.h.b16 %v1622
        %v4969 = vunpack.c.l.b16 %v1623
        %v4970 = vunpack.c.h.b16 %v1623
        %v4971 = vunpack.c.l.b16 %v1624
        %v4972 = vunpack.c.h.b16 %v1624
        %v4973 = vunpack.c.l.b16 %v1625
        %v4974 = vunpack.c.h.b16 %v1625
        %v4975 = vunpack.c.l.b16 %v1626
        %v4976 = vunpack.c.h.b16 %v1626
        %v4977 = vunpack.c.l.b16 %v1627
        %v4978 = vunpack.c.h.b16 %v1627
        %v4979 = vunpack.c.l.b16 %v1628
        %v4980 = vunpack.c.h.b16 %v1628
        %v4981 = vunpack.c.l.b16 %v1629
        %v4982 = vunpack.c.h.b16 %v1629
        %v4983 = vunpack.c.l.b16 %v1630
        %v4984 = vunpack.c.h.b16 %v1630
        %v4985 = vunpack.c.l.b16 %v1631
        %v4986 = vunpack.c.h.b16 %v1631
        %v4987 = vunpack.c.l.b16 %v1632
        %v4988 = vunpack.c.h.b16 %v1632
        %v4989 = vunpack.c.l.b16 %v1633
        %v4990 = vunpack.c.h.b16 %v1633
        %v4991 = vunpack.c.l.b16 %v1634
        %v4992 = vunpack.c.h.b16 %v1634
        %v4993 = vunpack.c.l.b16 %v1635
        %v4994 = vunpack.c.h.b16 %v1635
        %v4995 = vunpack.c.l.b16 %v1636
        %v4996 = vunpack.c.h.b16 %v1636
        %v4997 = vunpack.c.l.b16 %v1637
        %v4998 = vunpack.c.h.b16 %v1637
        %v4999 = vunpack.c.l.b16 %v1638
        %v5000 = vunpack.c.h.b16 %v1638
        %v5001 = vunpack.c.l.b16 %v1639
        %v5002 = vunpack.c.h.b16 %v1639
        %v5003 = vunpack.c.l.b16 %v1640
        %v5004 = vunpack.c.h.b16 %v1640
        %v5005 = vunpack.c.l.b16 %v1641
        %v5006 = vunpack.c.h.b16 %v1641
        %v5007 = vunpack.c.l.b16 %v1642
        %v5008 = vunpack.c.h.b16 %v1642
        %v5009 = vunpack.c.l.b16 %v1643
        %v5010 = vunpack.c.h.b16 %v1643
        %v5011 = vunpack.c.l.b16 %v1644
        %v5012 = vunpack.c.h.b16 %v1644
        %v5013 = vunpack.c.l.b16 %v1645
        %v5014 = vunpack.c.h.b16 %v1645
        %v5015 = vunpack.c.l.b16 %v1646
        %v5016 = vunpack.c.h.b16 %v1646
        %v5017 = vunpack.c.l.b16 %v1647
        %v5018 = vunpack.c.h.b16 %v1647
        %v5019 = vunpack.c.l.b16 %v1648
        %v5020 = vunpack.c.h.b16 %v1648
        %v5021 = vunpack.c.l.b16 %v1649
        %v5022 = vunpack.c.h.b16 %v1649
        %v5023 = vunpack.c.l.b16 %v1650
        %v5024 = vunpack.c.h.b16 %v1650
        %v5025 = vunpack.c.l.b16 %v1651
        %v5026 = vunpack.c.h.b16 %v1651
        %v5027 = vunpack.c.l.b16 %v1652
        %v5028 = vunpack.c.h.b16 %v1652
        %v5029 = vunpack.c.l.b16 %v1653
        %v5030 = vunpack.c.h.b16 %v1653
        %v5031 = vunpack.c.l.b16 %v1654
        %v5032 = vunpack.c.h.b16 %v1654
        %v5033 = vunpack.c.l.b16 %v1655
        %v5034 = vunpack.c.h.b16 %v1655
        %v5035 = vunpack.c.l.b16 %v1656
        %v5036 = vunpack.c.h.b16 %v1656
        %v5037 = vunpack.c.l.b16 %v1657
        %v5038 = vunpack.c.h.b16 %v1657
        %v5039 = vunpack.c.l.b16 %v1658
        %v5040 = vunpack.c.h.b16 %v1658
        %v5041 = vunpack.c.l.b16 %v1659
        %v5042 = vunpack.c.h.b16 %v1659
        %v5043 = vunpack.c.l.b16 %v1660
        %v5044 = vunpack.c.h.b16 %v1660
        %v5045 = vunpack.c.l.b16 %v1661
        %v5046 = vunpack.c.h.b16 %v1661
        %v5047 = vunpack.c.l.b16 %v1662
        %v5048 = vunpack.c.h.b16 %v1662
        %v5049 = vunpack.c.l.b16 %v1663
        %v5050 = vunpack.c.h.b16 %v1663
        %v5051 = vunpack.c.l.b16 %v1664
        %v5052 = vunpack.c.h.b16 %v1664
        %v5053 = vunpack.c.l.b16 %v1665
        %v5054 = vunpack.c.h.b16 %v1665
        %v5055 = vunpack.c.l.b16 %v1666
        %v5056 = vunpack.c.h.b16 %v1666
        %v5057 = vunpack.c.l.b16 %v1667
        %v5058 = vunpack.c.h.b16 %v1667
        %v5059 = vunpack.c.l.b16 %v1668
        %v5060 = vunpack.c.h.b16 %v1668
        %v5061 = vunpack.c.l.b16 %v1669
        %v5062 = vunpack.c.h.b16 %v1669
        %v5063 = vunpack.c.l.b16 %v1670
        %v5064 = vunpack.c.h.b16 %v1670
        %v5065 = vunpack.c.l.b16 %v1671
        %v5066 = vunpack.c.h.b16 %v1671
        %v5067 = vunpack.c.l.b16 %v1672
        %v5068 = vunpack.c.h.b16 %v1672
        %v5069 = vunpack.c.l.b16 %v1673
        %v5070 = vunpack.c.h.b16 %v1673
        %v5071 = vunpack.c.l.b16 %v1674
        %v5072 = vunpack.c.h.b16 %v1674
        %v5073 = vunpack.c.l.b16 %v1675
        %v5074 = vunpack.c.h.b16 %v1675
        %v5075 = vunpack.c.l.b16 %v1676
        %v5076 = vunpack.c.h.b16 %v1676
        %v5077 = vunpack.c.l.b16 %v1677
        %v5078 = vunpack.c.h.b16 %v1677
        %v5079 = vunpack.c.l.b16 %v1678
        %v5080 = vunpack.c.h.b16 %v1678
        %v5081 = vunpack.c.l.b16 %v1679
        %v5082 = vunpack.c.h.b16 %v1679
        %v5083 = vunpack.c.l.b16 %v1680
        %v5084 = vunpack.c.h.b16 %v1680
        %v5085 = vunpack.c.l.b16 %v1681
        %v5086 = vunpack.c.h.b16 %v1681
        %v5087 = vunpack.c.l.b16 %v1682
        %v5088 = vunpack.c.h.b16 %v1682
        %v5089 = vunpack.c.l.b16 %v1683
        %v5090 = vunpack.c.h.b16 %v1683
        %v5091 = vunpack.c.l.b16 %v1684
        %v5092 = vunpack.c.h.b16 %v1684
        %v5093 = vunpack.c.l.b16 %v1685
        %v5094 = vunpack.c.h.b16 %v1685
        %v5095 = vunpack.c.l.b16 %v1686
        %v5096 = vunpack.c.h.b16 %v1686
        %v5097 = vunpack.c.l.b16 %v1687
        %v5098 = vunpack.c.h.b16 %v1687
        %v5099 = vunpack.c.l.b16 %v1688
        %v5100 = vunpack.c.h.b16 %v1688
        %v5101 = vunpack.c.l.b16 %v1689
        %v5102 = vunpack.c.h.b16 %v1689
        %v5103 = vunpack.c.l.b16 %v1690
        %v5104 = vunpack.c.h.b16 %v1690
        %v5105 = vunpack.c.l.b16 %v1691
        %v5106 = vunpack.c.h.b16 %v1691
        %v5107 = vunpack.c.l.b16 %v1692
        %v5108 = vunpack.c.h.b16 %v1692
        %v5109 = vunpack.c.l.b16 %v1693
        %v5110 = vunpack.c.h.b16 %v1693
        %v5111 = vunpack.c.l.b16 %v1694
        %v5112 = vunpack.c.h.b16 %v1694
        %v5113 = vunpack.c.l.b16 %v1695
        %v5114 = vunpack.c.h.b16 %v1695
        %v5115 = vunpack.c.l.b16 %v1696
        %v5116 = vunpack.c.h.b16 %v1696
        %v5117 = vunpack.c.l.b16 %v1697
        %v5118 = vunpack.c.h.b16 %v1697
        %v5119 = vunpack.c.l.b16 %v1698
        %v5120 = vunpack.c.h.b16 %v1698
        %v5121 = vunpack.c.l.b16 %v1699
        %v5122 = vunpack.c.h.b16 %v1699
        %v5123 = vunpack.c.l.b16 %v1700
        %v5124 = vunpack.c.h.b16 %v1700
        %v5125 = vunpack.c.l.b16 %v1701
        %v5126 = vunpack.c.h.b16 %v1701
        %v5127 = vunpack.c.l.b16 %v1702
        %v5128 = vunpack.c.h.b16 %v1702
        %v5129 = vunpack.c.l.b16 %v1703
        %v5130 = vunpack.c.h.b16 %v1703
        %v5131 = vunpack.c.l.b16 %v1704
        %v5132 = vunpack.c.h.b16 %v1704
        %v5133 = vunpack.c.l.b16 %v1705
        %v5134 = vunpack.c.h.b16 %v1705
        %v5135 = vunpack.c.l.b16 %v1706
        %v5136 = vunpack.c.h.b16 %v1706
        %v5137 = vunpack.c.l.b16 %v1707
        %v5138 = vunpack.c.h.b16 %v1707
        %v5139 = vunpack.c.l.b16 %v1708
        %v5140 = vunpack.c.h.b16 %v1708
        %v5141 = vunpack.c.l.b16 %v1709
        %v5142 = vunpack.c.h.b16 %v1709
        %v5143 = vunpack.c.l.b16 %v1710
        %v5144 = vunpack.c.h.b16 %v1710
        %v5145 = vunpack.c.l.b16 %v1711
        %v5146 = vunpack.c.h.b16 %v1711
        %v5147 = vunpack.c.l.b16 %v1712
        %v5148 = vunpack.c.h.b16 %v1712
        %v5149 = vunpack.c.l.b16 %v1713
        %v5150 = vunpack.c.h.b16 %v1713
        %v5151 = vunpack.c.l.b16 %v1714
        %v5152 = vunpack.c.h.b16 %v1714
        %v5153 = vunpack.c.l.b16 %v1715
        %v5154 = vunpack.c.h.b16 %v1715
        %v5155 = vunpack.c.l.b16 %v1716
        %v5156 = vunpack.c.h.b16 %v1716
        %v5157 = vunpack.c.l.b16 %v1717
        %v5158 = vunpack.c.h.b16 %v1717
        %v5159 = vunpack.c.l.b16 %v1718
        %v5160 = vunpack.c.h.b16 %v1718
        %v5161 = vunpack.c.l.b16 %v1719
        %v5162 = vunpack.c.h.b16 %v1719
        %v5163 = vunpack.c.l.b16 %v1720
        %v5164 = vunpack.c.h.b16 %v1720
        %v5165 = vunpack.c.l.b16 %v1721
        %v5166 = vunpack.c.h.b16 %v1721
        %v5167 = vunpack.c.l.b16 %v1722
        %v5168 = vunpack.c.h.b16 %v1722
        %v5169 = vunpack.c.l.b16 %v1723
        %v5170 = vunpack.c.h.b16 %v1723
        %v5171 = vunpack.c.l.b16 %v1724
        %v5172 = vunpack.c.h.b16 %v1724
        %v5173 = vunpack.c.l.b16 %v1725
        %v5174 = vunpack.c.h.b16 %v1725
        %v5175 = vunpack.c.l.b16 %v1726
        %v5176 = vunpack.c.h.b16 %v1726
        %v5177 = vunpack.c.l.b16 %v1727
        %v5178 = vunpack.c.h.b16 %v1727
        %v5179 = vunpack.c.l.b16 %v1728
        %v5180 = vunpack.c.h.b16 %v1728
        %v5181 = vunpack.c.l.b16 %v1729
        %v5182 = vunpack.c.h.b16 %v1729
        %v5183 = vunpack.c.l.b16 %v1730
        %v5184 = vunpack.c.h.b16 %v1730
        %v5185 = vunpack.c.l.b16 %v1731
        %v5186 = vunpack.c.h.b16 %v1731
        %v5187 = vunpack.c.l.b16 %v1732
        %v5188 = vunpack.c.h.b16 %v1732
        %v5189 = vpack.c.b16 %v2887, %v2885
        %v5190 = vpack.c.b16 %v2888, %v2886
        %v5191 = vpack.c.b16 %v2891, %v2889
        %v5192 = vpack.c.b16 %v2892, %v2890
        %v5193 = vpack.c.b16 %v2895, %v2893
        %v5194 = vpack.c.b16 %v2896, %v2894
        %v5195 = vpack.c.b16 %v2899, %v2897
        %v5196 = vpack.c.b16 %v2900, %v2898
        %v5197 = vpack.c.b16 %v2903, %v2901
        %v5198 = vpack.c.b16 %v2904, %v2902
        %v5199 = vpack.c.b16 %v2907, %v2905
        %v5200 = vpack.c.b16 %v2908, %v2906
        %v5201 = vpack.c.b16 %v2911, %v2909
        %v5202 = vpack.c.b16 %v2912, %v2910
        %v5203 = vpack.c.b16 %v2915, %v2913
        %v5204 = vpack.c.b16 %v2916, %v2914
        %v5205 = vpack.c.b16 %v2919, %v2917
        %v5206 = vpack.c.b16 %v2920, %v2918
        %v5207 = vpack.c.b16 %v2923, %v2921
        %v5208 = vpack.c.b16 %v2924, %v2922
        %v5209 = vpack.c.b16 %v2927, %v2925
        %v5210 = vpack.c.b16 %v2928, %v2926
        %v5211 = vpack.c.b16 %v2931, %v2929
        %v5212 = vpack.c.b16 %v2932, %v2930
        %v5213 = vpack.c.b16 %v2935, %v2933
        %v5214 = vpack.c.b16 %v2936, %v2934
        %v5215 = vpack.c.b16 %v2939, %v2937
        %v5216 = vpack.c.b16 %v2940, %v2938
        %v5217 = vpack.c.b16 %v2943, %v2941
        %v5218 = vpack.c.b16 %v2944, %v2942
        %v5219 = vpack.c.b16 %v2947, %v2945
        %v5220 = vpack.c.b16 %v2948, %v2946
        %v5221 = vpack.c.b16 %v2951, %v2949
        %v5222 = vpack.c.b16 %v2952, %v2950
        %v5223 = vpack.c.b16 %v2955, %v2953
        %v5224 = vpack.c.b16 %v2956, %v2954
        %v5225 = vpack.c.b16 %v2959, %v2957
        %v5226 = vpack.c.b16 %v2960, %v2958
        %v5227 = vpack.c.b16 %v2963, %v2961
        %v5228 = vpack.c.b16 %v2964, %v2962
        %v5229 = vpack.c.b16 %v2967, %v2965
        %v5230 = vpack.c.b16 %v2968, %v2966
        %v5231 = vpack.c.b16 %v2971, %v2969
        %v5232 = vpack.c.b16 %v2972, %v2970
        %v5233 = vpack.c.b16 %v2975, %v2973
        %v5234 = vpack.c.b16 %v2976, %v2974
        %v5235 = vpack.c.b16 %v2979, %v2977
        %v5236 = vpack.c.b16 %v2980, %v2978
        %v5237 = vpack.c.b16 %v2983, %v2981
        %v5238 = vpack.c.b16 %v2984, %v2982
        %v5239 = vpack.c.b16 %v2987, %v2985
        %v5240 = vpack.c.b16 %v2988, %v2986
        %v5241 = vpack.c.b16 %v2991, %v2989
        %v5242 = vpack.c.b16 %v2992, %v2990
        %v5243 = vpack.c.b16 %v2995, %v2993
        %v5244 = vpack.c.b16 %v2996, %v2994
        %v5245 = vpack.c.b16 %v2999, %v2997
        %v5246 = vpack.c.b16 %v3000, %v2998
        %v5247 = vpack.c.b16 %v3003, %v3001
        %v5248 = vpack.c.b16 %v3004, %v3002
        %v5249 = vpack.c.b16 %v3007, %v3005
        %v5250 = vpack.c.b16 %v3008, %v3006
        %v5251 = vpack.c.b16 %v3011, %v3009
        %v5252 = vpack.c.b16 %v3012, %v3010
        %v5253 = vpack.c.b16 %v3015, %v3013
        %v5254 = vpack.c.b16 %v3016, %v3014
        %v5255 = vpack.c.b16 %v3019, %v3017
        %v5256 = vpack.c.b16 %v3020, %v3018
        %v5257 = vpack.c.b16 %v3023, %v3021
        %v5258 = vpack.c.b16 %v3024, %v3022
        %v5259 = vpack.c.b16 %v3027, %v3025
        %v5260 = vpack.c.b16 %v3028, %v3026
        %v5261 = vpack.c.b16 %v3031, %v3029
        %v5262 = vpack.c.b16 %v3032, %v3030
        %v5263 = vpack.c.b16 %v3035, %v3033
        %v5264 = vpack.c.b16 %v3036, %v3034
        %v5265 = vpack.c.b16 %v3039, %v3037
        %v5266 = vpack.c.b16 %v3040, %v3038
        %v5267 = vpack.c.b16 %v3043, %v3041
        %v5268 = vpack.c.b16 %v3044, %v3042
        %v5269 = vpack.c.b16 %v3047, %v3045
        %v5270 = vpack.c.b16 %v3048, %v3046
        %v5271 = vpack.c.b16 %v3051, %v3049
        %v5272 = vpack.c.b16 %v3052, %v3050
        %v5273 = vpack.c.b16 %v3055, %v3053
        %v5274 = vpack.c.b16 %v3056, %v3054
        %v5275 = vpack.c.b16 %v3059, %v3057
        %v5276 = vpack.c.b16 %v3060, %v3058
        %v5277 = vpack.c.b16 %v3063, %v3061
        %v5278 = vpack.c.b16 %v3064, %v3062
        %v5279 = vpack.c.b16 %v3067, %v3065
        %v5280 = vpack.c.b16 %v3068, %v3066
        %v5281 = vpack.c.b16 %v3071, %v3069
        %v5282 = vpack.c.b16 %v3072, %v3070
        %v5283 = vpack.c.b16 %v3075, %v3073
        %v5284 = vpack.c.b16 %v3076, %v3074
        %v5285 = vpack.c.b16 %v3079, %v3077
        %v5286 = vpack.c.b16 %v3080, %v3078
        %v5287 = vpack.c.b16 %v3083, %v3081
        %v5288 = vpack.c.b16 %v3084, %v3082
        %v5289 = vpack.c.b16 %v3087, %v3085
        %v5290 = vpack.c.b16 %v3088, %v3086
        %v5291 = vpack.c.b16 %v3091, %v3089
        %v5292 = vpack.c.b16 %v3092, %v3090
        %v5293 = vpack.c.b16 %v3095, %v3093
        %v5294 = vpack.c.b16 %v3096, %v3094
        %v5295 = vpack.c.b16 %v3099, %v3097
        %v5296 = vpack.c.b16 %v3100, %v3098
        %v5297 = vpack.c.b16 %v3103, %v3101
        %v5298 = vpack.c.b16 %v3104, %v3102
        %v5299 = vpack.c.b16 %v3107, %v3105
        %v5300 = vpack.c.b16 %v3108, %v3106
        %v5301 = vpack.c.b16 %v3111, %v3109
        %v5302 = vpack.c.b16 %v3112, %v3110
        %v5303 = vpack.c.b16 %v3115, %v3113
        %v5304 = vpack.c.b16 %v3116, %v3114
        %v5305 = vpack.c.b16 %v3119, %v3117
        %v5306 = vpack.c.b16 %v3120, %v3118
        %v5307 = vpack.c.b16 %v3123, %v3121
        %v5308 = vpack.c.b16 %v3124, %v3122
        %v5309 = vpack.c.b16 %v3127, %v3125
        %v5310 = vpack.c.b16 %v3128, %v3126
        %v5311 = vpack.c.b16 %v3131, %v3129
        %v5312 = vpack.c.b16 %v3132, %v3130
        %v5313 = vpack.c.b16 %v3135, %v3133
        %v5314 = vpack.c.b16 %v3136, %v3134
        %v5315 = vpack.c.b16 %v3139, %v3137
        %v5316 = vpack.c.b16 %v3140, %v3138
        %v5317 = vpack.c.b16 %v3143, %v3141
        %v5318 = vpack.c.b16 %v3144, %v3142
        %v5319 = vpack.c.b16 %v3147, %v3145
        %v5320 = vpack.c.b16 %v3148, %v3146
        %v5321 = vpack.c.b16 %v3151, %v3149
        %v5322 = vpack.c.b16 %v3152, %v3150
        %v5323 = vpack.c.b16 %v3155, %v3153
        %v5324 = vpack.c.b16 %v3156, %v3154
        %v5325 = vpack.c.b16 %v3159, %v3157
        %v5326 = vpack.c.b16 %v3160, %v3158
        %v5327 = vpack.c.b16 %v3163, %v3161
        %v5328 = vpack.c.b16 %v3164, %v3162
        %v5329 = vpack.c.b16 %v3167, %v3165
        %v5330 = vpack.c.b16 %v3168, %v3166
        %v5331 = vpack.c.b16 %v3171, %v3169
        %v5332 = vpack.c.b16 %v3172, %v3170
        %v5333 = vpack.c.b16 %v3175, %v3173
        %v5334 = vpack.c.b16 %v3176, %v3174
        %v5335 = vpack.c.b16 %v3179, %v3177
        %v5336 = vpack.c.b16 %v3180, %v3178
        %v5337 = vpack.c.b16 %v3183, %v3181
        %v5338 = vpack.c.b16 %v3184, %v3182
        %v5339 = vpack.c.b16 %v3187, %v3185
        %v5340 = vpack.c.b16 %v3188, %v3186
        %v5341 = vpack.c.b16 %v3191, %v3189
        %v5342 = vpack.c.b16 %v3192, %v3190
        %v5343 = vpack.c.b16 %v3195, %v3193
        %v5344 = vpack.c.b16 %v3196, %v3194
        %v5345 = vpack.c.b16 %v3199, %v3197
        %v5346 = vpack.c.b16 %v3200, %v3198
        %v5347 = vpack.c.b16 %v3203, %v3201
        %v5348 = vpack.c.b16 %v3204, %v3202
        %v5349 = vpack.c.b16 %v3207, %v3205
        %v5350 = vpack.c.b16 %v3208, %v3206
        %v5351 = vpack.c.b16 %v3211, %v3209
        %v5352 = vpack.c.b16 %v3212, %v3210
        %v5353 = vpack.c.b16 %v3215, %v3213
        %v5354 = vpack.c.b16 %v3216, %v3214
        %v5355 = vpack.c.b16 %v3219, %v3217
        %v5356 = vpack.c.b16 %v3220, %v3218
        %v5357 = vpack.c.b16 %v3223, %v3221
        %v5358 = vpack.c.b16 %v3224, %v3222
        %v5359 = vpack.c.b16 %v3227, %v3225
        %v5360 = vpack.c.b16 %v3228, %v3226
        %v5361 = vpack.c.b16 %v3231, %v3229
        %v5362 = vpack.c.b16 %v3232, %v3230
        %v5363 = vpack.c.b16 %v3235, %v3233
        %v5364 = vpack.c.b16 %v3236, %v3234
        %v5365 = vpack.c.b16 %v3239, %v3237
        %v5366 = vpack.c.b16 %v3240, %v3238
        %v5367 = vpack.c.b16 %v3243, %v3241
        %v5368 = vpack.c.b16 %v3244, %v3242
        %v5369 = vpack.c.b16 %v3247, %v3245
        %v5370 = vpack.c.b16 %v3248, %v3246
        %v5371 = vpack.c.b16 %v3251, %v3249
        %v5372 = vpack.c.b16 %v3252, %v3250
        %v5373 = vpack.c.b16 %v3255, %v3253
        %v5374 = vpack.c.b16 %v3256, %v3254
        %v5375 = vpack.c.b16 %v3259, %v3257
        %v5376 = vpack.c.b16 %v3260, %v3258
        %v5377 = vpack.c.b16 %v3263, %v3261
        %v5378 = vpack.c.b16 %v3264, %v3262
        %v5379 = vpack.c.b16 %v3267, %v3265
        %v5380 = vpack.c.b16 %v3268, %v3266
        %v5381 = vpack.c.b16 %v3271, %v3269
        %v5382 = vpack.c.b16 %v3272, %v3270
        %v5383 = vpack.c.b16 %v3275, %v3273
        %v5384 = vpack.c.b16 %v3276, %v3274
        %v5385 = vpack.c.b16 %v3279, %v3277
        %v5386 = vpack.c.b16 %v3280, %v3278
        %v5387 = vpack.c.b16 %v3283, %v3281
        %v5388 = vpack.c.b16 %v3284, %v3282
        %v5389 = vpack.c.b16 %v3287, %v3285
        %v5390 = vpack.c.b16 %v3288, %v3286
        %v5391 = vpack.c.b16 %v3291, %v3289
        %v5392 = vpack.c.b16 %v3292, %v3290
        %v5393 = vpack.c.b16 %v3295, %v3293
        %v5394 = vpack.c.b16 %v3296, %v3294
        %v5395 = vpack.c.b16 %v3299, %v3297
        %v5396 = vpack.c.b16 %v3300, %v3298
        %v5397 = vpack.c.b16 %v3303, %v3301
        %v5398 = vpack.c.b16 %v3304, %v3302
        %v5399 = vpack.c.b16 %v3307, %v3305
        %v5400 = vpack.c.b16 %v3308, %v3306
        %v5401 = vpack.c.b16 %v3311, %v3309
        %v5402 = vpack.c.b16 %v3312, %v3310
        %v5403 = vpack.c.b16 %v3315, %v3313
        %v5404 = vpack.c.b16 %v3316, %v3314
        %v5405 = vpack.c.b16 %v3319, %v3317
        %v5406 = vpack.c.b16 %v3320, %v3318
        %v5407 = vpack.c.b16 %v3323, %v3321
        %v5408 = vpack.c.b16 %v3324, %v3322
        %v5409 = vpack.c.b16 %v3327, %v3325
        %v5410 = vpack.c.b16 %v3328, %v3326
        %v5411 = vpack.c.b16 %v3331, %v3329
        %v5412 = vpack.c.b16 %v3332, %v3330
        %v5413 = vpack.c.b16 %v3335, %v3333
        %v5414 = vpack.c.b16 %v3336, %v3334
        %v5415 = vpack.c.b16 %v3339, %v3337
        %v5416 = vpack.c.b16 %v3340, %v3338
        %v5417 = vpack.c.b16 %v3343, %v3341
        %v5418 = vpack.c.b16 %v3344, %v3342
        %v5419 = vpack.c.b16 %v3347, %v3345
        %v5420 = vpack.c.b16 %v3348, %v3346
        %v5421 = vpack.c.b16 %v3351, %v3349
        %v5422 = vpack.c.b16 %v3352, %v3350
        %v5423 = vpack.c.b16 %v3355, %v3353
        %v5424 = vpack.c.b16 %v3356, %v3354
        %v5425 = vpack.c.b16 %v3359, %v3357
        %v5426 = vpack.c.b16 %v3360, %v3358
        %v5427 = vpack.c.b16 %v3363, %v3361
        %v5428 = vpack.c.b16 %v3364, %v3362
        %v5429 = vpack.c.b16 %v3367, %v3365
        %v5430 = vpack.c.b16 %v3368, %v3366
        %v5431 = vpack.c.b16 %v3371, %v3369
        %v5432 = vpack.c.b16 %v3372, %v3370
        %v5433 = vpack.c.b16 %v3375, %v3373
        %v5434 = vpack.c.b16 %v3376, %v3374
        %v5435 = vpack.c.b16 %v3379, %v3377
        %v5436 = vpack.c.b16 %v3380, %v3378
        %v5437 = vpack.c.b16 %v3383, %v3381
        %v5438 = vpack.c.b16 %v3384, %v3382
        %v5439 = vpack.c.b16 %v3387, %v3385
        %v5440 = vpack.c.b16 %v3388, %v3386
        %v5441 = vpack.c.b16 %v3391, %v3389
        %v5442 = vpack.c.b16 %v3392, %v3390
        %v5443 = vpack.c.b16 %v3395, %v3393
        %v5444 = vpack.c.b16 %v3396, %v3394
        %v5445 = vpack.c.b16 %v3399, %v3397
        %v5446 = vpack.c.b16 %v3400, %v3398
        %v5447 = vpack.c.b16 %v3403, %v3401
        %v5448 = vpack.c.b16 %v3404, %v3402
        %v5449 = vpack.c.b16 %v3407, %v3405
        %v5450 = vpack.c.b16 %v3408, %v3406
        %v5451 = vpack.c.b16 %v3411, %v3409
        %v5452 = vpack.c.b16 %v3412, %v3410
        %v5453 = vpack.c.b16 %v3415, %v3413
        %v5454 = vpack.c.b16 %v3416, %v3414
        %v5455 = vpack.c.b16 %v3419, %v3417
        %v5456 = vpack.c.b16 %v3420, %v3418
        %v5457 = vpack.c.b16 %v3423, %v3421
        %v5458 = vpack.c.b16 %v3424, %v3422
        %v5459 = vpack.c.b16 %v3427, %v3425
        %v5460 = vpack.c.b16 %v3428, %v3426
        %v5461 = vpack.c.b16 %v3431, %v3429
        %v5462 = vpack.c.b16 %v3432, %v3430
        %v5463 = vpack.c.b16 %v3435, %v3433
        %v5464 = vpack.c.b16 %v3436, %v3434
        %v5465 = vpack.c.b16 %v3439, %v3437
        %v5466 = vpack.c.b16 %v3440, %v3438
        %v5467 = vpack.c.b16 %v3443, %v3441
        %v5468 = vpack.c.b16 %v3444, %v3442
        %v5469 = vpack.c.b16 %v3447, %v3445
        %v5470 = vpack.c.b16 %v3448, %v3446
        %v5471 = vpack.c.b16 %v3451, %v3449
        %v5472 = vpack.c.b16 %v3452, %v3450
        %v5473 = vpack.c.b16 %v3455, %v3453
        %v5474 = vpack.c.b16 %v3456, %v3454
        %v5475 = vpack.c.b16 %v3459, %v3457
        %v5476 = vpack.c.b16 %v3460, %v3458
        %v5477 = vpack.c.b16 %v3463, %v3461
        %v5478 = vpack.c.b16 %v3464, %v3462
        %v5479 = vpack.c.b16 %v3467, %v3465
        %v5480 = vpack.c.b16 %v3468, %v3466
        %v5481 = vpack.c.b16 %v3471, %v3469
        %v5482 = vpack.c.b16 %v3472, %v3470
        %v5483 = vpack.c.b16 %v3475, %v3473
        %v5484 = vpack.c.b16 %v3476, %v3474
        %v5485 = vpack.c.b16 %v3479, %v3477
        %v5486 = vpack.c.b16 %v3480, %v3478
        %v5487 = vpack.c.b16 %v3483, %v3481
        %v5488 = vpack.c.b16 %v3484, %v3482
        %v5489 = vpack.c.b16 %v3487, %v3485
        %v5490 = vpack.c.b16 %v3488, %v3486
        %v5491 = vpack.c.b16 %v3491, %v3489
        %v5492 = vpack.c.b16 %v3492, %v3490
        %v5493 = vpack.c.b16 %v3495, %v3493
        %v5494 = vpack.c.b16 %v3496, %v3494
        %v5495 = vpack.c.b16 %v3499, %v3497
        %v5496 = vpack.c.b16 %v3500, %v3498
        %v5497 = vpack.c.b16 %v3503, %v3501
        %v5498 = vpack.c.b16 %v3504, %v3502
        %v5499 = vpack.c.b16 %v3507, %v3505
        %v5500 = vpack.c.b16 %v3508, %v3506
        %v5501 = vpack.c.b16 %v3511, %v3509
        %v5502 = vpack.c.b16 %v3512, %v3510
        %v5503 = vpack.c.b16 %v3515, %v3513
        %v5504 = vpack.c.b16 %v3516, %v3514
        %v5505 = vpack.c.b16 %v3519, %v3517
        %v5506 = vpack.c.b16 %v3520, %v3518
        %v5507 = vpack.c.b16 %v3523, %v3521
        %v5508 = vpack.c.b16 %v3524, %v3522
        %v5509 = vpack.c.b16 %v3527, %v3525
        %v5510 = vpack.c.b16 %v3528, %v3526
        %v5511 = vpack.c.b16 %v3531, %v3529
        %v5512 = vpack.c.b16 %v3532, %v3530
        %v5513 = vpack.c.b16 %v3535, %v3533
        %v5514 = vpack.c.b16 %v3536, %v3534
        %v5515 = vpack.c.b16 %v3539, %v3537
        %v5516 = vpack.c.b16 %v3540, %v3538
        %v5517 = vpack.c.b16 %v3543, %v3541
        %v5518 = vpack.c.b16 %v3544, %v3542
        %v5519 = vpack.c.b16 %v3547, %v3545
        %v5520 = vpack.c.b16 %v3548, %v3546
        %v5521 = vpack.c.b16 %v3551, %v3549
        %v5522 = vpack.c.b16 %v3552, %v3550
        %v5523 = vpack.c.b16 %v3555, %v3553
        %v5524 = vpack.c.b16 %v3556, %v3554
        %v5525 = vpack.c.b16 %v3559, %v3557
        %v5526 = vpack.c.b16 %v3560, %v3558
        %v5527 = vpack.c.b16 %v3563, %v3561
        %v5528 = vpack.c.b16 %v3564, %v3562
        %v5529 = vpack.c.b16 %v3567, %v3565
        %v5530 = vpack.c.b16 %v3568, %v3566
        %v5531 = vpack.c.b16 %v3571, %v3569
        %v5532 = vpack.c.b16 %v3572, %v3570
        %v5533 = vpack.c.b16 %v3575, %v3573
        %v5534 = vpack.c.b16 %v3576, %v3574
        %v5535 = vpack.c.b16 %v3579, %v3577
        %v5536 = vpack.c.b16 %v3580, %v3578
        %v5537 = vpack.c.b16 %v3583, %v3581
        %v5538 = vpack.c.b16 %v3584, %v3582
        %v5539 = vpack.c.b16 %v3587, %v3585
        %v5540 = vpack.c.b16 %v3588, %v3586
        %v5541 = vpack.c.b16 %v3591, %v3589
        %v5542 = vpack.c.b16 %v3592, %v3590
        %v5543 = vpack.c.b16 %v3595, %v3593
        %v5544 = vpack.c.b16 %v3596, %v3594
        %v5545 = vpack.c.b16 %v3599, %v3597
        %v5546 = vpack.c.b16 %v3600, %v3598
        %v5547 = vpack.c.b16 %v3603, %v3601
        %v5548 = vpack.c.b16 %v3604, %v3602
        %v5549 = vpack.c.b16 %v3607, %v3605
        %v5550 = vpack.c.b16 %v3608, %v3606
        %v5551 = vpack.c.b16 %v3611, %v3609
        %v5552 = vpack.c.b16 %v3612, %v3610
        %v5553 = vpack.c.b16 %v3615, %v3613
        %v5554 = vpack.c.b16 %v3616, %v3614
        %v5555 = vpack.c.b16 %v3619, %v3617
        %v5556 = vpack.c.b16 %v3620, %v3618
        %v5557 = vpack.c.b16 %v3623, %v3621
        %v5558 = vpack.c.b16 %v3624, %v3622
        %v5559 = vpack.c.b16 %v3627, %v3625
        %v5560 = vpack.c.b16 %v3628, %v3626
        %v5561 = vpack.c.b16 %v3631, %v3629
        %v5562 = vpack.c.b16 %v3632, %v3630
        %v5563 = vpack.c.b16 %v3635, %v3633
        %v5564 = vpack.c.b16 %v3636, %v3634
        %v5565 = vpack.c.b16 %v3639, %v3637
        %v5566 = vpack.c.b16 %v3640, %v3638
        %v5567 = vpack.c.b16 %v3643, %v3641
        %v5568 = vpack.c.b16 %v3644, %v3642
        %v5569 = vpack.c.b16 %v3647, %v3645
        %v5570 = vpack.c.b16 %v3648, %v3646
        %v5571 = vpack.c.b16 %v3651, %v3649
        %v5572 = vpack.c.b16 %v3652, %v3650
        %v5573 = vpack.c.b16 %v3655, %v3653
        %v5574 = vpack.c.b16 %v3656, %v3654
        %v5575 = vpack.c.b16 %v3659, %v3657
        %v5576 = vpack.c.b16 %v3660, %v3658
        %v5577 = vpack.c.b16 %v3663, %v3661
        %v5578 = vpack.c.b16 %v3664, %v3662
        %v5579 = vpack.c.b16 %v3667, %v3665
        %v5580 = vpack.c.b16 %v3668, %v3666
        %v5581 = vpack.c.b16 %v3671, %v3669
        %v5582 = vpack.c.b16 %v3672, %v3670
        %v5583 = vpack.c.b16 %v3675, %v3673
        %v5584 = vpack.c.b16 %v3676, %v3674
        %v5585 = vpack.c.b16 %v3679, %v3677
        %v5586 = vpack.c.b16 %v3680, %v3678
        %v5587 = vpack.c.b16 %v3683, %v3681
        %v5588 = vpack.c.b16 %v3684, %v3682
        %v5589 = vpack.c.b16 %v3687, %v3685
        %v5590 = vpack.c.b16 %v3688, %v3686
        %v5591 = vpack.c.b16 %v3691, %v3689
        %v5592 = vpack.c.b16 %v3692, %v3690
        %v5593 = vpack.c.b16 %v3695, %v3693
        %v5594 = vpack.c.b16 %v3696, %v3694
        %v5595 = vpack.c.b16 %v3699, %v3697
        %v5596 = vpack.c.b16 %v3700, %v3698
        %v5597 = vpack.c.b16 %v3703, %v3701
        %v5598 = vpack.c.b16 %v3704, %v3702
        %v5599 = vpack.c.b16 %v3707, %v3705
        %v5600 = vpack.c.b16 %v3708, %v3706
        %v5601 = vpack.c.b16 %v3711, %v3709
        %v5602 = vpack.c.b16 %v3712, %v3710
        %v5603 = vpack.c.b16 %v3715, %v3713
        %v5604 = vpack.c.b16 %v3716, %v3714
        %v5605 = vpack.c.b16 %v3719, %v3717
        %v5606 = vpack.c.b16 %v3720, %v3718
        %v5607 = vpack.c.b16 %v3723, %v3721
        %v5608 = vpack.c.b16 %v3724, %v3722
        %v5609 = vpack.c.b16 %v3727, %v3725
        %v5610 = vpack.c.b16 %v3728, %v3726
        %v5611 = vpack.c.b16 %v3731, %v3729
        %v5612 = vpack.c.b16 %v3732, %v3730
        %v5613 = vpack.c.b16 %v3735, %v3733
        %v5614 = vpack.c.b16 %v3736, %v3734
        %v5615 = vpack.c.b16 %v3739, %v3737
        %v5616 = vpack.c.b16 %v3740, %v3738
        %v5617 = vpack.c.b16 %v3743, %v3741
        %v5618 = vpack.c.b16 %v3744, %v3742
        %v5619 = vpack.c.b16 %v3747, %v3745
        %v5620 = vpack.c.b16 %v3748, %v3746
        %v5621 = vpack.c.b16 %v3751, %v3749
        %v5622 = vpack.c.b16 %v3752, %v3750
        %v5623 = vpack.c.b16 %v3755, %v3753
        %v5624 = vpack.c.b16 %v3756, %v3754
        %v5625 = vpack.c.b16 %v3759, %v3757
        %v5626 = vpack.c.b16 %v3760, %v3758
        %v5627 = vpack.c.b16 %v3763, %v3761
        %v5628 = vpack.c.b16 %v3764, %v3762
        %v5629 = vpack.c.b16 %v3767, %v3765
        %v5630 = vpack.c.b16 %v3768, %v3766
        %v5631 = vpack.c.b16 %v3771, %v3769
        %v5632 = vpack.c.b16 %v3772, %v3770
        %v5633 = vpack.c.b16 %v3775, %v3773
        %v5634 = vpack.c.b16 %v3776, %v3774
        %v5635 = vpack.c.b16 %v3779, %v3777
        %v5636 = vpack.c.b16 %v3780, %v3778
        %v5637 = vpack.c.b16 %v3783, %v3781
        %v5638 = vpack.c.b16 %v3784, %v3782
        %v5639 = vpack.c.b16 %v3787, %v3785
        %v5640 = vpack.c.b16 %v3788, %v3786
        %v5641 = vpack.c.b16 %v3791, %v3789
        %v5642 = vpack.c.b16 %v3792, %v3790
        %v5643 = vpack.c.b16 %v3795, %v3793
        %v5644 = vpack.c.b16 %v3796, %v3794
        %v5645 = vpack.c.b16 %v3799, %v3797
        %v5646 = vpack.c.b16 %v3800, %v3798
        %v5647 = vpack.c.b16 %v3803, %v3801
        %v5648 = vpack.c.b16 %v3804, %v3802
        %v5649 = vpack.c.b16 %v3807, %v3805
        %v5650 = vpack.c.b16 %v3808, %v3806
        %v5651 = vpack.c.b16 %v3811, %v3809
        %v5652 = vpack.c.b16 %v3812, %v3810
        %v5653 = vpack.c.b16 %v3815, %v3813
        %v5654 = vpack.c.b16 %v3816, %v3814
        %v5655 = vpack.c.b16 %v3819, %v3817
        %v5656 = vpack.c.b16 %v3820, %v3818
        %v5657 = vpack.c.b16 %v3823, %v3821
        %v5658 = vpack.c.b16 %v3824, %v3822
        %v5659 = vpack.c.b16 %v3827, %v3825
        %v5660 = vpack.c.b16 %v3828, %v3826
        %v5661 = vpack.c.b16 %v3831, %v3829
        %v5662 = vpack.c.b16 %v3832, %v3830
        %v5663 = vpack.c.b16 %v3835, %v3833
        %v5664 = vpack.c.b16 %v3836, %v3834
        %v5665 = vpack.c.b16 %v3839, %v3837
        %v5666 = vpack.c.b16 %v3840, %v3838
        %v5667 = vpack.c.b16 %v3843, %v3841
        %v5668 = vpack.c.b16 %v3844, %v3842
        %v5669 = vpack.c.b16 %v3847, %v3845
        %v5670 = vpack.c.b16 %v3848, %v3846
        %v5671 = vpack.c.b16 %v3851, %v3849
        %v5672 = vpack.c.b16 %v3852, %v3850
        %v5673 = vpack.c.b16 %v3855, %v3853
        %v5674 = vpack.c.b16 %v3856, %v3854
        %v5675 = vpack.c.b16 %v3859, %v3857
        %v5676 = vpack.c.b16 %v3860, %v3858
        %v5677 = vpack.c.b16 %v3863, %v3861
        %v5678 = vpack.c.b16 %v3864, %v3862
        %v5679 = vpack.c.b16 %v3867, %v3865
        %v5680 = vpack.c.b16 %v3868, %v3866
        %v5681 = vpack.c.b16 %v3871, %v3869
        %v5682 = vpack.c.b16 %v3872, %v3870
        %v5683 = vpack.c.b16 %v3875, %v3873
        %v5684 = vpack.c.b16 %v3876, %v3874
        %v5685 = vpack.c.b16 %v3879, %v3877
        %v5686 = vpack.c.b16 %v3880, %v3878
        %v5687 = vpack.c.b16 %v3883, %v3881
        %v5688 = vpack.c.b16 %v3884, %v3882
        %v5689 = vpack.c.b16 %v3887, %v3885
        %v5690 = vpack.c.b16 %v3888, %v3886
        %v5691 = vpack.c.b16 %v3891, %v3889
        %v5692 = vpack.c.b16 %v3892, %v3890
        %v5693 = vpack.c.b16 %v3895, %v3893
        %v5694 = vpack.c.b16 %v3896, %v3894
        %v5695 = vpack.c.b16 %v3899, %v3897
        %v5696 = vpack.c.b16 %v3900, %v3898
        %v5697 = vpack.c.b16 %v3903, %v3901
        %v5698 = vpack.c.b16 %v3904, %v3902
        %v5699 = vpack.c.b16 %v3907, %v3905
        %v5700 = vpack.c.b16 %v3908, %v3906
        %v5701 = vpack.c.b16 %v3911, %v3909
        %v5702 = vpack.c.b16 %v3912, %v3910
        %v5703 = vpack.c.b16 %v3915, %v3913
        %v5704 = vpack.c.b16 %v3916, %v3914
        %v5705 = vpack.c.b16 %v3919, %v3917
        %v5706 = vpack.c.b16 %v3920, %v3918
        %v5707 = vpack.c.b16 %v3923, %v3921
        %v5708 = vpack.c.b16 %v3924, %v3922
        %v5709 = vpack.c.b16 %v3927, %v3925
        %v5710 = vpack.c.b16 %v3928, %v3926
        %v5711 = vpack.c.b16 %v3931, %v3929
        %v5712 = vpack.c.b16 %v3932, %v3930
        %v5713 = vpack.c.b16 %v3935, %v3933
        %v5714 = vpack.c.b16 %v3936, %v3934
        %v5715 = vpack.c.b16 %v3939, %v3937
        %v5716 = vpack.c.b16 %v3940, %v3938
        %v5717 = vpack.c.b16 %v3943, %v3941
        %v5718 = vpack.c.b16 %v3944, %v3942
        %v5719 = vpack.c.b16 %v3947, %v3945
        %v5720 = vpack.c.b16 %v3948, %v3946
        %v5721 = vpack.c.b16 %v3951, %v3949
        %v5722 = vpack.c.b16 %v3952, %v3950
        %v5723 = vpack.c.b16 %v3955, %v3953
        %v5724 = vpack.c.b16 %v3956, %v3954
        %v5725 = vpack.c.b16 %v3959, %v3957
        %v5726 = vpack.c.b16 %v3960, %v3958
        %v5727 = vpack.c.b16 %v3963, %v3961
        %v5728 = vpack.c.b16 %v3964, %v3962
        %v5729 = vpack.c.b16 %v3967, %v3965
        %v5730 = vpack.c.b16 %v3968, %v3966
        %v5731 = vpack.c.b16 %v3971, %v3969
        %v5732 = vpack.c.b16 %v3972, %v3970
        %v5733 = vpack.c.b16 %v3975, %v3973
        %v5734 = vpack.c.b16 %v3976, %v3974
        %v5735 = vpack.c.b16 %v3979, %v3977
        %v5736 = vpack.c.b16 %v3980, %v3978
        %v5737 = vpack.c.b16 %v3983, %v3981
        %v5738 = vpack.c.b16 %v3984, %v3982
        %v5739 = vpack.c.b16 %v3987, %v3985
        %v5740 = vpack.c.b16 %v3988, %v3986
        %v5741 = vpack.c.b16 %v3991, %v3989
        %v5742 = vpack.c.b16 %v3992, %v3990
        %v5743 = vpack.c.b16 %v3995, %v3993
        %v5744 = vpack.c.b16 %v3996, %v3994
        %v5745 = vpack.c.b16 %v3999, %v3997
        %v5746 = vpack.c.b16 %v4000, %v3998
        %v5747 = vpack.c.b16 %v4003, %v4001
        %v5748 = vpack.c.b16 %v4004, %v4002
        %v5749 = vpack.c.b16 %v4007, %v4005
        %v5750 = vpack.c.b16 %v4008, %v4006
        %v5751 = vpack.c.b16 %v4011, %v4009
        %v5752 = vpack.c.b16 %v4012, %v4010
        %v5753 = vpack.c.b16 %v4015, %v4013
        %v5754 = vpack.c.b16 %v4016, %v4014
        %v5755 = vpack.c.b16 %v4019, %v4017
        %v5756 = vpack.c.b16 %v4020, %v4018
        %v5757 = vpack.c.b16 %v4023, %v4021
        %v5758 = vpack.c.b16 %v4024, %v4022
        %v5759 = vpack.c.b16 %v4027, %v4025
        %v5760 = vpack.c.b16 %v4028, %v4026
        %v5761 = vpack.c.b16 %v4031, %v4029
        %v5762 = vpack.c.b16 %v4032, %v4030
        %v5763 = vpack.c.b16 %v4035, %v4033
        %v5764 = vpack.c.b16 %v4036, %v4034
        %v5765 = vpack.c.b16 %v4039, %v4037
        %v5766 = vpack.c.b16 %v4040, %v4038
        %v5767 = vpack.c.b16 %v4043, %v4041
        %v5768 = vpack.c.b16 %v4044, %v4042
        %v5769 = vpack.c.b16 %v4047, %v4045
        %v5770 = vpack.c.b16 %v4048, %v4046
        %v5771 = vpack.c.b16 %v4051, %v4049
        %v5772 = vpack.c.b16 %v4052, %v4050
        %v5773 = vpack.c.b16 %v4055, %v4053
        %v5774 = vpack.c.b16 %v4056, %v4054
        %v5775 = vpack.c.b16 %v4059, %v4057
        %v5776 = vpack.c.b16 %v4060, %v4058
        %v5777 = vpack.c.b16 %v4063, %v4061
        %v5778 = vpack.c.b16 %v4064, %v4062
        %v5779 = vpack.c.b16 %v4067, %v4065
        %v5780 = vpack.c.b16 %v4068, %v4066
        %v5781 = vpack.c.b16 %v4071, %v4069
        %v5782 = vpack.c.b16 %v4072, %v4070
        %v5783 = vpack.c.b16 %v4075, %v4073
        %v5784 = vpack.c.b16 %v4076, %v4074
        %v5785 = vpack.c.b16 %v4079, %v4077
        %v5786 = vpack.c.b16 %v4080, %v4078
        %v5787 = vpack.c.b16 %v4083, %v4081
        %v5788 = vpack.c.b16 %v4084, %v4082
        %v5789 = vpack.c.b16 %v4087, %v4085
        %v5790 = vpack.c.b16 %v4088, %v4086
        %v5791 = vpack.c.b16 %v4091, %v4089
        %v5792 = vpack.c.b16 %v4092, %v4090
        %v5793 = vpack.c.b16 %v4095, %v4093
        %v5794 = vpack.c.b16 %v4096, %v4094
        %v5795 = vpack.c.b16 %v4099, %v4097
        %v5796 = vpack.c.b16 %v4100, %v4098
        %v5797 = vpack.c.b16 %v4103, %v4101
        %v5798 = vpack.c.b16 %v4104, %v4102
        %v5799 = vpack.c.b16 %v4107, %v4105
        %v5800 = vpack.c.b16 %v4108, %v4106
        %v5801 = vpack.c.b16 %v4111, %v4109
        %v5802 = vpack.c.b16 %v4112, %v4110
        %v5803 = vpack.c.b16 %v4115, %v4113
        %v5804 = vpack.c.b16 %v4116, %v4114
        %v5805 = vpack.c.b16 %v4119, %v4117
        %v5806 = vpack.c.b16 %v4120, %v4118
        %v5807 = vpack.c.b16 %v4123, %v4121
        %v5808 = vpack.c.b16 %v4124, %v4122
        %v5809 = vpack.c.b16 %v4127, %v4125
        %v5810 = vpack.c.b16 %v4128, %v4126
        %v5811 = vpack.c.b16 %v4131, %v4129
        %v5812 = vpack.c.b16 %v4132, %v4130
        %v5813 = vpack.c.b16 %v4135, %v4133
        %v5814 = vpack.c.b16 %v4136, %v4134
        %v5815 = vpack.c.b16 %v4139, %v4137
        %v5816 = vpack.c.b16 %v4140, %v4138
        %v5817 = vpack.c.b16 %v4143, %v4141
        %v5818 = vpack.c.b16 %v4144, %v4142
        %v5819 = vpack.c.b16 %v4147, %v4145
        %v5820 = vpack.c.b16 %v4148, %v4146
        %v5821 = vpack.c.b16 %v4151, %v4149
        %v5822 = vpack.c.b16 %v4152, %v4150
        %v5823 = vpack.c.b16 %v4155, %v4153
        %v5824 = vpack.c.b16 %v4156, %v4154
        %v5825 = vpack.c.b16 %v4159, %v4157
        %v5826 = vpack.c.b16 %v4160, %v4158
        %v5827 = vpack.c.b16 %v4163, %v4161
        %v5828 = vpack.c.b16 %v4164, %v4162
        %v5829 = vpack.c.b16 %v4167, %v4165
        %v5830 = vpack.c.b16 %v4168, %v4166
        %v5831 = vpack.c.b16 %v4171, %v4169
        %v5832 = vpack.c.b16 %v4172, %v4170
        %v5833 = vpack.c.b16 %v4175, %v4173
        %v5834 = vpack.c.b16 %v4176, %v4174
        %v5835 = vpack.c.b16 %v4179, %v4177
        %v5836 = vpack.c.b16 %v4180, %v4178
        %v5837 = vpack.c.b16 %v4183, %v4181
        %v5838 = vpack.c.b16 %v4184, %v4182
        %v5839 = vpack.c.b16 %v4187, %v4185
        %v5840 = vpack.c.b16 %v4188, %v4186
        %v5841 = vpack.c.b16 %v4191, %v4189
        %v5842 = vpack.c.b16 %v4192, %v4190
        %v5843 = vpack.c.b16 %v4195, %v4193
        %v5844 = vpack.c.b16 %v4196, %v4194
        %v5845 = vpack.c.b16 %v4199, %v4197
        %v5846 = vpack.c.b16 %v4200, %v4198
        %v5847 = vpack.c.b16 %v4203, %v4201
        %v5848 = vpack.c.b16 %v4204, %v4202
        %v5849 = vpack.c.b16 %v4207, %v4205
        %v5850 = vpack.c.b16 %v4208, %v4206
        %v5851 = vpack.c.b16 %v4211, %v4209
        %v5852 = vpack.c.b16 %v4212, %v4210
        %v5853 = vpack.c.b16 %v4215, %v4213
        %v5854 = vpack.c.b16 %v4216, %v4214
        %v5855 = vpack.c.b16 %v4219, %v4217
        %v5856 = vpack.c.b16 %v4220, %v4218
        %v5857 = vpack.c.b16 %v4223, %v4221
        %v5858 = vpack.c.b16 %v4224, %v4222
        %v5859 = vpack.c.b16 %v4227, %v4225
        %v5860 = vpack.c.b16 %v4228, %v4226
        %v5861 = vpack.c.b16 %v4231, %v4229
        %v5862 = vpack.c.b16 %v4232, %v4230
        %v5863 = vpack.c.b16 %v4235, %v4233
        %v5864 = vpack.c.b16 %v4236, %v4234
        %v5865 = vpack.c.b16 %v4239, %v4237
        %v5866 = vpack.c.b16 %v4240, %v4238
        %v5867 = vpack.c.b16 %v4243, %v4241
        %v5868 = vpack.c.b16 %v4244, %v4242
        %v5869 = vpack.c.b16 %v4247, %v4245
        %v5870 = vpack.c.b16 %v4248, %v4246
        %v5871 = vpack.c.b16 %v4251, %v4249
        %v5872 = vpack.c.b16 %v4252, %v4250
        %v5873 = vpack.c.b16 %v4255, %v4253
        %v5874 = vpack.c.b16 %v4256, %v4254
        %v5875 = vpack.c.b16 %v4259, %v4257
        %v5876 = vpack.c.b16 %v4260, %v4258
        %v5877 = vpack.c.b16 %v4263, %v4261
        %v5878 = vpack.c.b16 %v4264, %v4262
        %v5879 = vpack.c.b16 %v4267, %v4265
        %v5880 = vpack.c.b16 %v4268, %v4266
        %v5881 = vpack.c.b16 %v4271, %v4269
        %v5882 = vpack.c.b16 %v4272, %v4270
        %v5883 = vpack.c.b16 %v4275, %v4273
        %v5884 = vpack.c.b16 %v4276, %v4274
        %v5885 = vpack.c.b16 %v4279, %v4277
        %v5886 = vpack.c.b16 %v4280, %v4278
        %v5887 = vpack.c.b16 %v4283, %v4281
        %v5888 = vpack.c.b16 %v4284, %v4282
        %v5889 = vpack.c.b16 %v4287, %v4285
        %v5890 = vpack.c.b16 %v4288, %v4286
        %v5891 = vpack.c.b16 %v4291, %v4289
        %v5892 = vpack.c.b16 %v4292, %v4290
        %v5893 = vpack.c.b16 %v4295, %v4293
        %v5894 = vpack.c.b16 %v4296, %v4294
        %v5895 = vpack.c.b16 %v4299, %v4297
        %v5896 = vpack.c.b16 %v4300, %v4298
        %v5897 = vpack.c.b16 %v4303, %v4301
        %v5898 = vpack.c.b16 %v4304, %v4302
        %v5899 = vpack.c.b16 %v4307, %v4305
        %v5900 = vpack.c.b16 %v4308, %v4306
        %v5901 = vpack.c.b16 %v4311, %v4309
        %v5902 = vpack.c.b16 %v4312, %v4310
        %v5903 = vpack.c.b16 %v4315, %v4313
        %v5904 = vpack.c.b16 %v4316, %v4314
        %v5905 = vpack.c.b16 %v4319, %v4317
        %v5906 = vpack.c.b16 %v4320, %v4318
        %v5907 = vpack.c.b16 %v4323, %v4321
        %v5908 = vpack.c.b16 %v4324, %v4322
        %v5909 = vpack.c.b16 %v4327, %v4325
        %v5910 = vpack.c.b16 %v4328, %v4326
        %v5911 = vpack.c.b16 %v4331, %v4329
        %v5912 = vpack.c.b16 %v4332, %v4330
        %v5913 = vpack.c.b16 %v4335, %v4333
        %v5914 = vpack.c.b16 %v4336, %v4334
        %v5915 = vpack.c.b16 %v4339, %v4337
        %v5916 = vpack.c.b16 %v4340, %v4338
        %v5917 = vpack.c.b16 %v4343, %v4341
        %v5918 = vpack.c.b16 %v4344, %v4342
        %v5919 = vpack.c.b16 %v4347, %v4345
        %v5920 = vpack.c.b16 %v4348, %v4346
        %v5921 = vpack.c.b16 %v4351, %v4349
        %v5922 = vpack.c.b16 %v4352, %v4350
        %v5923 = vpack.c.b16 %v4355, %v4353
        %v5924 = vpack.c.b16 %v4356, %v4354
        %v5925 = vpack.c.b16 %v4359, %v4357
        %v5926 = vpack.c.b16 %v4360, %v4358
        %v5927 = vpack.c.b16 %v4363, %v4361
        %v5928 = vpack.c.b16 %v4364, %v4362
        %v5929 = vpack.c.b16 %v4367, %v4365
        %v5930 = vpack.c.b16 %v4368, %v4366
        %v5931 = vpack.c.b16 %v4371, %v4369
        %v5932 = vpack.c.b16 %v4372, %v4370
        %v5933 = vpack.c.b16 %v4375, %v4373
        %v5934 = vpack.c.b16 %v4376, %v4374
        %v5935 = vpack.c.b16 %v4379, %v4377
        %v5936 = vpack.c.b16 %v4380, %v4378
        %v5937 = vpack.c.b16 %v4383, %v4381
        %v5938 = vpack.c.b16 %v4384, %v4382
        %v5939 = vpack.c.b16 %v4387, %v4385
        %v5940 = vpack.c.b16 %v4388, %v4386
        %v5941 = vpack.c.b16 %v4391, %v4389
        %v5942 = vpack.c.b16 %v4392, %v4390
        %v5943 = vpack.c.b16 %v4395, %v4393
        %v5944 = vpack.c.b16 %v4396, %v4394
        %v5945 = vpack.c.b16 %v4399, %v4397
        %v5946 = vpack.c.b16 %v4400, %v4398
        %v5947 = vpack.c.b16 %v4403, %v4401
        %v5948 = vpack.c.b16 %v4404, %v4402
        %v5949 = vpack.c.b16 %v4407, %v4405
        %v5950 = vpack.c.b16 %v4408, %v4406
        %v5951 = vpack.c.b16 %v4411, %v4409
        %v5952 = vpack.c.b16 %v4412, %v4410
        %v5953 = vpack.c.b16 %v4415, %v4413
        %v5954 = vpack.c.b16 %v4416, %v4414
        %v5955 = vpack.c.b16 %v4419, %v4417
        %v5956 = vpack.c.b16 %v4420, %v4418
        %v5957 = vpack.c.b16 %v4423, %v4421
        %v5958 = vpack.c.b16 %v4424, %v4422
        %v5959 = vpack.c.b16 %v4427, %v4425
        %v5960 = vpack.c.b16 %v4428, %v4426
        %v5961 = vpack.c.b16 %v4431, %v4429
        %v5962 = vpack.c.b16 %v4432, %v4430
        %v5963 = vpack.c.b16 %v4435, %v4433
        %v5964 = vpack.c.b16 %v4436, %v4434
        %v5965 = vpack.c.b16 %v4439, %v4437
        %v5966 = vpack.c.b16 %v4440, %v4438
        %v5967 = vpack.c.b16 %v4443, %v4441
        %v5968 = vpack.c.b16 %v4444, %v4442
        %v5969 = vpack.c.b16 %v4447, %v4445
        %v5970 = vpack.c.b16 %v4448, %v4446
        %v5971 = vpack.c.b16 %v4451, %v4449
        %v5972 = vpack.c.b16 %v4452, %v4450
        %v5973 = vpack.c.b16 %v4455, %v4453
        %v5974 = vpack.c.b16 %v4456, %v4454
        %v5975 = vpack.c.b16 %v4459, %v4457
        %v5976 = vpack.c.b16 %v4460, %v4458
        %v5977 = vpack.c.b16 %v4463, %v4461
        %v5978 = vpack.c.b16 %v4464, %v4462
        %v5979 = vpack.c.b16 %v4467, %v4465
        %v5980 = vpack.c.b16 %v4468, %v4466
        %v5981 = vpack.c.b16 %v4471, %v4469
        %v5982 = vpack.c.b16 %v4472, %v4470
        %v5983 = vpack.c.b16 %v4475, %v4473
        %v5984 = vpack.c.b16 %v4476, %v4474
        %v5985 = vpack.c.b16 %v4479, %v4477
        %v5986 = vpack.c.b16 %v4480, %v4478
        %v5987 = vpack.c.b16 %v4483, %v4481
        %v5988 = vpack.c.b16 %v4484, %v4482
        %v5989 = vpack.c.b16 %v4487, %v4485
        %v5990 = vpack.c.b16 %v4488, %v4486
        %v5991 = vpack.c.b16 %v4491, %v4489
        %v5992 = vpack.c.b16 %v4492, %v4490
        %v5993 = vpack.c.b16 %v4495, %v4493
        %v5994 = vpack.c.b16 %v4496, %v4494
        %v5995 = vpack.c.b16 %v4499, %v4497
        %v5996 = vpack.c.b16 %v4500, %v4498
        %v5997 = vpack.c.b16 %v4503, %v4501
        %v5998 = vpack.c.b16 %v4504, %v4502
        %v5999 = vpack.c.b16 %v4507, %v4505
        %v6000 = vpack.c.b16 %v4508, %v4506
        %v6001 = vpack.c.b16 %v4511, %v4509
        %v6002 = vpack.c.b16 %v4512, %v4510
        %v6003 = vpack.c.b16 %v4515, %v4513
        %v6004 = vpack.c.b16 %v4516, %v4514
        %v6005 = vpack.c.b16 %v4519, %v4517
        %v6006 = vpack.c.b16 %v4520, %v4518
        %v6007 = vpack.c.b16 %v4523, %v4521
        %v6008 = vpack.c.b16 %v4524, %v4522
        %v6009 = vpack.c.b16 %v4527, %v4525
        %v6010 = vpack.c.b16 %v4528, %v4526
        %v6011 = vpack.c.b16 %v4531, %v4529
        %v6012 = vpack.c.b16 %v4532, %v4530
        %v6013 = vpack.c.b16 %v4535, %v4533
        %v6014 = vpack.c.b16 %v4536, %v4534
        %v6015 = vpack.c.b16 %v4539, %v4537
        %v6016 = vpack.c.b16 %v4540, %v4538
        %v6017 = vpack.c.b16 %v4543, %v4541
        %v6018 = vpack.c.b16 %v4544, %v4542
        %v6019 = vpack.c.b16 %v4547, %v4545
        %v6020 = vpack.c.b16 %v4548, %v4546
        %v6021 = vpack.c.b16 %v4551, %v4549
        %v6022 = vpack.c.b16 %v4552, %v4550
        %v6023 = vpack.c.b16 %v4555, %v4553
        %v6024 = vpack.c.b16 %v4556, %v4554
        %v6025 = vpack.c.b16 %v4559, %v4557
        %v6026 = vpack.c.b16 %v4560, %v4558
        %v6027 = vpack.c.b16 %v4563, %v4561
        %v6028 = vpack.c.b16 %v4564, %v4562
        %v6029 = vpack.c.b16 %v4567, %v4565
        %v6030 = vpack.c.b16 %v4568, %v4566
        %v6031 = vpack.c.b16 %v4571, %v4569
        %v6032 = vpack.c.b16 %v4572, %v4570
        %v6033 = vpack.c.b16 %v4575, %v4573
        %v6034 = vpack.c.b16 %v4576, %v4574
        %v6035 = vpack.c.b16 %v4579, %v4577
        %v6036 = vpack.c.b16 %v4580, %v4578
        %v6037 = vpack.c.b16 %v4583, %v4581
        %v6038 = vpack.c.b16 %v4584, %v4582
        %v6039 = vpack.c.b16 %v4587, %v4585
        %v6040 = vpack.c.b16 %v4588, %v4586
        %v6041 = vpack.c.b16 %v4591, %v4589
        %v6042 = vpack.c.b16 %v4592, %v4590
        %v6043 = vpack.c.b16 %v4595, %v4593
        %v6044 = vpack.c.b16 %v4596, %v4594
        %v6045 = vpack.c.b16 %v4599, %v4597
        %v6046 = vpack.c.b16 %v4600, %v4598
        %v6047 = vpack.c.b16 %v4603, %v4601
        %v6048 = vpack.c.b16 %v4604, %v4602
        %v6049 = vpack.c.b16 %v4607, %v4605
        %v6050 = vpack.c.b16 %v4608, %v4606
        %v6051 = vpack.c.b16 %v4611, %v4609
        %v6052 = vpack.c.b16 %v4612, %v4610
        %v6053 = vpack.c.b16 %v4615, %v4613
        %v6054 = vpack.c.b16 %v4616, %v4614
        %v6055 = vpack.c.b16 %v4619, %v4617
        %v6056 = vpack.c.b16 %v4620, %v4618
        %v6057 = vpack.c.b16 %v4623, %v4621
        %v6058 = vpack.c.b16 %v4624, %v4622
        %v6059 = vpack.c.b16 %v4627, %v4625
        %v6060 = vpack.c.b16 %v4628, %v4626
        %v6061 = vpack.c.b16 %v4631, %v4629
        %v6062 = vpack.c.b16 %v4632, %v4630
        %v6063 = vpack.c.b16 %v4635, %v4633
        %v6064 = vpack.c.b16 %v4636, %v4634
        %v6065 = vpack.c.b16 %v4639, %v4637
        %v6066 = vpack.c.b16 %v4640, %v4638
        %v6067 = vpack.c.b16 %v4643, %v4641
        %v6068 = vpack.c.b16 %v4644, %v4642
        %v6069 = vpack.c.b16 %v4647, %v4645
        %v6070 = vpack.c.b16 %v4648, %v4646
        %v6071 = vpack.c.b16 %v4651, %v4649
        %v6072 = vpack.c.b16 %v4652, %v4650
        %v6073 = vpack.c.b16 %v4655, %v4653
        %v6074 = vpack.c.b16 %v4656, %v4654
        %v6075 = vpack.c.b16 %v4659, %v4657
        %v6076 = vpack.c.b16 %v4660, %v4658
        %v6077 = vpack.c.b16 %v4663, %v4661
        %v6078 = vpack.c.b16 %v4664, %v4662
        %v6079 = vpack.c.b16 %v4667, %v4665
        %v6080 = vpack.c.b16 %v4668, %v4666
        %v6081 = vpack.c.b16 %v4671, %v4669
        %v6082 = vpack.c.b16 %v4672, %v4670
        %v6083 = vpack.c.b16 %v4675, %v4673
        %v6084 = vpack.c.b16 %v4676, %v4674
        %v6085 = vpack.c.b16 %v4679, %v4677
        %v6086 = vpack.c.b16 %v4680, %v4678
        %v6087 = vpack.c.b16 %v4683, %v4681
        %v6088 = vpack.c.b16 %v4684, %v4682
        %v6089 = vpack.c.b16 %v4687, %v4685
        %v6090 = vpack.c.b16 %v4688, %v4686
        %v6091 = vpack.c.b16 %v4691, %v4689
        %v6092 = vpack.c.b16 %v4692, %v4690
        %v6093 = vpack.c.b16 %v4695, %v4693
        %v6094 = vpack.c.b16 %v4696, %v4694
        %v6095 = vpack.c.b16 %v4699, %v4697
        %v6096 = vpack.c.b16 %v4700, %v4698
        %v6097 = vpack.c.b16 %v4703, %v4701
        %v6098 = vpack.c.b16 %v4704, %v4702
        %v6099 = vpack.c.b16 %v4707, %v4705
        %v6100 = vpack.c.b16 %v4708, %v4706
        %v6101 = vpack.c.b16 %v4711, %v4709
        %v6102 = vpack.c.b16 %v4712, %v4710
        %v6103 = vpack.c.b16 %v4715, %v4713
        %v6104 = vpack.c.b16 %v4716, %v4714
        %v6105 = vpack.c.b16 %v4719, %v4717
        %v6106 = vpack.c.b16 %v4720, %v4718
        %v6107 = vpack.c.b16 %v4723, %v4721
        %v6108 = vpack.c.b16 %v4724, %v4722
        %v6109 = vpack.c.b16 %v4727, %v4725
        %v6110 = vpack.c.b16 %v4728, %v4726
        %v6111 = vpack.c.b16 %v4731, %v4729
        %v6112 = vpack.c.b16 %v4732, %v4730
        %v6113 = vpack.c.b16 %v4735, %v4733
        %v6114 = vpack.c.b16 %v4736, %v4734
        %v6115 = vpack.c.b16 %v4739, %v4737
        %v6116 = vpack.c.b16 %v4740, %v4738
        %v6117 = vpack.c.b16 %v4743, %v4741
        %v6118 = vpack.c.b16 %v4744, %v4742
        %v6119 = vpack.c.b16 %v4747, %v4745
        %v6120 = vpack.c.b16 %v4748, %v4746
        %v6121 = vpack.c.b16 %v4751, %v4749
        %v6122 = vpack.c.b16 %v4752, %v4750
        %v6123 = vpack.c.b16 %v4755, %v4753
        %v6124 = vpack.c.b16 %v4756, %v4754
        %v6125 = vpack.c.b16 %v4759, %v4757
        %v6126 = vpack.c.b16 %v4760, %v4758
        %v6127 = vpack.c.b16 %v4763, %v4761
        %v6128 = vpack.c.b16 %v4764, %v4762
        %v6129 = vpack.c.b16 %v4767, %v4765
        %v6130 = vpack.c.b16 %v4768, %v4766
        %v6131 = vpack.c.b16 %v4771, %v4769
        %v6132 = vpack.c.b16 %v4772, %v4770
        %v6133 = vpack.c.b16 %v4775, %v4773
        %v6134 = vpack.c.b16 %v4776, %v4774
        %v6135 = vpack.c.b16 %v4779, %v4777
        %v6136 = vpack.c.b16 %v4780, %v4778
        %v6137 = vpack.c.b16 %v4783, %v4781
        %v6138 = vpack.c.b16 %v4784, %v4782
        %v6139 = vpack.c.b16 %v4787, %v4785
        %v6140 = vpack.c.b16 %v4788, %v4786
        %v6141 = vpack.c.b16 %v4791, %v4789
        %v6142 = vpack.c.b16 %v4792, %v4790
        %v6143 = vpack.c.b16 %v4795, %v4793
        %v6144 = vpack.c.b16 %v4796, %v4794
        %v6145 = vpack.c.b16 %v4799, %v4797
        %v6146 = vpack.c.b16 %v4800, %v4798
        %v6147 = vpack.c.b16 %v4803, %v4801
        %v6148 = vpack.c.b16 %v4804, %v4802
        %v6149 = vpack.c.b16 %v4807, %v4805
        %v6150 = vpack.c.b16 %v4808, %v4806
        %v6151 = vpack.c.b16 %v4811, %v4809
        %v6152 = vpack.c.b16 %v4812, %v4810
        %v6153 = vpack.c.b16 %v4815, %v4813
        %v6154 = vpack.c.b16 %v4816, %v4814
        %v6155 = vpack.c.b16 %v4819, %v4817
        %v6156 = vpack.c.b16 %v4820, %v4818
        %v6157 = vpack.c.b16 %v4823, %v4821
        %v6158 = vpack.c.b16 %v4824, %v4822
        %v6159 = vpack.c.b16 %v4827, %v4825
        %v6160 = vpack.c.b16 %v4828, %v4826
        %v6161 = vpack.c.b16 %v4831, %v4829
        %v6162 = vpack.c.b16 %v4832, %v4830
        %v6163 = vpack.c.b16 %v4835, %v4833
        %v6164 = vpack.c.b16 %v4836, %v4834
        %v6165 = vpack.c.b16 %v4839, %v4837
        %v6166 = vpack.c.b16 %v4840, %v4838
        %v6167 = vpack.c.b16 %v4843, %v4841
        %v6168 = vpack.c.b16 %v4844, %v4842
        %v6169 = vpack.c.b16 %v4847, %v4845
        %v6170 = vpack.c.b16 %v4848, %v4846
        %v6171 = vpack.c.b16 %v4851, %v4849
        %v6172 = vpack.c.b16 %v4852, %v4850
        %v6173 = vpack.c.b16 %v4855, %v4853
        %v6174 = vpack.c.b16 %v4856, %v4854
        %v6175 = vpack.c.b16 %v4859, %v4857
        %v6176 = vpack.c.b16 %v4860, %v4858
        %v6177 = vpack.c.b16 %v4863, %v4861
        %v6178 = vpack.c.b16 %v4864, %v4862
        %v6179 = vpack.c.b16 %v4867, %v4865
        %v6180 = vpack.c.b16 %v4868, %v4866
        %v6181 = vpack.c.b16 %v4871, %v4869
        %v6182 = vpack.c.b16 %v4872, %v4870
        %v6183 = vpack.c.b16 %v4875, %v4873
        %v6184 = vpack.c.b16 %v4876, %v4874
        %v6185 = vpack.c.b16 %v4879, %v4877
        %v6186 = vpack.c.b16 %v4880, %v4878
        %v6187 = vpack.c.b16 %v4883, %v4881
        %v6188 = vpack.c.b16 %v4884, %v4882
        %v6189 = vpack.c.b16 %v4887, %v4885
        %v6190 = vpack.c.b16 %v4888, %v4886
        %v6191 = vpack.c.b16 %v4891, %v4889
        %v6192 = vpack.c.b16 %v4892, %v4890
        %v6193 = vpack.c.b16 %v4895, %v4893
        %v6194 = vpack.c.b16 %v4896, %v4894
        %v6195 = vpack.c.b16 %v4899, %v4897
        %v6196 = vpack.c.b16 %v4900, %v4898
        %v6197 = vpack.c.b16 %v4903, %v4901
        %v6198 = vpack.c.b16 %v4904, %v4902
        %v6199 = vpack.c.b16 %v4907, %v4905
        %v6200 = vpack.c.b16 %v4908, %v4906
        %v6201 = vpack.c.b16 %v4911, %v4909
        %v6202 = vpack.c.b16 %v4912, %v4910
        %v6203 = vpack.c.b16 %v4915, %v4913
        %v6204 = vpack.c.b16 %v4916, %v4914
        %v6205 = vpack.c.b16 %v4919, %v4917
        %v6206 = vpack.c.b16 %v4920, %v4918
        %v6207 = vpack.c.b16 %v4923, %v4921
        %v6208 = vpack.c.b16 %v4924, %v4922
        %v6209 = vpack.c.b16 %v4927, %v4925
        %v6210 = vpack.c.b16 %v4928, %v4926
        %v6211 = vpack.c.b16 %v4931, %v4929
        %v6212 = vpack.c.b16 %v4932, %v4930
        %v6213 = vpack.c.b16 %v4935, %v4933
        %v6214 = vpack.c.b16 %v4936, %v4934
        %v6215 = vpack.c.b16 %v4939, %v4937
        %v6216 = vpack.c.b16 %v4940, %v4938
        %v6217 = vpack.c.b16 %v4943, %v4941
        %v6218 = vpack.c.b16 %v4944, %v4942
        %v6219 = vpack.c.b16 %v4947, %v4945
        %v6220 = vpack.c.b16 %v4948, %v4946
        %v6221 = vpack.c.b16 %v4951, %v4949
        %v6222 = vpack.c.b16 %v4952, %v4950
        %v6223 = vpack.c.b16 %v4955, %v4953
        %v6224 = vpack.c.b16 %v4956, %v4954
        %v6225 = vpack.c.b16 %v4959, %v4957
        %v6226 = vpack.c.b16 %v4960, %v4958
        %v6227 = vpack.c.b16 %v4963, %v4961
        %v6228 = vpack.c.b16 %v4964, %v4962
        %v6229 = vpack.c.b16 %v4967, %v4965
        %v6230 = vpack.c.b16 %v4968, %v4966
        %v6231 = vpack.c.b16 %v4971, %v4969
        %v6232 = vpack.c.b16 %v4972, %v4970
        %v6233 = vpack.c.b16 %v4975, %v4973
        %v6234 = vpack.c.b16 %v4976, %v4974
        %v6235 = vpack.c.b16 %v4979, %v4977
        %v6236 = vpack.c.b16 %v4980, %v4978
        %v6237 = vpack.c.b16 %v4983, %v4981
        %v6238 = vpack.c.b16 %v4984, %v4982
        %v6239 = vpack.c.b16 %v4987, %v4985
        %v6240 = vpack.c.b16 %v4988, %v4986
        %v6241 = vpack.c.b16 %v4991, %v4989
        %v6242 = vpack.c.b16 %v4992, %v4990
        %v6243 = vpack.c.b16 %v4995, %v4993
        %v6244 = vpack.c.b16 %v4996, %v4994
        %v6245 = vpack.c.b16 %v4999, %v4997
        %v6246 = vpack.c.b16 %v5000, %v4998
        %v6247 = vpack.c.b16 %v5003, %v5001
        %v6248 = vpack.c.b16 %v5004, %v5002
        %v6249 = vpack.c.b16 %v5007, %v5005
        %v6250 = vpack.c.b16 %v5008, %v5006
        %v6251 = vpack.c.b16 %v5011, %v5009
        %v6252 = vpack.c.b16 %v5012, %v5010
        %v6253 = vpack.c.b16 %v5015, %v5013
        %v6254 = vpack.c.b16 %v5016, %v5014
        %v6255 = vpack.c.b16 %v5019, %v5017
        %v6256 = vpack.c.b16 %v5020, %v5018
        %v6257 = vpack.c.b16 %v5023, %v5021
        %v6258 = vpack.c.b16 %v5024, %v5022
        %v6259 = vpack.c.b16 %v5027, %v5025
        %v6260 = vpack.c.b16 %v5028, %v5026
        %v6261 = vpack.c.b16 %v5031, %v5029
        %v6262 = vpack.c.b16 %v5032, %v5030
        %v6263 = vpack.c.b16 %v5035, %v5033
        %v6264 = vpack.c.b16 %v5036, %v5034
        %v6265 = vpack.c.b16 %v5039, %v5037
        %v6266 = vpack.c.b16 %v5040, %v5038
        %v6267 = vpack.c.b16 %v5043, %v5041
        %v6268 = vpack.c.b16 %v5044, %v5042
        %v6269 = vpack.c.b16 %v5047, %v5045
        %v6270 = vpack.c.b16 %v5048, %v5046
        %v6271 = vpack.c.b16 %v5051, %v5049
        %v6272 = vpack.c.b16 %v5052, %v5050
        %v6273 = vpack.c.b16 %v5055, %v5053
        %v6274 = vpack.c.b16 %v5056, %v5054
        %v6275 = vpack.c.b16 %v5059, %v5057
        %v6276 = vpack.c.b16 %v5060, %v5058
        %v6277 = vpack.c.b16 %v5063, %v5061
        %v6278 = vpack.c.b16 %v5064, %v5062
        %v6279 = vpack.c.b16 %v5067, %v5065
        %v6280 = vpack.c.b16 %v5068, %v5066
        %v6281 = vpack.c.b16 %v5071, %v5069
        %v6282 = vpack.c.b16 %v5072, %v5070
        %v6283 = vpack.c.b16 %v5075, %v5073
        %v6284 = vpack.c.b16 %v5076, %v5074
        %v6285 = vpack.c.b16 %v5079, %v5077
        %v6286 = vpack.c.b16 %v5080, %v5078
        %v6287 = vpack.c.b16 %v5083, %v5081
        %v6288 = vpack.c.b16 %v5084, %v5082
        %v6289 = vpack.c.b16 %v5087, %v5085
        %v6290 = vpack.c.b16 %v5088, %v5086
        %v6291 = vpack.c.b16 %v5091, %v5089
        %v6292 = vpack.c.b16 %v5092, %v5090
        %v6293 = vpack.c.b16 %v5095, %v5093
        %v6294 = vpack.c.b16 %v5096, %v5094
        %v6295 = vpack.c.b16 %v5099, %v5097
        %v6296 = vpack.c.b16 %v5100, %v5098
        %v6297 = vpack.c.b16 %v5103, %v5101
        %v6298 = vpack.c.b16 %v5104, %v5102
        %v6299 = vpack.c.b16 %v5107, %v5105
        %v6300 = vpack.c.b16 %v5108, %v5106
        %v6301 = vpack.c.b16 %v5111, %v5109
        %v6302 = vpack.c.b16 %v5112, %v5110
        %v6303 = vpack.c.b16 %v5115, %v5113
        %v6304 = vpack.c.b16 %v5116, %v5114
        %v6305 = vpack.c.b16 %v5119, %v5117
        %v6306 = vpack.c.b16 %v5120, %v5118
        %v6307 = vpack.c.b16 %v5123, %v5121
        %v6308 = vpack.c.b16 %v5124, %v5122
        %v6309 = vpack.c.b16 %v5127, %v5125
        %v6310 = vpack.c.b16 %v5128, %v5126
        %v6311 = vpack.c.b16 %v5131, %v5129
        %v6312 = vpack.c.b16 %v5132, %v5130
        %v6313 = vpack.c.b16 %v5135, %v5133
        %v6314 = vpack.c.b16 %v5136, %v5134
        %v6315 = vpack.c.b16 %v5139, %v5137
        %v6316 = vpack.c.b16 %v5140, %v5138
        %v6317 = vpack.c.b16 %v5143, %v5141
        %v6318 = vpack.c.b16 %v5144, %v5142
        %v6319 = vpack.c.b16 %v5147, %v5145
        %v6320 = vpack.c.b16 %v5148, %v5146
        %v6321 = vpack.c.b16 %v5151, %v5149
        %v6322 = vpack.c.b16 %v5152, %v5150
        %v6323 = vpack.c.b16 %v5155, %v5153
        %v6324 = vpack.c.b16 %v5156, %v5154
        %v6325 = vpack.c.b16 %v5159, %v5157
        %v6326 = vpack.c.b16 %v5160, %v5158
        %v6327 = vpack.c.b16 %v5163, %v5161
        %v6328 = vpack.c.b16 %v5164, %v5162
        %v6329 = vpack.c.b16 %v5167, %v5165
        %v6330 = vpack.c.b16 %v5168, %v5166
        %v6331 = vpack.c.b16 %v5171, %v5169
        %v6332 = vpack.c.b16 %v5172, %v5170
        %v6333 = vpack.c.b16 %v5175, %v5173
        %v6334 = vpack.c.b16 %v5176, %v5174
        %v6335 = vpack.c.b16 %v5179, %v5177
        %v6336 = vpack.c.b16 %v5180, %v5178
        %v6337 = vpack.c.b16 %v5183, %v5181
        %v6338 = vpack.c.b16 %v5184, %v5182
        %v6339 = vpack.c.b16 %v5187, %v5185
        %v6340 = vpack.c.b16 %v5188, %v5186
        %7493 = vmatpush.bf16.msra.mxu0 %v5203
        %7494 = vmatpush.bf16.msra.mxu0 %v5201
        %7495 = vmatpush.bf16.msra.mxu0 %v5199
        %7496 = vmatpush.bf16.msra.mxu0 %v5197
        %7497 = vmatpush.bf16.msra.mxu0 %v5195
        %7498 = vmatpush.bf16.msra.mxu0 %v5193
        %7499 = vmatpush.bf16.msra.mxu0 %v5191
        %7500 = vmatpush.bf16.msra.mxu0 %v5189
        %7501 = vmatmul.bf16.gmra.mxu0 %v509
        %v7502 = vpop.f32.mrf.mxu0
        %v7503 = vadd.f32 0.0, %v7502
        %v7504 = vpop.f32.mrf.mxu0
        %7505 = vdwg.mxu0
        %7506 = vmatpush.bf16.msra.mxu0 %v5219
        %7507 = vmatpush.bf16.msra.mxu0 %v5217
        %7508 = vmatpush.bf16.msra.mxu0 %v5215
        %7509 = vmatpush.bf16.msra.mxu0 %v5213
        %7510 = vmatpush.bf16.msra.mxu0 %v5211
        %7511 = vmatpush.bf16.msra.mxu0 %v5209
        %7512 = vmatpush.bf16.msra.mxu0 %v5207
        %7513 = vmatpush.bf16.msra.mxu0 %v5205
        %7514 = vmatmul.bf16.gmra.mxu0 %v510
        %v7515 = vpop.f32.mrf.mxu0
        %v7516 = vadd.f32 %v7503, %v7515
        %v7517 = vpop.f32.mrf.mxu0
        %7518 = vdwg.mxu0
        %7519 = vmatpush.bf16.msra.mxu0 %v5235
        %7520 = vmatpush.bf16.msra.mxu0 %v5233
        %7521 = vmatpush.bf16.msra.mxu0 %v5231
        %7522 = vmatpush.bf16.msra.mxu0 %v5229
        %7523 = vmatpush.bf16.msra.mxu0 %v5227
        %7524 = vmatpush.bf16.msra.mxu0 %v5225
        %7525 = vmatpush.bf16.msra.mxu0 %v5223
        %7526 = vmatpush.bf16.msra.mxu0 %v5221
        %7527 = vmatmul.bf16.gmra.mxu0 %v511
        %v7528 = vpop.f32.mrf.mxu0
        %v7529 = vadd.f32 %v7516, %v7528
        %v7530 = vpop.f32.mrf.mxu0
        %7531 = vdwg.mxu0
        %7532 = vmatpush.bf16.msra.mxu0 %v5251
        %7533 = vmatpush.bf16.msra.mxu0 %v5249
        %7534 = vmatpush.bf16.msra.mxu0 %v5247
        %7535 = vmatpush.bf16.msra.mxu0 %v5245
        %7536 = vmatpush.bf16.msra.mxu0 %v5243
        %7537 = vmatpush.bf16.msra.mxu0 %v5241
        %7538 = vmatpush.bf16.msra.mxu0 %v5239
        %7539 = vmatpush.bf16.msra.mxu0 %v5237
        %7540 = vmatmul.bf16.gmra.mxu0 %v512
        %v7541 = vpop.f32.mrf.mxu0
        %v7542 = vadd.f32 %v7529, %v7541
        %v7543 = vpop.f32.mrf.mxu0
        %7544 = vdwg.mxu0
        %7545 = vmatpush.bf16.msra.mxu0 %v5267
        %7546 = vmatpush.bf16.msra.mxu0 %v5265
        %7547 = vmatpush.bf16.msra.mxu0 %v5263
        %7548 = vmatpush.bf16.msra.mxu0 %v5261
        %7549 = vmatpush.bf16.msra.mxu0 %v5259
        %7550 = vmatpush.bf16.msra.mxu0 %v5257
        %7551 = vmatpush.bf16.msra.mxu0 %v5255
        %7552 = vmatpush.bf16.msra.mxu0 %v5253
        %7553 = vmatmul.bf16.gmra.mxu0 %v513
        %v7554 = vpop.f32.mrf.mxu0
        %v7555 = vadd.f32 %v7542, %v7554
        %v7556 = vpop.f32.mrf.mxu0
        %7557 = vdwg.mxu0
        %7558 = vmatpush.bf16.msra.mxu0 %v5283
        %7559 = vmatpush.bf16.msra.mxu0 %v5281
        %7560 = vmatpush.bf16.msra.mxu0 %v5279
        %7561 = vmatpush.bf16.msra.mxu0 %v5277
        %7562 = vmatpush.bf16.msra.mxu0 %v5275
        %7563 = vmatpush.bf16.msra.mxu0 %v5273
        %7564 = vmatpush.bf16.msra.mxu0 %v5271
        %7565 = vmatpush.bf16.msra.mxu0 %v5269
        %7566 = vmatmul.bf16.gmra.mxu0 %v514
        %v7567 = vpop.f32.mrf.mxu0
        %v7568 = vadd.f32 %v7555, %v7567
        %v7569 = vpop.f32.mrf.mxu0
        %7570 = vdwg.mxu0
        %7571 = vmatpush.bf16.msra.mxu0 %v5299
        %7572 = vmatpush.bf16.msra.mxu0 %v5297
        %7573 = vmatpush.bf16.msra.mxu0 %v5295
        %7574 = vmatpush.bf16.msra.mxu0 %v5293
        %7575 = vmatpush.bf16.msra.mxu0 %v5291
        %7576 = vmatpush.bf16.msra.mxu0 %v5289
        %7577 = vmatpush.bf16.msra.mxu0 %v5287
        %7578 = vmatpush.bf16.msra.mxu0 %v5285
        %7579 = vmatmul.bf16.gmra.mxu0 %v515
        %v7580 = vpop.f32.mrf.mxu0
        %v7581 = vadd.f32 %v7568, %v7580
        %v7582 = vpop.f32.mrf.mxu0
        %7583 = vdwg.mxu0
        %7584 = vmatpush.bf16.msra.mxu0 %v5315
        %7585 = vmatpush.bf16.msra.mxu0 %v5313
        %7586 = vmatpush.bf16.msra.mxu0 %v5311
        %7587 = vmatpush.bf16.msra.mxu0 %v5309
        %7588 = vmatpush.bf16.msra.mxu0 %v5307
        %7589 = vmatpush.bf16.msra.mxu0 %v5305
        %7590 = vmatpush.bf16.msra.mxu0 %v5303
        %7591 = vmatpush.bf16.msra.mxu0 %v5301
        %7592 = vmatmul.bf16.gmra.mxu0 %v516
        %v7593 = vpop.f32.mrf.mxu0
        %v7594 = vadd.f32 %v7581, %v7593
        %v7595 = vpop.f32.mrf.mxu0
        %7596 = vdwg.mxu0
        %7597 = vmatpush.bf16.msra.mxu0 %v5331
        %7598 = vmatpush.bf16.msra.mxu0 %v5329
        %7599 = vmatpush.bf16.msra.mxu0 %v5327
        %7600 = vmatpush.bf16.msra.mxu0 %v5325
        %7601 = vmatpush.bf16.msra.mxu0 %v5323
        %7602 = vmatpush.bf16.msra.mxu0 %v5321
        %7603 = vmatpush.bf16.msra.mxu0 %v5319
        %7604 = vmatpush.bf16.msra.mxu0 %v5317
        %7605 = vmatmul.bf16.gmra.mxu0 %v517
        %v7606 = vpop.f32.mrf.mxu0
        %v7607 = vadd.f32 %v7594, %v7606
        %v7608 = vpop.f32.mrf.mxu0
        %7609 = vdwg.mxu0
        %7610 = vmatpush.bf16.msra.mxu0 %v5347
        %7611 = vmatpush.bf16.msra.mxu0 %v5345
        %7612 = vmatpush.bf16.msra.mxu0 %v5343
        %7613 = vmatpush.bf16.msra.mxu0 %v5341
        %7614 = vmatpush.bf16.msra.mxu0 %v5339
        %7615 = vmatpush.bf16.msra.mxu0 %v5337
        %7616 = vmatpush.bf16.msra.mxu0 %v5335
        %7617 = vmatpush.bf16.msra.mxu0 %v5333
        %7618 = vmatmul.bf16.gmra.mxu0 %v518
        %v7619 = vpop.f32.mrf.mxu0
        %v7620 = vadd.f32 %v7607, %v7619
        %v7621 = vpop.f32.mrf.mxu0
        %7622 = vdwg.mxu0
        %7623 = vmatpush.bf16.msra.mxu0 %v5363
        %7624 = vmatpush.bf16.msra.mxu0 %v5361
        %7625 = vmatpush.bf16.msra.mxu0 %v5359
        %7626 = vmatpush.bf16.msra.mxu0 %v5357
        %7627 = vmatpush.bf16.msra.mxu0 %v5355
        %7628 = vmatpush.bf16.msra.mxu0 %v5353
        %7629 = vmatpush.bf16.msra.mxu0 %v5351
        %7630 = vmatpush.bf16.msra.mxu0 %v5349
        %7631 = vmatmul.bf16.gmra.mxu0 %v519
        %v7632 = vpop.f32.mrf.mxu0
        %v7633 = vadd.f32 %v7620, %v7632
        %v7634 = vpop.f32.mrf.mxu0
        %7635 = vdwg.mxu0
        %7636 = vmatpush.bf16.msra.mxu0 %v5379
        %7637 = vmatpush.bf16.msra.mxu0 %v5377
        %7638 = vmatpush.bf16.msra.mxu0 %v5375
        %7639 = vmatpush.bf16.msra.mxu0 %v5373
        %7640 = vmatpush.bf16.msra.mxu0 %v5371
        %7641 = vmatpush.bf16.msra.mxu0 %v5369
        %7642 = vmatpush.bf16.msra.mxu0 %v5367
        %7643 = vmatpush.bf16.msra.mxu0 %v5365
        %7644 = vmatmul.bf16.gmra.mxu0 %v520
        %v7645 = vpop.f32.mrf.mxu0
        %v7646 = vadd.f32 %v7633, %v7645
        %v7647 = vpop.f32.mrf.mxu0
        %7648 = vdwg.mxu0
        %7649 = vmatpush.bf16.msra.mxu0 %v5395
        %7650 = vmatpush.bf16.msra.mxu0 %v5393
        %7651 = vmatpush.bf16.msra.mxu0 %v5391
        %7652 = vmatpush.bf16.msra.mxu0 %v5389
        %7653 = vmatpush.bf16.msra.mxu0 %v5387
        %7654 = vmatpush.bf16.msra.mxu0 %v5385
        %7655 = vmatpush.bf16.msra.mxu0 %v5383
        %7656 = vmatpush.bf16.msra.mxu0 %v5381
        %7657 = vmatmul.bf16.gmra.mxu0 %v521
        %v7658 = vpop.f32.mrf.mxu0
        %v7659 = vadd.f32 %v7646, %v7658
        %v7660 = vpop.f32.mrf.mxu0
        %7661 = vdwg.mxu0
        %7662 = vmatpush.bf16.msra.mxu0 %v5411
        %7663 = vmatpush.bf16.msra.mxu0 %v5409
        %7664 = vmatpush.bf16.msra.mxu0 %v5407
        %7665 = vmatpush.bf16.msra.mxu0 %v5405
        %7666 = vmatpush.bf16.msra.mxu0 %v5403
        %7667 = vmatpush.bf16.msra.mxu0 %v5401
        %7668 = vmatpush.bf16.msra.mxu0 %v5399
        %7669 = vmatpush.bf16.msra.mxu0 %v5397
        %7670 = vmatmul.bf16.gmra.mxu0 %v522
        %v7671 = vpop.f32.mrf.mxu0
        %v7672 = vadd.f32 %v7659, %v7671
        %v7673 = vpop.f32.mrf.mxu0
        %7674 = vdwg.mxu0
        %7675 = vmatpush.bf16.msra.mxu0 %v5427
        %7676 = vmatpush.bf16.msra.mxu0 %v5425
        %7677 = vmatpush.bf16.msra.mxu0 %v5423
        %7678 = vmatpush.bf16.msra.mxu0 %v5421
        %7679 = vmatpush.bf16.msra.mxu0 %v5419
        %7680 = vmatpush.bf16.msra.mxu0 %v5417
        %7681 = vmatpush.bf16.msra.mxu0 %v5415
        %7682 = vmatpush.bf16.msra.mxu0 %v5413
        %7683 = vmatmul.bf16.gmra.mxu0 %v523
        %v7684 = vpop.f32.mrf.mxu0
        %v7685 = vadd.f32 %v7672, %v7684
        %v7686 = vpop.f32.mrf.mxu0
        %7687 = vdwg.mxu0
        %7688 = vmatpush.bf16.msra.mxu0 %v5443
        %7689 = vmatpush.bf16.msra.mxu0 %v5441
        %7690 = vmatpush.bf16.msra.mxu0 %v5439
        %7691 = vmatpush.bf16.msra.mxu0 %v5437
        %7692 = vmatpush.bf16.msra.mxu0 %v5435
        %7693 = vmatpush.bf16.msra.mxu0 %v5433
        %7694 = vmatpush.bf16.msra.mxu0 %v5431
        %7695 = vmatpush.bf16.msra.mxu0 %v5429
        %7696 = vmatmul.bf16.gmra.mxu0 %v524
        %v7697 = vpop.f32.mrf.mxu0
        %v7698 = vadd.f32 %v7685, %v7697
        %v7699 = vpop.f32.mrf.mxu0
        %7700 = vdwg.mxu0
        %7701 = vmatpush.bf16.msra.mxu0 %v5459
        %7702 = vmatpush.bf16.msra.mxu0 %v5457
        %7703 = vmatpush.bf16.msra.mxu0 %v5455
        %7704 = vmatpush.bf16.msra.mxu0 %v5453
        %7705 = vmatpush.bf16.msra.mxu0 %v5451
        %7706 = vmatpush.bf16.msra.mxu0 %v5449
        %7707 = vmatpush.bf16.msra.mxu0 %v5447
        %7708 = vmatpush.bf16.msra.mxu0 %v5445
        %7709 = vmatmul.bf16.gmra.mxu0 %v525
        %v7710 = vpop.f32.mrf.mxu0
        %v7711 = vadd.f32 %v7698, %v7710
        %v7712 = vpop.f32.mrf.mxu0
        %7713 = vdwg.mxu0
        %7714 = vmatpush.bf16.msra.mxu0 %v5475
        %7715 = vmatpush.bf16.msra.mxu0 %v5473
        %7716 = vmatpush.bf16.msra.mxu0 %v5471
        %7717 = vmatpush.bf16.msra.mxu0 %v5469
        %7718 = vmatpush.bf16.msra.mxu0 %v5467
        %7719 = vmatpush.bf16.msra.mxu0 %v5465
        %7720 = vmatpush.bf16.msra.mxu0 %v5463
        %7721 = vmatpush.bf16.msra.mxu0 %v5461
        %7722 = vmatmul.bf16.gmra.mxu0 %v526
        %v7723 = vpop.f32.mrf.mxu0
        %v7724 = vadd.f32 %v7711, %v7723
        %v7725 = vpop.f32.mrf.mxu0
        %7726 = vdwg.mxu0
        %7727 = vmatpush.bf16.msra.mxu0 %v5491
        %7728 = vmatpush.bf16.msra.mxu0 %v5489
        %7729 = vmatpush.bf16.msra.mxu0 %v5487
        %7730 = vmatpush.bf16.msra.mxu0 %v5485
        %7731 = vmatpush.bf16.msra.mxu0 %v5483
        %7732 = vmatpush.bf16.msra.mxu0 %v5481
        %7733 = vmatpush.bf16.msra.mxu0 %v5479
        %7734 = vmatpush.bf16.msra.mxu0 %v5477
        %7735 = vmatmul.bf16.gmra.mxu0 %v527
        %v7736 = vpop.f32.mrf.mxu0
        %v7737 = vadd.f32 %v7724, %v7736
        %v7738 = vpop.f32.mrf.mxu0
        %7739 = vdwg.mxu0
        %7740 = vmatpush.bf16.msra.mxu0 %v5507
        %7741 = vmatpush.bf16.msra.mxu0 %v5505
        %7742 = vmatpush.bf16.msra.mxu0 %v5503
        %7743 = vmatpush.bf16.msra.mxu0 %v5501
        %7744 = vmatpush.bf16.msra.mxu0 %v5499
        %7745 = vmatpush.bf16.msra.mxu0 %v5497
        %7746 = vmatpush.bf16.msra.mxu0 %v5495
        %7747 = vmatpush.bf16.msra.mxu0 %v5493
        %7748 = vmatmul.bf16.gmra.mxu0 %v528
        %v7749 = vpop.f32.mrf.mxu0
        %v7750 = vadd.f32 %v7737, %v7749
        %v7751 = vpop.f32.mrf.mxu0
        %7752 = vdwg.mxu0
        %7753 = vmatpush.bf16.msra.mxu0 %v5523
        %7754 = vmatpush.bf16.msra.mxu0 %v5521
        %7755 = vmatpush.bf16.msra.mxu0 %v5519
        %7756 = vmatpush.bf16.msra.mxu0 %v5517
        %7757 = vmatpush.bf16.msra.mxu0 %v5515
        %7758 = vmatpush.bf16.msra.mxu0 %v5513
        %7759 = vmatpush.bf16.msra.mxu0 %v5511
        %7760 = vmatpush.bf16.msra.mxu0 %v5509
        %7761 = vmatmul.bf16.gmra.mxu0 %v529
        %v7762 = vpop.f32.mrf.mxu0
        %v7763 = vadd.f32 %v7750, %v7762
        %v7764 = vpop.f32.mrf.mxu0
        %7765 = vdwg.mxu0
        %7766 = vmatpush.bf16.msra.mxu0 %v5539
        %7767 = vmatpush.bf16.msra.mxu0 %v5537
        %7768 = vmatpush.bf16.msra.mxu0 %v5535
        %7769 = vmatpush.bf16.msra.mxu0 %v5533
        %7770 = vmatpush.bf16.msra.mxu0 %v5531
        %7771 = vmatpush.bf16.msra.mxu0 %v5529
        %7772 = vmatpush.bf16.msra.mxu0 %v5527
        %7773 = vmatpush.bf16.msra.mxu0 %v5525
        %7774 = vmatmul.bf16.gmra.mxu0 %v530
        %v7775 = vpop.f32.mrf.mxu0
        %v7776 = vadd.f32 %v7763, %v7775
        %v7777 = vpop.f32.mrf.mxu0
        %7778 = vdwg.mxu0
        %7779 = vmatpush.bf16.msra.mxu0 %v5555
        %7780 = vmatpush.bf16.msra.mxu0 %v5553
        %7781 = vmatpush.bf16.msra.mxu0 %v5551
        %7782 = vmatpush.bf16.msra.mxu0 %v5549
        %7783 = vmatpush.bf16.msra.mxu0 %v5547
        %7784 = vmatpush.bf16.msra.mxu0 %v5545
        %7785 = vmatpush.bf16.msra.mxu0 %v5543
        %7786 = vmatpush.bf16.msra.mxu0 %v5541
        %7787 = vmatmul.bf16.gmra.mxu0 %v531
        %v7788 = vpop.f32.mrf.mxu0
        %v7789 = vadd.f32 %v7776, %v7788
        %v7790 = vpop.f32.mrf.mxu0
        %7791 = vdwg.mxu0
        %7792 = vmatpush.bf16.msra.mxu0 %v5571
        %7793 = vmatpush.bf16.msra.mxu0 %v5569
        %7794 = vmatpush.bf16.msra.mxu0 %v5567
        %7795 = vmatpush.bf16.msra.mxu0 %v5565
        %7796 = vmatpush.bf16.msra.mxu0 %v5563
        %7797 = vmatpush.bf16.msra.mxu0 %v5561
        %7798 = vmatpush.bf16.msra.mxu0 %v5559
        %7799 = vmatpush.bf16.msra.mxu0 %v5557
        %7800 = vmatmul.bf16.gmra.mxu0 %v532
        %v7801 = vpop.f32.mrf.mxu0
        %v7802 = vadd.f32 %v7789, %v7801
        %v7803 = vpop.f32.mrf.mxu0
        %7804 = vdwg.mxu0
        %7805 = vmatpush.bf16.msra.mxu0 %v5587
        %7806 = vmatpush.bf16.msra.mxu0 %v5585
        %7807 = vmatpush.bf16.msra.mxu0 %v5583
        %7808 = vmatpush.bf16.msra.mxu0 %v5581
        %7809 = vmatpush.bf16.msra.mxu0 %v5579
        %7810 = vmatpush.bf16.msra.mxu0 %v5577
        %7811 = vmatpush.bf16.msra.mxu0 %v5575
        %7812 = vmatpush.bf16.msra.mxu0 %v5573
        %7813 = vmatmul.bf16.gmra.mxu0 %v533
        %v7814 = vpop.f32.mrf.mxu0
        %v7815 = vadd.f32 %v7802, %v7814
        %v7816 = vpop.f32.mrf.mxu0
        %7817 = vdwg.mxu0
        %7818 = vmatpush.bf16.msra.mxu0 %v5603
        %7819 = vmatpush.bf16.msra.mxu0 %v5601
        %7820 = vmatpush.bf16.msra.mxu0 %v5599
        %7821 = vmatpush.bf16.msra.mxu0 %v5597
        %7822 = vmatpush.bf16.msra.mxu0 %v5595
        %7823 = vmatpush.bf16.msra.mxu0 %v5593
        %7824 = vmatpush.bf16.msra.mxu0 %v5591
        %7825 = vmatpush.bf16.msra.mxu0 %v5589
        %7826 = vmatmul.bf16.gmra.mxu0 %v534
        %v7827 = vpop.f32.mrf.mxu0
        %v7828 = vadd.f32 %v7815, %v7827
        %v7829 = vpop.f32.mrf.mxu0
        %7830 = vdwg.mxu0
        %7831 = vmatpush.bf16.msra.mxu0 %v5619
        %7832 = vmatpush.bf16.msra.mxu0 %v5617
        %7833 = vmatpush.bf16.msra.mxu0 %v5615
        %7834 = vmatpush.bf16.msra.mxu0 %v5613
        %7835 = vmatpush.bf16.msra.mxu0 %v5611
        %7836 = vmatpush.bf16.msra.mxu0 %v5609
        %7837 = vmatpush.bf16.msra.mxu0 %v5607
        %7838 = vmatpush.bf16.msra.mxu0 %v5605
        %7839 = vmatmul.bf16.gmra.mxu0 %v535
        %v7840 = vpop.f32.mrf.mxu0
        %v7841 = vadd.f32 %v7828, %v7840
        %v7842 = vpop.f32.mrf.mxu0
        %7843 = vdwg.mxu0
        %7844 = vmatpush.bf16.msra.mxu0 %v5635
        %7845 = vmatpush.bf16.msra.mxu0 %v5633
        %7846 = vmatpush.bf16.msra.mxu0 %v5631
        %7847 = vmatpush.bf16.msra.mxu0 %v5629
        %7848 = vmatpush.bf16.msra.mxu0 %v5627
        %7849 = vmatpush.bf16.msra.mxu0 %v5625
        %7850 = vmatpush.bf16.msra.mxu0 %v5623
        %7851 = vmatpush.bf16.msra.mxu0 %v5621
        %7852 = vmatmul.bf16.gmra.mxu0 %v536
        %v7853 = vpop.f32.mrf.mxu0
        %v7854 = vadd.f32 %v7841, %v7853
        %v7855 = vpop.f32.mrf.mxu0
        %7856 = vdwg.mxu0
        %7857 = vmatpush.bf16.msra.mxu0 %v5651
        %7858 = vmatpush.bf16.msra.mxu0 %v5649
        %7859 = vmatpush.bf16.msra.mxu0 %v5647
        %7860 = vmatpush.bf16.msra.mxu0 %v5645
        %7861 = vmatpush.bf16.msra.mxu0 %v5643
        %7862 = vmatpush.bf16.msra.mxu0 %v5641
        %7863 = vmatpush.bf16.msra.mxu0 %v5639
        %7864 = vmatpush.bf16.msra.mxu0 %v5637
        %7865 = vmatmul.bf16.gmra.mxu0 %v537
        %v7866 = vpop.f32.mrf.mxu0
        %v7867 = vadd.f32 %v7854, %v7866
        %v7868 = vpop.f32.mrf.mxu0
        %7869 = vdwg.mxu0
        %7870 = vmatpush.bf16.msra.mxu0 %v5667
        %7871 = vmatpush.bf16.msra.mxu0 %v5665
        %7872 = vmatpush.bf16.msra.mxu0 %v5663
        %7873 = vmatpush.bf16.msra.mxu0 %v5661
        %7874 = vmatpush.bf16.msra.mxu0 %v5659
        %7875 = vmatpush.bf16.msra.mxu0 %v5657
        %7876 = vmatpush.bf16.msra.mxu0 %v5655
        %7877 = vmatpush.bf16.msra.mxu0 %v5653
        %7878 = vmatmul.bf16.gmra.mxu0 %v538
        %v7879 = vpop.f32.mrf.mxu0
        %v7880 = vadd.f32 %v7867, %v7879
        %v7881 = vpop.f32.mrf.mxu0
        %7882 = vdwg.mxu0
        %7883 = vmatpush.bf16.msra.mxu0 %v5683
        %7884 = vmatpush.bf16.msra.mxu0 %v5681
        %7885 = vmatpush.bf16.msra.mxu0 %v5679
        %7886 = vmatpush.bf16.msra.mxu0 %v5677
        %7887 = vmatpush.bf16.msra.mxu0 %v5675
        %7888 = vmatpush.bf16.msra.mxu0 %v5673
        %7889 = vmatpush.bf16.msra.mxu0 %v5671
        %7890 = vmatpush.bf16.msra.mxu0 %v5669
        %7891 = vmatmul.bf16.gmra.mxu0 %v539
        %v7892 = vpop.f32.mrf.mxu0
        %v7893 = vadd.f32 %v7880, %v7892
        %v7894 = vpop.f32.mrf.mxu0
        %7895 = vdwg.mxu0
        %7896 = vmatpush.bf16.msra.mxu0 %v5699
        %7897 = vmatpush.bf16.msra.mxu0 %v5697
        %7898 = vmatpush.bf16.msra.mxu0 %v5695
        %7899 = vmatpush.bf16.msra.mxu0 %v5693
        %7900 = vmatpush.bf16.msra.mxu0 %v5691
        %7901 = vmatpush.bf16.msra.mxu0 %v5689
        %7902 = vmatpush.bf16.msra.mxu0 %v5687
        %7903 = vmatpush.bf16.msra.mxu0 %v5685
        %7904 = vmatmul.bf16.gmra.mxu0 %v540
        %v7905 = vpop.f32.mrf.mxu0
        %v7906 = vadd.f32 %v7893, %v7905
        %v7907 = vpop.f32.mrf.mxu0
        %7908 = vdwg.mxu0
        %7909 = vmatpush.bf16.msra.mxu0 %v5715
        %7910 = vmatpush.bf16.msra.mxu0 %v5713
        %7911 = vmatpush.bf16.msra.mxu0 %v5711
        %7912 = vmatpush.bf16.msra.mxu0 %v5709
        %7913 = vmatpush.bf16.msra.mxu0 %v5707
        %7914 = vmatpush.bf16.msra.mxu0 %v5705
        %7915 = vmatpush.bf16.msra.mxu0 %v5703
        %7916 = vmatpush.bf16.msra.mxu0 %v5701
        %7917 = vmatmul.bf16.gmra.mxu0 %v541
        %v7918 = vpop.f32.mrf.mxu0
        %v7919 = vadd.f32 %v7906, %v7918
        %v7920 = vpop.f32.mrf.mxu0
        %7921 = vdwg.mxu0
        %7922 = vmatpush.bf16.msra.mxu0 %v5731
        %7923 = vmatpush.bf16.msra.mxu0 %v5729
        %7924 = vmatpush.bf16.msra.mxu0 %v5727
        %7925 = vmatpush.bf16.msra.mxu0 %v5725
        %7926 = vmatpush.bf16.msra.mxu0 %v5723
        %7927 = vmatpush.bf16.msra.mxu0 %v5721
        %7928 = vmatpush.bf16.msra.mxu0 %v5719
        %7929 = vmatpush.bf16.msra.mxu0 %v5717
        %7930 = vmatmul.bf16.gmra.mxu0 %v542
        %v7931 = vpop.f32.mrf.mxu0
        %v7932 = vadd.f32 %v7919, %v7931
        %v7933 = vpop.f32.mrf.mxu0
        %7934 = vdwg.mxu0
        %7935 = vmatpush.bf16.msra.mxu0 %v5747
        %7936 = vmatpush.bf16.msra.mxu0 %v5745
        %7937 = vmatpush.bf16.msra.mxu0 %v5743
        %7938 = vmatpush.bf16.msra.mxu0 %v5741
        %7939 = vmatpush.bf16.msra.mxu0 %v5739
        %7940 = vmatpush.bf16.msra.mxu0 %v5737
        %7941 = vmatpush.bf16.msra.mxu0 %v5735
        %7942 = vmatpush.bf16.msra.mxu0 %v5733
        %7943 = vmatmul.bf16.gmra.mxu0 %v543
        %v7944 = vpop.f32.mrf.mxu0
        %v7945 = vadd.f32 %v7932, %v7944
        %v7946 = vpop.f32.mrf.mxu0
        %7947 = vdwg.mxu0
        %7948 = vmatpush.bf16.msra.mxu0 %v5763
        %7949 = vmatpush.bf16.msra.mxu0 %v5761
        %7950 = vmatpush.bf16.msra.mxu0 %v5759
        %7951 = vmatpush.bf16.msra.mxu0 %v5757
        %7952 = vmatpush.bf16.msra.mxu0 %v5755
        %7953 = vmatpush.bf16.msra.mxu0 %v5753
        %7954 = vmatpush.bf16.msra.mxu0 %v5751
        %7955 = vmatpush.bf16.msra.mxu0 %v5749
        %7956 = vmatmul.bf16.gmra.mxu0 %v544
        %v7957 = vpop.f32.mrf.mxu0
        %v7958 = vadd.f32 %v7945, %v7957
        %v7959 = vpop.f32.mrf.mxu0
        %7960 = vdwg.mxu0
        %7961 = vmatpush.bf16.msra.mxu0 %v5779
        %7962 = vmatpush.bf16.msra.mxu0 %v5777
        %7963 = vmatpush.bf16.msra.mxu0 %v5775
        %7964 = vmatpush.bf16.msra.mxu0 %v5773
        %7965 = vmatpush.bf16.msra.mxu0 %v5771
        %7966 = vmatpush.bf16.msra.mxu0 %v5769
        %7967 = vmatpush.bf16.msra.mxu0 %v5767
        %7968 = vmatpush.bf16.msra.mxu0 %v5765
        %7969 = vmatmul.bf16.gmra.mxu0 %v545
        %v7970 = vpop.f32.mrf.mxu0
        %v7971 = vadd.f32 %v7958, %v7970
        %v7972 = vpop.f32.mrf.mxu0
        %7973 = vdwg.mxu0
        %7974 = vmatpush.bf16.msra.mxu0 %v5795
        %7975 = vmatpush.bf16.msra.mxu0 %v5793
        %7976 = vmatpush.bf16.msra.mxu0 %v5791
        %7977 = vmatpush.bf16.msra.mxu0 %v5789
        %7978 = vmatpush.bf16.msra.mxu0 %v5787
        %7979 = vmatpush.bf16.msra.mxu0 %v5785
        %7980 = vmatpush.bf16.msra.mxu0 %v5783
        %7981 = vmatpush.bf16.msra.mxu0 %v5781
        %7982 = vmatmul.bf16.gmra.mxu0 %v546
        %v7983 = vpop.f32.mrf.mxu0
        %v7984 = vadd.f32 %v7971, %v7983
        %v7985 = vpop.f32.mrf.mxu0
        %7986 = vdwg.mxu0
        %7987 = vmatpush.bf16.msra.mxu0 %v5811
        %7988 = vmatpush.bf16.msra.mxu0 %v5809
        %7989 = vmatpush.bf16.msra.mxu0 %v5807
        %7990 = vmatpush.bf16.msra.mxu0 %v5805
        %7991 = vmatpush.bf16.msra.mxu0 %v5803
        %7992 = vmatpush.bf16.msra.mxu0 %v5801
        %7993 = vmatpush.bf16.msra.mxu0 %v5799
        %7994 = vmatpush.bf16.msra.mxu0 %v5797
        %7995 = vmatmul.bf16.gmra.mxu0 %v547
        %v7996 = vpop.f32.mrf.mxu0
        %v7997 = vadd.f32 %v7984, %v7996
        %v7998 = vpop.f32.mrf.mxu0
        %7999 = vdwg.mxu0
        %8000 = vmatpush.bf16.msra.mxu0 %v5827
        %8001 = vmatpush.bf16.msra.mxu0 %v5825
        %8002 = vmatpush.bf16.msra.mxu0 %v5823
        %8003 = vmatpush.bf16.msra.mxu0 %v5821
        %8004 = vmatpush.bf16.msra.mxu0 %v5819
        %8005 = vmatpush.bf16.msra.mxu0 %v5817
        %8006 = vmatpush.bf16.msra.mxu0 %v5815
        %8007 = vmatpush.bf16.msra.mxu0 %v5813
        %8008 = vmatmul.bf16.gmra.mxu0 %v548
        %v8009 = vpop.f32.mrf.mxu0
        %v8010 = vadd.f32 %v7997, %v8009
        %v8011 = vpop.f32.mrf.mxu0
        %8012 = vdwg.mxu0
        %8013 = vmatpush.bf16.msra.mxu0 %v5843
        %8014 = vmatpush.bf16.msra.mxu0 %v5841
        %8015 = vmatpush.bf16.msra.mxu0 %v5839
        %8016 = vmatpush.bf16.msra.mxu0 %v5837
        %8017 = vmatpush.bf16.msra.mxu0 %v5835
        %8018 = vmatpush.bf16.msra.mxu0 %v5833
        %8019 = vmatpush.bf16.msra.mxu0 %v5831
        %8020 = vmatpush.bf16.msra.mxu0 %v5829
        %8021 = vmatmul.bf16.gmra.mxu0 %v549
        %v8022 = vpop.f32.mrf.mxu0
        %v8023 = vadd.f32 %v8010, %v8022
        %v8024 = vpop.f32.mrf.mxu0
        %8025 = vdwg.mxu0
        %8026 = vmatpush.bf16.msra.mxu0 %v5859
        %8027 = vmatpush.bf16.msra.mxu0 %v5857
        %8028 = vmatpush.bf16.msra.mxu0 %v5855
        %8029 = vmatpush.bf16.msra.mxu0 %v5853
        %8030 = vmatpush.bf16.msra.mxu0 %v5851
        %8031 = vmatpush.bf16.msra.mxu0 %v5849
        %8032 = vmatpush.bf16.msra.mxu0 %v5847
        %8033 = vmatpush.bf16.msra.mxu0 %v5845
        %8034 = vmatmul.bf16.gmra.mxu0 %v550
        %v8035 = vpop.f32.mrf.mxu0
        %v8036 = vadd.f32 %v8023, %v8035
        %v8037 = vpop.f32.mrf.mxu0
        %8038 = vdwg.mxu0
        %8039 = vmatpush.bf16.msra.mxu0 %v5875
        %8040 = vmatpush.bf16.msra.mxu0 %v5873
        %8041 = vmatpush.bf16.msra.mxu0 %v5871
        %8042 = vmatpush.bf16.msra.mxu0 %v5869
        %8043 = vmatpush.bf16.msra.mxu0 %v5867
        %8044 = vmatpush.bf16.msra.mxu0 %v5865
        %8045 = vmatpush.bf16.msra.mxu0 %v5863
        %8046 = vmatpush.bf16.msra.mxu0 %v5861
        %8047 = vmatmul.bf16.gmra.mxu0 %v551
        %v8048 = vpop.f32.mrf.mxu0
        %v8049 = vadd.f32 %v8036, %v8048
        %v8050 = vpop.f32.mrf.mxu0
        %8051 = vdwg.mxu0
        %8052 = vmatpush.bf16.msra.mxu0 %v5891
        %8053 = vmatpush.bf16.msra.mxu0 %v5889
        %8054 = vmatpush.bf16.msra.mxu0 %v5887
        %8055 = vmatpush.bf16.msra.mxu0 %v5885
        %8056 = vmatpush.bf16.msra.mxu0 %v5883
        %8057 = vmatpush.bf16.msra.mxu0 %v5881
        %8058 = vmatpush.bf16.msra.mxu0 %v5879
        %8059 = vmatpush.bf16.msra.mxu0 %v5877
        %8060 = vmatmul.bf16.gmra.mxu0 %v552
        %v8061 = vpop.f32.mrf.mxu0
        %v8062 = vadd.f32 %v8049, %v8061
        %v8063 = vpop.f32.mrf.mxu0
        %8064 = vdwg.mxu0
        %8065 = vmatpush.bf16.msra.mxu0 %v5907
        %8066 = vmatpush.bf16.msra.mxu0 %v5905
        %8067 = vmatpush.bf16.msra.mxu0 %v5903
        %8068 = vmatpush.bf16.msra.mxu0 %v5901
        %8069 = vmatpush.bf16.msra.mxu0 %v5899
        %8070 = vmatpush.bf16.msra.mxu0 %v5897
        %8071 = vmatpush.bf16.msra.mxu0 %v5895
        %8072 = vmatpush.bf16.msra.mxu0 %v5893
        %8073 = vmatmul.bf16.gmra.mxu0 %v553
        %v8074 = vpop.f32.mrf.mxu0
        %v8075 = vadd.f32 %v8062, %v8074
        %v8076 = vpop.f32.mrf.mxu0
        %8077 = vdwg.mxu0
        %8078 = vmatpush.bf16.msra.mxu0 %v5923
        %8079 = vmatpush.bf16.msra.mxu0 %v5921
        %8080 = vmatpush.bf16.msra.mxu0 %v5919
        %8081 = vmatpush.bf16.msra.mxu0 %v5917
        %8082 = vmatpush.bf16.msra.mxu0 %v5915
        %8083 = vmatpush.bf16.msra.mxu0 %v5913
        %8084 = vmatpush.bf16.msra.mxu0 %v5911
        %8085 = vmatpush.bf16.msra.mxu0 %v5909
        %8086 = vmatmul.bf16.gmra.mxu0 %v554
        %v8087 = vpop.f32.mrf.mxu0
        %v8088 = vadd.f32 %v8075, %v8087
        %v8089 = vpop.f32.mrf.mxu0
        %8090 = vdwg.mxu0
        %8091 = vmatpush.bf16.msra.mxu0 %v5939
        %8092 = vmatpush.bf16.msra.mxu0 %v5937
        %8093 = vmatpush.bf16.msra.mxu0 %v5935
        %8094 = vmatpush.bf16.msra.mxu0 %v5933
        %8095 = vmatpush.bf16.msra.mxu0 %v5931
        %8096 = vmatpush.bf16.msra.mxu0 %v5929
        %8097 = vmatpush.bf16.msra.mxu0 %v5927
        %8098 = vmatpush.bf16.msra.mxu0 %v5925
        %8099 = vmatmul.bf16.gmra.mxu0 %v555
        %v8100 = vpop.f32.mrf.mxu0
        %v8101 = vadd.f32 %v8088, %v8100
        %v8102 = vpop.f32.mrf.mxu0
        %8103 = vdwg.mxu0
        %8104 = vmatpush.bf16.msra.mxu0 %v5955
        %8105 = vmatpush.bf16.msra.mxu0 %v5953
        %8106 = vmatpush.bf16.msra.mxu0 %v5951
        %8107 = vmatpush.bf16.msra.mxu0 %v5949
        %8108 = vmatpush.bf16.msra.mxu0 %v5947
        %8109 = vmatpush.bf16.msra.mxu0 %v5945
        %8110 = vmatpush.bf16.msra.mxu0 %v5943
        %8111 = vmatpush.bf16.msra.mxu0 %v5941
        %8112 = vmatmul.bf16.gmra.mxu0 %v556
        %v8113 = vpop.f32.mrf.mxu0
        %v8114 = vadd.f32 %v8101, %v8113
        %v8115 = vpop.f32.mrf.mxu0
        %8116 = vdwg.mxu0
        %8117 = vmatpush.bf16.msra.mxu0 %v5971
        %8118 = vmatpush.bf16.msra.mxu0 %v5969
        %8119 = vmatpush.bf16.msra.mxu0 %v5967
        %8120 = vmatpush.bf16.msra.mxu0 %v5965
        %8121 = vmatpush.bf16.msra.mxu0 %v5963
        %8122 = vmatpush.bf16.msra.mxu0 %v5961
        %8123 = vmatpush.bf16.msra.mxu0 %v5959
        %8124 = vmatpush.bf16.msra.mxu0 %v5957
        %8125 = vmatmul.bf16.gmra.mxu0 %v557
        %v8126 = vpop.f32.mrf.mxu0
        %v8127 = vadd.f32 %v8114, %v8126
        %v8128 = vpop.f32.mrf.mxu0
        %8129 = vdwg.mxu0
        %8130 = vmatpush.bf16.msra.mxu0 %v5987
        %8131 = vmatpush.bf16.msra.mxu0 %v5985
        %8132 = vmatpush.bf16.msra.mxu0 %v5983
        %8133 = vmatpush.bf16.msra.mxu0 %v5981
        %8134 = vmatpush.bf16.msra.mxu0 %v5979
        %8135 = vmatpush.bf16.msra.mxu0 %v5977
        %8136 = vmatpush.bf16.msra.mxu0 %v5975
        %8137 = vmatpush.bf16.msra.mxu0 %v5973
        %8138 = vmatmul.bf16.gmra.mxu0 %v558
        %v8139 = vpop.f32.mrf.mxu0
        %v8140 = vadd.f32 %v8127, %v8139
        %v8141 = vpop.f32.mrf.mxu0
        %8142 = vdwg.mxu0
        %8143 = vmatpush.bf16.msra.mxu0 %v6003
        %8144 = vmatpush.bf16.msra.mxu0 %v6001
        %8145 = vmatpush.bf16.msra.mxu0 %v5999
        %8146 = vmatpush.bf16.msra.mxu0 %v5997
        %8147 = vmatpush.bf16.msra.mxu0 %v5995
        %8148 = vmatpush.bf16.msra.mxu0 %v5993
        %8149 = vmatpush.bf16.msra.mxu0 %v5991
        %8150 = vmatpush.bf16.msra.mxu0 %v5989
        %8151 = vmatmul.bf16.gmra.mxu0 %v559
        %v8152 = vpop.f32.mrf.mxu0
        %v8153 = vadd.f32 %v8140, %v8152
        %v8154 = vpop.f32.mrf.mxu0
        %8155 = vdwg.mxu0
        %8156 = vmatpush.bf16.msra.mxu0 %v6019
        %8157 = vmatpush.bf16.msra.mxu0 %v6017
        %8158 = vmatpush.bf16.msra.mxu0 %v6015
        %8159 = vmatpush.bf16.msra.mxu0 %v6013
        %8160 = vmatpush.bf16.msra.mxu0 %v6011
        %8161 = vmatpush.bf16.msra.mxu0 %v6009
        %8162 = vmatpush.bf16.msra.mxu0 %v6007
        %8163 = vmatpush.bf16.msra.mxu0 %v6005
        %8164 = vmatmul.bf16.gmra.mxu0 %v560
        %v8165 = vpop.f32.mrf.mxu0
        %v8166 = vadd.f32 %v8153, %v8165
        %v8167 = vpop.f32.mrf.mxu0
        %8168 = vdwg.mxu0
        %8169 = vmatpush.bf16.msra.mxu0 %v6035
        %8170 = vmatpush.bf16.msra.mxu0 %v6033
        %8171 = vmatpush.bf16.msra.mxu0 %v6031
        %8172 = vmatpush.bf16.msra.mxu0 %v6029
        %8173 = vmatpush.bf16.msra.mxu0 %v6027
        %8174 = vmatpush.bf16.msra.mxu0 %v6025
        %8175 = vmatpush.bf16.msra.mxu0 %v6023
        %8176 = vmatpush.bf16.msra.mxu0 %v6021
        %8177 = vmatmul.bf16.gmra.mxu0 %v561
        %v8178 = vpop.f32.mrf.mxu0
        %v8179 = vadd.f32 %v8166, %v8178
        %v8180 = vpop.f32.mrf.mxu0
        %8181 = vdwg.mxu0
        %8182 = vmatpush.bf16.msra.mxu0 %v6051
        %8183 = vmatpush.bf16.msra.mxu0 %v6049
        %8184 = vmatpush.bf16.msra.mxu0 %v6047
        %8185 = vmatpush.bf16.msra.mxu0 %v6045
        %8186 = vmatpush.bf16.msra.mxu0 %v6043
        %8187 = vmatpush.bf16.msra.mxu0 %v6041
        %8188 = vmatpush.bf16.msra.mxu0 %v6039
        %8189 = vmatpush.bf16.msra.mxu0 %v6037
        %8190 = vmatmul.bf16.gmra.mxu0 %v562
        %v8191 = vpop.f32.mrf.mxu0
        %v8192 = vadd.f32 %v8179, %v8191
        %v8193 = vpop.f32.mrf.mxu0
        %8194 = vdwg.mxu0
        %8195 = vmatpush.bf16.msra.mxu0 %v6067
        %8196 = vmatpush.bf16.msra.mxu0 %v6065
        %8197 = vmatpush.bf16.msra.mxu0 %v6063
        %8198 = vmatpush.bf16.msra.mxu0 %v6061
        %8199 = vmatpush.bf16.msra.mxu0 %v6059
        %8200 = vmatpush.bf16.msra.mxu0 %v6057
        %8201 = vmatpush.bf16.msra.mxu0 %v6055
        %8202 = vmatpush.bf16.msra.mxu0 %v6053
        %8203 = vmatmul.bf16.gmra.mxu0 %v563
        %v8204 = vpop.f32.mrf.mxu0
        %v8205 = vadd.f32 %v8192, %v8204
        %v8206 = vpop.f32.mrf.mxu0
        %8207 = vdwg.mxu0
        %8208 = vmatpush.bf16.msra.mxu0 %v6083
        %8209 = vmatpush.bf16.msra.mxu0 %v6081
        %8210 = vmatpush.bf16.msra.mxu0 %v6079
        %8211 = vmatpush.bf16.msra.mxu0 %v6077
        %8212 = vmatpush.bf16.msra.mxu0 %v6075
        %8213 = vmatpush.bf16.msra.mxu0 %v6073
        %8214 = vmatpush.bf16.msra.mxu0 %v6071
        %8215 = vmatpush.bf16.msra.mxu0 %v6069
        %8216 = vmatmul.bf16.gmra.mxu0 %v564
        %v8217 = vpop.f32.mrf.mxu0
        %v8218 = vadd.f32 %v8205, %v8217
        %v8219 = vpop.f32.mrf.mxu0
        %8220 = vdwg.mxu0
        %8221 = vmatpush.bf16.msra.mxu0 %v6099
        %8222 = vmatpush.bf16.msra.mxu0 %v6097
        %8223 = vmatpush.bf16.msra.mxu0 %v6095
        %8224 = vmatpush.bf16.msra.mxu0 %v6093
        %8225 = vmatpush.bf16.msra.mxu0 %v6091
        %8226 = vmatpush.bf16.msra.mxu0 %v6089
        %8227 = vmatpush.bf16.msra.mxu0 %v6087
        %8228 = vmatpush.bf16.msra.mxu0 %v6085
        %8229 = vmatmul.bf16.gmra.mxu0 %v565
        %v8230 = vpop.f32.mrf.mxu0
        %v8231 = vadd.f32 %v8218, %v8230
        %v8232 = vpop.f32.mrf.mxu0
        %8233 = vdwg.mxu0
        %8234 = vmatpush.bf16.msra.mxu0 %v6115
        %8235 = vmatpush.bf16.msra.mxu0 %v6113
        %8236 = vmatpush.bf16.msra.mxu0 %v6111
        %8237 = vmatpush.bf16.msra.mxu0 %v6109
        %8238 = vmatpush.bf16.msra.mxu0 %v6107
        %8239 = vmatpush.bf16.msra.mxu0 %v6105
        %8240 = vmatpush.bf16.msra.mxu0 %v6103
        %8241 = vmatpush.bf16.msra.mxu0 %v6101
        %8242 = vmatmul.bf16.gmra.mxu0 %v566
        %v8243 = vpop.f32.mrf.mxu0
        %v8244 = vadd.f32 %v8231, %v8243
        %v8245 = vpop.f32.mrf.mxu0
        %8246 = vdwg.mxu0
        %8247 = vmatpush.bf16.msra.mxu0 %v6131
        %8248 = vmatpush.bf16.msra.mxu0 %v6129
        %8249 = vmatpush.bf16.msra.mxu0 %v6127
        %8250 = vmatpush.bf16.msra.mxu0 %v6125
        %8251 = vmatpush.bf16.msra.mxu0 %v6123
        %8252 = vmatpush.bf16.msra.mxu0 %v6121
        %8253 = vmatpush.bf16.msra.mxu0 %v6119
        %8254 = vmatpush.bf16.msra.mxu0 %v6117
        %8255 = vmatmul.bf16.gmra.mxu0 %v567
        %v8256 = vpop.f32.mrf.mxu0
        %v8257 = vadd.f32 %v8244, %v8256
        %v8258 = vpop.f32.mrf.mxu0
        %8259 = vdwg.mxu0
        %8260 = vmatpush.bf16.msra.mxu0 %v6147
        %8261 = vmatpush.bf16.msra.mxu0 %v6145
        %8262 = vmatpush.bf16.msra.mxu0 %v6143
        %8263 = vmatpush.bf16.msra.mxu0 %v6141
        %8264 = vmatpush.bf16.msra.mxu0 %v6139
        %8265 = vmatpush.bf16.msra.mxu0 %v6137
        %8266 = vmatpush.bf16.msra.mxu0 %v6135
        %8267 = vmatpush.bf16.msra.mxu0 %v6133
        %8268 = vmatmul.bf16.gmra.mxu0 %v568
        %v8269 = vpop.f32.mrf.mxu0
        %v8270 = vadd.f32 %v8257, %v8269
        %v8271 = vpop.f32.mrf.mxu0
        %8272 = vdwg.mxu0
        %8273 = vmatpush.bf16.msra.mxu0 %v6163
        %8274 = vmatpush.bf16.msra.mxu0 %v6161
        %8275 = vmatpush.bf16.msra.mxu0 %v6159
        %8276 = vmatpush.bf16.msra.mxu0 %v6157
        %8277 = vmatpush.bf16.msra.mxu0 %v6155
        %8278 = vmatpush.bf16.msra.mxu0 %v6153
        %8279 = vmatpush.bf16.msra.mxu0 %v6151
        %8280 = vmatpush.bf16.msra.mxu0 %v6149
        %8281 = vmatmul.bf16.gmra.mxu0 %v569
        %v8282 = vpop.f32.mrf.mxu0
        %v8283 = vadd.f32 %v8270, %v8282
        %v8284 = vpop.f32.mrf.mxu0
        %8285 = vdwg.mxu0
        %8286 = vmatpush.bf16.msra.mxu0 %v6179
        %8287 = vmatpush.bf16.msra.mxu0 %v6177
        %8288 = vmatpush.bf16.msra.mxu0 %v6175
        %8289 = vmatpush.bf16.msra.mxu0 %v6173
        %8290 = vmatpush.bf16.msra.mxu0 %v6171
        %8291 = vmatpush.bf16.msra.mxu0 %v6169
        %8292 = vmatpush.bf16.msra.mxu0 %v6167
        %8293 = vmatpush.bf16.msra.mxu0 %v6165
        %8294 = vmatmul.bf16.gmra.mxu0 %v570
        %v8295 = vpop.f32.mrf.mxu0
        %v8296 = vadd.f32 %v8283, %v8295
        %v8297 = vpop.f32.mrf.mxu0
        %8298 = vdwg.mxu0
        %8299 = vmatpush.bf16.msra.mxu0 %v6195
        %8300 = vmatpush.bf16.msra.mxu0 %v6193
        %8301 = vmatpush.bf16.msra.mxu0 %v6191
        %8302 = vmatpush.bf16.msra.mxu0 %v6189
        %8303 = vmatpush.bf16.msra.mxu0 %v6187
        %8304 = vmatpush.bf16.msra.mxu0 %v6185
        %8305 = vmatpush.bf16.msra.mxu0 %v6183
        %8306 = vmatpush.bf16.msra.mxu0 %v6181
        %8307 = vmatmul.bf16.gmra.mxu0 %v571
        %v8308 = vpop.f32.mrf.mxu0
        %v8309 = vadd.f32 %v8296, %v8308
        %v8310 = vpop.f32.mrf.mxu0
        %8311 = vdwg.mxu0
        %8312 = vmatpush.bf16.msra.mxu0 %v6211
        %8313 = vmatpush.bf16.msra.mxu0 %v6209
        %8314 = vmatpush.bf16.msra.mxu0 %v6207
        %8315 = vmatpush.bf16.msra.mxu0 %v6205
        %8316 = vmatpush.bf16.msra.mxu0 %v6203
        %8317 = vmatpush.bf16.msra.mxu0 %v6201
        %8318 = vmatpush.bf16.msra.mxu0 %v6199
        %8319 = vmatpush.bf16.msra.mxu0 %v6197
        %8320 = vmatmul.bf16.gmra.mxu0 %v572
        %v8321 = vpop.f32.mrf.mxu0
        %v8322 = vadd.f32 %v8309, %v8321
        %v8323 = vpop.f32.mrf.mxu0
        %8324 = vdwg.mxu0
        %8325 = vmatpush.bf16.msra.mxu0 %v6227
        %8326 = vmatpush.bf16.msra.mxu0 %v6225
        %8327 = vmatpush.bf16.msra.mxu0 %v6223
        %8328 = vmatpush.bf16.msra.mxu0 %v6221
        %8329 = vmatpush.bf16.msra.mxu0 %v6219
        %8330 = vmatpush.bf16.msra.mxu0 %v6217
        %8331 = vmatpush.bf16.msra.mxu0 %v6215
        %8332 = vmatpush.bf16.msra.mxu0 %v6213
        %8333 = vmatmul.bf16.gmra.mxu0 %v573
        %v8334 = vpop.f32.mrf.mxu0
        %v8335 = vadd.f32 %v8322, %v8334
        %v8336 = vpop.f32.mrf.mxu0
        %8337 = vdwg.mxu0
        %8338 = vmatpush.bf16.msra.mxu0 %v6243
        %8339 = vmatpush.bf16.msra.mxu0 %v6241
        %8340 = vmatpush.bf16.msra.mxu0 %v6239
        %8341 = vmatpush.bf16.msra.mxu0 %v6237
        %8342 = vmatpush.bf16.msra.mxu0 %v6235
        %8343 = vmatpush.bf16.msra.mxu0 %v6233
        %8344 = vmatpush.bf16.msra.mxu0 %v6231
        %8345 = vmatpush.bf16.msra.mxu0 %v6229
        %8346 = vmatmul.bf16.gmra.mxu0 %v574
        %v8347 = vpop.f32.mrf.mxu0
        %v8348 = vadd.f32 %v8335, %v8347
        %v8349 = vpop.f32.mrf.mxu0
        %8350 = vdwg.mxu0
        %8351 = vmatpush.bf16.msra.mxu0 %v6259
        %8352 = vmatpush.bf16.msra.mxu0 %v6257
        %8353 = vmatpush.bf16.msra.mxu0 %v6255
        %8354 = vmatpush.bf16.msra.mxu0 %v6253
        %8355 = vmatpush.bf16.msra.mxu0 %v6251
        %8356 = vmatpush.bf16.msra.mxu0 %v6249
        %8357 = vmatpush.bf16.msra.mxu0 %v6247
        %8358 = vmatpush.bf16.msra.mxu0 %v6245
        %8359 = vmatmul.bf16.gmra.mxu0 %v575
        %v8360 = vpop.f32.mrf.mxu0
        %v8361 = vadd.f32 %v8348, %v8360
        %v8362 = vpop.f32.mrf.mxu0
        %8363 = vdwg.mxu0
        %8364 = vmatpush.bf16.msra.mxu0 %v6275
        %8365 = vmatpush.bf16.msra.mxu0 %v6273
        %8366 = vmatpush.bf16.msra.mxu0 %v6271
        %8367 = vmatpush.bf16.msra.mxu0 %v6269
        %8368 = vmatpush.bf16.msra.mxu0 %v6267
        %8369 = vmatpush.bf16.msra.mxu0 %v6265
        %8370 = vmatpush.bf16.msra.mxu0 %v6263
        %8371 = vmatpush.bf16.msra.mxu0 %v6261
        %8372 = vmatmul.bf16.gmra.mxu0 %v576
        %v8373 = vpop.f32.mrf.mxu0
        %v8374 = vadd.f32 %v8361, %v8373
        %v8375 = vpop.f32.mrf.mxu0
        %8376 = vdwg.mxu0
        %8377 = vmatpush.bf16.msra.mxu0 %v6291
        %8378 = vmatpush.bf16.msra.mxu0 %v6289
        %8379 = vmatpush.bf16.msra.mxu0 %v6287
        %8380 = vmatpush.bf16.msra.mxu0 %v6285
        %8381 = vmatpush.bf16.msra.mxu0 %v6283
        %8382 = vmatpush.bf16.msra.mxu0 %v6281
        %8383 = vmatpush.bf16.msra.mxu0 %v6279
        %8384 = vmatpush.bf16.msra.mxu0 %v6277
        %8385 = vmatmul.bf16.gmra.mxu0 %v577
        %v8386 = vpop.f32.mrf.mxu0
        %v8387 = vadd.f32 %v8374, %v8386
        %v8388 = vpop.f32.mrf.mxu0
        %8389 = vdwg.mxu0
        %8390 = vmatpush.bf16.msra.mxu0 %v6307
        %8391 = vmatpush.bf16.msra.mxu0 %v6305
        %8392 = vmatpush.bf16.msra.mxu0 %v6303
        %8393 = vmatpush.bf16.msra.mxu0 %v6301
        %8394 = vmatpush.bf16.msra.mxu0 %v6299
        %8395 = vmatpush.bf16.msra.mxu0 %v6297
        %8396 = vmatpush.bf16.msra.mxu0 %v6295
        %8397 = vmatpush.bf16.msra.mxu0 %v6293
        %8398 = vmatmul.bf16.gmra.mxu0 %v578
        %v8399 = vpop.f32.mrf.mxu0
        %v8400 = vadd.f32 %v8387, %v8399
        %v8401 = vpop.f32.mrf.mxu0
        %8402 = vdwg.mxu0
        %8403 = vmatpush.bf16.msra.mxu0 %v6323
        %8404 = vmatpush.bf16.msra.mxu0 %v6321
        %8405 = vmatpush.bf16.msra.mxu0 %v6319
        %8406 = vmatpush.bf16.msra.mxu0 %v6317
        %8407 = vmatpush.bf16.msra.mxu0 %v6315
        %8408 = vmatpush.bf16.msra.mxu0 %v6313
        %8409 = vmatpush.bf16.msra.mxu0 %v6311
        %8410 = vmatpush.bf16.msra.mxu0 %v6309
        %8411 = vmatmul.bf16.gmra.mxu0 %v579
        %v8412 = vpop.f32.mrf.mxu0
        %v8413 = vadd.f32 %v8400, %v8412
        %v8414 = vpop.f32.mrf.mxu0
        %8415 = vdwg.mxu0
        %8416 = vmatpush.bf16.msra.mxu0 %v6339
        %8417 = vmatpush.bf16.msra.mxu0 %v6337
        %8418 = vmatpush.bf16.msra.mxu0 %v6335
        %8419 = vmatpush.bf16.msra.mxu0 %v6333
        %8420 = vmatpush.bf16.msra.mxu0 %v6331
        %8421 = vmatpush.bf16.msra.mxu0 %v6329
        %8422 = vmatpush.bf16.msra.mxu0 %v6327
        %8423 = vmatpush.bf16.msra.mxu0 %v6325
        %8424 = vmatmul.bf16.gmra.mxu0 %v580
        %v8425 = vpop.f32.mrf.mxu0
        %v8426 = vadd.f32 %v8413, %v8425
        %v8427 = vpop.f32.mrf.mxu0
        %8428 = vdwg.mxu0
        %8429 = vmatpush.bf16.msra.mxu0 %v5204
        %8430 = vmatpush.bf16.msra.mxu0 %v5202
        %8431 = vmatpush.bf16.msra.mxu0 %v5200
        %8432 = vmatpush.bf16.msra.mxu0 %v5198
        %8433 = vmatpush.bf16.msra.mxu0 %v5196
        %8434 = vmatpush.bf16.msra.mxu0 %v5194
        %8435 = vmatpush.bf16.msra.mxu0 %v5192
        %8436 = vmatpush.bf16.msra.mxu0 %v5190
        %8437 = vmatmul.bf16.gmra.mxu0 %v509
        %v8438 = vpop.f32.mrf.mxu0
        %v8439 = vadd.f32 0.0, %v8438
        %v8440 = vpop.f32.mrf.mxu0
        %8441 = vdwg.mxu0
        %8442 = vmatpush.bf16.msra.mxu0 %v5220
        %8443 = vmatpush.bf16.msra.mxu0 %v5218
        %8444 = vmatpush.bf16.msra.mxu0 %v5216
        %8445 = vmatpush.bf16.msra.mxu0 %v5214
        %8446 = vmatpush.bf16.msra.mxu0 %v5212
        %8447 = vmatpush.bf16.msra.mxu0 %v5210
        %8448 = vmatpush.bf16.msra.mxu0 %v5208
        %8449 = vmatpush.bf16.msra.mxu0 %v5206
        %8450 = vmatmul.bf16.gmra.mxu0 %v510
        %v8451 = vpop.f32.mrf.mxu0
        %v8452 = vadd.f32 %v8439, %v8451
        %v8453 = vpop.f32.mrf.mxu0
        %8454 = vdwg.mxu0
        %8455 = vmatpush.bf16.msra.mxu0 %v5236
        %8456 = vmatpush.bf16.msra.mxu0 %v5234
        %8457 = vmatpush.bf16.msra.mxu0 %v5232
        %8458 = vmatpush.bf16.msra.mxu0 %v5230
        %8459 = vmatpush.bf16.msra.mxu0 %v5228
        %8460 = vmatpush.bf16.msra.mxu0 %v5226
        %8461 = vmatpush.bf16.msra.mxu0 %v5224
        %8462 = vmatpush.bf16.msra.mxu0 %v5222
        %8463 = vmatmul.bf16.gmra.mxu0 %v511
        %v8464 = vpop.f32.mrf.mxu0
        %v8465 = vadd.f32 %v8452, %v8464
        %v8466 = vpop.f32.mrf.mxu0
        %8467 = vdwg.mxu0
        %8468 = vmatpush.bf16.msra.mxu0 %v5252
        %8469 = vmatpush.bf16.msra.mxu0 %v5250
        %8470 = vmatpush.bf16.msra.mxu0 %v5248
        %8471 = vmatpush.bf16.msra.mxu0 %v5246
        %8472 = vmatpush.bf16.msra.mxu0 %v5244
        %8473 = vmatpush.bf16.msra.mxu0 %v5242
        %8474 = vmatpush.bf16.msra.mxu0 %v5240
        %8475 = vmatpush.bf16.msra.mxu0 %v5238
        %8476 = vmatmul.bf16.gmra.mxu0 %v512
        %v8477 = vpop.f32.mrf.mxu0
        %v8478 = vadd.f32 %v8465, %v8477
        %v8479 = vpop.f32.mrf.mxu0
        %8480 = vdwg.mxu0
        %8481 = vmatpush.bf16.msra.mxu0 %v5268
        %8482 = vmatpush.bf16.msra.mxu0 %v5266
        %8483 = vmatpush.bf16.msra.mxu0 %v5264
        %8484 = vmatpush.bf16.msra.mxu0 %v5262
        %8485 = vmatpush.bf16.msra.mxu0 %v5260
        %8486 = vmatpush.bf16.msra.mxu0 %v5258
        %8487 = vmatpush.bf16.msra.mxu0 %v5256
        %8488 = vmatpush.bf16.msra.mxu0 %v5254
        %8489 = vmatmul.bf16.gmra.mxu0 %v513
        %v8490 = vpop.f32.mrf.mxu0
        %v8491 = vadd.f32 %v8478, %v8490
        %v8492 = vpop.f32.mrf.mxu0
        %8493 = vdwg.mxu0
        %8494 = vmatpush.bf16.msra.mxu0 %v5284
        %8495 = vmatpush.bf16.msra.mxu0 %v5282
        %8496 = vmatpush.bf16.msra.mxu0 %v5280
        %8497 = vmatpush.bf16.msra.mxu0 %v5278
        %8498 = vmatpush.bf16.msra.mxu0 %v5276
        %8499 = vmatpush.bf16.msra.mxu0 %v5274
        %8500 = vmatpush.bf16.msra.mxu0 %v5272
        %8501 = vmatpush.bf16.msra.mxu0 %v5270
        %8502 = vmatmul.bf16.gmra.mxu0 %v514
        %v8503 = vpop.f32.mrf.mxu0
        %v8504 = vadd.f32 %v8491, %v8503
        %v8505 = vpop.f32.mrf.mxu0
        %8506 = vdwg.mxu0
        %8507 = vmatpush.bf16.msra.mxu0 %v5300
        %8508 = vmatpush.bf16.msra.mxu0 %v5298
        %8509 = vmatpush.bf16.msra.mxu0 %v5296
        %8510 = vmatpush.bf16.msra.mxu0 %v5294
        %8511 = vmatpush.bf16.msra.mxu0 %v5292
        %8512 = vmatpush.bf16.msra.mxu0 %v5290
        %8513 = vmatpush.bf16.msra.mxu0 %v5288
        %8514 = vmatpush.bf16.msra.mxu0 %v5286
        %8515 = vmatmul.bf16.gmra.mxu0 %v515
        %v8516 = vpop.f32.mrf.mxu0
        %v8517 = vadd.f32 %v8504, %v8516
        %v8518 = vpop.f32.mrf.mxu0
        %8519 = vdwg.mxu0
        %8520 = vmatpush.bf16.msra.mxu0 %v5316
        %8521 = vmatpush.bf16.msra.mxu0 %v5314
        %8522 = vmatpush.bf16.msra.mxu0 %v5312
        %8523 = vmatpush.bf16.msra.mxu0 %v5310
        %8524 = vmatpush.bf16.msra.mxu0 %v5308
        %8525 = vmatpush.bf16.msra.mxu0 %v5306
        %8526 = vmatpush.bf16.msra.mxu0 %v5304
        %8527 = vmatpush.bf16.msra.mxu0 %v5302
        %8528 = vmatmul.bf16.gmra.mxu0 %v516
        %v8529 = vpop.f32.mrf.mxu0
        %v8530 = vadd.f32 %v8517, %v8529
        %v8531 = vpop.f32.mrf.mxu0
        %8532 = vdwg.mxu0
        %8533 = vmatpush.bf16.msra.mxu0 %v5332
        %8534 = vmatpush.bf16.msra.mxu0 %v5330
        %8535 = vmatpush.bf16.msra.mxu0 %v5328
        %8536 = vmatpush.bf16.msra.mxu0 %v5326
        %8537 = vmatpush.bf16.msra.mxu0 %v5324
        %8538 = vmatpush.bf16.msra.mxu0 %v5322
        %8539 = vmatpush.bf16.msra.mxu0 %v5320
        %8540 = vmatpush.bf16.msra.mxu0 %v5318
        %8541 = vmatmul.bf16.gmra.mxu0 %v517
        %v8542 = vpop.f32.mrf.mxu0
        %v8543 = vadd.f32 %v8530, %v8542
        %v8544 = vpop.f32.mrf.mxu0
        %8545 = vdwg.mxu0
        %8546 = vmatpush.bf16.msra.mxu0 %v5348
        %8547 = vmatpush.bf16.msra.mxu0 %v5346
        %8548 = vmatpush.bf16.msra.mxu0 %v5344
        %8549 = vmatpush.bf16.msra.mxu0 %v5342
        %8550 = vmatpush.bf16.msra.mxu0 %v5340
        %8551 = vmatpush.bf16.msra.mxu0 %v5338
        %8552 = vmatpush.bf16.msra.mxu0 %v5336
        %8553 = vmatpush.bf16.msra.mxu0 %v5334
        %8554 = vmatmul.bf16.gmra.mxu0 %v518
        %v8555 = vpop.f32.mrf.mxu0
        %v8556 = vadd.f32 %v8543, %v8555
        %v8557 = vpop.f32.mrf.mxu0
        %8558 = vdwg.mxu0
        %8559 = vmatpush.bf16.msra.mxu0 %v5364
        %8560 = vmatpush.bf16.msra.mxu0 %v5362
        %8561 = vmatpush.bf16.msra.mxu0 %v5360
        %8562 = vmatpush.bf16.msra.mxu0 %v5358
        %8563 = vmatpush.bf16.msra.mxu0 %v5356
        %8564 = vmatpush.bf16.msra.mxu0 %v5354
        %8565 = vmatpush.bf16.msra.mxu0 %v5352
        %8566 = vmatpush.bf16.msra.mxu0 %v5350
        %8567 = vmatmul.bf16.gmra.mxu0 %v519
        %v8568 = vpop.f32.mrf.mxu0
        %v8569 = vadd.f32 %v8556, %v8568
        %v8570 = vpop.f32.mrf.mxu0
        %8571 = vdwg.mxu0
        %8572 = vmatpush.bf16.msra.mxu0 %v5380
        %8573 = vmatpush.bf16.msra.mxu0 %v5378
        %8574 = vmatpush.bf16.msra.mxu0 %v5376
        %8575 = vmatpush.bf16.msra.mxu0 %v5374
        %8576 = vmatpush.bf16.msra.mxu0 %v5372
        %8577 = vmatpush.bf16.msra.mxu0 %v5370
        %8578 = vmatpush.bf16.msra.mxu0 %v5368
        %8579 = vmatpush.bf16.msra.mxu0 %v5366
        %8580 = vmatmul.bf16.gmra.mxu0 %v520
        %v8581 = vpop.f32.mrf.mxu0
        %v8582 = vadd.f32 %v8569, %v8581
        %v8583 = vpop.f32.mrf.mxu0
        %8584 = vdwg.mxu0
        %8585 = vmatpush.bf16.msra.mxu0 %v5396
        %8586 = vmatpush.bf16.msra.mxu0 %v5394
        %8587 = vmatpush.bf16.msra.mxu0 %v5392
        %8588 = vmatpush.bf16.msra.mxu0 %v5390
        %8589 = vmatpush.bf16.msra.mxu0 %v5388
        %8590 = vmatpush.bf16.msra.mxu0 %v5386
        %8591 = vmatpush.bf16.msra.mxu0 %v5384
        %8592 = vmatpush.bf16.msra.mxu0 %v5382
        %8593 = vmatmul.bf16.gmra.mxu0 %v521
        %v8594 = vpop.f32.mrf.mxu0
        %v8595 = vadd.f32 %v8582, %v8594
        %v8596 = vpop.f32.mrf.mxu0
        %8597 = vdwg.mxu0
        %8598 = vmatpush.bf16.msra.mxu0 %v5412
        %8599 = vmatpush.bf16.msra.mxu0 %v5410
        %8600 = vmatpush.bf16.msra.mxu0 %v5408
        %8601 = vmatpush.bf16.msra.mxu0 %v5406
        %8602 = vmatpush.bf16.msra.mxu0 %v5404
        %8603 = vmatpush.bf16.msra.mxu0 %v5402
        %8604 = vmatpush.bf16.msra.mxu0 %v5400
        %8605 = vmatpush.bf16.msra.mxu0 %v5398
        %8606 = vmatmul.bf16.gmra.mxu0 %v522
        %v8607 = vpop.f32.mrf.mxu0
        %v8608 = vadd.f32 %v8595, %v8607
        %v8609 = vpop.f32.mrf.mxu0
        %8610 = vdwg.mxu0
        %8611 = vmatpush.bf16.msra.mxu0 %v5428
        %8612 = vmatpush.bf16.msra.mxu0 %v5426
        %8613 = vmatpush.bf16.msra.mxu0 %v5424
        %8614 = vmatpush.bf16.msra.mxu0 %v5422
        %8615 = vmatpush.bf16.msra.mxu0 %v5420
        %8616 = vmatpush.bf16.msra.mxu0 %v5418
        %8617 = vmatpush.bf16.msra.mxu0 %v5416
        %8618 = vmatpush.bf16.msra.mxu0 %v5414
        %8619 = vmatmul.bf16.gmra.mxu0 %v523
        %v8620 = vpop.f32.mrf.mxu0
        %v8621 = vadd.f32 %v8608, %v8620
        %v8622 = vpop.f32.mrf.mxu0
        %8623 = vdwg.mxu0
        %8624 = vmatpush.bf16.msra.mxu0 %v5444
        %8625 = vmatpush.bf16.msra.mxu0 %v5442
        %8626 = vmatpush.bf16.msra.mxu0 %v5440
        %8627 = vmatpush.bf16.msra.mxu0 %v5438
        %8628 = vmatpush.bf16.msra.mxu0 %v5436
        %8629 = vmatpush.bf16.msra.mxu0 %v5434
        %8630 = vmatpush.bf16.msra.mxu0 %v5432
        %8631 = vmatpush.bf16.msra.mxu0 %v5430
        %8632 = vmatmul.bf16.gmra.mxu0 %v524
        %v8633 = vpop.f32.mrf.mxu0
        %v8634 = vadd.f32 %v8621, %v8633
        %v8635 = vpop.f32.mrf.mxu0
        %8636 = vdwg.mxu0
        %8637 = vmatpush.bf16.msra.mxu0 %v5460
        %8638 = vmatpush.bf16.msra.mxu0 %v5458
        %8639 = vmatpush.bf16.msra.mxu0 %v5456
        %8640 = vmatpush.bf16.msra.mxu0 %v5454
        %8641 = vmatpush.bf16.msra.mxu0 %v5452
        %8642 = vmatpush.bf16.msra.mxu0 %v5450
        %8643 = vmatpush.bf16.msra.mxu0 %v5448
        %8644 = vmatpush.bf16.msra.mxu0 %v5446
        %8645 = vmatmul.bf16.gmra.mxu0 %v525
        %v8646 = vpop.f32.mrf.mxu0
        %v8647 = vadd.f32 %v8634, %v8646
        %v8648 = vpop.f32.mrf.mxu0
        %8649 = vdwg.mxu0
        %8650 = vmatpush.bf16.msra.mxu0 %v5476
        %8651 = vmatpush.bf16.msra.mxu0 %v5474
        %8652 = vmatpush.bf16.msra.mxu0 %v5472
        %8653 = vmatpush.bf16.msra.mxu0 %v5470
        %8654 = vmatpush.bf16.msra.mxu0 %v5468
        %8655 = vmatpush.bf16.msra.mxu0 %v5466
        %8656 = vmatpush.bf16.msra.mxu0 %v5464
        %8657 = vmatpush.bf16.msra.mxu0 %v5462
        %8658 = vmatmul.bf16.gmra.mxu0 %v526
        %v8659 = vpop.f32.mrf.mxu0
        %v8660 = vadd.f32 %v8647, %v8659
        %v8661 = vpop.f32.mrf.mxu0
        %8662 = vdwg.mxu0
        %8663 = vmatpush.bf16.msra.mxu0 %v5492
        %8664 = vmatpush.bf16.msra.mxu0 %v5490
        %8665 = vmatpush.bf16.msra.mxu0 %v5488
        %8666 = vmatpush.bf16.msra.mxu0 %v5486
        %8667 = vmatpush.bf16.msra.mxu0 %v5484
        %8668 = vmatpush.bf16.msra.mxu0 %v5482
        %8669 = vmatpush.bf16.msra.mxu0 %v5480
        %8670 = vmatpush.bf16.msra.mxu0 %v5478
        %8671 = vmatmul.bf16.gmra.mxu0 %v527
        %v8672 = vpop.f32.mrf.mxu0
        %v8673 = vadd.f32 %v8660, %v8672
        %v8674 = vpop.f32.mrf.mxu0
        %8675 = vdwg.mxu0
        %8676 = vmatpush.bf16.msra.mxu0 %v5508
        %8677 = vmatpush.bf16.msra.mxu0 %v5506
        %8678 = vmatpush.bf16.msra.mxu0 %v5504
        %8679 = vmatpush.bf16.msra.mxu0 %v5502
        %8680 = vmatpush.bf16.msra.mxu0 %v5500
        %8681 = vmatpush.bf16.msra.mxu0 %v5498
        %8682 = vmatpush.bf16.msra.mxu0 %v5496
        %8683 = vmatpush.bf16.msra.mxu0 %v5494
        %8684 = vmatmul.bf16.gmra.mxu0 %v528
        %v8685 = vpop.f32.mrf.mxu0
        %v8686 = vadd.f32 %v8673, %v8685
        %v8687 = vpop.f32.mrf.mxu0
        %8688 = vdwg.mxu0
        %8689 = vmatpush.bf16.msra.mxu0 %v5524
        %8690 = vmatpush.bf16.msra.mxu0 %v5522
        %8691 = vmatpush.bf16.msra.mxu0 %v5520
        %8692 = vmatpush.bf16.msra.mxu0 %v5518
        %8693 = vmatpush.bf16.msra.mxu0 %v5516
        %8694 = vmatpush.bf16.msra.mxu0 %v5514
        %8695 = vmatpush.bf16.msra.mxu0 %v5512
        %8696 = vmatpush.bf16.msra.mxu0 %v5510
        %8697 = vmatmul.bf16.gmra.mxu0 %v529
        %v8698 = vpop.f32.mrf.mxu0
        %v8699 = vadd.f32 %v8686, %v8698
        %v8700 = vpop.f32.mrf.mxu0
        %8701 = vdwg.mxu0
        %8702 = vmatpush.bf16.msra.mxu0 %v5540
        %8703 = vmatpush.bf16.msra.mxu0 %v5538
        %8704 = vmatpush.bf16.msra.mxu0 %v5536
        %8705 = vmatpush.bf16.msra.mxu0 %v5534
        %8706 = vmatpush.bf16.msra.mxu0 %v5532
        %8707 = vmatpush.bf16.msra.mxu0 %v5530
        %8708 = vmatpush.bf16.msra.mxu0 %v5528
        %8709 = vmatpush.bf16.msra.mxu0 %v5526
        %8710 = vmatmul.bf16.gmra.mxu0 %v530
        %v8711 = vpop.f32.mrf.mxu0
        %v8712 = vadd.f32 %v8699, %v8711
        %v8713 = vpop.f32.mrf.mxu0
        %8714 = vdwg.mxu0
        %8715 = vmatpush.bf16.msra.mxu0 %v5556
        %8716 = vmatpush.bf16.msra.mxu0 %v5554
        %8717 = vmatpush.bf16.msra.mxu0 %v5552
        %8718 = vmatpush.bf16.msra.mxu0 %v5550
        %8719 = vmatpush.bf16.msra.mxu0 %v5548
        %8720 = vmatpush.bf16.msra.mxu0 %v5546
        %8721 = vmatpush.bf16.msra.mxu0 %v5544
        %8722 = vmatpush.bf16.msra.mxu0 %v5542
        %8723 = vmatmul.bf16.gmra.mxu0 %v531
        %v8724 = vpop.f32.mrf.mxu0
        %v8725 = vadd.f32 %v8712, %v8724
        %v8726 = vpop.f32.mrf.mxu0
        %8727 = vdwg.mxu0
        %8728 = vmatpush.bf16.msra.mxu0 %v5572
        %8729 = vmatpush.bf16.msra.mxu0 %v5570
        %8730 = vmatpush.bf16.msra.mxu0 %v5568
        %8731 = vmatpush.bf16.msra.mxu0 %v5566
        %8732 = vmatpush.bf16.msra.mxu0 %v5564
        %8733 = vmatpush.bf16.msra.mxu0 %v5562
        %8734 = vmatpush.bf16.msra.mxu0 %v5560
        %8735 = vmatpush.bf16.msra.mxu0 %v5558
        %8736 = vmatmul.bf16.gmra.mxu0 %v532
        %v8737 = vpop.f32.mrf.mxu0
        %v8738 = vadd.f32 %v8725, %v8737
        %v8739 = vpop.f32.mrf.mxu0
        %8740 = vdwg.mxu0
        %8741 = vmatpush.bf16.msra.mxu0 %v5588
        %8742 = vmatpush.bf16.msra.mxu0 %v5586
        %8743 = vmatpush.bf16.msra.mxu0 %v5584
        %8744 = vmatpush.bf16.msra.mxu0 %v5582
        %8745 = vmatpush.bf16.msra.mxu0 %v5580
        %8746 = vmatpush.bf16.msra.mxu0 %v5578
        %8747 = vmatpush.bf16.msra.mxu0 %v5576
        %8748 = vmatpush.bf16.msra.mxu0 %v5574
        %8749 = vmatmul.bf16.gmra.mxu0 %v533
        %v8750 = vpop.f32.mrf.mxu0
        %v8751 = vadd.f32 %v8738, %v8750
        %v8752 = vpop.f32.mrf.mxu0
        %8753 = vdwg.mxu0
        %8754 = vmatpush.bf16.msra.mxu0 %v5604
        %8755 = vmatpush.bf16.msra.mxu0 %v5602
        %8756 = vmatpush.bf16.msra.mxu0 %v5600
        %8757 = vmatpush.bf16.msra.mxu0 %v5598
        %8758 = vmatpush.bf16.msra.mxu0 %v5596
        %8759 = vmatpush.bf16.msra.mxu0 %v5594
        %8760 = vmatpush.bf16.msra.mxu0 %v5592
        %8761 = vmatpush.bf16.msra.mxu0 %v5590
        %8762 = vmatmul.bf16.gmra.mxu0 %v534
        %v8763 = vpop.f32.mrf.mxu0
        %v8764 = vadd.f32 %v8751, %v8763
        %v8765 = vpop.f32.mrf.mxu0
        %8766 = vdwg.mxu0
        %8767 = vmatpush.bf16.msra.mxu0 %v5620
        %8768 = vmatpush.bf16.msra.mxu0 %v5618
        %8769 = vmatpush.bf16.msra.mxu0 %v5616
        %8770 = vmatpush.bf16.msra.mxu0 %v5614
        %8771 = vmatpush.bf16.msra.mxu0 %v5612
        %8772 = vmatpush.bf16.msra.mxu0 %v5610
        %8773 = vmatpush.bf16.msra.mxu0 %v5608
        %8774 = vmatpush.bf16.msra.mxu0 %v5606
        %8775 = vmatmul.bf16.gmra.mxu0 %v535
        %v8776 = vpop.f32.mrf.mxu0
        %v8777 = vadd.f32 %v8764, %v8776
        %v8778 = vpop.f32.mrf.mxu0
        %8779 = vdwg.mxu0
        %8780 = vmatpush.bf16.msra.mxu0 %v5636
        %8781 = vmatpush.bf16.msra.mxu0 %v5634
        %8782 = vmatpush.bf16.msra.mxu0 %v5632
        %8783 = vmatpush.bf16.msra.mxu0 %v5630
        %8784 = vmatpush.bf16.msra.mxu0 %v5628
        %8785 = vmatpush.bf16.msra.mxu0 %v5626
        %8786 = vmatpush.bf16.msra.mxu0 %v5624
        %8787 = vmatpush.bf16.msra.mxu0 %v5622
        %8788 = vmatmul.bf16.gmra.mxu0 %v536
        %v8789 = vpop.f32.mrf.mxu0
        %v8790 = vadd.f32 %v8777, %v8789
        %v8791 = vpop.f32.mrf.mxu0
        %8792 = vdwg.mxu0
        %8793 = vmatpush.bf16.msra.mxu0 %v5652
        %8794 = vmatpush.bf16.msra.mxu0 %v5650
        %8795 = vmatpush.bf16.msra.mxu0 %v5648
        %8796 = vmatpush.bf16.msra.mxu0 %v5646
        %8797 = vmatpush.bf16.msra.mxu0 %v5644
        %8798 = vmatpush.bf16.msra.mxu0 %v5642
        %8799 = vmatpush.bf16.msra.mxu0 %v5640
        %8800 = vmatpush.bf16.msra.mxu0 %v5638
        %8801 = vmatmul.bf16.gmra.mxu0 %v537
        %v8802 = vpop.f32.mrf.mxu0
        %v8803 = vadd.f32 %v8790, %v8802
        %v8804 = vpop.f32.mrf.mxu0
        %8805 = vdwg.mxu0
        %8806 = vmatpush.bf16.msra.mxu0 %v5668
        %8807 = vmatpush.bf16.msra.mxu0 %v5666
        %8808 = vmatpush.bf16.msra.mxu0 %v5664
        %8809 = vmatpush.bf16.msra.mxu0 %v5662
        %8810 = vmatpush.bf16.msra.mxu0 %v5660
        %8811 = vmatpush.bf16.msra.mxu0 %v5658
        %8812 = vmatpush.bf16.msra.mxu0 %v5656
        %8813 = vmatpush.bf16.msra.mxu0 %v5654
        %8814 = vmatmul.bf16.gmra.mxu0 %v538
        %v8815 = vpop.f32.mrf.mxu0
        %v8816 = vadd.f32 %v8803, %v8815
        %v8817 = vpop.f32.mrf.mxu0
        %8818 = vdwg.mxu0
        %8819 = vmatpush.bf16.msra.mxu0 %v5684
        %8820 = vmatpush.bf16.msra.mxu0 %v5682
        %8821 = vmatpush.bf16.msra.mxu0 %v5680
        %8822 = vmatpush.bf16.msra.mxu0 %v5678
        %8823 = vmatpush.bf16.msra.mxu0 %v5676
        %8824 = vmatpush.bf16.msra.mxu0 %v5674
        %8825 = vmatpush.bf16.msra.mxu0 %v5672
        %8826 = vmatpush.bf16.msra.mxu0 %v5670
        %8827 = vmatmul.bf16.gmra.mxu0 %v539
        %v8828 = vpop.f32.mrf.mxu0
        %v8829 = vadd.f32 %v8816, %v8828
        %v8830 = vpop.f32.mrf.mxu0
        %8831 = vdwg.mxu0
        %8832 = vmatpush.bf16.msra.mxu0 %v5700
        %8833 = vmatpush.bf16.msra.mxu0 %v5698
        %8834 = vmatpush.bf16.msra.mxu0 %v5696
        %8835 = vmatpush.bf16.msra.mxu0 %v5694
        %8836 = vmatpush.bf16.msra.mxu0 %v5692
        %8837 = vmatpush.bf16.msra.mxu0 %v5690
        %8838 = vmatpush.bf16.msra.mxu0 %v5688
        %8839 = vmatpush.bf16.msra.mxu0 %v5686
        %8840 = vmatmul.bf16.gmra.mxu0 %v540
        %v8841 = vpop.f32.mrf.mxu0
        %v8842 = vadd.f32 %v8829, %v8841
        %v8843 = vpop.f32.mrf.mxu0
        %8844 = vdwg.mxu0
        %8845 = vmatpush.bf16.msra.mxu0 %v5716
        %8846 = vmatpush.bf16.msra.mxu0 %v5714
        %8847 = vmatpush.bf16.msra.mxu0 %v5712
        %8848 = vmatpush.bf16.msra.mxu0 %v5710
        %8849 = vmatpush.bf16.msra.mxu0 %v5708
        %8850 = vmatpush.bf16.msra.mxu0 %v5706
        %8851 = vmatpush.bf16.msra.mxu0 %v5704
        %8852 = vmatpush.bf16.msra.mxu0 %v5702
        %8853 = vmatmul.bf16.gmra.mxu0 %v541
        %v8854 = vpop.f32.mrf.mxu0
        %v8855 = vadd.f32 %v8842, %v8854
        %v8856 = vpop.f32.mrf.mxu0
        %8857 = vdwg.mxu0
        %8858 = vmatpush.bf16.msra.mxu0 %v5732
        %8859 = vmatpush.bf16.msra.mxu0 %v5730
        %8860 = vmatpush.bf16.msra.mxu0 %v5728
        %8861 = vmatpush.bf16.msra.mxu0 %v5726
        %8862 = vmatpush.bf16.msra.mxu0 %v5724
        %8863 = vmatpush.bf16.msra.mxu0 %v5722
        %8864 = vmatpush.bf16.msra.mxu0 %v5720
        %8865 = vmatpush.bf16.msra.mxu0 %v5718
        %8866 = vmatmul.bf16.gmra.mxu0 %v542
        %v8867 = vpop.f32.mrf.mxu0
        %v8868 = vadd.f32 %v8855, %v8867
        %v8869 = vpop.f32.mrf.mxu0
        %8870 = vdwg.mxu0
        %8871 = vmatpush.bf16.msra.mxu0 %v5748
        %8872 = vmatpush.bf16.msra.mxu0 %v5746
        %8873 = vmatpush.bf16.msra.mxu0 %v5744
        %8874 = vmatpush.bf16.msra.mxu0 %v5742
        %8875 = vmatpush.bf16.msra.mxu0 %v5740
        %8876 = vmatpush.bf16.msra.mxu0 %v5738
        %8877 = vmatpush.bf16.msra.mxu0 %v5736
        %8878 = vmatpush.bf16.msra.mxu0 %v5734
        %8879 = vmatmul.bf16.gmra.mxu0 %v543
        %v8880 = vpop.f32.mrf.mxu0
        %v8881 = vadd.f32 %v8868, %v8880
        %v8882 = vpop.f32.mrf.mxu0
        %8883 = vdwg.mxu0
        %8884 = vmatpush.bf16.msra.mxu0 %v5764
        %8885 = vmatpush.bf16.msra.mxu0 %v5762
        %8886 = vmatpush.bf16.msra.mxu0 %v5760
        %8887 = vmatpush.bf16.msra.mxu0 %v5758
        %8888 = vmatpush.bf16.msra.mxu0 %v5756
        %8889 = vmatpush.bf16.msra.mxu0 %v5754
        %8890 = vmatpush.bf16.msra.mxu0 %v5752
        %8891 = vmatpush.bf16.msra.mxu0 %v5750
        %8892 = vmatmul.bf16.gmra.mxu0 %v544
        %v8893 = vpop.f32.mrf.mxu0
        %v8894 = vadd.f32 %v8881, %v8893
        %v8895 = vpop.f32.mrf.mxu0
        %8896 = vdwg.mxu0
        %8897 = vmatpush.bf16.msra.mxu0 %v5780
        %8898 = vmatpush.bf16.msra.mxu0 %v5778
        %8899 = vmatpush.bf16.msra.mxu0 %v5776
        %8900 = vmatpush.bf16.msra.mxu0 %v5774
        %8901 = vmatpush.bf16.msra.mxu0 %v5772
        %8902 = vmatpush.bf16.msra.mxu0 %v5770
        %8903 = vmatpush.bf16.msra.mxu0 %v5768
        %8904 = vmatpush.bf16.msra.mxu0 %v5766
        %8905 = vmatmul.bf16.gmra.mxu0 %v545
        %v8906 = vpop.f32.mrf.mxu0
        %v8907 = vadd.f32 %v8894, %v8906
        %v8908 = vpop.f32.mrf.mxu0
        %8909 = vdwg.mxu0
        %8910 = vmatpush.bf16.msra.mxu0 %v5796
        %8911 = vmatpush.bf16.msra.mxu0 %v5794
        %8912 = vmatpush.bf16.msra.mxu0 %v5792
        %8913 = vmatpush.bf16.msra.mxu0 %v5790
        %8914 = vmatpush.bf16.msra.mxu0 %v5788
        %8915 = vmatpush.bf16.msra.mxu0 %v5786
        %8916 = vmatpush.bf16.msra.mxu0 %v5784
        %8917 = vmatpush.bf16.msra.mxu0 %v5782
        %8918 = vmatmul.bf16.gmra.mxu0 %v546
        %v8919 = vpop.f32.mrf.mxu0
        %v8920 = vadd.f32 %v8907, %v8919
        %v8921 = vpop.f32.mrf.mxu0
        %8922 = vdwg.mxu0
        %8923 = vmatpush.bf16.msra.mxu0 %v5812
        %8924 = vmatpush.bf16.msra.mxu0 %v5810
        %8925 = vmatpush.bf16.msra.mxu0 %v5808
        %8926 = vmatpush.bf16.msra.mxu0 %v5806
        %8927 = vmatpush.bf16.msra.mxu0 %v5804
        %8928 = vmatpush.bf16.msra.mxu0 %v5802
        %8929 = vmatpush.bf16.msra.mxu0 %v5800
        %8930 = vmatpush.bf16.msra.mxu0 %v5798
        %8931 = vmatmul.bf16.gmra.mxu0 %v547
        %v8932 = vpop.f32.mrf.mxu0
        %v8933 = vadd.f32 %v8920, %v8932
        %v8934 = vpop.f32.mrf.mxu0
        %8935 = vdwg.mxu0
        %8936 = vmatpush.bf16.msra.mxu0 %v5828
        %8937 = vmatpush.bf16.msra.mxu0 %v5826
        %8938 = vmatpush.bf16.msra.mxu0 %v5824
        %8939 = vmatpush.bf16.msra.mxu0 %v5822
        %8940 = vmatpush.bf16.msra.mxu0 %v5820
        %8941 = vmatpush.bf16.msra.mxu0 %v5818
        %8942 = vmatpush.bf16.msra.mxu0 %v5816
        %8943 = vmatpush.bf16.msra.mxu0 %v5814
        %8944 = vmatmul.bf16.gmra.mxu0 %v548
        %v8945 = vpop.f32.mrf.mxu0
        %v8946 = vadd.f32 %v8933, %v8945
        %v8947 = vpop.f32.mrf.mxu0
        %8948 = vdwg.mxu0
        %8949 = vmatpush.bf16.msra.mxu0 %v5844
        %8950 = vmatpush.bf16.msra.mxu0 %v5842
        %8951 = vmatpush.bf16.msra.mxu0 %v5840
        %8952 = vmatpush.bf16.msra.mxu0 %v5838
        %8953 = vmatpush.bf16.msra.mxu0 %v5836
        %8954 = vmatpush.bf16.msra.mxu0 %v5834
        %8955 = vmatpush.bf16.msra.mxu0 %v5832
        %8956 = vmatpush.bf16.msra.mxu0 %v5830
        %8957 = vmatmul.bf16.gmra.mxu0 %v549
        %v8958 = vpop.f32.mrf.mxu0
        %v8959 = vadd.f32 %v8946, %v8958
        %v8960 = vpop.f32.mrf.mxu0
        %8961 = vdwg.mxu0
        %8962 = vmatpush.bf16.msra.mxu0 %v5860
        %8963 = vmatpush.bf16.msra.mxu0 %v5858
        %8964 = vmatpush.bf16.msra.mxu0 %v5856
        %8965 = vmatpush.bf16.msra.mxu0 %v5854
        %8966 = vmatpush.bf16.msra.mxu0 %v5852
        %8967 = vmatpush.bf16.msra.mxu0 %v5850
        %8968 = vmatpush.bf16.msra.mxu0 %v5848
        %8969 = vmatpush.bf16.msra.mxu0 %v5846
        %8970 = vmatmul.bf16.gmra.mxu0 %v550
        %v8971 = vpop.f32.mrf.mxu0
        %v8972 = vadd.f32 %v8959, %v8971
        %v8973 = vpop.f32.mrf.mxu0
        %8974 = vdwg.mxu0
        %8975 = vmatpush.bf16.msra.mxu0 %v5876
        %8976 = vmatpush.bf16.msra.mxu0 %v5874
        %8977 = vmatpush.bf16.msra.mxu0 %v5872
        %8978 = vmatpush.bf16.msra.mxu0 %v5870
        %8979 = vmatpush.bf16.msra.mxu0 %v5868
        %8980 = vmatpush.bf16.msra.mxu0 %v5866
        %8981 = vmatpush.bf16.msra.mxu0 %v5864
        %8982 = vmatpush.bf16.msra.mxu0 %v5862
        %8983 = vmatmul.bf16.gmra.mxu0 %v551
        %v8984 = vpop.f32.mrf.mxu0
        %v8985 = vadd.f32 %v8972, %v8984
        %v8986 = vpop.f32.mrf.mxu0
        %8987 = vdwg.mxu0
        %8988 = vmatpush.bf16.msra.mxu0 %v5892
        %8989 = vmatpush.bf16.msra.mxu0 %v5890
        %8990 = vmatpush.bf16.msra.mxu0 %v5888
        %8991 = vmatpush.bf16.msra.mxu0 %v5886
        %8992 = vmatpush.bf16.msra.mxu0 %v5884
        %8993 = vmatpush.bf16.msra.mxu0 %v5882
        %8994 = vmatpush.bf16.msra.mxu0 %v5880
        %8995 = vmatpush.bf16.msra.mxu0 %v5878
        %8996 = vmatmul.bf16.gmra.mxu0 %v552
        %v8997 = vpop.f32.mrf.mxu0
        %v8998 = vadd.f32 %v8985, %v8997
        %v8999 = vpop.f32.mrf.mxu0
        %9000 = vdwg.mxu0
        %9001 = vmatpush.bf16.msra.mxu0 %v5908
        %9002 = vmatpush.bf16.msra.mxu0 %v5906
        %9003 = vmatpush.bf16.msra.mxu0 %v5904
        %9004 = vmatpush.bf16.msra.mxu0 %v5902
        %9005 = vmatpush.bf16.msra.mxu0 %v5900
        %9006 = vmatpush.bf16.msra.mxu0 %v5898
        %9007 = vmatpush.bf16.msra.mxu0 %v5896
        %9008 = vmatpush.bf16.msra.mxu0 %v5894
        %9009 = vmatmul.bf16.gmra.mxu0 %v553
        %v9010 = vpop.f32.mrf.mxu0
        %v9011 = vadd.f32 %v8998, %v9010
        %v9012 = vpop.f32.mrf.mxu0
        %9013 = vdwg.mxu0
        %9014 = vmatpush.bf16.msra.mxu0 %v5924
        %9015 = vmatpush.bf16.msra.mxu0 %v5922
        %9016 = vmatpush.bf16.msra.mxu0 %v5920
        %9017 = vmatpush.bf16.msra.mxu0 %v5918
        %9018 = vmatpush.bf16.msra.mxu0 %v5916
        %9019 = vmatpush.bf16.msra.mxu0 %v5914
        %9020 = vmatpush.bf16.msra.mxu0 %v5912
        %9021 = vmatpush.bf16.msra.mxu0 %v5910
        %9022 = vmatmul.bf16.gmra.mxu0 %v554
        %v9023 = vpop.f32.mrf.mxu0
        %v9024 = vadd.f32 %v9011, %v9023
        %v9025 = vpop.f32.mrf.mxu0
        %9026 = vdwg.mxu0
        %9027 = vmatpush.bf16.msra.mxu0 %v5940
        %9028 = vmatpush.bf16.msra.mxu0 %v5938
        %9029 = vmatpush.bf16.msra.mxu0 %v5936
        %9030 = vmatpush.bf16.msra.mxu0 %v5934
        %9031 = vmatpush.bf16.msra.mxu0 %v5932
        %9032 = vmatpush.bf16.msra.mxu0 %v5930
        %9033 = vmatpush.bf16.msra.mxu0 %v5928
        %9034 = vmatpush.bf16.msra.mxu0 %v5926
        %9035 = vmatmul.bf16.gmra.mxu0 %v555
        %v9036 = vpop.f32.mrf.mxu0
        %v9037 = vadd.f32 %v9024, %v9036
        %v9038 = vpop.f32.mrf.mxu0
        %9039 = vdwg.mxu0
        %9040 = vmatpush.bf16.msra.mxu0 %v5956
        %9041 = vmatpush.bf16.msra.mxu0 %v5954
        %9042 = vmatpush.bf16.msra.mxu0 %v5952
        %9043 = vmatpush.bf16.msra.mxu0 %v5950
        %9044 = vmatpush.bf16.msra.mxu0 %v5948
        %9045 = vmatpush.bf16.msra.mxu0 %v5946
        %9046 = vmatpush.bf16.msra.mxu0 %v5944
        %9047 = vmatpush.bf16.msra.mxu0 %v5942
        %9048 = vmatmul.bf16.gmra.mxu0 %v556
        %v9049 = vpop.f32.mrf.mxu0
        %v9050 = vadd.f32 %v9037, %v9049
        %v9051 = vpop.f32.mrf.mxu0
        %9052 = vdwg.mxu0
        %9053 = vmatpush.bf16.msra.mxu0 %v5972
        %9054 = vmatpush.bf16.msra.mxu0 %v5970
        %9055 = vmatpush.bf16.msra.mxu0 %v5968
        %9056 = vmatpush.bf16.msra.mxu0 %v5966
        %9057 = vmatpush.bf16.msra.mxu0 %v5964
        %9058 = vmatpush.bf16.msra.mxu0 %v5962
        %9059 = vmatpush.bf16.msra.mxu0 %v5960
        %9060 = vmatpush.bf16.msra.mxu0 %v5958
        %9061 = vmatmul.bf16.gmra.mxu0 %v557
        %v9062 = vpop.f32.mrf.mxu0
        %v9063 = vadd.f32 %v9050, %v9062
        %v9064 = vpop.f32.mrf.mxu0
        %9065 = vdwg.mxu0
        %9066 = vmatpush.bf16.msra.mxu0 %v5988
        %9067 = vmatpush.bf16.msra.mxu0 %v5986
        %9068 = vmatpush.bf16.msra.mxu0 %v5984
        %9069 = vmatpush.bf16.msra.mxu0 %v5982
        %9070 = vmatpush.bf16.msra.mxu0 %v5980
        %9071 = vmatpush.bf16.msra.mxu0 %v5978
        %9072 = vmatpush.bf16.msra.mxu0 %v5976
        %9073 = vmatpush.bf16.msra.mxu0 %v5974
        %9074 = vmatmul.bf16.gmra.mxu0 %v558
        %v9075 = vpop.f32.mrf.mxu0
        %v9076 = vadd.f32 %v9063, %v9075
        %v9077 = vpop.f32.mrf.mxu0
        %9078 = vdwg.mxu0
        %9079 = vmatpush.bf16.msra.mxu0 %v6004
        %9080 = vmatpush.bf16.msra.mxu0 %v6002
        %9081 = vmatpush.bf16.msra.mxu0 %v6000
        %9082 = vmatpush.bf16.msra.mxu0 %v5998
        %9083 = vmatpush.bf16.msra.mxu0 %v5996
        %9084 = vmatpush.bf16.msra.mxu0 %v5994
        %9085 = vmatpush.bf16.msra.mxu0 %v5992
        %9086 = vmatpush.bf16.msra.mxu0 %v5990
        %9087 = vmatmul.bf16.gmra.mxu0 %v559
        %v9088 = vpop.f32.mrf.mxu0
        %v9089 = vadd.f32 %v9076, %v9088
        %v9090 = vpop.f32.mrf.mxu0
        %9091 = vdwg.mxu0
        %9092 = vmatpush.bf16.msra.mxu0 %v6020
        %9093 = vmatpush.bf16.msra.mxu0 %v6018
        %9094 = vmatpush.bf16.msra.mxu0 %v6016
        %9095 = vmatpush.bf16.msra.mxu0 %v6014
        %9096 = vmatpush.bf16.msra.mxu0 %v6012
        %9097 = vmatpush.bf16.msra.mxu0 %v6010
        %9098 = vmatpush.bf16.msra.mxu0 %v6008
        %9099 = vmatpush.bf16.msra.mxu0 %v6006
        %9100 = vmatmul.bf16.gmra.mxu0 %v560
        %v9101 = vpop.f32.mrf.mxu0
        %v9102 = vadd.f32 %v9089, %v9101
        %v9103 = vpop.f32.mrf.mxu0
        %9104 = vdwg.mxu0
        %9105 = vmatpush.bf16.msra.mxu0 %v6036
        %9106 = vmatpush.bf16.msra.mxu0 %v6034
        %9107 = vmatpush.bf16.msra.mxu0 %v6032
        %9108 = vmatpush.bf16.msra.mxu0 %v6030
        %9109 = vmatpush.bf16.msra.mxu0 %v6028
        %9110 = vmatpush.bf16.msra.mxu0 %v6026
        %9111 = vmatpush.bf16.msra.mxu0 %v6024
        %9112 = vmatpush.bf16.msra.mxu0 %v6022
        %9113 = vmatmul.bf16.gmra.mxu0 %v561
        %v9114 = vpop.f32.mrf.mxu0
        %v9115 = vadd.f32 %v9102, %v9114
        %v9116 = vpop.f32.mrf.mxu0
        %9117 = vdwg.mxu0
        %9118 = vmatpush.bf16.msra.mxu0 %v6052
        %9119 = vmatpush.bf16.msra.mxu0 %v6050
        %9120 = vmatpush.bf16.msra.mxu0 %v6048
        %9121 = vmatpush.bf16.msra.mxu0 %v6046
        %9122 = vmatpush.bf16.msra.mxu0 %v6044
        %9123 = vmatpush.bf16.msra.mxu0 %v6042
        %9124 = vmatpush.bf16.msra.mxu0 %v6040
        %9125 = vmatpush.bf16.msra.mxu0 %v6038
        %9126 = vmatmul.bf16.gmra.mxu0 %v562
        %v9127 = vpop.f32.mrf.mxu0
        %v9128 = vadd.f32 %v9115, %v9127
        %v9129 = vpop.f32.mrf.mxu0
        %9130 = vdwg.mxu0
        %9131 = vmatpush.bf16.msra.mxu0 %v6068
        %9132 = vmatpush.bf16.msra.mxu0 %v6066
        %9133 = vmatpush.bf16.msra.mxu0 %v6064
        %9134 = vmatpush.bf16.msra.mxu0 %v6062
        %9135 = vmatpush.bf16.msra.mxu0 %v6060
        %9136 = vmatpush.bf16.msra.mxu0 %v6058
        %9137 = vmatpush.bf16.msra.mxu0 %v6056
        %9138 = vmatpush.bf16.msra.mxu0 %v6054
        %9139 = vmatmul.bf16.gmra.mxu0 %v563
        %v9140 = vpop.f32.mrf.mxu0
        %v9141 = vadd.f32 %v9128, %v9140
        %v9142 = vpop.f32.mrf.mxu0
        %9143 = vdwg.mxu0
        %9144 = vmatpush.bf16.msra.mxu0 %v6084
        %9145 = vmatpush.bf16.msra.mxu0 %v6082
        %9146 = vmatpush.bf16.msra.mxu0 %v6080
        %9147 = vmatpush.bf16.msra.mxu0 %v6078
        %9148 = vmatpush.bf16.msra.mxu0 %v6076
        %9149 = vmatpush.bf16.msra.mxu0 %v6074
        %9150 = vmatpush.bf16.msra.mxu0 %v6072
        %9151 = vmatpush.bf16.msra.mxu0 %v6070
        %9152 = vmatmul.bf16.gmra.mxu0 %v564
        %v9153 = vpop.f32.mrf.mxu0
        %v9154 = vadd.f32 %v9141, %v9153
        %v9155 = vpop.f32.mrf.mxu0
        %9156 = vdwg.mxu0
        %9157 = vmatpush.bf16.msra.mxu0 %v6100
        %9158 = vmatpush.bf16.msra.mxu0 %v6098
        %9159 = vmatpush.bf16.msra.mxu0 %v6096
        %9160 = vmatpush.bf16.msra.mxu0 %v6094
        %9161 = vmatpush.bf16.msra.mxu0 %v6092
        %9162 = vmatpush.bf16.msra.mxu0 %v6090
        %9163 = vmatpush.bf16.msra.mxu0 %v6088
        %9164 = vmatpush.bf16.msra.mxu0 %v6086
        %9165 = vmatmul.bf16.gmra.mxu0 %v565
        %v9166 = vpop.f32.mrf.mxu0
        %v9167 = vadd.f32 %v9154, %v9166
        %v9168 = vpop.f32.mrf.mxu0
        %9169 = vdwg.mxu0
        %9170 = vmatpush.bf16.msra.mxu0 %v6116
        %9171 = vmatpush.bf16.msra.mxu0 %v6114
        %9172 = vmatpush.bf16.msra.mxu0 %v6112
        %9173 = vmatpush.bf16.msra.mxu0 %v6110
        %9174 = vmatpush.bf16.msra.mxu0 %v6108
        %9175 = vmatpush.bf16.msra.mxu0 %v6106
        %9176 = vmatpush.bf16.msra.mxu0 %v6104
        %9177 = vmatpush.bf16.msra.mxu0 %v6102
        %9178 = vmatmul.bf16.gmra.mxu0 %v566
        %v9179 = vpop.f32.mrf.mxu0
        %v9180 = vadd.f32 %v9167, %v9179
        %v9181 = vpop.f32.mrf.mxu0
        %9182 = vdwg.mxu0
        %9183 = vmatpush.bf16.msra.mxu0 %v6132
        %9184 = vmatpush.bf16.msra.mxu0 %v6130
        %9185 = vmatpush.bf16.msra.mxu0 %v6128
        %9186 = vmatpush.bf16.msra.mxu0 %v6126
        %9187 = vmatpush.bf16.msra.mxu0 %v6124
        %9188 = vmatpush.bf16.msra.mxu0 %v6122
        %9189 = vmatpush.bf16.msra.mxu0 %v6120
        %9190 = vmatpush.bf16.msra.mxu0 %v6118
        %9191 = vmatmul.bf16.gmra.mxu0 %v567
        %v9192 = vpop.f32.mrf.mxu0
        %v9193 = vadd.f32 %v9180, %v9192
        %v9194 = vpop.f32.mrf.mxu0
        %9195 = vdwg.mxu0
        %9196 = vmatpush.bf16.msra.mxu0 %v6148
        %9197 = vmatpush.bf16.msra.mxu0 %v6146
        %9198 = vmatpush.bf16.msra.mxu0 %v6144
        %9199 = vmatpush.bf16.msra.mxu0 %v6142
        %9200 = vmatpush.bf16.msra.mxu0 %v6140
        %9201 = vmatpush.bf16.msra.mxu0 %v6138
        %9202 = vmatpush.bf16.msra.mxu0 %v6136
        %9203 = vmatpush.bf16.msra.mxu0 %v6134
        %9204 = vmatmul.bf16.gmra.mxu0 %v568
        %v9205 = vpop.f32.mrf.mxu0
        %v9206 = vadd.f32 %v9193, %v9205
        %v9207 = vpop.f32.mrf.mxu0
        %9208 = vdwg.mxu0
        %9209 = vmatpush.bf16.msra.mxu0 %v6164
        %9210 = vmatpush.bf16.msra.mxu0 %v6162
        %9211 = vmatpush.bf16.msra.mxu0 %v6160
        %9212 = vmatpush.bf16.msra.mxu0 %v6158
        %9213 = vmatpush.bf16.msra.mxu0 %v6156
        %9214 = vmatpush.bf16.msra.mxu0 %v6154
        %9215 = vmatpush.bf16.msra.mxu0 %v6152
        %9216 = vmatpush.bf16.msra.mxu0 %v6150
        %9217 = vmatmul.bf16.gmra.mxu0 %v569
        %v9218 = vpop.f32.mrf.mxu0
        %v9219 = vadd.f32 %v9206, %v9218
        %v9220 = vpop.f32.mrf.mxu0
        %9221 = vdwg.mxu0
        %9222 = vmatpush.bf16.msra.mxu0 %v6180
        %9223 = vmatpush.bf16.msra.mxu0 %v6178
        %9224 = vmatpush.bf16.msra.mxu0 %v6176
        %9225 = vmatpush.bf16.msra.mxu0 %v6174
        %9226 = vmatpush.bf16.msra.mxu0 %v6172
        %9227 = vmatpush.bf16.msra.mxu0 %v6170
        %9228 = vmatpush.bf16.msra.mxu0 %v6168
        %9229 = vmatpush.bf16.msra.mxu0 %v6166
        %9230 = vmatmul.bf16.gmra.mxu0 %v570
        %v9231 = vpop.f32.mrf.mxu0
        %v9232 = vadd.f32 %v9219, %v9231
        %v9233 = vpop.f32.mrf.mxu0
        %9234 = vdwg.mxu0
        %9235 = vmatpush.bf16.msra.mxu0 %v6196
        %9236 = vmatpush.bf16.msra.mxu0 %v6194
        %9237 = vmatpush.bf16.msra.mxu0 %v6192
        %9238 = vmatpush.bf16.msra.mxu0 %v6190
        %9239 = vmatpush.bf16.msra.mxu0 %v6188
        %9240 = vmatpush.bf16.msra.mxu0 %v6186
        %9241 = vmatpush.bf16.msra.mxu0 %v6184
        %9242 = vmatpush.bf16.msra.mxu0 %v6182
        %9243 = vmatmul.bf16.gmra.mxu0 %v571
        %v9244 = vpop.f32.mrf.mxu0
        %v9245 = vadd.f32 %v9232, %v9244
        %v9246 = vpop.f32.mrf.mxu0
        %9247 = vdwg.mxu0
        %9248 = vmatpush.bf16.msra.mxu0 %v6212
        %9249 = vmatpush.bf16.msra.mxu0 %v6210
        %9250 = vmatpush.bf16.msra.mxu0 %v6208
        %9251 = vmatpush.bf16.msra.mxu0 %v6206
        %9252 = vmatpush.bf16.msra.mxu0 %v6204
        %9253 = vmatpush.bf16.msra.mxu0 %v6202
        %9254 = vmatpush.bf16.msra.mxu0 %v6200
        %9255 = vmatpush.bf16.msra.mxu0 %v6198
        %9256 = vmatmul.bf16.gmra.mxu0 %v572
        %v9257 = vpop.f32.mrf.mxu0
        %v9258 = vadd.f32 %v9245, %v9257
        %v9259 = vpop.f32.mrf.mxu0
        %9260 = vdwg.mxu0
        %9261 = vmatpush.bf16.msra.mxu0 %v6228
        %9262 = vmatpush.bf16.msra.mxu0 %v6226
        %9263 = vmatpush.bf16.msra.mxu0 %v6224
        %9264 = vmatpush.bf16.msra.mxu0 %v6222
        %9265 = vmatpush.bf16.msra.mxu0 %v6220
        %9266 = vmatpush.bf16.msra.mxu0 %v6218
        %9267 = vmatpush.bf16.msra.mxu0 %v6216
        %9268 = vmatpush.bf16.msra.mxu0 %v6214
        %9269 = vmatmul.bf16.gmra.mxu0 %v573
        %v9270 = vpop.f32.mrf.mxu0
        %v9271 = vadd.f32 %v9258, %v9270
        %v9272 = vpop.f32.mrf.mxu0
        %9273 = vdwg.mxu0
        %9274 = vmatpush.bf16.msra.mxu0 %v6244
        %9275 = vmatpush.bf16.msra.mxu0 %v6242
        %9276 = vmatpush.bf16.msra.mxu0 %v6240
        %9277 = vmatpush.bf16.msra.mxu0 %v6238
        %9278 = vmatpush.bf16.msra.mxu0 %v6236
        %9279 = vmatpush.bf16.msra.mxu0 %v6234
        %9280 = vmatpush.bf16.msra.mxu0 %v6232
        %9281 = vmatpush.bf16.msra.mxu0 %v6230
        %9282 = vmatmul.bf16.gmra.mxu0 %v574
        %v9283 = vpop.f32.mrf.mxu0
        %v9284 = vadd.f32 %v9271, %v9283
        %v9285 = vpop.f32.mrf.mxu0
        %9286 = vdwg.mxu0
        %9287 = vmatpush.bf16.msra.mxu0 %v6260
        %9288 = vmatpush.bf16.msra.mxu0 %v6258
        %9289 = vmatpush.bf16.msra.mxu0 %v6256
        %9290 = vmatpush.bf16.msra.mxu0 %v6254
        %9291 = vmatpush.bf16.msra.mxu0 %v6252
        %9292 = vmatpush.bf16.msra.mxu0 %v6250
        %9293 = vmatpush.bf16.msra.mxu0 %v6248
        %9294 = vmatpush.bf16.msra.mxu0 %v6246
        %9295 = vmatmul.bf16.gmra.mxu0 %v575
        %v9296 = vpop.f32.mrf.mxu0
        %v9297 = vadd.f32 %v9284, %v9296
        %v9298 = vpop.f32.mrf.mxu0
        %9299 = vdwg.mxu0
        %9300 = vmatpush.bf16.msra.mxu0 %v6276
        %9301 = vmatpush.bf16.msra.mxu0 %v6274
        %9302 = vmatpush.bf16.msra.mxu0 %v6272
        %9303 = vmatpush.bf16.msra.mxu0 %v6270
        %9304 = vmatpush.bf16.msra.mxu0 %v6268
        %9305 = vmatpush.bf16.msra.mxu0 %v6266
        %9306 = vmatpush.bf16.msra.mxu0 %v6264
        %9307 = vmatpush.bf16.msra.mxu0 %v6262
        %9308 = vmatmul.bf16.gmra.mxu0 %v576
        %v9309 = vpop.f32.mrf.mxu0
        %v9310 = vadd.f32 %v9297, %v9309
        %v9311 = vpop.f32.mrf.mxu0
        %9312 = vdwg.mxu0
        %9313 = vmatpush.bf16.msra.mxu0 %v6292
        %9314 = vmatpush.bf16.msra.mxu0 %v6290
        %9315 = vmatpush.bf16.msra.mxu0 %v6288
        %9316 = vmatpush.bf16.msra.mxu0 %v6286
        %9317 = vmatpush.bf16.msra.mxu0 %v6284
        %9318 = vmatpush.bf16.msra.mxu0 %v6282
        %9319 = vmatpush.bf16.msra.mxu0 %v6280
        %9320 = vmatpush.bf16.msra.mxu0 %v6278
        %9321 = vmatmul.bf16.gmra.mxu0 %v577
        %v9322 = vpop.f32.mrf.mxu0
        %v9323 = vadd.f32 %v9310, %v9322
        %v9324 = vpop.f32.mrf.mxu0
        %9325 = vdwg.mxu0
        %9326 = vmatpush.bf16.msra.mxu0 %v6308
        %9327 = vmatpush.bf16.msra.mxu0 %v6306
        %9328 = vmatpush.bf16.msra.mxu0 %v6304
        %9329 = vmatpush.bf16.msra.mxu0 %v6302
        %9330 = vmatpush.bf16.msra.mxu0 %v6300
        %9331 = vmatpush.bf16.msra.mxu0 %v6298
        %9332 = vmatpush.bf16.msra.mxu0 %v6296
        %9333 = vmatpush.bf16.msra.mxu0 %v6294
        %9334 = vmatmul.bf16.gmra.mxu0 %v578
        %v9335 = vpop.f32.mrf.mxu0
        %v9336 = vadd.f32 %v9323, %v9335
        %v9337 = vpop.f32.mrf.mxu0
        %9338 = vdwg.mxu0
        %9339 = vmatpush.bf16.msra.mxu0 %v6324
        %9340 = vmatpush.bf16.msra.mxu0 %v6322
        %9341 = vmatpush.bf16.msra.mxu0 %v6320
        %9342 = vmatpush.bf16.msra.mxu0 %v6318
        %9343 = vmatpush.bf16.msra.mxu0 %v6316
        %9344 = vmatpush.bf16.msra.mxu0 %v6314
        %9345 = vmatpush.bf16.msra.mxu0 %v6312
        %9346 = vmatpush.bf16.msra.mxu0 %v6310
        %9347 = vmatmul.bf16.gmra.mxu0 %v579
        %v9348 = vpop.f32.mrf.mxu0
        %v9349 = vadd.f32 %v9336, %v9348
        %v9350 = vpop.f32.mrf.mxu0
        %9351 = vdwg.mxu0
        %9352 = vmatpush.bf16.msra.mxu0 %v6340
        %9353 = vmatpush.bf16.msra.mxu0 %v6338
        %9354 = vmatpush.bf16.msra.mxu0 %v6336
        %9355 = vmatpush.bf16.msra.mxu0 %v6334
        %9356 = vmatpush.bf16.msra.mxu0 %v6332
        %9357 = vmatpush.bf16.msra.mxu0 %v6330
        %9358 = vmatpush.bf16.msra.mxu0 %v6328
        %9359 = vmatpush.bf16.msra.mxu0 %v6326
        %9360 = vmatmul.bf16.gmra.mxu0 %v580
        %v9361 = vpop.f32.mrf.mxu0
        %v9362 = vadd.f32 %v9349, %v9361
        %v9363 = vpop.f32.mrf.mxu0
        %9364 = vdwg.mxu0
        %v9367 = vrot.slane %v9362, 6
        %vm9368 = vcmask 1041408
        %v9369 = vsel %vm9368, %v8426, %v9367
        %v9371 = vadd.f32 %v309, %v9369
        %9372 = vst [vmem:[#allocation2] sm:$0xf] %v9371
        %p9373 = scmp.eq.s32.totalorder %s24, 1
        // Predicated region
        $region49: #{facial_expression_cnn_forward.3} parent=35 // pred_check
          %p9374 = pneg %p9373
        $region50: #{facial_expression_cnn_forward.3} parent=35 // pred_check_branch
          %9376 = sbr.rel (%p9374) target = $region52
        $region51: #{facial_expression_cnn_forward.3} parent=35 // pred_region
          %v9377 = vld [vmem:[#allocation2] sm:$0xf]
          %v9378 = vld [vmem:[#allocation5] sm:$0x3]
          %v9380 = vperm.slane %v9378, 0
          %v9381 = vperm.slane %v9378, 1
          %v9382 = vrot.slane %v9381, 6
          %v9383 = vsel %vm9368, %v9380, %v9382
          %v9385 = vadd.f32 %v9377, %v9383
          %v9386 = vmax.f32 %v9385, 0.0
          %v9387 = vld [vmem:[%s298] sm:$0xff]
          %v9388 = vld [vmem:[%s298 + $0x8] sm:$0xff]
          %v9389 = vld [vmem:[%s298 + $0x10] sm:$0xff]
          %v9390 = vld [vmem:[%s298 + $0x18] sm:$0xff]
          %v9391 = vld [vmem:[%s298 + $0x20] sm:$0xff]
          %v9392 = vld [vmem:[%s298 + $0x28] sm:$0xff]
          %v9393 = vld [vmem:[%s298 + $0x30] sm:$0xff]
          %v9394 = vld [vmem:[%s298 + $0x38] sm:$0xff]
          %v9395 = vld [vmem:[%s298 + $0x40] sm:$0xff]
          %v9396 = vld [vmem:[%s298 + $0x48] sm:$0xff]
          %v9397 = vld [vmem:[%s298 + $0x50] sm:$0xff]
          %v9398 = vld [vmem:[%s298 + $0x58] sm:$0xff]
          %v9399 = vld [vmem:[%s298 + $0x60] sm:$0xff]
          %v9400 = vld [vmem:[%s298 + $0x68] sm:$0xff]
          %v9401 = vld [vmem:[%s298 + $0x70] sm:$0xff]
          %v9402 = vld [vmem:[%s298 + $0x78] sm:$0xff]
          %v9403 = vld [vmem:[%s298 + $0x80] sm:$0xff]
          %v9404 = vld [vmem:[%s298 + $0x88] sm:$0xff]
          %v9405 = vld [vmem:[%s298 + $0x90] sm:$0xff]
          %v9406 = vld [vmem:[%s298 + $0x98] sm:$0xff]
          %v9407 = vld [vmem:[%s298 + $0xa0] sm:$0xff]
          %v9408 = vld [vmem:[%s298 + $0xa8] sm:$0xff]
          %v9409 = vld [vmem:[%s298 + $0xb0] sm:$0xff]
          %v9410 = vld [vmem:[%s298 + $0xb8] sm:$0xff]
          %v9411 = vld [vmem:[%s298 + $0xc0] sm:$0xff]
          %v9412 = vld [vmem:[%s298 + $0xc8] sm:$0xff]
          %v9413 = vld [vmem:[%s298 + $0xd0] sm:$0xff]
          %v9414 = vld [vmem:[%s298 + $0xd8] sm:$0xff]
          %v9415 = vld [vmem:[%s298 + $0xe0] sm:$0xff]
          %v9416 = vld [vmem:[%s298 + $0xe8] sm:$0xff]
          %v9417 = vld [vmem:[%s298 + $0xf0] sm:$0xff]
          %v9418 = vld [vmem:[%s298 + $0xf8] sm:$0xff]
          %9420 = vst [vmem:[#allocation1] ss:$4 sm:$0xff] %v9386
          %v9421 = vld.sshfl [vmem:[#allocation1] sm:$0xff pattern:$0x73625140]
          %v9422 = vld.sshfl [vmem:[#allocation1 + $0x8] sm:$0xff pattern:$0x73625140]
          %9425 = vmatpush.msra.mxu0 %v9402
          %9426 = vmatpush.msra.mxu0 %v9401
          %9427 = vmatpush.msra.mxu0 %v9400
          %9428 = vmatpush.msra.mxu0 %v9399
          %9429 = vmatpush.msra.mxu0 %v9398
          %9430 = vmatpush.msra.mxu0 %v9397
          %9431 = vmatpush.msra.mxu0 %v9396
          %9432 = vmatpush.msra.mxu0 %v9395
          %9433 = vmatpush.msra.mxu0 %v9394
          %9434 = vmatpush.msra.mxu0 %v9393
          %9435 = vmatpush.msra.mxu0 %v9392
          %9436 = vmatpush.msra.mxu0 %v9391
          %9437 = vmatpush.msra.mxu0 %v9390
          %9438 = vmatpush.msra.mxu0 %v9389
          %9439 = vmatpush.msra.mxu0 %v9388
          %9440 = vmatpush.msra.mxu0 %v9387
          %9441 = vmatmul.f32.gmra.mxu0 %v9421
          %v9442 = vpop.f32.mrf.mxu0
          %v9443 = vadd.f32 0.0, %v9442
          %9444 = vdwg.mxu0
          %9445 = vmatpush.msra.mxu0 %v9418
          %9446 = vmatpush.msra.mxu0 %v9417
          %9447 = vmatpush.msra.mxu0 %v9416
          %9448 = vmatpush.msra.mxu0 %v9415
          %9449 = vmatpush.msra.mxu0 %v9414
          %9450 = vmatpush.msra.mxu0 %v9413
          %9451 = vmatpush.msra.mxu0 %v9412
          %9452 = vmatpush.msra.mxu0 %v9411
          %9453 = vmatpush.msra.mxu0 %v9410
          %9454 = vmatpush.msra.mxu0 %v9409
          %9455 = vmatpush.msra.mxu0 %v9408
          %9456 = vmatpush.msra.mxu0 %v9407
          %9457 = vmatpush.msra.mxu0 %v9406
          %9458 = vmatpush.msra.mxu0 %v9405
          %9459 = vmatpush.msra.mxu0 %v9404
          %9460 = vmatpush.msra.mxu0 %v9403
          %9461 = vmatmul.f32.gmra.mxu0 %v9422
          %v9462 = vpop.f32.mrf.mxu0
          %v9463 = vadd.f32 %v9443, %v9462
          %9464 = vdwg.mxu0
          %vm9465 = vcmask 25600
          %9466 = vst.msk [vmem:[%s303] sm:$0x3] %vm9465, %v9463
        $region52: #{facial_expression_cnn_forward.3} parent=35 // pred_fallthru
          _
        %p9467 = scmp.lt.s32.totalorder %s23, 0
        %s9468 = scalar_select %p9467, %s23, 0
        %s9469 = smul.addr %s9468, 2
        %s9470 = scalar_lea.vmem %s4, %s9469
        // Predicated region
        $region53: #{facial_expression_cnn_forward.3} parent=35 // pred_check
          %p9471 = pneg %p155
        $region54: #{facial_expression_cnn_forward.3} parent=35 // pred_check_branch
          %9473 = sbr.rel (%p9471) target = $region56
        $region55: #{facial_expression_cnn_forward.3} parent=35 // pred_region
          _
        $region56: #{facial_expression_cnn_forward.3} parent=35 // pred_fallthru
          _
        // Predicated region
        $region57: #{facial_expression_cnn_forward.3} parent=35 // pred_check
          %p9474 = pneg %p155
        $region58: #{facial_expression_cnn_forward.3} parent=35 // pred_check_branch
          %9476 = sbr.rel (%p9474) target = $region60
        $region59: #{facial_expression_cnn_forward.3} parent=35 // pred_region
          %p9477 = scmp.lt.s32.totalorder %s23, 0
          %s9478 = scalar_select %p9477, %s23, 0
          %s9479 = smul.addr %s9478, 2
          %s9480 = scalar_lea.vmem %s4, %s9479
        $region60: #{facial_expression_cnn_forward.3} parent=35 // pred_fallthru
          _
      $region36: #{facial_expression_cnn_forward.3} parent=5 // pred_fallthru
        _
      %p9481 = scmp.le.s32.totalorder 2, %s14
      // Predicated region
      $region61: #{facial_expression_cnn_forward.3} parent=5 // pred_check
        %p9482 = pneg %p9481
      $region62: #{facial_expression_cnn_forward.3} parent=5 // pred_check_branch
        %9484 = sbr.rel (%p9482) target = $region64
      $region63: #{facial_expression_cnn_forward.3} parent=5 // pred_region
        %s9485 = ssub.s32 %s14, 2
      $region64: #{facial_expression_cnn_forward.3} parent=5 // pred_fallthru
        _
    $region6: #{facial_expression_cnn_forward.3} parent=1 // loop_footer
      %s18 = sadd.s32 1, %s14
    $region7: #{facial_expression_cnn_forward.3} parent=1 // loop_footer_branch
      %13 = sbr.rel target = $region3
    $region8: #{facial_expression_cnn_forward.3} parent=1 // loop_exit
      _
    %9486 = vsyncpa [#allocation4], 1
    %s9487 = scalar_lea.sflag [#allocation4], 1
    %9488 = vsyncpa %s9487, 1
    %9489 = vsyncpa [#allocation6], 1

</llo_original>
